<compile_context>
chip_gen: v6e
topology: v6e:2x2x1
jax: 0.10.0
libtpu: 0.0.40
codegen_flags: <defaults>
</compile_context>

<pallas_src>
import math
import numpy as np
import jax
import jax.numpy as jnp
from jax import lax
from jax.experimental import pallas as pl
from jax.experimental.pallas import tpu as pltpu

# ----------------------- model hyper-parameters -----------------------
D_MODEL = 112
D_PAD = 128                              # lane-padded feature dim
N_HEADS = 28
HEAD_DIM = D_MODEL // N_HEADS            # 4
NUM_TRANSFORMERS = 2
NUM_LABELS = 5
EMBED_DIM = 256                          # bert-mini hidden size (stand-in)
VOCAB = 64
GRID_SIZE = 5
SPLINE_ORDER = 3
N_BASES = GRID_SIZE + SPLINE_ORDER       # 8
LN_EPS = 1e-5

_H = 2.0 / GRID_SIZE
# KAN knot grid: arange(-spline_order, grid_size+spline_order+1)*h + grid_range[0]
KAN_GRID = [float(v * _H - 1.0) for v in range(-SPLINE_ORDER, GRID_SIZE + SPLINE_ORDER + 1)]


def bspline_bases(x):
    """Cox-de Boor recursion (elementwise). x: (N, D). Returns list of N_BASES (N, D)."""
    g = KAN_GRID
    bases = [((x >= g[j]) & (x < g[j + 1])).astype(jnp.float32) for j in range(len(g) - 1)]
    for k in range(1, SPLINE_ORDER + 1):
        bases = [
            (x - g[j]) / (g[j + k] - g[j]) * bases[j]
            + (g[j + k + 1] - x) / (g[j + k + 1] - g[j + 1]) * bases[j + 1]
            for j in range(len(bases) - 1)
        ]
    assert len(bases) == N_BASES
    return bases


# ----------------------------- fused Pallas kernel -----------------------------
def _fused_forward_kernel(ids_ref, table_ref, red_wT_ref, red_b_ref,
                          qkv_wT_ref, qkv_b_ref, o_wT_ref, o_b_ref,
                          ln_g_ref, ln_b_ref,
                          kan_base_wT_ref, kan_spline_wT_ref,
                          cls_wT_ref, cls_b_ref,
                          r_sel_ref, r_selT_ref, head_mask_ref, lane_valid_ref,
                          pool_ref, out_ref):
    f32 = jnp.float32
    S = r_sel_ref.shape[1]               # sequence length
    TB = pool_ref.shape[0]               # batch elements processed this grid step
    R = TB * S                           # row slab height

    # Host-precomputed constants (fetched once; constant block index).
    lane_valid = lane_valid_ref[...]     # (1, D_PAD)   1 for real lanes, 0 for pad
    head_mask = head_mask_ref[...]       # (HS, D_PAD)  [m//S == head(c)]
    r_sel = r_sel_ref[...]               # (HS, S)      [m % S == i]
    r_selT = r_selT_ref[...]             # (S, HS)      transpose of r_sel

    def layernorm(y, gamma, beta):
        # y is zero in padded lanes; statistics over the 112 real lanes only.
        mu = jnp.sum(y, axis=-1, keepdims=True) * (1.0 / D_MODEL)
        yc = (y - mu) * lane_valid
        var = jnp.sum(yc * yc, axis=-1, keepdims=True) * (1.0 / D_MODEL)
        return yc * lax.rsqrt(var + LN_EPS) * gamma + beta   # gamma/beta zero-padded

    # ---------- fused embedding lookup (one-hot @ table) + E->d reduction ----------
    ids = ids_ref[0]                                                     # (R, 1) int32
    onehot = (ids == lax.broadcasted_iota(jnp.int32, (R, VOCAB), 1)).astype(f32)
    emb = jnp.dot(onehot, table_ref[...], preferred_element_type=f32)    # (R, EMBED_DIM)
    x = jnp.dot(emb, red_wT_ref[...], preferred_element_type=f32) + red_b_ref[...]  # (R, D_PAD)

    # ---------- transformer layers (statically unrolled) ----------
    for l in range(NUM_TRANSFORMERS):
        # Fused QKV: one (R,128)@(128,384) matmul; Q already carries 1/sqrt(head_dim).
        qkv = jnp.dot(x, qkv_wT_ref[l], preferred_element_type=f32) + qkv_b_ref[l]
        q = qkv[:, :D_PAD]
        k = qkv[:, D_PAD:2 * D_PAD]
        v = qkv[:, 2 * D_PAD:]

        # Attention per batch element (static loop, TB small). Scores live in
        # (heads*S, S) layout so softmax max/sum are exact per-(head, query)
        # row reductions -- no group_mat matmul, no approx reciprocal.
        ctx_rows = []
        for b in range(TB):
            qb = q[b * S:(b + 1) * S]
            kb = k[b * S:(b + 1) * S]
            vb = v[b * S:(b + 1) * S]
            # qtilde[h*S+i, c] = q[i, c] * [head(c) == h]
            qtilde = jnp.dot(r_sel, qb, preferred_element_type=f32) * head_mask     # (HS, D_PAD)
            # s[h*S+i, j] = sum_{c in head h} q[i,c] * k[j,c]   (already scaled)
            s = lax.dot_general(qtilde, kb, (((1,), (1,)), ((), ())),
                                preferred_element_type=f32)                          # (HS, S)
            s = s - jnp.max(s, axis=-1, keepdims=True)        # exact per-head max
            e = jnp.exp(s)
            p = e / jnp.sum(e, axis=-1, keepdims=True)        # denom >= 1, exact divide
            # ctx_all[h*S+i, c] = sum_j p[h,i,j] * v[j, c]; gather head(c)'s block back
            ctx_all = jnp.dot(p, vb, preferred_element_type=f32) * head_mask         # (HS, D_PAD)
            ctx_rows.append(jnp.dot(r_selT, ctx_all, preferred_element_type=f32))    # (S, D_PAD)
        ctx = ctx_rows[0] if TB == 1 else jnp.concatenate(ctx_rows, axis=0)          # (R, D_PAD)

        attn = jnp.dot(ctx, o_wT_ref[l], preferred_element_type=f32) + o_b_ref[l]
        x = layernorm(x + attn, ln_g_ref[l, 0], ln_b_ref[l, 0])                      # norm1(src+attn)

        # KANLinear: silu branch + single wide spline matmul over stacked bases.
        silu = x * jax.nn.sigmoid(x)
        kan = jnp.dot(silu, kan_base_wT_ref[l], preferred_element_type=f32)
        basis_cat = jnp.concatenate(bspline_bases(x), axis=-1)                       # (R, 8*D_PAD)
        kan = kan + jnp.dot(basis_cat, kan_spline_wT_ref[l], preferred_element_type=f32)
        x = layernorm(x + kan, ln_g_ref[l, 1], ln_b_ref[l, 1])                       # norm2(src+kan)

    # ---------- mean pool (block-diag selector) + lane-dense classifier ----------
    feats = jnp.dot(pool_ref[...], x, preferred_element_type=f32)                    # (TB, D_PAD)
    out_ref[0] = jnp.dot(feats, cls_wT_ref[...], preferred_element_type=f32) + cls_b_ref[...]


def forward_fused(fparams, input_ids, grid_steps=None):
    B, S = input_ids.shape
    if grid_steps is None:
        grid_steps = 2 if B >= 2 else 1    # keep both v7x TensorCores busy; cheap on v5e/v6e
    G = int(grid_steps)
    TB = -(-B // G)                        # batch elements per grid step
    Bp = G * TB
    ids = input_ids.astype(jnp.int32)
    if Bp != B:
        ids = jnp.concatenate([ids, jnp.zeros((Bp - B, S), jnp.int32)], axis=0)
    ids3 = ids.reshape(G, TB * S, 1)

    # Host-side selector / mask constants (compile-time numpy constants).
    HS = N_HEADS * S
    m = np.arange(HS)
    r_sel = (m[:, None] % S == np.arange(S)[None, :]).astype(np.float32)           # (HS, S)
    r_selT = np.ascontiguousarray(r_sel.T)                                          # (S, HS)
    head_mask = ((m[:, None] // S) ==
                 (np.arange(D_PAD)[None, :] // HEAD_DIM)).astype(np.float32)        # (HS, D_PAD)
    lane_valid = (np.arange(D_PAD) < D_MODEL).astype(np.float32)[None, :]           # (1, D_PAD)
    pool_mat = np.kron(np.eye(TB, dtype=np.float32),
                       np.full((1, S), 1.0 / S, np.float32))                        # (TB, TB*S)

    L = NUM_TRANSFORMERS
    c2 = lambda g: (0, 0)
    c3 = lambda g: (0, 0, 0)
    c4 = lambda g: (0, 0, 0, 0)
    out = pl.pallas_call(
        _fused_forward_kernel,
        out_shape=jax.ShapeDtypeStruct((G, TB, D_PAD), jnp.float32),
        grid=(G,),
        in_specs=[
            pl.BlockSpec((1, TB * S, 1), lambda g: (g, 0, 0)),         # ids
            pl.BlockSpec((VOCAB, EMBED_DIM), c2),                      # embed_table
            pl.BlockSpec((EMBED_DIM, D_PAD), c2),                      # red_wT
            pl.BlockSpec((1, D_PAD), c2),                              # red_b
            pl.BlockSpec((L, D_PAD, 3 * D_PAD), c3),                   # qkv_wT (fused)
            pl.BlockSpec((L, 1, 3 * D_PAD), c3),                       # qkv_b  (fused)
            pl.BlockSpec((L, D_PAD, D_PAD), c3),                       # o_wT
            pl.BlockSpec((L, 1, D_PAD), c3),                           # o_b
            pl.BlockSpec((L, 2, 1, D_PAD), c4),                        # ln_g
            pl.BlockSpec((L, 2, 1, D_PAD), c4),                        # ln_b
            pl.BlockSpec((L, D_PAD, D_PAD), c3),                       # kan_base_wT
            pl.BlockSpec((L, N_BASES * D_PAD, D_PAD), c3),             # kan_spline_wT
            pl.BlockSpec((D_PAD, D_PAD), c2),                          # cls_wT (lane-padded)
            pl.BlockSpec((1, D_PAD), c2),                              # cls_b
            pl.BlockSpec((HS, S), c2),                                 # r_sel
            pl.BlockSpec((S, HS), c2),                                 # r_selT
            pl.BlockSpec((HS, D_PAD), c2),                             # head_mask
            pl.BlockSpec((1, D_PAD), c2),                              # lane_valid
            pl.BlockSpec((TB, TB * S), c2),                            # pool_mat
        ],
        out_specs=pl.BlockSpec((1, TB, D_PAD), lambda g: (g, 0, 0)),
        compiler_params=pltpu.CompilerParams(
            dimension_semantics=("parallel",)),                        # megacore on v7x
    )(ids3, fparams["embed_table"], fparams["red_wT"], fparams["red_b"],
      fparams["qkv_wT"], fparams["qkv_b"], fparams["o_wT"], fparams["o_b"],
      fparams["ln_g"], fparams["ln_b"], fparams["kan_base_wT"], fparams["kan_spline_wT"],
      fparams["cls_wT"], fparams["cls_b"],
      r_sel, r_selT, head_mask, lane_valid, pool_mat)
    return out.reshape(Bp, D_PAD)[:B, :NUM_LABELS]


@jax.jit
def forward(fparams, input_ids, attention_mask=None):
    # Mask is applied post-softmax to `scores` only in the PyTorch module -> no effect.
    del attention_mask
    # TODO(synk): the real module runs a full pretrained BertModel to produce
    # last_hidden_state; replaced by a deterministic token-embedding lookup (fused in-kernel).
    return forward_fused(fparams, input_ids)


# ----------------------------- parameter preparation -----------------------------
def _pad_to(x, shape):
    return jnp.pad(x, [(0, t - s) for s, t in zip(x.shape, shape)])


def prepare_fused_params(params):
    """Canonical params -> padded / fused / pre-scaled arrays for the fused kernel."""
    scale = 1.0 / math.sqrt(HEAD_DIM)
    qkv_wT, qkv_b, o_wT, o_b, ln_g, ln_b, base_wT, spline_wT = ([] for _ in range(8))
    for layer in params["layers"]:
        qw = _pad_to(layer["q_wT"] * scale, (D_PAD, D_PAD))     # fold 1/sqrt(hd) into Q
        kw = _pad_to(layer["k_wT"], (D_PAD, D_PAD))
        vw = _pad_to(layer["v_wT"], (D_PAD, D_PAD))
        qkv_wT.append(jnp.concatenate([qw, kw, vw], axis=1))                 # (128, 384)
        qb = _pad_to(layer["q_b"] * scale, (D_PAD,))
        kb = _pad_to(layer["k_b"], (D_PAD,))
        vb = _pad_to(layer["v_b"], (D_PAD,))
        qkv_b.append(jnp.concatenate([qb, kb, vb]).reshape(1, 3 * D_PAD))
        o_wT.append(_pad_to(layer["o_wT"], (D_PAD, D_PAD)))
        o_b.append(_pad_to(layer["o_b"], (D_PAD,)).reshape(1, D_PAD))
        ln_g.append(jnp.stack([_pad_to(layer["ln1_g"], (D_PAD,)),
                               _pad_to(layer["ln2_g"], (D_PAD,))]).reshape(2, 1, D_PAD))
        ln_b.append(jnp.stack([_pad_to(layer["ln1_b"], (D_PAD,)),
                               _pad_to(layer["ln2_b"], (D_PAD,))]).reshape(2, 1, D_PAD))
        base_wT.append(_pad_to(layer["kan_base_wT"], (D_PAD, D_PAD)))
        # (s, in, out) -> pad -> flatten to (s*D_PAD, D_PAD); rows for padded inputs are 0.
        sw = _pad_to(layer["kan_spline_wT"], (N_BASES, D_PAD, D_PAD))
        spline_wT.append(sw.reshape(N_BASES * D_PAD, D_PAD))
    return {
        "embed_table": params["embed_table"],
        "red_wT": _pad_to(params["red_wT"], (EMBED_DIM, D_PAD)),
        "red_b": _pad_to(params["red_b"], (D_PAD,)).reshape(1, D_PAD),
        "qkv_wT": jnp.stack(qkv_wT), "qkv_b": jnp.stack(qkv_b),
        "o_wT": jnp.stack(o_wT), "o_b": jnp.stack(o_b),
        "ln_g": jnp.stack(ln_g), "ln_b": jnp.stack(ln_b),
        "kan_base_wT": jnp.stack(base_wT),
        "kan_spline_wT": jnp.stack(spline_wT),
        "cls_wT": _pad_to(params["cls_wT"], (D_PAD, D_PAD)),           # lane-dense output
        "cls_b": _pad_to(params["cls_b"], (D_PAD,)).reshape(1, D_PAD),
    }


# ----------------------------- pure-JAX reference -----------------------------
def _ref_layernorm(y, g, b):
    mu = jnp.mean(y, axis=-1, keepdims=True)
    yc = y - mu
    var = jnp.mean(yc * yc, axis=-1, keepdims=True)
    return yc * jax.lax.rsqrt(var + LN_EPS) * g + b


def forward_ref(params, input_ids):
    B, S = input_ids.shape
    emb = params["embed_table"][input_ids]
    x = emb @ params["red_wT"] + params["red_b"]
    for layer in params["layers"]:
        q = x @ layer["q_wT"] + layer["q_b"]
        k = x @ layer["k_wT"] + layer["k_b"]
        v = x @ layer["v_wT"] + layer["v_b"]

        def heads(t):
            return t.reshape(B, S, N_HEADS, HEAD_DIM).transpose(0, 2, 1, 3)
        qh, kh, vh = heads(q), heads(k), heads(v)
        scores = jnp.einsum("bhqd,bhkd->bhqk", qh / math.sqrt(HEAD_DIM), kh)
        w = jax.nn.softmax(scores, axis=-1)
        ctx = jnp.einsum("bhqk,bhkd->bhqd", w, vh).transpose(0, 2, 1, 3).reshape(B, S, D_MODEL)
        attn = ctx @ layer["o_wT"] + layer["o_b"]
        x = _ref_layernorm(x + attn, layer["ln1_g"], layer["ln1_b"])
        x2 = x.reshape(B * S, D_MODEL)
        base = (x2 * jax.nn.sigmoid(x2)) @ layer["kan_base_wT"]
        bases = bspline_bases(x2)
        spl = sum(bases[s] @ layer["kan_spline_wT"][s] for s in range(N_BASES))
        kan = (base + spl).reshape(B, S, D_MODEL)
        x = _ref_layernorm(x + kan, layer["ln2_g"], layer["ln2_b"])
    feats = x.mean(axis=1)
    return feats @ params["cls_wT"] + params["cls_b"]


# ----------------------------- parameter init -----------------------------
def init_params(key):
    def nrm(k, shape, scale=0.05):
        return scale * jax.random.normal(k, shape, dtype=jnp.float32)

    keys = iter(jax.random.split(key, 64))
    params = {
        "embed_table": nrm(next(keys), (VOCAB, EMBED_DIM), 1.0),
        "red_wT": nrm(next(keys), (EMBED_DIM, D_MODEL)),
        "red_b": nrm(next(keys), (D_MODEL,)),
    }
    layers = []
    for _ in range(NUM_TRANSFORMERS):
        layer = {}
        for name in ("q", "k", "v", "o"):
            layer[name + "_wT"] = nrm(next(keys), (D_MODEL, D_MODEL))
            layer[name + "_b"] = nrm(next(keys), (D_MODEL,))
        layer["ln1_g"] = jnp.ones((D_MODEL,), jnp.float32)
        layer["ln1_b"] = jnp.zeros((D_MODEL,), jnp.float32)
        layer["ln2_g"] = jnp.ones((D_MODEL,), jnp.float32)
        layer["ln2_b"] = jnp.zeros((D_MODEL,), jnp.float32)
        layer["kan_base_wT"] = nrm(next(keys), (D_MODEL, D_MODEL))
        spline_w = nrm(next(keys), (D_MODEL, D_MODEL, N_BASES))       # (out, in, s)
        spline_scaler = nrm(next(keys), (D_MODEL, D_MODEL))           # (out, in)
        scaled = spline_w * spline_scaler[:, :, None]                 # scaled_spline_weight
        layer["kan_spline_wT"] = jnp.transpose(scaled, (2, 1, 0))     # (s, in, out)
        layers.append(layer)
    params["layers"] = layers
    params["cls_wT"] = nrm(next(keys), (D_MODEL, NUM_LABELS))
    params["cls_b"] = nrm(next(keys), (NUM_LABELS,))
    return params


# ----------------------------- main -----------------------------
if __name__ == "__main__":
    key = jax.random.PRNGKey(0)
    kp, kin = jax.random.split(key)
    params = init_params(kp)
    fparams = prepare_fused_params(params)

    # Test 1: B=2 (grid=2, 1 sequence per step).  Test 2: B=8 (grid=2, 4 per step:
    # exercises the batched-rows / block-diagonal pooling path).
    for B, S in ((2, 8), (8, 8)):
        input_ids = jax.random.randint(jax.random.fold_in(kin, B), (B, S), 0, VOCAB)
        attention_mask = jnp.ones((B, S), dtype=jnp.int32)  # no effect (post-softmax in spec)

        logits = forward(fparams, input_ids, attention_mask)
        logits = jax.block_until_ready(logits)
        assert logits.shape == (B, NUM_LABELS) and logits.dtype == jnp.float32

        ref = forward_ref(params, input_ids)
        if not np.allclose(np.asarray(logits), np.asarray(ref), rtol=2e-3, atol=2e-3):
            raise AssertionError(
                f"mismatch vs reference (B={B}), max abs err = "
                f"{np.max(np.abs(np.asarray(logits) - np.asarray(ref)))}")

    print("KERNEL_OK")
</pallas_src>

<mosaic_0001>
module attributes {stable_mosaic.version = 11 : i64} {
  func.func @_fused_forward_kernel(%arg0: i32, %arg1: memref<1x8x1xi32, #tpu.memory_space<vmem>>, %arg2: memref<64x256xf32, #tpu.memory_space<vmem>>, %arg3: memref<256x128xf32, #tpu.memory_space<vmem>>, %arg4: memref<1x128xf32, #tpu.memory_space<vmem>>, %arg5: memref<2x128x384xf32, #tpu.memory_space<vmem>>, %arg6: memref<2x1x384xf32, #tpu.memory_space<vmem>>, %arg7: memref<2x128x128xf32, #tpu.memory_space<vmem>>, %arg8: memref<2x1x128xf32, #tpu.memory_space<vmem>>, %arg9: memref<2x2x1x128xf32, #tpu.memory_space<vmem>>, %arg10: memref<2x2x1x128xf32, #tpu.memory_space<vmem>>, %arg11: memref<2x128x128xf32, #tpu.memory_space<vmem>>, %arg12: memref<2x1024x128xf32, #tpu.memory_space<vmem>>, %arg13: memref<128x128xf32, #tpu.memory_space<vmem>>, %arg14: memref<1x128xf32, #tpu.memory_space<vmem>>, %arg15: memref<224x8xf32, #tpu.memory_space<vmem>>, %arg16: memref<8x224xf32, #tpu.memory_space<vmem>>, %arg17: memref<224x128xf32, #tpu.memory_space<vmem>>, %arg18: memref<1x128xf32, #tpu.memory_space<vmem>>, %arg19: memref<1x8xf32, #tpu.memory_space<vmem>>, %arg20: memref<1x1x128xf32, #tpu.memory_space<vmem>>) attributes {dimension_semantics = [#tpu.dimension_semantics<parallel>], iteration_bounds = array<i64: 2>, scalar_prefetch = 0 : i64, scratch_operands = 0 : i64, tpu.core_type = #tpu.core_type<tc>, window_params = [{transform_indices = @transform_0, window_bounds = array<i64: 1, 8, 1>}, {pipeline_mode = #tpu.pipeline_mode<synchronous>, transform_indices = @transform_1, window_bounds = array<i64: 64, 256>}, {pipeline_mode = #tpu.pipeline_mode<synchronous>, transform_indices = @transform_2, window_bounds = array<i64: 256, 128>}, {pipeline_mode = #tpu.pipeline_mode<synchronous>, transform_indices = @transform_3, window_bounds = array<i64: 1, 128>}, {pipeline_mode = #tpu.pipeline_mode<synchronous>, transform_indices = @transform_4, window_bounds = array<i64: 2, 128, 384>}, {pipeline_mode = #tpu.pipeline_mode<synchronous>, transform_indices = @transform_5, window_bounds = array<i64: 2, 1, 384>}, {pipeline_mode = #tpu.pipeline_mode<synchronous>, transform_indices = @transform_6, window_bounds = array<i64: 2, 128, 128>}, {pipeline_mode = #tpu.pipeline_mode<synchronous>, transform_indices = @transform_7, window_bounds = array<i64: 2, 1, 128>}, {pipeline_mode = #tpu.pipeline_mode<synchronous>, transform_indices = @transform_8, window_bounds = array<i64: 2, 2, 1, 128>}, {pipeline_mode = #tpu.pipeline_mode<synchronous>, transform_indices = @transform_9, window_bounds = array<i64: 2, 2, 1, 128>}, {pipeline_mode = #tpu.pipeline_mode<synchronous>, transform_indices = @transform_10, window_bounds = array<i64: 2, 128, 128>}, {pipeline_mode = #tpu.pipeline_mode<synchronous>, transform_indices = @transform_11, window_bounds = array<i64: 2, 1024, 128>}, {pipeline_mode = #tpu.pipeline_mode<synchronous>, transform_indices = @transform_12, window_bounds = array<i64: 128, 128>}, {pipeline_mode = #tpu.pipeline_mode<synchronous>, transform_indices = @transform_13, window_bounds = array<i64: 1, 128>}, {pipeline_mode = #tpu.pipeline_mode<synchronous>, transform_indices = @transform_14, window_bounds = array<i64: 224, 8>}, {pipeline_mode = #tpu.pipeline_mode<synchronous>, transform_indices = @transform_15, window_bounds = array<i64: 8, 224>}, {pipeline_mode = #tpu.pipeline_mode<synchronous>, transform_indices = @transform_16, window_bounds = array<i64: 224, 128>}, {pipeline_mode = #tpu.pipeline_mode<synchronous>, transform_indices = @transform_17, window_bounds = array<i64: 1, 128>}, {pipeline_mode = #tpu.pipeline_mode<synchronous>, transform_indices = @transform_18, window_bounds = array<i64: 1, 8>}, {transform_indices = @transform_19, window_bounds = array<i64: 1, 1, 128>}]} {
    %c0 = arith.constant 0 : index
    %c0_0 = arith.constant 0 : index
    %0 = vector.load %arg18[%c0, %c0_0] : memref<1x128xf32, #tpu.memory_space<vmem>>, vector<1x128xf32>
    %c0_1 = arith.constant 0 : index
    %c0_2 = arith.constant 0 : index
    %1 = vector.load %arg17[%c0_1, %c0_2] : memref<224x128xf32, #tpu.memory_space<vmem>>, vector<224x128xf32>
    %c0_3 = arith.constant 0 : index
    %c0_4 = arith.constant 0 : index
    %2 = vector.load %arg15[%c0_3, %c0_4] : memref<224x8xf32, #tpu.memory_space<vmem>>, vector<224x8xf32>
    %c0_5 = arith.constant 0 : index
    %c0_6 = arith.constant 0 : index
    %3 = vector.load %arg16[%c0_5, %c0_6] : memref<8x224xf32, #tpu.memory_space<vmem>>, vector<8x224xf32>
    %c0_7 = arith.constant 0 : index
    %c0_8 = arith.constant 0 : index
    %c0_9 = arith.constant 0 : index
    %4 = vector.load %arg1[%c0_7, %c0_8, %c0_9] : memref<1x8x1xi32, #tpu.memory_space<vmem>>, vector<1x8x1xi32>
    %5 = vector.shape_cast %4 : vector<1x8x1xi32> to vector<8x1xi32>
    %6 = tpu.iota {dimensions = array<i32: 1>} : vector<8x64xi32>
    %7 = vector.broadcast %5 : vector<8x1xi32> to vector<8x64xi32>
    %8 = arith.cmpi eq, %7, %6 : vector<8x64xi32>
    %9 = arith.extui %8 : vector<8x64xi1> to vector<8x64xi32>
    %10 = arith.sitofp %9 : vector<8x64xi32> to vector<8x64xf32>
    %c0_10 = arith.constant 0 : index
    %c0_11 = arith.constant 0 : index
    %11 = vector.load %arg2[%c0_10, %c0_11] : memref<64x256xf32, #tpu.memory_space<vmem>>, vector<64x256xf32>
    %cst = arith.constant dense<0.000000e+00> : vector<8x256xf32>
    %12 = tpu.matmul %10, %11, %cst {dimension_numbers = #tpu.dot_dimension_numbers<[1], [0], [0], [1], [0, 0, 1, 1], [], []>} : vector<8x64xf32>, vector<64x256xf32>, vector<8x256xf32> -> vector<8x256xf32>
    %c0_12 = arith.constant 0 : index
    %c0_13 = arith.constant 0 : index
    %13 = vector.load %arg3[%c0_12, %c0_13] : memref<256x128xf32, #tpu.memory_space<vmem>>, vector<256x128xf32>
    %cst_14 = arith.constant dense<0.000000e+00> : vector<8x128xf32>
    %14 = tpu.matmul %12, %13, %cst_14 {dimension_numbers = #tpu.dot_dimension_numbers<[1], [0], [0], [1], [0, 0, 1, 1], [], []>} : vector<8x256xf32>, vector<256x128xf32>, vector<8x128xf32> -> vector<8x128xf32>
    %c0_15 = arith.constant 0 : index
    %c0_16 = arith.constant 0 : index
    %15 = vector.load %arg4[%c0_15, %c0_16] : memref<1x128xf32, #tpu.memory_space<vmem>>, vector<1x128xf32>
    %16 = vector.broadcast %15 : vector<1x128xf32> to vector<8x128xf32>
    %17 = arith.addf %14, %16 : vector<8x128xf32>
    %c0_17 = arith.constant 0 : index
    %c0_18 = arith.constant 0 : index
    %c0_19 = arith.constant 0 : index
    %18 = vector.load %arg5[%c0_17, %c0_18, %c0_19] : memref<2x128x384xf32, #tpu.memory_space<vmem>>, vector<1x128x384xf32>
    %19 = vector.shape_cast %18 : vector<1x128x384xf32> to vector<128x384xf32>
    %cst_20 = arith.constant dense<0.000000e+00> : vector<8x384xf32>
    %20 = tpu.matmul %17, %19, %cst_20 {dimension_numbers = #tpu.dot_dimension_numbers<[1], [0], [0], [1], [0, 0, 1, 1], [], []>} : vector<8x128xf32>, vector<128x384xf32>, vector<8x384xf32> -> vector<8x384xf32>
    %c0_21 = arith.constant 0 : index
    %c0_22 = arith.constant 0 : index
    %c0_23 = arith.constant 0 : index
    %21 = vector.load %arg6[%c0_21, %c0_22, %c0_23] : memref<2x1x384xf32, #tpu.memory_space<vmem>>, vector<1x1x384xf32>
    %22 = vector.shape_cast %21 : vector<1x1x384xf32> to vector<1x384xf32>
    %23 = vector.broadcast %22 : vector<1x384xf32> to vector<8x384xf32>
    %24 = arith.addf %20, %23 : vector<8x384xf32>
    %25 = vector.extract_strided_slice %24 {offsets = [0, 0], sizes = [8, 128], strides = [1, 1]} : vector<8x384xf32> to vector<8x128xf32>
    %26 = vector.extract_strided_slice %24 {offsets = [0, 128], sizes = [8, 128], strides = [1, 1]} : vector<8x384xf32> to vector<8x128xf32>
    %27 = vector.extract_strided_slice %24 {offsets = [0, 256], sizes = [8, 128], strides = [1, 1]} : vector<8x384xf32> to vector<8x128xf32>
    %cst_24 = arith.constant dense<0.000000e+00> : vector<224x128xf32>
    %28 = tpu.matmul %2, %25, %cst_24 {dimension_numbers = #tpu.dot_dimension_numbers<[1], [0], [0], [1], [0, 0, 1, 1], [], []>} : vector<224x8xf32>, vector<8x128xf32>, vector<224x128xf32> -> vector<224x128xf32>
    %29 = arith.mulf %28, %1 : vector<224x128xf32>
    %cst_25 = arith.constant dense<0.000000e+00> : vector<224x8xf32>
    %30 = tpu.matmul %29, %26, %cst_25 {dimension_numbers = #tpu.dot_dimension_numbers<[1], [1], [0], [0], [0, 0, 1, 0], [], []>} : vector<224x128xf32>, vector<8x128xf32>, vector<224x8xf32> -> vector<224x8xf32>
    %cst_26 = arith.constant dense<0xFF800000> : vector<224xf32>
    %31 = vector.multi_reduction <maximumf>, %30, %cst_26 [1] : vector<224x8xf32> to vector<224xf32>
    %32 = vector.shape_cast %31 : vector<224xf32> to vector<224x1xf32>
    %33 = vector.broadcast %32 : vector<224x1xf32> to vector<224x8xf32>
    %34 = arith.subf %30, %33 : vector<224x8xf32>
    %35 = math.exp %34 : vector<224x8xf32>
    %cst_27 = arith.constant dense<0.000000e+00> : vector<224xf32>
    %36 = vector.multi_reduction <add>, %35, %cst_27 [1] : vector<224x8xf32> to vector<224xf32>
    %37 = vector.shape_cast %36 : vector<224xf32> to vector<224x1xf32>
    %38 = vector.broadcast %37 : vector<224x1xf32> to vector<224x8xf32>
    %39 = arith.divf %35, %38 : vector<224x8xf32>
    %cst_28 = arith.constant dense<0.000000e+00> : vector<224x128xf32>
    %40 = tpu.matmul %39, %27, %cst_28 {dimension_numbers = #tpu.dot_dimension_numbers<[1], [0], [0], [1], [0, 0, 1, 1], [], []>} : vector<224x8xf32>, vector<8x128xf32>, vector<224x128xf32> -> vector<224x128xf32>
    %41 = arith.mulf %40, %1 : vector<224x128xf32>
    %cst_29 = arith.constant dense<0.000000e+00> : vector<8x128xf32>
    %42 = tpu.matmul %3, %41, %cst_29 {dimension_numbers = #tpu.dot_dimension_numbers<[1], [0], [0], [1], [0, 0, 1, 1], [], []>} : vector<8x224xf32>, vector<224x128xf32>, vector<8x128xf32> -> vector<8x128xf32>
    %c0_30 = arith.constant 0 : index
    %c0_31 = arith.constant 0 : index
    %c0_32 = arith.constant 0 : index
    %43 = vector.load %arg7[%c0_30, %c0_31, %c0_32] : memref<2x128x128xf32, #tpu.memory_space<vmem>>, vector<1x128x128xf32>
    %44 = vector.shape_cast %43 : vector<1x128x128xf32> to vector<128x128xf32>
    %cst_33 = arith.constant dense<0.000000e+00> : vector<8x128xf32>
    %45 = tpu.matmul %42, %44, %cst_33 {dimension_numbers = #tpu.dot_dimension_numbers<[1], [0], [0], [1], [0, 0, 1, 1], [], []>} : vector<8x128xf32>, vector<128x128xf32>, vector<8x128xf32> -> vector<8x128xf32>
    %c0_34 = arith.constant 0 : index
    %c0_35 = arith.constant 0 : index
    %c0_36 = arith.constant 0 : index
    %46 = vector.load %arg8[%c0_34, %c0_35, %c0_36] : memref<2x1x128xf32, #tpu.memory_space<vmem>>, vector<1x1x128xf32>
    %47 = vector.shape_cast %46 : vector<1x1x128xf32> to vector<1x128xf32>
    %48 = vector.broadcast %47 : vector<1x128xf32> to vector<8x128xf32>
    %49 = arith.addf %45, %48 : vector<8x128xf32>
    %50 = arith.addf %17, %49 : vector<8x128xf32>
    %c0_37 = arith.constant 0 : index
    %c0_38 = arith.constant 0 : index
    %c0_39 = arith.constant 0 : index
    %c0_40 = arith.constant 0 : index
    %51 = vector.load %arg9[%c0_37, %c0_38, %c0_39, %c0_40] : memref<2x2x1x128xf32, #tpu.memory_space<vmem>>, vector<1x1x1x128xf32>
    %52 = vector.shape_cast %51 : vector<1x1x1x128xf32> to vector<1x128xf32>
    %c0_41 = arith.constant 0 : index
    %c0_42 = arith.constant 0 : index
    %c0_43 = arith.constant 0 : index
    %c0_44 = arith.constant 0 : index
    %53 = vector.load %arg10[%c0_41, %c0_42, %c0_43, %c0_44] : memref<2x2x1x128xf32, #tpu.memory_space<vmem>>, vector<1x1x1x128xf32>
    %54 = vector.shape_cast %53 : vector<1x1x1x128xf32> to vector<1x128xf32>
    %cst_45 = arith.constant dense<0.000000e+00> : vector<8xf32>
    %55 = vector.multi_reduction <add>, %50, %cst_45 [1] : vector<8x128xf32> to vector<8xf32>
    %56 = vector.shape_cast %55 : vector<8xf32> to vector<8x1xf32>
    %cst_46 = arith.constant 0.00892857183 : f32
    %57 = vector.broadcast %cst_46 : f32 to vector<8x1xf32>
    %58 = arith.mulf %56, %57 : vector<8x1xf32>
    %59 = vector.broadcast %58 : vector<8x1xf32> to vector<8x128xf32>
    %60 = arith.subf %50, %59 : vector<8x128xf32>
    %61 = vector.broadcast %0 : vector<1x128xf32> to vector<8x128xf32>
    %62 = arith.mulf %60, %61 : vector<8x128xf32>
    %63 = arith.mulf %62, %62 : vector<8x128xf32>
    %cst_47 = arith.constant dense<0.000000e+00> : vector<8xf32>
    %64 = vector.multi_reduction <add>, %63, %cst_47 [1] : vector<8x128xf32> to vector<8xf32>
    %65 = vector.shape_cast %64 : vector<8xf32> to vector<8x1xf32>
    %cst_48 = arith.constant 0.00892857183 : f32
    %66 = vector.broadcast %cst_48 : f32 to vector<8x1xf32>
    %67 = arith.mulf %65, %66 : vector<8x1xf32>
    %cst_49 = arith.constant 9.99999974E-6 : f32
    %68 = vector.broadcast %cst_49 : f32 to vector<8x1xf32>
    %69 = arith.addf %67, %68 : vector<8x1xf32>
    %70 = math.rsqrt %69 : vector<8x1xf32>
    %71 = vector.broadcast %70 : vector<8x1xf32> to vector<8x128xf32>
    %72 = arith.mulf %62, %71 : vector<8x128xf32>
    %73 = vector.broadcast %52 : vector<1x128xf32> to vector<8x128xf32>
    %74 = arith.mulf %72, %73 : vector<8x128xf32>
    %75 = vector.broadcast %54 : vector<1x128xf32> to vector<8x128xf32>
    %76 = arith.addf %74, %75 : vector<8x128xf32>
    %77 = arith.negf %76 : vector<8x128xf32>
    %78 = math.exp %77 : vector<8x128xf32>
    %cst_50 = arith.constant 1.000000e+00 : f32
    %79 = vector.broadcast %cst_50 : f32 to vector<8x128xf32>
    %80 = arith.addf %79, %78 : vector<8x128xf32>
    %81 = arith.divf %79, %80 : vector<8x128xf32>
    %82 = arith.mulf %76, %81 : vector<8x128xf32>
    %c0_51 = arith.constant 0 : index
    %c0_52 = arith.constant 0 : index
    %c0_53 = arith.constant 0 : index
    %83 = vector.load %arg11[%c0_51, %c0_52, %c0_53] : memref<2x128x128xf32, #tpu.memory_space<vmem>>, vector<1x128x128xf32>
    %84 = vector.shape_cast %83 : vector<1x128x128xf32> to vector<128x128xf32>
    %cst_54 = arith.constant dense<0.000000e+00> : vector<8x128xf32>
    %85 = tpu.matmul %82, %84, %cst_54 {dimension_numbers = #tpu.dot_dimension_numbers<[1], [0], [0], [1], [0, 0, 1, 1], [], []>} : vector<8x128xf32>, vector<128x128xf32>, vector<8x128xf32> -> vector<8x128xf32>
    %cst_55 = arith.constant -2.200000e+00 : f32
    %86 = vector.broadcast %cst_55 : f32 to vector<8x128xf32>
    %87 = arith.cmpf oge, %76, %86 : vector<8x128xf32>
    %cst_56 = arith.constant -1.800000e+00 : f32
    %88 = vector.broadcast %cst_56 : f32 to vector<8x128xf32>
    %89 = arith.cmpf olt, %76, %88 : vector<8x128xf32>
    %90 = arith.andi %87, %89 : vector<8x128xi1>
    %91 = arith.extui %90 : vector<8x128xi1> to vector<8x128xi32>
    %92 = arith.sitofp %91 : vector<8x128xi32> to vector<8x128xf32>
    %cst_57 = arith.constant -1.800000e+00 : f32
    %93 = vector.broadcast %cst_57 : f32 to vector<8x128xf32>
    %94 = arith.cmpf oge, %76, %93 : vector<8x128xf32>
    %cst_58 = arith.constant -1.400000e+00 : f32
    %95 = vector.broadcast %cst_58 : f32 to vector<8x128xf32>
    %96 = arith.cmpf olt, %76, %95 : vector<8x128xf32>
    %97 = arith.andi %94, %96 : vector<8x128xi1>
    %98 = arith.extui %97 : vector<8x128xi1> to vector<8x128xi32>
    %99 = arith.sitofp %98 : vector<8x128xi32> to vector<8x128xf32>
    %cst_59 = arith.constant -1.400000e+00 : f32
    %100 = vector.broadcast %cst_59 : f32 to vector<8x128xf32>
    %101 = arith.cmpf oge, %76, %100 : vector<8x128xf32>
    %cst_60 = arith.constant -1.000000e+00 : f32
    %102 = vector.broadcast %cst_60 : f32 to vector<8x128xf32>
    %103 = arith.cmpf olt, %76, %102 : vector<8x128xf32>
    %104 = arith.andi %101, %103 : vector<8x128xi1>
    %105 = arith.extui %104 : vector<8x128xi1> to vector<8x128xi32>
    %106 = arith.sitofp %105 : vector<8x128xi32> to vector<8x128xf32>
    %cst_61 = arith.constant -1.000000e+00 : f32
    %107 = vector.broadcast %cst_61 : f32 to vector<8x128xf32>
    %108 = arith.cmpf oge, %76, %107 : vector<8x128xf32>
    %cst_62 = arith.constant -6.000000e-01 : f32
    %109 = vector.broadcast %cst_62 : f32 to vector<8x128xf32>
    %110 = arith.cmpf olt, %76, %109 : vector<8x128xf32>
    %111 = arith.andi %108, %110 : vector<8x128xi1>
    %112 = arith.extui %111 : vector<8x128xi1> to vector<8x128xi32>
    %113 = arith.sitofp %112 : vector<8x128xi32> to vector<8x128xf32>
    %cst_63 = arith.constant -6.000000e-01 : f32
    %114 = vector.broadcast %cst_63 : f32 to vector<8x128xf32>
    %115 = arith.cmpf oge, %76, %114 : vector<8x128xf32>
    %cst_64 = arith.constant -2.000000e-01 : f32
    %116 = vector.broadcast %cst_64 : f32 to vector<8x128xf32>
    %117 = arith.cmpf olt, %76, %116 : vector<8x128xf32>
    %118 = arith.andi %115, %117 : vector<8x128xi1>
    %119 = arith.extui %118 : vector<8x128xi1> to vector<8x128xi32>
    %120 = arith.sitofp %119 : vector<8x128xi32> to vector<8x128xf32>
    %cst_65 = arith.constant -2.000000e-01 : f32
    %121 = vector.broadcast %cst_65 : f32 to vector<8x128xf32>
    %122 = arith.cmpf oge, %76, %121 : vector<8x128xf32>
    %cst_66 = arith.constant 2.000000e-01 : f32
    %123 = vector.broadcast %cst_66 : f32 to vector<8x128xf32>
    %124 = arith.cmpf olt, %76, %123 : vector<8x128xf32>
    %125 = arith.andi %122, %124 : vector<8x128xi1>
    %126 = arith.extui %125 : vector<8x128xi1> to vector<8x128xi32>
    %127 = arith.sitofp %126 : vector<8x128xi32> to vector<8x128xf32>
    %cst_67 = arith.constant 2.000000e-01 : f32
    %128 = vector.broadcast %cst_67 : f32 to vector<8x128xf32>
    %129 = arith.cmpf oge, %76, %128 : vector<8x128xf32>
    %cst_68 = arith.constant 6.000000e-01 : f32
    %130 = vector.broadcast %cst_68 : f32 to vector<8x128xf32>
    %131 = arith.cmpf olt, %76, %130 : vector<8x128xf32>
    %132 = arith.andi %129, %131 : vector<8x128xi1>
    %133 = arith.extui %132 : vector<8x128xi1> to vector<8x128xi32>
    %134 = arith.sitofp %133 : vector<8x128xi32> to vector<8x128xf32>
    %cst_69 = arith.constant 6.000000e-01 : f32
    %135 = vector.broadcast %cst_69 : f32 to vector<8x128xf32>
    %136 = arith.cmpf oge, %76, %135 : vector<8x128xf32>
    %cst_70 = arith.constant 1.000000e+00 : f32
    %137 = vector.broadcast %cst_70 : f32 to vector<8x128xf32>
    %138 = arith.cmpf olt, %76, %137 : vector<8x128xf32>
    %139 = arith.andi %136, %138 : vector<8x128xi1>
    %140 = arith.extui %139 : vector<8x128xi1> to vector<8x128xi32>
    %141 = arith.sitofp %140 : vector<8x128xi32> to vector<8x128xf32>
    %cst_71 = arith.constant 1.000000e+00 : f32
    %142 = vector.broadcast %cst_71 : f32 to vector<8x128xf32>
    %143 = arith.cmpf oge, %76, %142 : vector<8x128xf32>
    %cst_72 = arith.constant 1.400000e+00 : f32
    %144 = vector.broadcast %cst_72 : f32 to vector<8x128xf32>
    %145 = arith.cmpf olt, %76, %144 : vector<8x128xf32>
    %146 = arith.andi %143, %145 : vector<8x128xi1>
    %147 = arith.extui %146 : vector<8x128xi1> to vector<8x128xi32>
    %148 = arith.sitofp %147 : vector<8x128xi32> to vector<8x128xf32>
    %cst_73 = arith.constant 1.400000e+00 : f32
    %149 = vector.broadcast %cst_73 : f32 to vector<8x128xf32>
    %150 = arith.cmpf oge, %76, %149 : vector<8x128xf32>
    %cst_74 = arith.constant 1.800000e+00 : f32
    %151 = vector.broadcast %cst_74 : f32 to vector<8x128xf32>
    %152 = arith.cmpf olt, %76, %151 : vector<8x128xf32>
    %153 = arith.andi %150, %152 : vector<8x128xi1>
    %154 = arith.extui %153 : vector<8x128xi1> to vector<8x128xi32>
    %155 = arith.sitofp %154 : vector<8x128xi32> to vector<8x128xf32>
    %cst_75 = arith.constant 1.800000e+00 : f32
    %156 = vector.broadcast %cst_75 : f32 to vector<8x128xf32>
    %157 = arith.cmpf oge, %76, %156 : vector<8x128xf32>
    %cst_76 = arith.constant 2.200000e+00 : f32
    %158 = vector.broadcast %cst_76 : f32 to vector<8x128xf32>
    %159 = arith.cmpf olt, %76, %158 : vector<8x128xf32>
    %160 = arith.andi %157, %159 : vector<8x128xi1>
    %161 = arith.extui %160 : vector<8x128xi1> to vector<8x128xi32>
    %162 = arith.sitofp %161 : vector<8x128xi32> to vector<8x128xf32>
    %cst_77 = arith.constant -2.200000e+00 : f32
    %163 = vector.broadcast %cst_77 : f32 to vector<8x128xf32>
    %164 = arith.subf %76, %163 : vector<8x128xf32>
    %cst_78 = arith.constant 4.000000e-01 : f32
    %165 = vector.broadcast %cst_78 : f32 to vector<8x128xf32>
    %166 = arith.divf %164, %165 : vector<8x128xf32>
    %167 = arith.mulf %166, %92 : vector<8x128xf32>
    %cst_79 = arith.constant -1.400000e+00 : f32
    %168 = vector.broadcast %cst_79 : f32 to vector<8x128xf32>
    %169 = arith.subf %168, %76 : vector<8x128xf32>
    %cst_80 = arith.constant 4.000000e-01 : f32
    %170 = vector.broadcast %cst_80 : f32 to vector<8x128xf32>
    %171 = arith.divf %169, %170 : vector<8x128xf32>
    %172 = arith.mulf %171, %99 : vector<8x128xf32>
    %173 = arith.addf %167, %172 : vector<8x128xf32>
    %cst_81 = arith.constant -1.800000e+00 : f32
    %174 = vector.broadcast %cst_81 : f32 to vector<8x128xf32>
    %175 = arith.subf %76, %174 : vector<8x128xf32>
    %cst_82 = arith.constant 4.000000e-01 : f32
    %176 = vector.broadcast %cst_82 : f32 to vector<8x128xf32>
    %177 = arith.divf %175, %176 : vector<8x128xf32>
    %178 = arith.mulf %177, %99 : vector<8x128xf32>
    %cst_83 = arith.constant -1.000000e+00 : f32
    %179 = vector.broadcast %cst_83 : f32 to vector<8x128xf32>
    %180 = arith.subf %179, %76 : vector<8x128xf32>
    %cst_84 = arith.constant 4.000000e-01 : f32
    %181 = vector.broadcast %cst_84 : f32 to vector<8x128xf32>
    %182 = arith.divf %180, %181 : vector<8x128xf32>
    %183 = arith.mulf %182, %106 : vector<8x128xf32>
    %184 = arith.addf %178, %183 : vector<8x128xf32>
    %cst_85 = arith.constant -1.400000e+00 : f32
    %185 = vector.broadcast %cst_85 : f32 to vector<8x128xf32>
    %186 = arith.subf %76, %185 : vector<8x128xf32>
    %cst_86 = arith.constant 4.000000e-01 : f32
    %187 = vector.broadcast %cst_86 : f32 to vector<8x128xf32>
    %188 = arith.divf %186, %187 : vector<8x128xf32>
    %189 = arith.mulf %188, %106 : vector<8x128xf32>
    %cst_87 = arith.constant -6.000000e-01 : f32
    %190 = vector.broadcast %cst_87 : f32 to vector<8x128xf32>
    %191 = arith.subf %190, %76 : vector<8x128xf32>
    %cst_88 = arith.constant 4.000000e-01 : f32
    %192 = vector.broadcast %cst_88 : f32 to vector<8x128xf32>
    %193 = arith.divf %191, %192 : vector<8x128xf32>
    %194 = arith.mulf %193, %113 : vector<8x128xf32>
    %195 = arith.addf %189, %194 : vector<8x128xf32>
    %cst_89 = arith.constant -1.000000e+00 : f32
    %196 = vector.broadcast %cst_89 : f32 to vector<8x128xf32>
    %197 = arith.subf %76, %196 : vector<8x128xf32>
    %cst_90 = arith.constant 4.000000e-01 : f32
    %198 = vector.broadcast %cst_90 : f32 to vector<8x128xf32>
    %199 = arith.divf %197, %198 : vector<8x128xf32>
    %200 = arith.mulf %199, %113 : vector<8x128xf32>
    %cst_91 = arith.constant -2.000000e-01 : f32
    %201 = vector.broadcast %cst_91 : f32 to vector<8x128xf32>
    %202 = arith.subf %201, %76 : vector<8x128xf32>
    %cst_92 = arith.constant 4.000000e-01 : f32
    %203 = vector.broadcast %cst_92 : f32 to vector<8x128xf32>
    %204 = arith.divf %202, %203 : vector<8x128xf32>
    %205 = arith.mulf %204, %120 : vector<8x128xf32>
    %206 = arith.addf %200, %205 : vector<8x128xf32>
    %cst_93 = arith.constant -6.000000e-01 : f32
    %207 = vector.broadcast %cst_93 : f32 to vector<8x128xf32>
    %208 = arith.subf %76, %207 : vector<8x128xf32>
    %cst_94 = arith.constant 4.000000e-01 : f32
    %209 = vector.broadcast %cst_94 : f32 to vector<8x128xf32>
    %210 = arith.divf %208, %209 : vector<8x128xf32>
    %211 = arith.mulf %210, %120 : vector<8x128xf32>
    %cst_95 = arith.constant 2.000000e-01 : f32
    %212 = vector.broadcast %cst_95 : f32 to vector<8x128xf32>
    %213 = arith.subf %212, %76 : vector<8x128xf32>
    %cst_96 = arith.constant 4.000000e-01 : f32
    %214 = vector.broadcast %cst_96 : f32 to vector<8x128xf32>
    %215 = arith.divf %213, %214 : vector<8x128xf32>
    %216 = arith.mulf %215, %127 : vector<8x128xf32>
    %217 = arith.addf %211, %216 : vector<8x128xf32>
    %cst_97 = arith.constant -2.000000e-01 : f32
    %218 = vector.broadcast %cst_97 : f32 to vector<8x128xf32>
    %219 = arith.subf %76, %218 : vector<8x128xf32>
    %cst_98 = arith.constant 4.000000e-01 : f32
    %220 = vector.broadcast %cst_98 : f32 to vector<8x128xf32>
    %221 = arith.divf %219, %220 : vector<8x128xf32>
    %222 = arith.mulf %221, %127 : vector<8x128xf32>
    %cst_99 = arith.constant 6.000000e-01 : f32
    %223 = vector.broadcast %cst_99 : f32 to vector<8x128xf32>
    %224 = arith.subf %223, %76 : vector<8x128xf32>
    %cst_100 = arith.constant 4.000000e-01 : f32
    %225 = vector.broadcast %cst_100 : f32 to vector<8x128xf32>
    %226 = arith.divf %224, %225 : vector<8x128xf32>
    %227 = arith.mulf %226, %134 : vector<8x128xf32>
    %228 = arith.addf %222, %227 : vector<8x128xf32>
    %cst_101 = arith.constant 2.000000e-01 : f32
    %229 = vector.broadcast %cst_101 : f32 to vector<8x128xf32>
    %230 = arith.subf %76, %229 : vector<8x128xf32>
    %cst_102 = arith.constant 4.000000e-01 : f32
    %231 = vector.broadcast %cst_102 : f32 to vector<8x128xf32>
    %232 = arith.divf %230, %231 : vector<8x128xf32>
    %233 = arith.mulf %232, %134 : vector<8x128xf32>
    %cst_103 = arith.constant 1.000000e+00 : f32
    %234 = vector.broadcast %cst_103 : f32 to vector<8x128xf32>
    %235 = arith.subf %234, %76 : vector<8x128xf32>
    %cst_104 = arith.constant 4.000000e-01 : f32
    %236 = vector.broadcast %cst_104 : f32 to vector<8x128xf32>
    %237 = arith.divf %235, %236 : vector<8x128xf32>
    %238 = arith.mulf %237, %141 : vector<8x128xf32>
    %239 = arith.addf %233, %238 : vector<8x128xf32>
    %cst_105 = arith.constant 6.000000e-01 : f32
    %240 = vector.broadcast %cst_105 : f32 to vector<8x128xf32>
    %241 = arith.subf %76, %240 : vector<8x128xf32>
    %cst_106 = arith.constant 4.000000e-01 : f32
    %242 = vector.broadcast %cst_106 : f32 to vector<8x128xf32>
    %243 = arith.divf %241, %242 : vector<8x128xf32>
    %244 = arith.mulf %243, %141 : vector<8x128xf32>
    %cst_107 = arith.constant 1.400000e+00 : f32
    %245 = vector.broadcast %cst_107 : f32 to vector<8x128xf32>
    %246 = arith.subf %245, %76 : vector<8x128xf32>
    %cst_108 = arith.constant 4.000000e-01 : f32
    %247 = vector.broadcast %cst_108 : f32 to vector<8x128xf32>
    %248 = arith.divf %246, %247 : vector<8x128xf32>
    %249 = arith.mulf %248, %148 : vector<8x128xf32>
    %250 = arith.addf %244, %249 : vector<8x128xf32>
    %cst_109 = arith.constant 1.000000e+00 : f32
    %251 = vector.broadcast %cst_109 : f32 to vector<8x128xf32>
    %252 = arith.subf %76, %251 : vector<8x128xf32>
    %cst_110 = arith.constant 4.000000e-01 : f32
    %253 = vector.broadcast %cst_110 : f32 to vector<8x128xf32>
    %254 = arith.divf %252, %253 : vector<8x128xf32>
    %255 = arith.mulf %254, %148 : vector<8x128xf32>
    %cst_111 = arith.constant 1.800000e+00 : f32
    %256 = vector.broadcast %cst_111 : f32 to vector<8x128xf32>
    %257 = arith.subf %256, %76 : vector<8x128xf32>
    %cst_112 = arith.constant 4.000000e-01 : f32
    %258 = vector.broadcast %cst_112 : f32 to vector<8x128xf32>
    %259 = arith.divf %257, %258 : vector<8x128xf32>
    %260 = arith.mulf %259, %155 : vector<8x128xf32>
    %261 = arith.addf %255, %260 : vector<8x128xf32>
    %cst_113 = arith.constant 1.400000e+00 : f32
    %262 = vector.broadcast %cst_113 : f32 to vector<8x128xf32>
    %263 = arith.subf %76, %262 : vector<8x128xf32>
    %cst_114 = arith.constant 4.000000e-01 : f32
    %264 = vector.broadcast %cst_114 : f32 to vector<8x128xf32>
    %265 = arith.divf %263, %264 : vector<8x128xf32>
    %266 = arith.mulf %265, %155 : vector<8x128xf32>
    %cst_115 = arith.constant 2.200000e+00 : f32
    %267 = vector.broadcast %cst_115 : f32 to vector<8x128xf32>
    %268 = arith.subf %267, %76 : vector<8x128xf32>
    %cst_116 = arith.constant 4.000000e-01 : f32
    %269 = vector.broadcast %cst_116 : f32 to vector<8x128xf32>
    %270 = arith.divf %268, %269 : vector<8x128xf32>
    %271 = arith.mulf %270, %162 : vector<8x128xf32>
    %272 = arith.addf %266, %271 : vector<8x128xf32>
    %cst_117 = arith.constant -2.200000e+00 : f32
    %273 = vector.broadcast %cst_117 : f32 to vector<8x128xf32>
    %274 = arith.subf %76, %273 : vector<8x128xf32>
    %cst_118 = arith.constant 8.000000e-01 : f32
    %275 = vector.broadcast %cst_118 : f32 to vector<8x128xf32>
    %276 = arith.divf %274, %275 : vector<8x128xf32>
    %277 = arith.mulf %276, %173 : vector<8x128xf32>
    %cst_119 = arith.constant -1.000000e+00 : f32
    %278 = vector.broadcast %cst_119 : f32 to vector<8x128xf32>
    %279 = arith.subf %278, %76 : vector<8x128xf32>
    %cst_120 = arith.constant 8.000000e-01 : f32
    %280 = vector.broadcast %cst_120 : f32 to vector<8x128xf32>
    %281 = arith.divf %279, %280 : vector<8x128xf32>
    %282 = arith.mulf %281, %184 : vector<8x128xf32>
    %283 = arith.addf %277, %282 : vector<8x128xf32>
    %cst_121 = arith.constant -1.800000e+00 : f32
    %284 = vector.broadcast %cst_121 : f32 to vector<8x128xf32>
    %285 = arith.subf %76, %284 : vector<8x128xf32>
    %cst_122 = arith.constant 8.000000e-01 : f32
    %286 = vector.broadcast %cst_122 : f32 to vector<8x128xf32>
    %287 = arith.divf %285, %286 : vector<8x128xf32>
    %288 = arith.mulf %287, %184 : vector<8x128xf32>
    %cst_123 = arith.constant -6.000000e-01 : f32
    %289 = vector.broadcast %cst_123 : f32 to vector<8x128xf32>
    %290 = arith.subf %289, %76 : vector<8x128xf32>
    %cst_124 = arith.constant 8.000000e-01 : f32
    %291 = vector.broadcast %cst_124 : f32 to vector<8x128xf32>
    %292 = arith.divf %290, %291 : vector<8x128xf32>
    %293 = arith.mulf %292, %195 : vector<8x128xf32>
    %294 = arith.addf %288, %293 : vector<8x128xf32>
    %cst_125 = arith.constant -1.400000e+00 : f32
    %295 = vector.broadcast %cst_125 : f32 to vector<8x128xf32>
    %296 = arith.subf %76, %295 : vector<8x128xf32>
    %cst_126 = arith.constant 8.000000e-01 : f32
    %297 = vector.broadcast %cst_126 : f32 to vector<8x128xf32>
    %298 = arith.divf %296, %297 : vector<8x128xf32>
    %299 = arith.mulf %298, %195 : vector<8x128xf32>
    %cst_127 = arith.constant -2.000000e-01 : f32
    %300 = vector.broadcast %cst_127 : f32 to vector<8x128xf32>
    %301 = arith.subf %300, %76 : vector<8x128xf32>
    %cst_128 = arith.constant 8.000000e-01 : f32
    %302 = vector.broadcast %cst_128 : f32 to vector<8x128xf32>
    %303 = arith.divf %301, %302 : vector<8x128xf32>
    %304 = arith.mulf %303, %206 : vector<8x128xf32>
    %305 = arith.addf %299, %304 : vector<8x128xf32>
    %cst_129 = arith.constant -1.000000e+00 : f32
    %306 = vector.broadcast %cst_129 : f32 to vector<8x128xf32>
    %307 = arith.subf %76, %306 : vector<8x128xf32>
    %cst_130 = arith.constant 8.000000e-01 : f32
    %308 = vector.broadcast %cst_130 : f32 to vector<8x128xf32>
    %309 = arith.divf %307, %308 : vector<8x128xf32>
    %310 = arith.mulf %309, %206 : vector<8x128xf32>
    %cst_131 = arith.constant 2.000000e-01 : f32
    %311 = vector.broadcast %cst_131 : f32 to vector<8x128xf32>
    %312 = arith.subf %311, %76 : vector<8x128xf32>
    %cst_132 = arith.constant 8.000000e-01 : f32
    %313 = vector.broadcast %cst_132 : f32 to vector<8x128xf32>
    %314 = arith.divf %312, %313 : vector<8x128xf32>
    %315 = arith.mulf %314, %217 : vector<8x128xf32>
    %316 = arith.addf %310, %315 : vector<8x128xf32>
    %cst_133 = arith.constant -6.000000e-01 : f32
    %317 = vector.broadcast %cst_133 : f32 to vector<8x128xf32>
    %318 = arith.subf %76, %317 : vector<8x128xf32>
    %cst_134 = arith.constant 8.000000e-01 : f32
    %319 = vector.broadcast %cst_134 : f32 to vector<8x128xf32>
    %320 = arith.divf %318, %319 : vector<8x128xf32>
    %321 = arith.mulf %320, %217 : vector<8x128xf32>
    %cst_135 = arith.constant 6.000000e-01 : f32
    %322 = vector.broadcast %cst_135 : f32 to vector<8x128xf32>
    %323 = arith.subf %322, %76 : vector<8x128xf32>
    %cst_136 = arith.constant 8.000000e-01 : f32
    %324 = vector.broadcast %cst_136 : f32 to vector<8x128xf32>
    %325 = arith.divf %323, %324 : vector<8x128xf32>
    %326 = arith.mulf %325, %228 : vector<8x128xf32>
    %327 = arith.addf %321, %326 : vector<8x128xf32>
    %cst_137 = arith.constant -2.000000e-01 : f32
    %328 = vector.broadcast %cst_137 : f32 to vector<8x128xf32>
    %329 = arith.subf %76, %328 : vector<8x128xf32>
    %cst_138 = arith.constant 8.000000e-01 : f32
    %330 = vector.broadcast %cst_138 : f32 to vector<8x128xf32>
    %331 = arith.divf %329, %330 : vector<8x128xf32>
    %332 = arith.mulf %331, %228 : vector<8x128xf32>
    %cst_139 = arith.constant 1.000000e+00 : f32
    %333 = vector.broadcast %cst_139 : f32 to vector<8x128xf32>
    %334 = arith.subf %333, %76 : vector<8x128xf32>
    %cst_140 = arith.constant 8.000000e-01 : f32
    %335 = vector.broadcast %cst_140 : f32 to vector<8x128xf32>
    %336 = arith.divf %334, %335 : vector<8x128xf32>
    %337 = arith.mulf %336, %239 : vector<8x128xf32>
    %338 = arith.addf %332, %337 : vector<8x128xf32>
    %cst_141 = arith.constant 2.000000e-01 : f32
    %339 = vector.broadcast %cst_141 : f32 to vector<8x128xf32>
    %340 = arith.subf %76, %339 : vector<8x128xf32>
    %cst_142 = arith.constant 8.000000e-01 : f32
    %341 = vector.broadcast %cst_142 : f32 to vector<8x128xf32>
    %342 = arith.divf %340, %341 : vector<8x128xf32>
    %343 = arith.mulf %342, %239 : vector<8x128xf32>
    %cst_143 = arith.constant 1.400000e+00 : f32
    %344 = vector.broadcast %cst_143 : f32 to vector<8x128xf32>
    %345 = arith.subf %344, %76 : vector<8x128xf32>
    %cst_144 = arith.constant 8.000000e-01 : f32
    %346 = vector.broadcast %cst_144 : f32 to vector<8x128xf32>
    %347 = arith.divf %345, %346 : vector<8x128xf32>
    %348 = arith.mulf %347, %250 : vector<8x128xf32>
    %349 = arith.addf %343, %348 : vector<8x128xf32>
    %cst_145 = arith.constant 6.000000e-01 : f32
    %350 = vector.broadcast %cst_145 : f32 to vector<8x128xf32>
    %351 = arith.subf %76, %350 : vector<8x128xf32>
    %cst_146 = arith.constant 8.000000e-01 : f32
    %352 = vector.broadcast %cst_146 : f32 to vector<8x128xf32>
    %353 = arith.divf %351, %352 : vector<8x128xf32>
    %354 = arith.mulf %353, %250 : vector<8x128xf32>
    %cst_147 = arith.constant 1.800000e+00 : f32
    %355 = vector.broadcast %cst_147 : f32 to vector<8x128xf32>
    %356 = arith.subf %355, %76 : vector<8x128xf32>
    %cst_148 = arith.constant 8.000000e-01 : f32
    %357 = vector.broadcast %cst_148 : f32 to vector<8x128xf32>
    %358 = arith.divf %356, %357 : vector<8x128xf32>
    %359 = arith.mulf %358, %261 : vector<8x128xf32>
    %360 = arith.addf %354, %359 : vector<8x128xf32>
    %cst_149 = arith.constant 1.000000e+00 : f32
    %361 = vector.broadcast %cst_149 : f32 to vector<8x128xf32>
    %362 = arith.subf %76, %361 : vector<8x128xf32>
    %cst_150 = arith.constant 8.000000e-01 : f32
    %363 = vector.broadcast %cst_150 : f32 to vector<8x128xf32>
    %364 = arith.divf %362, %363 : vector<8x128xf32>
    %365 = arith.mulf %364, %261 : vector<8x128xf32>
    %cst_151 = arith.constant 2.200000e+00 : f32
    %366 = vector.broadcast %cst_151 : f32 to vector<8x128xf32>
    %367 = arith.subf %366, %76 : vector<8x128xf32>
    %cst_152 = arith.constant 8.000000e-01 : f32
    %368 = vector.broadcast %cst_152 : f32 to vector<8x128xf32>
    %369 = arith.divf %367, %368 : vector<8x128xf32>
    %370 = arith.mulf %369, %272 : vector<8x128xf32>
    %371 = arith.addf %365, %370 : vector<8x128xf32>
    %cst_153 = arith.constant -2.200000e+00 : f32
    %372 = vector.broadcast %cst_153 : f32 to vector<8x128xf32>
    %373 = arith.subf %76, %372 : vector<8x128xf32>
    %cst_154 = arith.constant 1.200000e+00 : f32
    %374 = vector.broadcast %cst_154 : f32 to vector<8x128xf32>
    %375 = arith.divf %373, %374 : vector<8x128xf32>
    %376 = arith.mulf %375, %283 : vector<8x128xf32>
    %cst_155 = arith.constant -6.000000e-01 : f32
    %377 = vector.broadcast %cst_155 : f32 to vector<8x128xf32>
    %378 = arith.subf %377, %76 : vector<8x128xf32>
    %cst_156 = arith.constant 1.200000e+00 : f32
    %379 = vector.broadcast %cst_156 : f32 to vector<8x128xf32>
    %380 = arith.divf %378, %379 : vector<8x128xf32>
    %381 = arith.mulf %380, %294 : vector<8x128xf32>
    %382 = arith.addf %376, %381 : vector<8x128xf32>
    %cst_157 = arith.constant -1.800000e+00 : f32
    %383 = vector.broadcast %cst_157 : f32 to vector<8x128xf32>
    %384 = arith.subf %76, %383 : vector<8x128xf32>
    %cst_158 = arith.constant 1.200000e+00 : f32
    %385 = vector.broadcast %cst_158 : f32 to vector<8x128xf32>
    %386 = arith.divf %384, %385 : vector<8x128xf32>
    %387 = arith.mulf %386, %294 : vector<8x128xf32>
    %cst_159 = arith.constant -2.000000e-01 : f32
    %388 = vector.broadcast %cst_159 : f32 to vector<8x128xf32>
    %389 = arith.subf %388, %76 : vector<8x128xf32>
    %cst_160 = arith.constant 1.200000e+00 : f32
    %390 = vector.broadcast %cst_160 : f32 to vector<8x128xf32>
    %391 = arith.divf %389, %390 : vector<8x128xf32>
    %392 = arith.mulf %391, %305 : vector<8x128xf32>
    %393 = arith.addf %387, %392 : vector<8x128xf32>
    %cst_161 = arith.constant -1.400000e+00 : f32
    %394 = vector.broadcast %cst_161 : f32 to vector<8x128xf32>
    %395 = arith.subf %76, %394 : vector<8x128xf32>
    %cst_162 = arith.constant 1.200000e+00 : f32
    %396 = vector.broadcast %cst_162 : f32 to vector<8x128xf32>
    %397 = arith.divf %395, %396 : vector<8x128xf32>
    %398 = arith.mulf %397, %305 : vector<8x128xf32>
    %cst_163 = arith.constant 2.000000e-01 : f32
    %399 = vector.broadcast %cst_163 : f32 to vector<8x128xf32>
    %400 = arith.subf %399, %76 : vector<8x128xf32>
    %cst_164 = arith.constant 1.200000e+00 : f32
    %401 = vector.broadcast %cst_164 : f32 to vector<8x128xf32>
    %402 = arith.divf %400, %401 : vector<8x128xf32>
    %403 = arith.mulf %402, %316 : vector<8x128xf32>
    %404 = arith.addf %398, %403 : vector<8x128xf32>
    %cst_165 = arith.constant -1.000000e+00 : f32
    %405 = vector.broadcast %cst_165 : f32 to vector<8x128xf32>
    %406 = arith.subf %76, %405 : vector<8x128xf32>
    %cst_166 = arith.constant 1.200000e+00 : f32
    %407 = vector.broadcast %cst_166 : f32 to vector<8x128xf32>
    %408 = arith.divf %406, %407 : vector<8x128xf32>
    %409 = arith.mulf %408, %316 : vector<8x128xf32>
    %cst_167 = arith.constant 6.000000e-01 : f32
    %410 = vector.broadcast %cst_167 : f32 to vector<8x128xf32>
    %411 = arith.subf %410, %76 : vector<8x128xf32>
    %cst_168 = arith.constant 1.200000e+00 : f32
    %412 = vector.broadcast %cst_168 : f32 to vector<8x128xf32>
    %413 = arith.divf %411, %412 : vector<8x128xf32>
    %414 = arith.mulf %413, %327 : vector<8x128xf32>
    %415 = arith.addf %409, %414 : vector<8x128xf32>
    %cst_169 = arith.constant -6.000000e-01 : f32
    %416 = vector.broadcast %cst_169 : f32 to vector<8x128xf32>
    %417 = arith.subf %76, %416 : vector<8x128xf32>
    %cst_170 = arith.constant 1.200000e+00 : f32
    %418 = vector.broadcast %cst_170 : f32 to vector<8x128xf32>
    %419 = arith.divf %417, %418 : vector<8x128xf32>
    %420 = arith.mulf %419, %327 : vector<8x128xf32>
    %cst_171 = arith.constant 1.000000e+00 : f32
    %421 = vector.broadcast %cst_171 : f32 to vector<8x128xf32>
    %422 = arith.subf %421, %76 : vector<8x128xf32>
    %cst_172 = arith.constant 1.200000e+00 : f32
    %423 = vector.broadcast %cst_172 : f32 to vector<8x128xf32>
    %424 = arith.divf %422, %423 : vector<8x128xf32>
    %425 = arith.mulf %424, %338 : vector<8x128xf32>
    %426 = arith.addf %420, %425 : vector<8x128xf32>
    %cst_173 = arith.constant -2.000000e-01 : f32
    %427 = vector.broadcast %cst_173 : f32 to vector<8x128xf32>
    %428 = arith.subf %76, %427 : vector<8x128xf32>
    %cst_174 = arith.constant 1.200000e+00 : f32
    %429 = vector.broadcast %cst_174 : f32 to vector<8x128xf32>
    %430 = arith.divf %428, %429 : vector<8x128xf32>
    %431 = arith.mulf %430, %338 : vector<8x128xf32>
    %cst_175 = arith.constant 1.400000e+00 : f32
    %432 = vector.broadcast %cst_175 : f32 to vector<8x128xf32>
    %433 = arith.subf %432, %76 : vector<8x128xf32>
    %cst_176 = arith.constant 1.200000e+00 : f32
    %434 = vector.broadcast %cst_176 : f32 to vector<8x128xf32>
    %435 = arith.divf %433, %434 : vector<8x128xf32>
    %436 = arith.mulf %435, %349 : vector<8x128xf32>
    %437 = arith.addf %431, %436 : vector<8x128xf32>
    %cst_177 = arith.constant 2.000000e-01 : f32
    %438 = vector.broadcast %cst_177 : f32 to vector<8x128xf32>
    %439 = arith.subf %76, %438 : vector<8x128xf32>
    %cst_178 = arith.constant 1.200000e+00 : f32
    %440 = vector.broadcast %cst_178 : f32 to vector<8x128xf32>
    %441 = arith.divf %439, %440 : vector<8x128xf32>
    %442 = arith.mulf %441, %349 : vector<8x128xf32>
    %cst_179 = arith.constant 1.800000e+00 : f32
    %443 = vector.broadcast %cst_179 : f32 to vector<8x128xf32>
    %444 = arith.subf %443, %76 : vector<8x128xf32>
    %cst_180 = arith.constant 1.200000e+00 : f32
    %445 = vector.broadcast %cst_180 : f32 to vector<8x128xf32>
    %446 = arith.divf %444, %445 : vector<8x128xf32>
    %447 = arith.mulf %446, %360 : vector<8x128xf32>
    %448 = arith.addf %442, %447 : vector<8x128xf32>
    %cst_181 = arith.constant 6.000000e-01 : f32
    %449 = vector.broadcast %cst_181 : f32 to vector<8x128xf32>
    %450 = arith.subf %76, %449 : vector<8x128xf32>
    %cst_182 = arith.constant 1.200000e+00 : f32
    %451 = vector.broadcast %cst_182 : f32 to vector<8x128xf32>
    %452 = arith.divf %450, %451 : vector<8x128xf32>
    %453 = arith.mulf %452, %360 : vector<8x128xf32>
    %cst_183 = arith.constant 2.200000e+00 : f32
    %454 = vector.broadcast %cst_183 : f32 to vector<8x128xf32>
    %455 = arith.subf %454, %76 : vector<8x128xf32>
    %cst_184 = arith.constant 1.200000e+00 : f32
    %456 = vector.broadcast %cst_184 : f32 to vector<8x128xf32>
    %457 = arith.divf %455, %456 : vector<8x128xf32>
    %458 = arith.mulf %457, %371 : vector<8x128xf32>
    %459 = arith.addf %453, %458 : vector<8x128xf32>
    %460 = tpu.concatenate %382, %393, %404, %415, %426, %437, %448, %459 in 1 : vector<8x128xf32>, vector<8x128xf32>, vector<8x128xf32>, vector<8x128xf32>, vector<8x128xf32>, vector<8x128xf32>, vector<8x128xf32>, vector<8x128xf32> -> vector<8x1024xf32>
    %c0_185 = arith.constant 0 : index
    %c0_186 = arith.constant 0 : index
    %c0_187 = arith.constant 0 : index
    %461 = vector.load %arg12[%c0_185, %c0_186, %c0_187] : memref<2x1024x128xf32, #tpu.memory_space<vmem>>, vector<1x1024x128xf32>
    %462 = vector.shape_cast %461 : vector<1x1024x128xf32> to vector<1024x128xf32>
    %cst_188 = arith.constant dense<0.000000e+00> : vector<8x128xf32>
    %463 = tpu.matmul %460, %462, %cst_188 {dimension_numbers = #tpu.dot_dimension_numbers<[1], [0], [0], [1], [0, 0, 1, 1], [], []>} : vector<8x1024xf32>, vector<1024x128xf32>, vector<8x128xf32> -> vector<8x128xf32>
    %464 = arith.addf %85, %463 : vector<8x128xf32>
    %465 = arith.addf %76, %464 : vector<8x128xf32>
    %c0_189 = arith.constant 0 : index
    %c1 = arith.constant 1 : index
    %c0_190 = arith.constant 0 : index
    %c0_191 = arith.constant 0 : index
    %466 = vector.load %arg9[%c0_189, %c1, %c0_190, %c0_191] : memref<2x2x1x128xf32, #tpu.memory_space<vmem>>, vector<1x1x1x128xf32>
    %467 = vector.shape_cast %466 : vector<1x1x1x128xf32> to vector<1x128xf32>
    %c0_192 = arith.constant 0 : index
    %c1_193 = arith.constant 1 : index
    %c0_194 = arith.constant 0 : index
    %c0_195 = arith.constant 0 : index
    %468 = vector.load %arg10[%c0_192, %c1_193, %c0_194, %c0_195] : memref<2x2x1x128xf32, #tpu.memory_space<vmem>>, vector<1x1x1x128xf32>
    %469 = vector.shape_cast %468 : vector<1x1x1x128xf32> to vector<1x128xf32>
    %cst_196 = arith.constant dense<0.000000e+00> : vector<8xf32>
    %470 = vector.multi_reduction <add>, %465, %cst_196 [1] : vector<8x128xf32> to vector<8xf32>
    %471 = vector.shape_cast %470 : vector<8xf32> to vector<8x1xf32>
    %cst_197 = arith.constant 0.00892857183 : f32
    %472 = vector.broadcast %cst_197 : f32 to vector<8x1xf32>
    %473 = arith.mulf %471, %472 : vector<8x1xf32>
    %474 = vector.broadcast %473 : vector<8x1xf32> to vector<8x128xf32>
    %475 = arith.subf %465, %474 : vector<8x128xf32>
    %476 = vector.broadcast %0 : vector<1x128xf32> to vector<8x128xf32>
    %477 = arith.mulf %475, %476 : vector<8x128xf32>
    %478 = arith.mulf %477, %477 : vector<8x128xf32>
    %cst_198 = arith.constant dense<0.000000e+00> : vector<8xf32>
    %479 = vector.multi_reduction <add>, %478, %cst_198 [1] : vector<8x128xf32> to vector<8xf32>
    %480 = vector.shape_cast %479 : vector<8xf32> to vector<8x1xf32>
    %cst_199 = arith.constant 0.00892857183 : f32
    %481 = vector.broadcast %cst_199 : f32 to vector<8x1xf32>
    %482 = arith.mulf %480, %481 : vector<8x1xf32>
    %cst_200 = arith.constant 9.99999974E-6 : f32
    %483 = vector.broadcast %cst_200 : f32 to vector<8x1xf32>
    %484 = arith.addf %482, %483 : vector<8x1xf32>
    %485 = math.rsqrt %484 : vector<8x1xf32>
    %486 = vector.broadcast %485 : vector<8x1xf32> to vector<8x128xf32>
    %487 = arith.mulf %477, %486 : vector<8x128xf32>
    %488 = vector.broadcast %467 : vector<1x128xf32> to vector<8x128xf32>
    %489 = arith.mulf %487, %488 : vector<8x128xf32>
    %490 = vector.broadcast %469 : vector<1x128xf32> to vector<8x128xf32>
    %491 = arith.addf %489, %490 : vector<8x128xf32>
    %c1_201 = arith.constant 1 : index
    %c0_202 = arith.constant 0 : index
    %c0_203 = arith.constant 0 : index
    %492 = vector.load %arg5[%c1_201, %c0_202, %c0_203] : memref<2x128x384xf32, #tpu.memory_space<vmem>>, vector<1x128x384xf32>
    %493 = vector.shape_cast %492 : vector<1x128x384xf32> to vector<128x384xf32>
    %cst_204 = arith.constant dense<0.000000e+00> : vector<8x384xf32>
    %494 = tpu.matmul %491, %493, %cst_204 {dimension_numbers = #tpu.dot_dimension_numbers<[1], [0], [0], [1], [0, 0, 1, 1], [], []>} : vector<8x128xf32>, vector<128x384xf32>, vector<8x384xf32> -> vector<8x384xf32>
    %c1_205 = arith.constant 1 : index
    %c0_206 = arith.constant 0 : index
    %c0_207 = arith.constant 0 : index
    %495 = vector.load %arg6[%c1_205, %c0_206, %c0_207] : memref<2x1x384xf32, #tpu.memory_space<vmem>>, vector<1x1x384xf32>
    %496 = vector.shape_cast %495 : vector<1x1x384xf32> to vector<1x384xf32>
    %497 = vector.broadcast %496 : vector<1x384xf32> to vector<8x384xf32>
    %498 = arith.addf %494, %497 : vector<8x384xf32>
    %499 = vector.extract_strided_slice %498 {offsets = [0, 0], sizes = [8, 128], strides = [1, 1]} : vector<8x384xf32> to vector<8x128xf32>
    %500 = vector.extract_strided_slice %498 {offsets = [0, 128], sizes = [8, 128], strides = [1, 1]} : vector<8x384xf32> to vector<8x128xf32>
    %501 = vector.extract_strided_slice %498 {offsets = [0, 256], sizes = [8, 128], strides = [1, 1]} : vector<8x384xf32> to vector<8x128xf32>
    %cst_208 = arith.constant dense<0.000000e+00> : vector<224x128xf32>
    %502 = tpu.matmul %2, %499, %cst_208 {dimension_numbers = #tpu.dot_dimension_numbers<[1], [0], [0], [1], [0, 0, 1, 1], [], []>} : vector<224x8xf32>, vector<8x128xf32>, vector<224x128xf32> -> vector<224x128xf32>
    %503 = arith.mulf %502, %1 : vector<224x128xf32>
    %cst_209 = arith.constant dense<0.000000e+00> : vector<224x8xf32>
    %504 = tpu.matmul %503, %500, %cst_209 {dimension_numbers = #tpu.dot_dimension_numbers<[1], [1], [0], [0], [0, 0, 1, 0], [], []>} : vector<224x128xf32>, vector<8x128xf32>, vector<224x8xf32> -> vector<224x8xf32>
    %cst_210 = arith.constant dense<0xFF800000> : vector<224xf32>
    %505 = vector.multi_reduction <maximumf>, %504, %cst_210 [1] : vector<224x8xf32> to vector<224xf32>
    %506 = vector.shape_cast %505 : vector<224xf32> to vector<224x1xf32>
    %507 = vector.broadcast %506 : vector<224x1xf32> to vector<224x8xf32>
    %508 = arith.subf %504, %507 : vector<224x8xf32>
    %509 = math.exp %508 : vector<224x8xf32>
    %cst_211 = arith.constant dense<0.000000e+00> : vector<224xf32>
    %510 = vector.multi_reduction <add>, %509, %cst_211 [1] : vector<224x8xf32> to vector<224xf32>
    %511 = vector.shape_cast %510 : vector<224xf32> to vector<224x1xf32>
    %512 = vector.broadcast %511 : vector<224x1xf32> to vector<224x8xf32>
    %513 = arith.divf %509, %512 : vector<224x8xf32>
    %cst_212 = arith.constant dense<0.000000e+00> : vector<224x128xf32>
    %514 = tpu.matmul %513, %501, %cst_212 {dimension_numbers = #tpu.dot_dimension_numbers<[1], [0], [0], [1], [0, 0, 1, 1], [], []>} : vector<224x8xf32>, vector<8x128xf32>, vector<224x128xf32> -> vector<224x128xf32>
    %515 = arith.mulf %514, %1 : vector<224x128xf32>
    %cst_213 = arith.constant dense<0.000000e+00> : vector<8x128xf32>
    %516 = tpu.matmul %3, %515, %cst_213 {dimension_numbers = #tpu.dot_dimension_numbers<[1], [0], [0], [1], [0, 0, 1, 1], [], []>} : vector<8x224xf32>, vector<224x128xf32>, vector<8x128xf32> -> vector<8x128xf32>
    %c1_214 = arith.constant 1 : index
    %c0_215 = arith.constant 0 : index
    %c0_216 = arith.constant 0 : index
    %517 = vector.load %arg7[%c1_214, %c0_215, %c0_216] : memref<2x128x128xf32, #tpu.memory_space<vmem>>, vector<1x128x128xf32>
    %518 = vector.shape_cast %517 : vector<1x128x128xf32> to vector<128x128xf32>
    %cst_217 = arith.constant dense<0.000000e+00> : vector<8x128xf32>
    %519 = tpu.matmul %516, %518, %cst_217 {dimension_numbers = #tpu.dot_dimension_numbers<[1], [0], [0], [1], [0, 0, 1, 1], [], []>} : vector<8x128xf32>, vector<128x128xf32>, vector<8x128xf32> -> vector<8x128xf32>
    %c1_218 = arith.constant 1 : index
    %c0_219 = arith.constant 0 : index
    %c0_220 = arith.constant 0 : index
    %520 = vector.load %arg8[%c1_218, %c0_219, %c0_220] : memref<2x1x128xf32, #tpu.memory_space<vmem>>, vector<1x1x128xf32>
    %521 = vector.shape_cast %520 : vector<1x1x128xf32> to vector<1x128xf32>
    %522 = vector.broadcast %521 : vector<1x128xf32> to vector<8x128xf32>
    %523 = arith.addf %519, %522 : vector<8x128xf32>
    %524 = arith.addf %491, %523 : vector<8x128xf32>
    %c1_221 = arith.constant 1 : index
    %c0_222 = arith.constant 0 : index
    %c0_223 = arith.constant 0 : index
    %c0_224 = arith.constant 0 : index
    %525 = vector.load %arg9[%c1_221, %c0_222, %c0_223, %c0_224] : memref<2x2x1x128xf32, #tpu.memory_space<vmem>>, vector<1x1x1x128xf32>
    %526 = vector.shape_cast %525 : vector<1x1x1x128xf32> to vector<1x128xf32>
    %c1_225 = arith.constant 1 : index
    %c0_226 = arith.constant 0 : index
    %c0_227 = arith.constant 0 : index
    %c0_228 = arith.constant 0 : index
    %527 = vector.load %arg10[%c1_225, %c0_226, %c0_227, %c0_228] : memref<2x2x1x128xf32, #tpu.memory_space<vmem>>, vector<1x1x1x128xf32>
    %528 = vector.shape_cast %527 : vector<1x1x1x128xf32> to vector<1x128xf32>
    %cst_229 = arith.constant dense<0.000000e+00> : vector<8xf32>
    %529 = vector.multi_reduction <add>, %524, %cst_229 [1] : vector<8x128xf32> to vector<8xf32>
    %530 = vector.shape_cast %529 : vector<8xf32> to vector<8x1xf32>
    %cst_230 = arith.constant 0.00892857183 : f32
    %531 = vector.broadcast %cst_230 : f32 to vector<8x1xf32>
    %532 = arith.mulf %530, %531 : vector<8x1xf32>
    %533 = vector.broadcast %532 : vector<8x1xf32> to vector<8x128xf32>
    %534 = arith.subf %524, %533 : vector<8x128xf32>
    %535 = vector.broadcast %0 : vector<1x128xf32> to vector<8x128xf32>
    %536 = arith.mulf %534, %535 : vector<8x128xf32>
    %537 = arith.mulf %536, %536 : vector<8x128xf32>
    %cst_231 = arith.constant dense<0.000000e+00> : vector<8xf32>
    %538 = vector.multi_reduction <add>, %537, %cst_231 [1] : vector<8x128xf32> to vector<8xf32>
    %539 = vector.shape_cast %538 : vector<8xf32> to vector<8x1xf32>
    %cst_232 = arith.constant 0.00892857183 : f32
    %540 = vector.broadcast %cst_232 : f32 to vector<8x1xf32>
    %541 = arith.mulf %539, %540 : vector<8x1xf32>
    %cst_233 = arith.constant 9.99999974E-6 : f32
    %542 = vector.broadcast %cst_233 : f32 to vector<8x1xf32>
    %543 = arith.addf %541, %542 : vector<8x1xf32>
    %544 = math.rsqrt %543 : vector<8x1xf32>
    %545 = vector.broadcast %544 : vector<8x1xf32> to vector<8x128xf32>
    %546 = arith.mulf %536, %545 : vector<8x128xf32>
    %547 = vector.broadcast %526 : vector<1x128xf32> to vector<8x128xf32>
    %548 = arith.mulf %546, %547 : vector<8x128xf32>
    %549 = vector.broadcast %528 : vector<1x128xf32> to vector<8x128xf32>
    %550 = arith.addf %548, %549 : vector<8x128xf32>
    %551 = arith.negf %550 : vector<8x128xf32>
    %552 = math.exp %551 : vector<8x128xf32>
    %cst_234 = arith.constant 1.000000e+00 : f32
    %553 = vector.broadcast %cst_234 : f32 to vector<8x128xf32>
    %554 = arith.addf %553, %552 : vector<8x128xf32>
    %555 = arith.divf %553, %554 : vector<8x128xf32>
    %556 = arith.mulf %550, %555 : vector<8x128xf32>
    %c1_235 = arith.constant 1 : index
    %c0_236 = arith.constant 0 : index
    %c0_237 = arith.constant 0 : index
    %557 = vector.load %arg11[%c1_235, %c0_236, %c0_237] : memref<2x128x128xf32, #tpu.memory_space<vmem>>, vector<1x128x128xf32>
    %558 = vector.shape_cast %557 : vector<1x128x128xf32> to vector<128x128xf32>
    %cst_238 = arith.constant dense<0.000000e+00> : vector<8x128xf32>
    %559 = tpu.matmul %556, %558, %cst_238 {dimension_numbers = #tpu.dot_dimension_numbers<[1], [0], [0], [1], [0, 0, 1, 1], [], []>} : vector<8x128xf32>, vector<128x128xf32>, vector<8x128xf32> -> vector<8x128xf32>
    %cst_239 = arith.constant -2.200000e+00 : f32
    %560 = vector.broadcast %cst_239 : f32 to vector<8x128xf32>
    %561 = arith.cmpf oge, %550, %560 : vector<8x128xf32>
    %cst_240 = arith.constant -1.800000e+00 : f32
    %562 = vector.broadcast %cst_240 : f32 to vector<8x128xf32>
    %563 = arith.cmpf olt, %550, %562 : vector<8x128xf32>
    %564 = arith.andi %561, %563 : vector<8x128xi1>
    %565 = arith.extui %564 : vector<8x128xi1> to vector<8x128xi32>
    %566 = arith.sitofp %565 : vector<8x128xi32> to vector<8x128xf32>
    %cst_241 = arith.constant -1.800000e+00 : f32
    %567 = vector.broadcast %cst_241 : f32 to vector<8x128xf32>
    %568 = arith.cmpf oge, %550, %567 : vector<8x128xf32>
    %cst_242 = arith.constant -1.400000e+00 : f32
    %569 = vector.broadcast %cst_242 : f32 to vector<8x128xf32>
    %570 = arith.cmpf olt, %550, %569 : vector<8x128xf32>
    %571 = arith.andi %568, %570 : vector<8x128xi1>
    %572 = arith.extui %571 : vector<8x128xi1> to vector<8x128xi32>
    %573 = arith.sitofp %572 : vector<8x128xi32> to vector<8x128xf32>
    %cst_243 = arith.constant -1.400000e+00 : f32
    %574 = vector.broadcast %cst_243 : f32 to vector<8x128xf32>
    %575 = arith.cmpf oge, %550, %574 : vector<8x128xf32>
    %cst_244 = arith.constant -1.000000e+00 : f32
    %576 = vector.broadcast %cst_244 : f32 to vector<8x128xf32>
    %577 = arith.cmpf olt, %550, %576 : vector<8x128xf32>
    %578 = arith.andi %575, %577 : vector<8x128xi1>
    %579 = arith.extui %578 : vector<8x128xi1> to vector<8x128xi32>
    %580 = arith.sitofp %579 : vector<8x128xi32> to vector<8x128xf32>
    %cst_245 = arith.constant -1.000000e+00 : f32
    %581 = vector.broadcast %cst_245 : f32 to vector<8x128xf32>
    %582 = arith.cmpf oge, %550, %581 : vector<8x128xf32>
    %cst_246 = arith.constant -6.000000e-01 : f32
    %583 = vector.broadcast %cst_246 : f32 to vector<8x128xf32>
    %584 = arith.cmpf olt, %550, %583 : vector<8x128xf32>
    %585 = arith.andi %582, %584 : vector<8x128xi1>
    %586 = arith.extui %585 : vector<8x128xi1> to vector<8x128xi32>
    %587 = arith.sitofp %586 : vector<8x128xi32> to vector<8x128xf32>
    %cst_247 = arith.constant -6.000000e-01 : f32
    %588 = vector.broadcast %cst_247 : f32 to vector<8x128xf32>
    %589 = arith.cmpf oge, %550, %588 : vector<8x128xf32>
    %cst_248 = arith.constant -2.000000e-01 : f32
    %590 = vector.broadcast %cst_248 : f32 to vector<8x128xf32>
    %591 = arith.cmpf olt, %550, %590 : vector<8x128xf32>
    %592 = arith.andi %589, %591 : vector<8x128xi1>
    %593 = arith.extui %592 : vector<8x128xi1> to vector<8x128xi32>
    %594 = arith.sitofp %593 : vector<8x128xi32> to vector<8x128xf32>
    %cst_249 = arith.constant -2.000000e-01 : f32
    %595 = vector.broadcast %cst_249 : f32 to vector<8x128xf32>
    %596 = arith.cmpf oge, %550, %595 : vector<8x128xf32>
    %cst_250 = arith.constant 2.000000e-01 : f32
    %597 = vector.broadcast %cst_250 : f32 to vector<8x128xf32>
    %598 = arith.cmpf olt, %550, %597 : vector<8x128xf32>
    %599 = arith.andi %596, %598 : vector<8x128xi1>
    %600 = arith.extui %599 : vector<8x128xi1> to vector<8x128xi32>
    %601 = arith.sitofp %600 : vector<8x128xi32> to vector<8x128xf32>
    %cst_251 = arith.constant 2.000000e-01 : f32
    %602 = vector.broadcast %cst_251 : f32 to vector<8x128xf32>
    %603 = arith.cmpf oge, %550, %602 : vector<8x128xf32>
    %cst_252 = arith.constant 6.000000e-01 : f32
    %604 = vector.broadcast %cst_252 : f32 to vector<8x128xf32>
    %605 = arith.cmpf olt, %550, %604 : vector<8x128xf32>
    %606 = arith.andi %603, %605 : vector<8x128xi1>
    %607 = arith.extui %606 : vector<8x128xi1> to vector<8x128xi32>
    %608 = arith.sitofp %607 : vector<8x128xi32> to vector<8x128xf32>
    %cst_253 = arith.constant 6.000000e-01 : f32
    %609 = vector.broadcast %cst_253 : f32 to vector<8x128xf32>
    %610 = arith.cmpf oge, %550, %609 : vector<8x128xf32>
    %cst_254 = arith.constant 1.000000e+00 : f32
    %611 = vector.broadcast %cst_254 : f32 to vector<8x128xf32>
    %612 = arith.cmpf olt, %550, %611 : vector<8x128xf32>
    %613 = arith.andi %610, %612 : vector<8x128xi1>
    %614 = arith.extui %613 : vector<8x128xi1> to vector<8x128xi32>
    %615 = arith.sitofp %614 : vector<8x128xi32> to vector<8x128xf32>
    %cst_255 = arith.constant 1.000000e+00 : f32
    %616 = vector.broadcast %cst_255 : f32 to vector<8x128xf32>
    %617 = arith.cmpf oge, %550, %616 : vector<8x128xf32>
    %cst_256 = arith.constant 1.400000e+00 : f32
    %618 = vector.broadcast %cst_256 : f32 to vector<8x128xf32>
    %619 = arith.cmpf olt, %550, %618 : vector<8x128xf32>
    %620 = arith.andi %617, %619 : vector<8x128xi1>
    %621 = arith.extui %620 : vector<8x128xi1> to vector<8x128xi32>
    %622 = arith.sitofp %621 : vector<8x128xi32> to vector<8x128xf32>
    %cst_257 = arith.constant 1.400000e+00 : f32
    %623 = vector.broadcast %cst_257 : f32 to vector<8x128xf32>
    %624 = arith.cmpf oge, %550, %623 : vector<8x128xf32>
    %cst_258 = arith.constant 1.800000e+00 : f32
    %625 = vector.broadcast %cst_258 : f32 to vector<8x128xf32>
    %626 = arith.cmpf olt, %550, %625 : vector<8x128xf32>
    %627 = arith.andi %624, %626 : vector<8x128xi1>
    %628 = arith.extui %627 : vector<8x128xi1> to vector<8x128xi32>
    %629 = arith.sitofp %628 : vector<8x128xi32> to vector<8x128xf32>
    %cst_259 = arith.constant 1.800000e+00 : f32
    %630 = vector.broadcast %cst_259 : f32 to vector<8x128xf32>
    %631 = arith.cmpf oge, %550, %630 : vector<8x128xf32>
    %cst_260 = arith.constant 2.200000e+00 : f32
    %632 = vector.broadcast %cst_260 : f32 to vector<8x128xf32>
    %633 = arith.cmpf olt, %550, %632 : vector<8x128xf32>
    %634 = arith.andi %631, %633 : vector<8x128xi1>
    %635 = arith.extui %634 : vector<8x128xi1> to vector<8x128xi32>
    %636 = arith.sitofp %635 : vector<8x128xi32> to vector<8x128xf32>
    %cst_261 = arith.constant -2.200000e+00 : f32
    %637 = vector.broadcast %cst_261 : f32 to vector<8x128xf32>
    %638 = arith.subf %550, %637 : vector<8x128xf32>
    %cst_262 = arith.constant 4.000000e-01 : f32
    %639 = vector.broadcast %cst_262 : f32 to vector<8x128xf32>
    %640 = arith.divf %638, %639 : vector<8x128xf32>
    %641 = arith.mulf %640, %566 : vector<8x128xf32>
    %cst_263 = arith.constant -1.400000e+00 : f32
    %642 = vector.broadcast %cst_263 : f32 to vector<8x128xf32>
    %643 = arith.subf %642, %550 : vector<8x128xf32>
    %cst_264 = arith.constant 4.000000e-01 : f32
    %644 = vector.broadcast %cst_264 : f32 to vector<8x128xf32>
    %645 = arith.divf %643, %644 : vector<8x128xf32>
    %646 = arith.mulf %645, %573 : vector<8x128xf32>
    %647 = arith.addf %641, %646 : vector<8x128xf32>
    %cst_265 = arith.constant -1.800000e+00 : f32
    %648 = vector.broadcast %cst_265 : f32 to vector<8x128xf32>
    %649 = arith.subf %550, %648 : vector<8x128xf32>
    %cst_266 = arith.constant 4.000000e-01 : f32
    %650 = vector.broadcast %cst_266 : f32 to vector<8x128xf32>
    %651 = arith.divf %649, %650 : vector<8x128xf32>
    %652 = arith.mulf %651, %573 : vector<8x128xf32>
    %cst_267 = arith.constant -1.000000e+00 : f32
    %653 = vector.broadcast %cst_267 : f32 to vector<8x128xf32>
    %654 = arith.subf %653, %550 : vector<8x128xf32>
    %cst_268 = arith.constant 4.000000e-01 : f32
    %655 = vector.broadcast %cst_268 : f32 to vector<8x128xf32>
    %656 = arith.divf %654, %655 : vector<8x128xf32>
    %657 = arith.mulf %656, %580 : vector<8x128xf32>
    %658 = arith.addf %652, %657 : vector<8x128xf32>
    %cst_269 = arith.constant -1.400000e+00 : f32
    %659 = vector.broadcast %cst_269 : f32 to vector<8x128xf32>
    %660 = arith.subf %550, %659 : vector<8x128xf32>
    %cst_270 = arith.constant 4.000000e-01 : f32
    %661 = vector.broadcast %cst_270 : f32 to vector<8x128xf32>
    %662 = arith.divf %660, %661 : vector<8x128xf32>
    %663 = arith.mulf %662, %580 : vector<8x128xf32>
    %cst_271 = arith.constant -6.000000e-01 : f32
    %664 = vector.broadcast %cst_271 : f32 to vector<8x128xf32>
    %665 = arith.subf %664, %550 : vector<8x128xf32>
    %cst_272 = arith.constant 4.000000e-01 : f32
    %666 = vector.broadcast %cst_272 : f32 to vector<8x128xf32>
    %667 = arith.divf %665, %666 : vector<8x128xf32>
    %668 = arith.mulf %667, %587 : vector<8x128xf32>
    %669 = arith.addf %663, %668 : vector<8x128xf32>
    %cst_273 = arith.constant -1.000000e+00 : f32
    %670 = vector.broadcast %cst_273 : f32 to vector<8x128xf32>
    %671 = arith.subf %550, %670 : vector<8x128xf32>
    %cst_274 = arith.constant 4.000000e-01 : f32
    %672 = vector.broadcast %cst_274 : f32 to vector<8x128xf32>
    %673 = arith.divf %671, %672 : vector<8x128xf32>
    %674 = arith.mulf %673, %587 : vector<8x128xf32>
    %cst_275 = arith.constant -2.000000e-01 : f32
    %675 = vector.broadcast %cst_275 : f32 to vector<8x128xf32>
    %676 = arith.subf %675, %550 : vector<8x128xf32>
    %cst_276 = arith.constant 4.000000e-01 : f32
    %677 = vector.broadcast %cst_276 : f32 to vector<8x128xf32>
    %678 = arith.divf %676, %677 : vector<8x128xf32>
    %679 = arith.mulf %678, %594 : vector<8x128xf32>
    %680 = arith.addf %674, %679 : vector<8x128xf32>
    %cst_277 = arith.constant -6.000000e-01 : f32
    %681 = vector.broadcast %cst_277 : f32 to vector<8x128xf32>
    %682 = arith.subf %550, %681 : vector<8x128xf32>
    %cst_278 = arith.constant 4.000000e-01 : f32
    %683 = vector.broadcast %cst_278 : f32 to vector<8x128xf32>
    %684 = arith.divf %682, %683 : vector<8x128xf32>
    %685 = arith.mulf %684, %594 : vector<8x128xf32>
    %cst_279 = arith.constant 2.000000e-01 : f32
    %686 = vector.broadcast %cst_279 : f32 to vector<8x128xf32>
    %687 = arith.subf %686, %550 : vector<8x128xf32>
    %cst_280 = arith.constant 4.000000e-01 : f32
    %688 = vector.broadcast %cst_280 : f32 to vector<8x128xf32>
    %689 = arith.divf %687, %688 : vector<8x128xf32>
    %690 = arith.mulf %689, %601 : vector<8x128xf32>
    %691 = arith.addf %685, %690 : vector<8x128xf32>
    %cst_281 = arith.constant -2.000000e-01 : f32
    %692 = vector.broadcast %cst_281 : f32 to vector<8x128xf32>
    %693 = arith.subf %550, %692 : vector<8x128xf32>
    %cst_282 = arith.constant 4.000000e-01 : f32
    %694 = vector.broadcast %cst_282 : f32 to vector<8x128xf32>
    %695 = arith.divf %693, %694 : vector<8x128xf32>
    %696 = arith.mulf %695, %601 : vector<8x128xf32>
    %cst_283 = arith.constant 6.000000e-01 : f32
    %697 = vector.broadcast %cst_283 : f32 to vector<8x128xf32>
    %698 = arith.subf %697, %550 : vector<8x128xf32>
    %cst_284 = arith.constant 4.000000e-01 : f32
    %699 = vector.broadcast %cst_284 : f32 to vector<8x128xf32>
    %700 = arith.divf %698, %699 : vector<8x128xf32>
    %701 = arith.mulf %700, %608 : vector<8x128xf32>
    %702 = arith.addf %696, %701 : vector<8x128xf32>
    %cst_285 = arith.constant 2.000000e-01 : f32
    %703 = vector.broadcast %cst_285 : f32 to vector<8x128xf32>
    %704 = arith.subf %550, %703 : vector<8x128xf32>
    %cst_286 = arith.constant 4.000000e-01 : f32
    %705 = vector.broadcast %cst_286 : f32 to vector<8x128xf32>
    %706 = arith.divf %704, %705 : vector<8x128xf32>
    %707 = arith.mulf %706, %608 : vector<8x128xf32>
    %cst_287 = arith.constant 1.000000e+00 : f32
    %708 = vector.broadcast %cst_287 : f32 to vector<8x128xf32>
    %709 = arith.subf %708, %550 : vector<8x128xf32>
    %cst_288 = arith.constant 4.000000e-01 : f32
    %710 = vector.broadcast %cst_288 : f32 to vector<8x128xf32>
    %711 = arith.divf %709, %710 : vector<8x128xf32>
    %712 = arith.mulf %711, %615 : vector<8x128xf32>
    %713 = arith.addf %707, %712 : vector<8x128xf32>
    %cst_289 = arith.constant 6.000000e-01 : f32
    %714 = vector.broadcast %cst_289 : f32 to vector<8x128xf32>
    %715 = arith.subf %550, %714 : vector<8x128xf32>
    %cst_290 = arith.constant 4.000000e-01 : f32
    %716 = vector.broadcast %cst_290 : f32 to vector<8x128xf32>
    %717 = arith.divf %715, %716 : vector<8x128xf32>
    %718 = arith.mulf %717, %615 : vector<8x128xf32>
    %cst_291 = arith.constant 1.400000e+00 : f32
    %719 = vector.broadcast %cst_291 : f32 to vector<8x128xf32>
    %720 = arith.subf %719, %550 : vector<8x128xf32>
    %cst_292 = arith.constant 4.000000e-01 : f32
    %721 = vector.broadcast %cst_292 : f32 to vector<8x128xf32>
    %722 = arith.divf %720, %721 : vector<8x128xf32>
    %723 = arith.mulf %722, %622 : vector<8x128xf32>
    %724 = arith.addf %718, %723 : vector<8x128xf32>
    %cst_293 = arith.constant 1.000000e+00 : f32
    %725 = vector.broadcast %cst_293 : f32 to vector<8x128xf32>
    %726 = arith.subf %550, %725 : vector<8x128xf32>
    %cst_294 = arith.constant 4.000000e-01 : f32
    %727 = vector.broadcast %cst_294 : f32 to vector<8x128xf32>
    %728 = arith.divf %726, %727 : vector<8x128xf32>
    %729 = arith.mulf %728, %622 : vector<8x128xf32>
    %cst_295 = arith.constant 1.800000e+00 : f32
    %730 = vector.broadcast %cst_295 : f32 to vector<8x128xf32>
    %731 = arith.subf %730, %550 : vector<8x128xf32>
    %cst_296 = arith.constant 4.000000e-01 : f32
    %732 = vector.broadcast %cst_296 : f32 to vector<8x128xf32>
    %733 = arith.divf %731, %732 : vector<8x128xf32>
    %734 = arith.mulf %733, %629 : vector<8x128xf32>
    %735 = arith.addf %729, %734 : vector<8x128xf32>
    %cst_297 = arith.constant 1.400000e+00 : f32
    %736 = vector.broadcast %cst_297 : f32 to vector<8x128xf32>
    %737 = arith.subf %550, %736 : vector<8x128xf32>
    %cst_298 = arith.constant 4.000000e-01 : f32
    %738 = vector.broadcast %cst_298 : f32 to vector<8x128xf32>
    %739 = arith.divf %737, %738 : vector<8x128xf32>
    %740 = arith.mulf %739, %629 : vector<8x128xf32>
    %cst_299 = arith.constant 2.200000e+00 : f32
    %741 = vector.broadcast %cst_299 : f32 to vector<8x128xf32>
    %742 = arith.subf %741, %550 : vector<8x128xf32>
    %cst_300 = arith.constant 4.000000e-01 : f32
    %743 = vector.broadcast %cst_300 : f32 to vector<8x128xf32>
    %744 = arith.divf %742, %743 : vector<8x128xf32>
    %745 = arith.mulf %744, %636 : vector<8x128xf32>
    %746 = arith.addf %740, %745 : vector<8x128xf32>
    %cst_301 = arith.constant -2.200000e+00 : f32
    %747 = vector.broadcast %cst_301 : f32 to vector<8x128xf32>
    %748 = arith.subf %550, %747 : vector<8x128xf32>
    %cst_302 = arith.constant 8.000000e-01 : f32
    %749 = vector.broadcast %cst_302 : f32 to vector<8x128xf32>
    %750 = arith.divf %748, %749 : vector<8x128xf32>
    %751 = arith.mulf %750, %647 : vector<8x128xf32>
    %cst_303 = arith.constant -1.000000e+00 : f32
    %752 = vector.broadcast %cst_303 : f32 to vector<8x128xf32>
    %753 = arith.subf %752, %550 : vector<8x128xf32>
    %cst_304 = arith.constant 8.000000e-01 : f32
    %754 = vector.broadcast %cst_304 : f32 to vector<8x128xf32>
    %755 = arith.divf %753, %754 : vector<8x128xf32>
    %756 = arith.mulf %755, %658 : vector<8x128xf32>
    %757 = arith.addf %751, %756 : vector<8x128xf32>
    %cst_305 = arith.constant -1.800000e+00 : f32
    %758 = vector.broadcast %cst_305 : f32 to vector<8x128xf32>
    %759 = arith.subf %550, %758 : vector<8x128xf32>
    %cst_306 = arith.constant 8.000000e-01 : f32
    %760 = vector.broadcast %cst_306 : f32 to vector<8x128xf32>
    %761 = arith.divf %759, %760 : vector<8x128xf32>
    %762 = arith.mulf %761, %658 : vector<8x128xf32>
    %cst_307 = arith.constant -6.000000e-01 : f32
    %763 = vector.broadcast %cst_307 : f32 to vector<8x128xf32>
    %764 = arith.subf %763, %550 : vector<8x128xf32>
    %cst_308 = arith.constant 8.000000e-01 : f32
    %765 = vector.broadcast %cst_308 : f32 to vector<8x128xf32>
    %766 = arith.divf %764, %765 : vector<8x128xf32>
    %767 = arith.mulf %766, %669 : vector<8x128xf32>
    %768 = arith.addf %762, %767 : vector<8x128xf32>
    %cst_309 = arith.constant -1.400000e+00 : f32
    %769 = vector.broadcast %cst_309 : f32 to vector<8x128xf32>
    %770 = arith.subf %550, %769 : vector<8x128xf32>
    %cst_310 = arith.constant 8.000000e-01 : f32
    %771 = vector.broadcast %cst_310 : f32 to vector<8x128xf32>
    %772 = arith.divf %770, %771 : vector<8x128xf32>
    %773 = arith.mulf %772, %669 : vector<8x128xf32>
    %cst_311 = arith.constant -2.000000e-01 : f32
    %774 = vector.broadcast %cst_311 : f32 to vector<8x128xf32>
    %775 = arith.subf %774, %550 : vector<8x128xf32>
    %cst_312 = arith.constant 8.000000e-01 : f32
    %776 = vector.broadcast %cst_312 : f32 to vector<8x128xf32>
    %777 = arith.divf %775, %776 : vector<8x128xf32>
    %778 = arith.mulf %777, %680 : vector<8x128xf32>
    %779 = arith.addf %773, %778 : vector<8x128xf32>
    %cst_313 = arith.constant -1.000000e+00 : f32
    %780 = vector.broadcast %cst_313 : f32 to vector<8x128xf32>
    %781 = arith.subf %550, %780 : vector<8x128xf32>
    %cst_314 = arith.constant 8.000000e-01 : f32
    %782 = vector.broadcast %cst_314 : f32 to vector<8x128xf32>
    %783 = arith.divf %781, %782 : vector<8x128xf32>
    %784 = arith.mulf %783, %680 : vector<8x128xf32>
    %cst_315 = arith.constant 2.000000e-01 : f32
    %785 = vector.broadcast %cst_315 : f32 to vector<8x128xf32>
    %786 = arith.subf %785, %550 : vector<8x128xf32>
    %cst_316 = arith.constant 8.000000e-01 : f32
    %787 = vector.broadcast %cst_316 : f32 to vector<8x128xf32>
    %788 = arith.divf %786, %787 : vector<8x128xf32>
    %789 = arith.mulf %788, %691 : vector<8x128xf32>
    %790 = arith.addf %784, %789 : vector<8x128xf32>
    %cst_317 = arith.constant -6.000000e-01 : f32
    %791 = vector.broadcast %cst_317 : f32 to vector<8x128xf32>
    %792 = arith.subf %550, %791 : vector<8x128xf32>
    %cst_318 = arith.constant 8.000000e-01 : f32
    %793 = vector.broadcast %cst_318 : f32 to vector<8x128xf32>
    %794 = arith.divf %792, %793 : vector<8x128xf32>
    %795 = arith.mulf %794, %691 : vector<8x128xf32>
    %cst_319 = arith.constant 6.000000e-01 : f32
    %796 = vector.broadcast %cst_319 : f32 to vector<8x128xf32>
    %797 = arith.subf %796, %550 : vector<8x128xf32>
    %cst_320 = arith.constant 8.000000e-01 : f32
    %798 = vector.broadcast %cst_320 : f32 to vector<8x128xf32>
    %799 = arith.divf %797, %798 : vector<8x128xf32>
    %800 = arith.mulf %799, %702 : vector<8x128xf32>
    %801 = arith.addf %795, %800 : vector<8x128xf32>
    %cst_321 = arith.constant -2.000000e-01 : f32
    %802 = vector.broadcast %cst_321 : f32 to vector<8x128xf32>
    %803 = arith.subf %550, %802 : vector<8x128xf32>
    %cst_322 = arith.constant 8.000000e-01 : f32
    %804 = vector.broadcast %cst_322 : f32 to vector<8x128xf32>
    %805 = arith.divf %803, %804 : vector<8x128xf32>
    %806 = arith.mulf %805, %702 : vector<8x128xf32>
    %cst_323 = arith.constant 1.000000e+00 : f32
    %807 = vector.broadcast %cst_323 : f32 to vector<8x128xf32>
    %808 = arith.subf %807, %550 : vector<8x128xf32>
    %cst_324 = arith.constant 8.000000e-01 : f32
    %809 = vector.broadcast %cst_324 : f32 to vector<8x128xf32>
    %810 = arith.divf %808, %809 : vector<8x128xf32>
    %811 = arith.mulf %810, %713 : vector<8x128xf32>
    %812 = arith.addf %806, %811 : vector<8x128xf32>
    %cst_325 = arith.constant 2.000000e-01 : f32
    %813 = vector.broadcast %cst_325 : f32 to vector<8x128xf32>
    %814 = arith.subf %550, %813 : vector<8x128xf32>
    %cst_326 = arith.constant 8.000000e-01 : f32
    %815 = vector.broadcast %cst_326 : f32 to vector<8x128xf32>
    %816 = arith.divf %814, %815 : vector<8x128xf32>
    %817 = arith.mulf %816, %713 : vector<8x128xf32>
    %cst_327 = arith.constant 1.400000e+00 : f32
    %818 = vector.broadcast %cst_327 : f32 to vector<8x128xf32>
    %819 = arith.subf %818, %550 : vector<8x128xf32>
    %cst_328 = arith.constant 8.000000e-01 : f32
    %820 = vector.broadcast %cst_328 : f32 to vector<8x128xf32>
    %821 = arith.divf %819, %820 : vector<8x128xf32>
    %822 = arith.mulf %821, %724 : vector<8x128xf32>
    %823 = arith.addf %817, %822 : vector<8x128xf32>
    %cst_329 = arith.constant 6.000000e-01 : f32
    %824 = vector.broadcast %cst_329 : f32 to vector<8x128xf32>
    %825 = arith.subf %550, %824 : vector<8x128xf32>
    %cst_330 = arith.constant 8.000000e-01 : f32
    %826 = vector.broadcast %cst_330 : f32 to vector<8x128xf32>
    %827 = arith.divf %825, %826 : vector<8x128xf32>
    %828 = arith.mulf %827, %724 : vector<8x128xf32>
    %cst_331 = arith.constant 1.800000e+00 : f32
    %829 = vector.broadcast %cst_331 : f32 to vector<8x128xf32>
    %830 = arith.subf %829, %550 : vector<8x128xf32>
    %cst_332 = arith.constant 8.000000e-01 : f32
    %831 = vector.broadcast %cst_332 : f32 to vector<8x128xf32>
    %832 = arith.divf %830, %831 : vector<8x128xf32>
    %833 = arith.mulf %832, %735 : vector<8x128xf32>
    %834 = arith.addf %828, %833 : vector<8x128xf32>
    %cst_333 = arith.constant 1.000000e+00 : f32
    %835 = vector.broadcast %cst_333 : f32 to vector<8x128xf32>
    %836 = arith.subf %550, %835 : vector<8x128xf32>
    %cst_334 = arith.constant 8.000000e-01 : f32
    %837 = vector.broadcast %cst_334 : f32 to vector<8x128xf32>
    %838 = arith.divf %836, %837 : vector<8x128xf32>
    %839 = arith.mulf %838, %735 : vector<8x128xf32>
    %cst_335 = arith.constant 2.200000e+00 : f32
    %840 = vector.broadcast %cst_335 : f32 to vector<8x128xf32>
    %841 = arith.subf %840, %550 : vector<8x128xf32>
    %cst_336 = arith.constant 8.000000e-01 : f32
    %842 = vector.broadcast %cst_336 : f32 to vector<8x128xf32>
    %843 = arith.divf %841, %842 : vector<8x128xf32>
    %844 = arith.mulf %843, %746 : vector<8x128xf32>
    %845 = arith.addf %839, %844 : vector<8x128xf32>
    %cst_337 = arith.constant -2.200000e+00 : f32
    %846 = vector.broadcast %cst_337 : f32 to vector<8x128xf32>
    %847 = arith.subf %550, %846 : vector<8x128xf32>
    %cst_338 = arith.constant 1.200000e+00 : f32
    %848 = vector.broadcast %cst_338 : f32 to vector<8x128xf32>
    %849 = arith.divf %847, %848 : vector<8x128xf32>
    %850 = arith.mulf %849, %757 : vector<8x128xf32>
    %cst_339 = arith.constant -6.000000e-01 : f32
    %851 = vector.broadcast %cst_339 : f32 to vector<8x128xf32>
    %852 = arith.subf %851, %550 : vector<8x128xf32>
    %cst_340 = arith.constant 1.200000e+00 : f32
    %853 = vector.broadcast %cst_340 : f32 to vector<8x128xf32>
    %854 = arith.divf %852, %853 : vector<8x128xf32>
    %855 = arith.mulf %854, %768 : vector<8x128xf32>
    %856 = arith.addf %850, %855 : vector<8x128xf32>
    %cst_341 = arith.constant -1.800000e+00 : f32
    %857 = vector.broadcast %cst_341 : f32 to vector<8x128xf32>
    %858 = arith.subf %550, %857 : vector<8x128xf32>
    %cst_342 = arith.constant 1.200000e+00 : f32
    %859 = vector.broadcast %cst_342 : f32 to vector<8x128xf32>
    %860 = arith.divf %858, %859 : vector<8x128xf32>
    %861 = arith.mulf %860, %768 : vector<8x128xf32>
    %cst_343 = arith.constant -2.000000e-01 : f32
    %862 = vector.broadcast %cst_343 : f32 to vector<8x128xf32>
    %863 = arith.subf %862, %550 : vector<8x128xf32>
    %cst_344 = arith.constant 1.200000e+00 : f32
    %864 = vector.broadcast %cst_344 : f32 to vector<8x128xf32>
    %865 = arith.divf %863, %864 : vector<8x128xf32>
    %866 = arith.mulf %865, %779 : vector<8x128xf32>
    %867 = arith.addf %861, %866 : vector<8x128xf32>
    %cst_345 = arith.constant -1.400000e+00 : f32
    %868 = vector.broadcast %cst_345 : f32 to vector<8x128xf32>
    %869 = arith.subf %550, %868 : vector<8x128xf32>
    %cst_346 = arith.constant 1.200000e+00 : f32
    %870 = vector.broadcast %cst_346 : f32 to vector<8x128xf32>
    %871 = arith.divf %869, %870 : vector<8x128xf32>
    %872 = arith.mulf %871, %779 : vector<8x128xf32>
    %cst_347 = arith.constant 2.000000e-01 : f32
    %873 = vector.broadcast %cst_347 : f32 to vector<8x128xf32>
    %874 = arith.subf %873, %550 : vector<8x128xf32>
    %cst_348 = arith.constant 1.200000e+00 : f32
    %875 = vector.broadcast %cst_348 : f32 to vector<8x128xf32>
    %876 = arith.divf %874, %875 : vector<8x128xf32>
    %877 = arith.mulf %876, %790 : vector<8x128xf32>
    %878 = arith.addf %872, %877 : vector<8x128xf32>
    %cst_349 = arith.constant -1.000000e+00 : f32
    %879 = vector.broadcast %cst_349 : f32 to vector<8x128xf32>
    %880 = arith.subf %550, %879 : vector<8x128xf32>
    %cst_350 = arith.constant 1.200000e+00 : f32
    %881 = vector.broadcast %cst_350 : f32 to vector<8x128xf32>
    %882 = arith.divf %880, %881 : vector<8x128xf32>
    %883 = arith.mulf %882, %790 : vector<8x128xf32>
    %cst_351 = arith.constant 6.000000e-01 : f32
    %884 = vector.broadcast %cst_351 : f32 to vector<8x128xf32>
    %885 = arith.subf %884, %550 : vector<8x128xf32>
    %cst_352 = arith.constant 1.200000e+00 : f32
    %886 = vector.broadcast %cst_352 : f32 to vector<8x128xf32>
    %887 = arith.divf %885, %886 : vector<8x128xf32>
    %888 = arith.mulf %887, %801 : vector<8x128xf32>
    %889 = arith.addf %883, %888 : vector<8x128xf32>
    %cst_353 = arith.constant -6.000000e-01 : f32
    %890 = vector.broadcast %cst_353 : f32 to vector<8x128xf32>
    %891 = arith.subf %550, %890 : vector<8x128xf32>
    %cst_354 = arith.constant 1.200000e+00 : f32
    %892 = vector.broadcast %cst_354 : f32 to vector<8x128xf32>
    %893 = arith.divf %891, %892 : vector<8x128xf32>
    %894 = arith.mulf %893, %801 : vector<8x128xf32>
    %cst_355 = arith.constant 1.000000e+00 : f32
    %895 = vector.broadcast %cst_355 : f32 to vector<8x128xf32>
    %896 = arith.subf %895, %550 : vector<8x128xf32>
    %cst_356 = arith.constant 1.200000e+00 : f32
    %897 = vector.broadcast %cst_356 : f32 to vector<8x128xf32>
    %898 = arith.divf %896, %897 : vector<8x128xf32>
    %899 = arith.mulf %898, %812 : vector<8x128xf32>
    %900 = arith.addf %894, %899 : vector<8x128xf32>
    %cst_357 = arith.constant -2.000000e-01 : f32
    %901 = vector.broadcast %cst_357 : f32 to vector<8x128xf32>
    %902 = arith.subf %550, %901 : vector<8x128xf32>
    %cst_358 = arith.constant 1.200000e+00 : f32
    %903 = vector.broadcast %cst_358 : f32 to vector<8x128xf32>
    %904 = arith.divf %902, %903 : vector<8x128xf32>
    %905 = arith.mulf %904, %812 : vector<8x128xf32>
    %cst_359 = arith.constant 1.400000e+00 : f32
    %906 = vector.broadcast %cst_359 : f32 to vector<8x128xf32>
    %907 = arith.subf %906, %550 : vector<8x128xf32>
    %cst_360 = arith.constant 1.200000e+00 : f32
    %908 = vector.broadcast %cst_360 : f32 to vector<8x128xf32>
    %909 = arith.divf %907, %908 : vector<8x128xf32>
    %910 = arith.mulf %909, %823 : vector<8x128xf32>
    %911 = arith.addf %905, %910 : vector<8x128xf32>
    %cst_361 = arith.constant 2.000000e-01 : f32
    %912 = vector.broadcast %cst_361 : f32 to vector<8x128xf32>
    %913 = arith.subf %550, %912 : vector<8x128xf32>
    %cst_362 = arith.constant 1.200000e+00 : f32
    %914 = vector.broadcast %cst_362 : f32 to vector<8x128xf32>
    %915 = arith.divf %913, %914 : vector<8x128xf32>
    %916 = arith.mulf %915, %823 : vector<8x128xf32>
    %cst_363 = arith.constant 1.800000e+00 : f32
    %917 = vector.broadcast %cst_363 : f32 to vector<8x128xf32>
    %918 = arith.subf %917, %550 : vector<8x128xf32>
    %cst_364 = arith.constant 1.200000e+00 : f32
    %919 = vector.broadcast %cst_364 : f32 to vector<8x128xf32>
    %920 = arith.divf %918, %919 : vector<8x128xf32>
    %921 = arith.mulf %920, %834 : vector<8x128xf32>
    %922 = arith.addf %916, %921 : vector<8x128xf32>
    %cst_365 = arith.constant 6.000000e-01 : f32
    %923 = vector.broadcast %cst_365 : f32 to vector<8x128xf32>
    %924 = arith.subf %550, %923 : vector<8x128xf32>
    %cst_366 = arith.constant 1.200000e+00 : f32
    %925 = vector.broadcast %cst_366 : f32 to vector<8x128xf32>
    %926 = arith.divf %924, %925 : vector<8x128xf32>
    %927 = arith.mulf %926, %834 : vector<8x128xf32>
    %cst_367 = arith.constant 2.200000e+00 : f32
    %928 = vector.broadcast %cst_367 : f32 to vector<8x128xf32>
    %929 = arith.subf %928, %550 : vector<8x128xf32>
    %cst_368 = arith.constant 1.200000e+00 : f32
    %930 = vector.broadcast %cst_368 : f32 to vector<8x128xf32>
    %931 = arith.divf %929, %930 : vector<8x128xf32>
    %932 = arith.mulf %931, %845 : vector<8x128xf32>
    %933 = arith.addf %927, %932 : vector<8x128xf32>
    %934 = tpu.concatenate %856, %867, %878, %889, %900, %911, %922, %933 in 1 : vector<8x128xf32>, vector<8x128xf32>, vector<8x128xf32>, vector<8x128xf32>, vector<8x128xf32>, vector<8x128xf32>, vector<8x128xf32>, vector<8x128xf32> -> vector<8x1024xf32>
    %c1_369 = arith.constant 1 : index
    %c0_370 = arith.constant 0 : index
    %c0_371 = arith.constant 0 : index
    %935 = vector.load %arg12[%c1_369, %c0_370, %c0_371] : memref<2x1024x128xf32, #tpu.memory_space<vmem>>, vector<1x1024x128xf32>
    %936 = vector.shape_cast %935 : vector<1x1024x128xf32> to vector<1024x128xf32>
    %cst_372 = arith.constant dense<0.000000e+00> : vector<8x128xf32>
    %937 = tpu.matmul %934, %936, %cst_372 {dimension_numbers = #tpu.dot_dimension_numbers<[1], [0], [0], [1], [0, 0, 1, 1], [], []>} : vector<8x1024xf32>, vector<1024x128xf32>, vector<8x128xf32> -> vector<8x128xf32>
    %938 = arith.addf %559, %937 : vector<8x128xf32>
    %939 = arith.addf %550, %938 : vector<8x128xf32>
    %c1_373 = arith.constant 1 : index
    %c1_374 = arith.constant 1 : index
    %c0_375 = arith.constant 0 : index
    %c0_376 = arith.constant 0 : index
    %940 = vector.load %arg9[%c1_373, %c1_374, %c0_375, %c0_376] : memref<2x2x1x128xf32, #tpu.memory_space<vmem>>, vector<1x1x1x128xf32>
    %941 = vector.shape_cast %940 : vector<1x1x1x128xf32> to vector<1x128xf32>
    %c1_377 = arith.constant 1 : index
    %c1_378 = arith.constant 1 : index
    %c0_379 = arith.constant 0 : index
    %c0_380 = arith.constant 0 : index
    %942 = vector.load %arg10[%c1_377, %c1_378, %c0_379, %c0_380] : memref<2x2x1x128xf32, #tpu.memory_space<vmem>>, vector<1x1x1x128xf32>
    %943 = vector.shape_cast %942 : vector<1x1x1x128xf32> to vector<1x128xf32>
    %cst_381 = arith.constant dense<0.000000e+00> : vector<8xf32>
    %944 = vector.multi_reduction <add>, %939, %cst_381 [1] : vector<8x128xf32> to vector<8xf32>
    %945 = vector.shape_cast %944 : vector<8xf32> to vector<8x1xf32>
    %cst_382 = arith.constant 0.00892857183 : f32
    %946 = vector.broadcast %cst_382 : f32 to vector<8x1xf32>
    %947 = arith.mulf %945, %946 : vector<8x1xf32>
    %948 = vector.broadcast %947 : vector<8x1xf32> to vector<8x128xf32>
    %949 = arith.subf %939, %948 : vector<8x128xf32>
    %950 = vector.broadcast %0 : vector<1x128xf32> to vector<8x128xf32>
    %951 = arith.mulf %949, %950 : vector<8x128xf32>
    %952 = arith.mulf %951, %951 : vector<8x128xf32>
    %cst_383 = arith.constant dense<0.000000e+00> : vector<8xf32>
    %953 = vector.multi_reduction <add>, %952, %cst_383 [1] : vector<8x128xf32> to vector<8xf32>
    %954 = vector.shape_cast %953 : vector<8xf32> to vector<8x1xf32>
    %cst_384 = arith.constant 0.00892857183 : f32
    %955 = vector.broadcast %cst_384 : f32 to vector<8x1xf32>
    %956 = arith.mulf %954, %955 : vector<8x1xf32>
    %cst_385 = arith.constant 9.99999974E-6 : f32
    %957 = vector.broadcast %cst_385 : f32 to vector<8x1xf32>
    %958 = arith.addf %956, %957 : vector<8x1xf32>
    %959 = math.rsqrt %958 : vector<8x1xf32>
    %960 = vector.broadcast %959 : vector<8x1xf32> to vector<8x128xf32>
    %961 = arith.mulf %951, %960 : vector<8x128xf32>
    %962 = vector.broadcast %941 : vector<1x128xf32> to vector<8x128xf32>
    %963 = arith.mulf %961, %962 : vector<8x128xf32>
    %964 = vector.broadcast %943 : vector<1x128xf32> to vector<8x128xf32>
    %965 = arith.addf %963, %964 : vector<8x128xf32>
    %c0_386 = arith.constant 0 : index
    %c0_387 = arith.constant 0 : index
    %966 = vector.load %arg19[%c0_386, %c0_387] : memref<1x8xf32, #tpu.memory_space<vmem>>, vector<1x8xf32>
    %cst_388 = arith.constant dense<0.000000e+00> : vector<1x128xf32>
    %967 = tpu.matmul %966, %965, %cst_388 {dimension_numbers = #tpu.dot_dimension_numbers<[1], [0], [0], [1], [0, 0, 1, 1], [], []>} : vector<1x8xf32>, vector<8x128xf32>, vector<1x128xf32> -> vector<1x128xf32>
    %c0_389 = arith.constant 0 : index
    %c0_390 = arith.constant 0 : index
    %968 = vector.load %arg13[%c0_389, %c0_390] : memref<128x128xf32, #tpu.memory_space<vmem>>, vector<128x128xf32>
    %cst_391 = arith.constant dense<0.000000e+00> : vector<1x128xf32>
    %969 = tpu.matmul %967, %968, %cst_391 {dimension_numbers = #tpu.dot_dimension_numbers<[1], [0], [0], [1], [0, 0, 1, 1], [], []>} : vector<1x128xf32>, vector<128x128xf32>, vector<1x128xf32> -> vector<1x128xf32>
    %c0_392 = arith.constant 0 : index
    %c0_393 = arith.constant 0 : index
    %970 = vector.load %arg14[%c0_392, %c0_393] : memref<1x128xf32, #tpu.memory_space<vmem>>, vector<1x128xf32>
    %971 = arith.addf %969, %970 : vector<1x128xf32>
    %c0_394 = arith.constant 0 : index
    %c0_395 = arith.constant 0 : index
    %c0_396 = arith.constant 0 : index
    %972 = vector.load %arg20[%c0_394, %c0_395, %c0_396] : memref<1x1x128xf32, #tpu.memory_space<vmem>>, vector<1x1x128xf32>
    %973 = vector.shape_cast %972 : vector<1x1x128xf32> to vector<1x128xf32>
    %974 = vector.shape_cast %971 : vector<1x128xf32> to vector<1x1x128xf32>
    tpu.vector_store %arg20[%c0_394, %c0_395, %c0_396], %974 {strides = array<i32>} : memref<1x1x128xf32, #tpu.memory_space<vmem>>, vector<1x1x128xf32>,
    return
  }
  func.func @transform_0(%arg0: i32) -> (i32, i32, i32) {
    %c0_i32 = arith.constant 0 : i32
    %c0_i32_0 = arith.constant 0 : i32
    %c0_i32_1 = arith.constant 0 : i32
    return %arg0, %c0_i32, %c0_i32_0 : i32, i32, i32
  }
  func.func @transform_1(%arg0: i32) -> (i32, i32) {
    %c0_i32 = arith.constant 0 : i32
    %c0_i32_0 = arith.constant 0 : i32
    %c0_i32_1 = arith.constant 0 : i32
    return %c0_i32, %c0_i32_0 : i32, i32
  }
  func.func @transform_2(%arg0: i32) -> (i32, i32) {
    %c0_i32 = arith.constant 0 : i32
    %c0_i32_0 = arith.constant 0 : i32
    %c0_i32_1 = arith.constant 0 : i32
    return %c0_i32, %c0_i32_0 : i32, i32
  }
  func.func @transform_3(%arg0: i32) -> (i32, i32) {
    %c0_i32 = arith.constant 0 : i32
    %c0_i32_0 = arith.constant 0 : i32
    %c0_i32_1 = arith.constant 0 : i32
    return %c0_i32, %c0_i32_0 : i32, i32
  }
  func.func @transform_4(%arg0: i32) -> (i32, i32, i32) {
    %c0_i32 = arith.constant 0 : i32
    %c0_i32_0 = arith.constant 0 : i32
    %c0_i32_1 = arith.constant 0 : i32
    %c0_i32_2 = arith.constant 0 : i32
    return %c0_i32, %c0_i32_0, %c0_i32_1 : i32, i32, i32
  }
  func.func @transform_5(%arg0: i32) -> (i32, i32, i32) {
    %c0_i32 = arith.constant 0 : i32
    %c0_i32_0 = arith.constant 0 : i32
    %c0_i32_1 = arith.constant 0 : i32
    %c0_i32_2 = arith.constant 0 : i32
    return %c0_i32, %c0_i32_0, %c0_i32_1 : i32, i32, i32
  }
  func.func @transform_6(%arg0: i32) -> (i32, i32, i32) {
    %c0_i32 = arith.constant 0 : i32
    %c0_i32_0 = arith.constant 0 : i32
    %c0_i32_1 = arith.constant 0 : i32
    %c0_i32_2 = arith.constant 0 : i32
    return %c0_i32, %c0_i32_0, %c0_i32_1 : i32, i32, i32
  }
  func.func @transform_7(%arg0: i32) -> (i32, i32, i32) {
    %c0_i32 = arith.constant 0 : i32
    %c0_i32_0 = arith.constant 0 : i32
    %c0_i32_1 = arith.constant 0 : i32
    %c0_i32_2 = arith.constant 0 : i32
    return %c0_i32, %c0_i32_0, %c0_i32_1 : i32, i32, i32
  }
  func.func @transform_8(%arg0: i32) -> (i32, i32, i32, i32) {
    %c0_i32 = arith.constant 0 : i32
    %c0_i32_0 = arith.constant 0 : i32
    %c0_i32_1 = arith.constant 0 : i32
    %c0_i32_2 = arith.constant 0 : i32
    %c0_i32_3 = arith.constant 0 : i32
    return %c0_i32, %c0_i32_0, %c0_i32_1, %c0_i32_2 : i32, i32, i32, i32
  }
  func.func @transform_9(%arg0: i32) -> (i32, i32, i32, i32) {
    %c0_i32 = arith.constant 0 : i32
    %c0_i32_0 = arith.constant 0 : i32
    %c0_i32_1 = arith.constant 0 : i32
    %c0_i32_2 = arith.constant 0 : i32
    %c0_i32_3 = arith.constant 0 : i32
    return %c0_i32, %c0_i32_0, %c0_i32_1, %c0_i32_2 : i32, i32, i32, i32
  }
  func.func @transform_10(%arg0: i32) -> (i32, i32, i32) {
    %c0_i32 = arith.constant 0 : i32
    %c0_i32_0 = arith.constant 0 : i32
    %c0_i32_1 = arith.constant 0 : i32
    %c0_i32_2 = arith.constant 0 : i32
    return %c0_i32, %c0_i32_0, %c0_i32_1 : i32, i32, i32
  }
  func.func @transform_11(%arg0: i32) -> (i32, i32, i32) {
    %c0_i32 = arith.constant 0 : i32
    %c0_i32_0 = arith.constant 0 : i32
    %c0_i32_1 = arith.constant 0 : i32
    %c0_i32_2 = arith.constant 0 : i32
    return %c0_i32, %c0_i32_0, %c0_i32_1 : i32, i32, i32
  }
  func.func @transform_12(%arg0: i32) -> (i32, i32) {
    %c0_i32 = arith.constant 0 : i32
    %c0_i32_0 = arith.constant 0 : i32
    %c0_i32_1 = arith.constant 0 : i32
    return %c0_i32, %c0_i32_0 : i32, i32
  }
  func.func @transform_13(%arg0: i32) -> (i32, i32) {
    %c0_i32 = arith.constant 0 : i32
    %c0_i32_0 = arith.constant 0 : i32
    %c0_i32_1 = arith.constant 0 : i32
    return %c0_i32, %c0_i32_0 : i32, i32
  }
  func.func @transform_14(%arg0: i32) -> (i32, i32) {
    %c0_i32 = arith.constant 0 : i32
    %c0_i32_0 = arith.constant 0 : i32
    %c0_i32_1 = arith.constant 0 : i32
    return %c0_i32, %c0_i32_0 : i32, i32
  }
  func.func @transform_15(%arg0: i32) -> (i32, i32) {
    %c0_i32 = arith.constant 0 : i32
    %c0_i32_0 = arith.constant 0 : i32
    %c0_i32_1 = arith.constant 0 : i32
    return %c0_i32, %c0_i32_0 : i32, i32
  }
  func.func @transform_16(%arg0: i32) -> (i32, i32) {
    %c0_i32 = arith.constant 0 : i32
    %c0_i32_0 = arith.constant 0 : i32
    %c0_i32_1 = arith.constant 0 : i32
    return %c0_i32, %c0_i32_0 : i32, i32
  }
  func.func @transform_17(%arg0: i32) -> (i32, i32) {
    %c0_i32 = arith.constant 0 : i32
    %c0_i32_0 = arith.constant 0 : i32
    %c0_i32_1 = arith.constant 0 : i32
    return %c0_i32, %c0_i32_0 : i32, i32
  }
  func.func @transform_18(%arg0: i32) -> (i32, i32) {
    %c0_i32 = arith.constant 0 : i32
    %c0_i32_0 = arith.constant 0 : i32
    %c0_i32_1 = arith.constant 0 : i32
    return %c0_i32, %c0_i32_0 : i32, i32
  }
  func.func @transform_19(%arg0: i32) -> (i32, i32, i32) {
    %c0_i32 = arith.constant 0 : i32
    %c0_i32_0 = arith.constant 0 : i32
    %c0_i32_1 = arith.constant 0 : i32
    return %arg0, %c0_i32, %c0_i32_0 : i32, i32, i32
  }
}

</mosaic_0001>

<llo_original>
// kernel: forward.1
$region0: #{forward.1}
  #allocation0 [shape = 'u32[]', space=smem, size = 0x4, offset = 0x4, fixed_abs, tag = 'smem constant byte address 0x4 - core index']
  #allocation1 [shape = 'u32[144,128]{1,0:T(1,128)}', space=vmem, size = 0x12000, scoped, tag = 'internal scratch']
  %s0 = inlined_call_operand.vmem [shape: s32[2,8,1], index: 0, kind: input, shape index: {}]
  %s1 = inlined_call_operand.hbm [shape: f32[64,256], index: 1, kind: input, shape index: {}]
  %s2 = inlined_call_operand.hbm [shape: f32[256,128], index: 2, kind: input, shape index: {}]
  %s3 = inlined_call_operand.vmem [shape: f32[1,128], index: 3, kind: input, shape index: {}]
  %s4 = inlined_call_operand.hbm [shape: f32[2,128,384], index: 4, kind: input, shape index: {}]
  %s5 = inlined_call_operand.vmem [shape: f32[2,1,384], index: 5, kind: input, shape index: {}]
  %s6 = inlined_call_operand.hbm [shape: f32[2,128,128], index: 6, kind: input, shape index: {}]
  %s7 = inlined_call_operand.vmem [shape: f32[2,1,128], index: 7, kind: input, shape index: {}]
  %s8 = inlined_call_operand.vmem [shape: f32[2,2,1,128], index: 8, kind: input, shape index: {}]
  %s9 = inlined_call_operand.vmem [shape: f32[2,2,1,128], index: 9, kind: input, shape index: {}]
  %s10 = inlined_call_operand.hbm [shape: f32[2,128,128], index: 10, kind: input, shape index: {}]
  %s11 = inlined_call_operand.hbm [shape: f32[2,1024,128], index: 11, kind: input, shape index: {}]
  %s12 = inlined_call_operand.hbm [shape: f32[128,128], index: 12, kind: input, shape index: {}]
  %s13 = inlined_call_operand.hbm [shape: f32[1,128], index: 13, kind: input, shape index: {}]
  %s14 = inlined_call_operand.hbm [shape: f32[224,8], index: 14, kind: input, shape index: {}]
  %s15 = inlined_call_operand.vmem [shape: f32[8,224], index: 15, kind: input, shape index: {}]
  %s16 = inlined_call_operand.hbm [shape: f32[224,128], index: 16, kind: input, shape index: {}]
  %s17 = inlined_call_operand.vmem [shape: f32[1,128], index: 17, kind: input, shape index: {}]
  %s18 = inlined_call_operand.vmem [shape: f32[1,8], index: 18, kind: input, shape index: {}]
  %s19 = inlined_call_operand.hbm [shape: f32[2,1,128], index: 19, kind: output, shape index: {}]
  %s20 = sld [smem:[#allocation0]]
  $region149: #{forward.1} parent=0
    _
  %s22 = ssub.s32 1, %s20
  %s23 = scalar_select 0, %s22, %s20
  $region1: #{forward.1} parent=0
    #allocation2 [shape = 'u8[65536]{0}', space=vmem, size = 0x10000, scoped, tag = 'input window, operand 1, single buffered']
    #allocation3 [shape = 's32[2]{0}', space=sflag, size = 0x8, scoped, tag = 'scoped memory for forward.1']
    #allocation4 [shape = 's32[2]{0}', space=sflag, size = 0x8, scoped, tag = 'scoped memory for forward.1']
    #allocation5 [shape = 'u8[131072]{0}', space=vmem, size = 0x20000, scoped, tag = 'input window, operand 2, single buffered']
    #allocation6 [shape = 's32[1]{0}', space=sflag, size = 0x4, scoped, tag = 'scoped memory for forward.1']
    #allocation7 [shape = 'u8[393216]{0}', space=vmem, size = 0x60000, scoped, tag = 'input window, operand 4, single buffered']
    #allocation8 [shape = 'u8[131072]{0}', space=vmem, size = 0x20000, scoped, tag = 'input window, operand 6, single buffered']
    #allocation9 [shape = 's32[1]{0}', space=sflag, size = 0x4, scoped, tag = 'scoped memory for forward.1']
    #allocation10 [shape = 'u8[131072]{0}', space=vmem, size = 0x20000, scoped, tag = 'input window, operand 10, single buffered']
    #allocation11 [shape = 'u8[1048576]{0}', space=vmem, size = 0x100000, scoped, tag = 'input window, operand 11, single buffered']
    #allocation12 [shape = 's32[1]{0}', space=sflag, size = 0x4, scoped, tag = 'scoped memory for forward.1']
    #allocation13 [shape = 'u8[65536]{0}', space=vmem, size = 0x10000, scoped, tag = 'input window, operand 12, single buffered']
    #allocation14 [shape = 'u8[512]{0}', space=vmem, size = 0x400, scoped, tag = 'input window, operand 13, single buffered']
    #allocation15 [shape = 's32[1]{0}', space=sflag, size = 0x4, scoped, tag = 'scoped memory for forward.1']
    #allocation16 [shape = 'u8[114688]{0}', space=vmem, size = 0x1c000, scoped, tag = 'input window, operand 14, single buffered']
    #allocation17 [shape = 'u8[114688]{0}', space=vmem, size = 0x1c000, scoped, tag = 'input window, operand 16, single buffered']
    #allocation18 [shape = 's32[1]{0}', space=sflag, size = 0x4, scoped, tag = 'scoped memory for forward.1']
    #allocation19 [shape = 'u8[1024]{0}', space=vmem, size = 0x400, scoped, tag = 'output window, operand 0']
    %24 = vsyncpa [#allocation3], 0
    %25 = vsyncpa [#allocation6], 0
    %26 = vsyncpa [#allocation9], 0
    %27 = vsyncpa [#allocation12], 0
    %28 = vsyncpa [#allocation15], 0
    %29 = vsyncpa [#allocation18], 0
    %30 = vsyncpa [#allocation4], 0
    %s31 = scalar_lea.sflag [#allocation4], 1
    %32 = vsyncpa %s31, 0
    loop: start=0, step=1, limit=4
    $region2: #{forward.1} parent=1 // loop_pre_header
      _
    $region3: #{forward.1} parent=1 // loop_header
      %s34 = sphi 0, %s38
      %p35 = scmp.ge.s32.totalorder %s34, 4
      %s44 = sphi 0, %s46
      %s47 = sphi 0, %s44
      %s48 = sphi 0, %s47
      %s64 = sphi 0, %s48
      %s68 = sphi 0, %s68
      %s70 = sphi 0, %s68
      %s71 = sphi 0, %s70
      %s85 = sphi 0, %s71
      %s89 = sphi 0, %s89
      %s91 = sphi 0, %s89
      %s92 = sphi 0, %s91
      %s106 = sphi 0, %s92
      %s110 = sphi 0, %s110
      %s112 = sphi 0, %s110
      %s113 = sphi 0, %s112
      %s127 = sphi 0, %s113
      %s131 = sphi 0, %s131
      %s133 = sphi 0, %s131
      %s134 = sphi 0, %s133
      %s148 = sphi 0, %s134
      %s152 = sphi 0, %s152
      %s154 = sphi 0, %s152
      %s155 = sphi 0, %s154
      %s169 = sphi 0, %s155
      %s173 = sphi 0, %s173
      %s175 = sphi 0, %s173
      %s176 = sphi 0, %s175
      %s190 = sphi 0, %s176
      %s194 = sphi 0, %s194
      %s196 = sphi 0, %s194
      %s197 = sphi 0, %s196
      %s211 = sphi 0, %s197
      %s215 = sphi 0, %s215
      %s217 = sphi 0, %s215
      %s218 = sphi 0, %s217
      %s232 = sphi 0, %s218
      %s236 = sphi 0, %s236
      %s238 = sphi 0, %s236
      %s239 = sphi 0, %s238
      %s253 = sphi 0, %s239
      %s257 = sphi 0, %s257
      %s259 = sphi 0, %s257
      %s260 = sphi 0, %s259
      %s274 = sphi 0, %s260
      %s278 = sphi 0, %s278
      %s280 = sphi 0, %s278
      %s281 = sphi 0, %s280
      %s295 = sphi 0, %s281
      %s299 = sphi 0, %s299
      %s301 = sphi 0, %s299
      %s302 = sphi 0, %s301
      %s316 = sphi 0, %s302
      %s320 = sphi 0, %s320
      %s322 = sphi 0, %s320
      %s323 = sphi 0, %s322
      %s337 = sphi 0, %s323
      %s341 = sphi 0, %s341
      %s343 = sphi 0, %s341
      %s344 = sphi 0, %s343
      %s358 = sphi 0, %s344
      %s362 = sphi 0, %s362
      %s364 = sphi 0, %s362
      %s365 = sphi 0, %s364
      %s379 = sphi 0, %s365
      %s383 = sphi 0, %s383
      %s385 = sphi 0, %s383
      %s386 = sphi 0, %s385
      %s400 = sphi 0, %s386
      %s404 = sphi 0, %s404
      %s406 = sphi 0, %s404
      %s407 = sphi 0, %s406
      %s421 = sphi 0, %s407
      %s425 = sphi 0, %s425
      %s427 = sphi 0, %s425
      %s428 = sphi 0, %s427
      %s442 = sphi 0, %s428
      %s448 = sphi 0, %s450
      %s451 = sphi 0, %s448
      %s452 = sphi 0, %s451
      %s468 = sphi 0, %s452
    $region4: #{forward.1} parent=1 // loop_header_branch
      %37 = sbr.rel (%p35) target = $region8
    $region5: #{forward.1} parent=1 // loop_body
      %s39 = ssub.s32 %s34, 1
      %s40 = ssub.s32 %s34, 2
      %s41 = sadd.s32 %s34, 1
      %s42 = ssub.s32 %s34, %s41
      %p43 = scmp.eq.s32.totalorder %s42, 0
      %s45 = sadd.s32 %s44, 1
      %s46 = scalar_select %p43, %s44, %s45
      %p49 = pneg %p43
      %p50 = scmp.eq.s32.totalorder %s34, 1
      %p51 = por %p49, %p50
      %p52 = scmp.ne.s32.totalorder %s44, %s47
      %p53 = scmp.eq.s32.totalorder %s34, 0
      %p54 = por %p52, %p53
      %p55 = scmp.ne.s32.totalorder %s44, %s47
      %p56 = scmp.eq.s32.totalorder %s39, 1
      %p57 = por %p55, %p56
      %p58 = scmp.ne.s32.totalorder %s47, %s48
      %p59 = scmp.eq.s32.totalorder %s39, 0
      %p60 = por %p58, %p59
      %p61 = scmp.ne.s32.totalorder %s47, %s48
      %p62 = scmp.eq.s32.totalorder %s40, 1
      %p63 = por %p61, %p62
      %p65 = scmp.ne.s32.totalorder %s48, %s64
      %p66 = scmp.eq.s32.totalorder %s40, 0
      %p67 = por %p65, %p66
      %s69 = sadd.s32 %s68, 1
      %p72 = scmp.eq.s32.totalorder %s34, 1
      %p73 = scmp.ne.s32.totalorder %s68, %s70
      %p74 = scmp.eq.s32.totalorder %s34, 0
      %p75 = por %p73, %p74
      %p76 = scmp.ne.s32.totalorder %s68, %s70
      %p77 = scmp.eq.s32.totalorder %s39, 1
      %p78 = por %p76, %p77
      %p79 = scmp.ne.s32.totalorder %s70, %s71
      %p80 = scmp.eq.s32.totalorder %s39, 0
      %p81 = por %p79, %p80
      %p82 = scmp.ne.s32.totalorder %s70, %s71
      %p83 = scmp.eq.s32.totalorder %s40, 1
      %p84 = por %p82, %p83
      %p86 = scmp.ne.s32.totalorder %s71, %s85
      %p87 = scmp.eq.s32.totalorder %s40, 0
      %p88 = por %p86, %p87
      %s90 = sadd.s32 %s89, 1
      %p93 = scmp.eq.s32.totalorder %s34, 1
      %p94 = scmp.ne.s32.totalorder %s89, %s91
      %p95 = scmp.eq.s32.totalorder %s34, 0
      %p96 = por %p94, %p95
      %p97 = scmp.ne.s32.totalorder %s89, %s91
      %p98 = scmp.eq.s32.totalorder %s39, 1
      %p99 = por %p97, %p98
      %p100 = scmp.ne.s32.totalorder %s91, %s92
      %p101 = scmp.eq.s32.totalorder %s39, 0
      %p102 = por %p100, %p101
      %p103 = scmp.ne.s32.totalorder %s91, %s92
      %p104 = scmp.eq.s32.totalorder %s40, 1
      %p105 = por %p103, %p104
      %p107 = scmp.ne.s32.totalorder %s92, %s106
      %p108 = scmp.eq.s32.totalorder %s40, 0
      %p109 = por %p107, %p108
      %s111 = sadd.s32 %s110, 1
      %p114 = scmp.eq.s32.totalorder %s34, 1
      %p115 = scmp.ne.s32.totalorder %s110, %s112
      %p116 = scmp.eq.s32.totalorder %s34, 0
      %p117 = por %p115, %p116
      %p118 = scmp.ne.s32.totalorder %s110, %s112
      %p119 = scmp.eq.s32.totalorder %s39, 1
      %p120 = por %p118, %p119
      %p121 = scmp.ne.s32.totalorder %s112, %s113
      %p122 = scmp.eq.s32.totalorder %s39, 0
      %p123 = por %p121, %p122
      %p124 = scmp.ne.s32.totalorder %s112, %s113
      %p125 = scmp.eq.s32.totalorder %s40, 1
      %p126 = por %p124, %p125
      %p128 = scmp.ne.s32.totalorder %s113, %s127
      %p129 = scmp.eq.s32.totalorder %s40, 0
      %p130 = por %p128, %p129
      %s132 = sadd.s32 %s131, 1
      %p135 = scmp.eq.s32.totalorder %s34, 1
      %p136 = scmp.ne.s32.totalorder %s131, %s133
      %p137 = scmp.eq.s32.totalorder %s34, 0
      %p138 = por %p136, %p137
      %p139 = scmp.ne.s32.totalorder %s131, %s133
      %p140 = scmp.eq.s32.totalorder %s39, 1
      %p141 = por %p139, %p140
      %p142 = scmp.ne.s32.totalorder %s133, %s134
      %p143 = scmp.eq.s32.totalorder %s39, 0
      %p144 = por %p142, %p143
      %p145 = scmp.ne.s32.totalorder %s133, %s134
      %p146 = scmp.eq.s32.totalorder %s40, 1
      %p147 = por %p145, %p146
      %p149 = scmp.ne.s32.totalorder %s134, %s148
      %p150 = scmp.eq.s32.totalorder %s40, 0
      %p151 = por %p149, %p150
      %s153 = sadd.s32 %s152, 1
      %p156 = scmp.eq.s32.totalorder %s34, 1
      %p157 = scmp.ne.s32.totalorder %s152, %s154
      %p158 = scmp.eq.s32.totalorder %s34, 0
      %p159 = por %p157, %p158
      %p160 = scmp.ne.s32.totalorder %s152, %s154
      %p161 = scmp.eq.s32.totalorder %s39, 1
      %p162 = por %p160, %p161
      %p163 = scmp.ne.s32.totalorder %s154, %s155
      %p164 = scmp.eq.s32.totalorder %s39, 0
      %p165 = por %p163, %p164
      %p166 = scmp.ne.s32.totalorder %s154, %s155
      %p167 = scmp.eq.s32.totalorder %s40, 1
      %p168 = por %p166, %p167
      %p170 = scmp.ne.s32.totalorder %s155, %s169
      %p171 = scmp.eq.s32.totalorder %s40, 0
      %p172 = por %p170, %p171
      %s174 = sadd.s32 %s173, 1
      %p177 = scmp.eq.s32.totalorder %s34, 1
      %p178 = scmp.ne.s32.totalorder %s173, %s175
      %p179 = scmp.eq.s32.totalorder %s34, 0
      %p180 = por %p178, %p179
      %p181 = scmp.ne.s32.totalorder %s173, %s175
      %p182 = scmp.eq.s32.totalorder %s39, 1
      %p183 = por %p181, %p182
      %p184 = scmp.ne.s32.totalorder %s175, %s176
      %p185 = scmp.eq.s32.totalorder %s39, 0
      %p186 = por %p184, %p185
      %p187 = scmp.ne.s32.totalorder %s175, %s176
      %p188 = scmp.eq.s32.totalorder %s40, 1
      %p189 = por %p187, %p188
      %p191 = scmp.ne.s32.totalorder %s176, %s190
      %p192 = scmp.eq.s32.totalorder %s40, 0
      %p193 = por %p191, %p192
      %s195 = sadd.s32 %s194, 1
      %p198 = scmp.eq.s32.totalorder %s34, 1
      %p199 = scmp.ne.s32.totalorder %s194, %s196
      %p200 = scmp.eq.s32.totalorder %s34, 0
      %p201 = por %p199, %p200
      %p202 = scmp.ne.s32.totalorder %s194, %s196
      %p203 = scmp.eq.s32.totalorder %s39, 1
      %p204 = por %p202, %p203
      %p205 = scmp.ne.s32.totalorder %s196, %s197
      %p206 = scmp.eq.s32.totalorder %s39, 0
      %p207 = por %p205, %p206
      %p208 = scmp.ne.s32.totalorder %s196, %s197
      %p209 = scmp.eq.s32.totalorder %s40, 1
      %p210 = por %p208, %p209
      %p212 = scmp.ne.s32.totalorder %s197, %s211
      %p213 = scmp.eq.s32.totalorder %s40, 0
      %p214 = por %p212, %p213
      %s216 = sadd.s32 %s215, 1
      %p219 = scmp.eq.s32.totalorder %s34, 1
      %p220 = scmp.ne.s32.totalorder %s215, %s217
      %p221 = scmp.eq.s32.totalorder %s34, 0
      %p222 = por %p220, %p221
      %p223 = scmp.ne.s32.totalorder %s215, %s217
      %p224 = scmp.eq.s32.totalorder %s39, 1
      %p225 = por %p223, %p224
      %p226 = scmp.ne.s32.totalorder %s217, %s218
      %p227 = scmp.eq.s32.totalorder %s39, 0
      %p228 = por %p226, %p227
      %p229 = scmp.ne.s32.totalorder %s217, %s218
      %p230 = scmp.eq.s32.totalorder %s40, 1
      %p231 = por %p229, %p230
      %p233 = scmp.ne.s32.totalorder %s218, %s232
      %p234 = scmp.eq.s32.totalorder %s40, 0
      %p235 = por %p233, %p234
      %s237 = sadd.s32 %s236, 1
      %p240 = scmp.eq.s32.totalorder %s34, 1
      %p241 = scmp.ne.s32.totalorder %s236, %s238
      %p242 = scmp.eq.s32.totalorder %s34, 0
      %p243 = por %p241, %p242
      %p244 = scmp.ne.s32.totalorder %s236, %s238
      %p245 = scmp.eq.s32.totalorder %s39, 1
      %p246 = por %p244, %p245
      %p247 = scmp.ne.s32.totalorder %s238, %s239
      %p248 = scmp.eq.s32.totalorder %s39, 0
      %p249 = por %p247, %p248
      %p250 = scmp.ne.s32.totalorder %s238, %s239
      %p251 = scmp.eq.s32.totalorder %s40, 1
      %p252 = por %p250, %p251
      %p254 = scmp.ne.s32.totalorder %s239, %s253
      %p255 = scmp.eq.s32.totalorder %s40, 0
      %p256 = por %p254, %p255
      %s258 = sadd.s32 %s257, 1
      %p261 = scmp.eq.s32.totalorder %s34, 1
      %p262 = scmp.ne.s32.totalorder %s257, %s259
      %p263 = scmp.eq.s32.totalorder %s34, 0
      %p264 = por %p262, %p263
      %p265 = scmp.ne.s32.totalorder %s257, %s259
      %p266 = scmp.eq.s32.totalorder %s39, 1
      %p267 = por %p265, %p266
      %p268 = scmp.ne.s32.totalorder %s259, %s260
      %p269 = scmp.eq.s32.totalorder %s39, 0
      %p270 = por %p268, %p269
      %p271 = scmp.ne.s32.totalorder %s259, %s260
      %p272 = scmp.eq.s32.totalorder %s40, 1
      %p273 = por %p271, %p272
      %p275 = scmp.ne.s32.totalorder %s260, %s274
      %p276 = scmp.eq.s32.totalorder %s40, 0
      %p277 = por %p275, %p276
      %s279 = sadd.s32 %s278, 1
      %p282 = scmp.eq.s32.totalorder %s34, 1
      %p283 = scmp.ne.s32.totalorder %s278, %s280
      %p284 = scmp.eq.s32.totalorder %s34, 0
      %p285 = por %p283, %p284
      %p286 = scmp.ne.s32.totalorder %s278, %s280
      %p287 = scmp.eq.s32.totalorder %s39, 1
      %p288 = por %p286, %p287
      %p289 = scmp.ne.s32.totalorder %s280, %s281
      %p290 = scmp.eq.s32.totalorder %s39, 0
      %p291 = por %p289, %p290
      %p292 = scmp.ne.s32.totalorder %s280, %s281
      %p293 = scmp.eq.s32.totalorder %s40, 1
      %p294 = por %p292, %p293
      %p296 = scmp.ne.s32.totalorder %s281, %s295
      %p297 = scmp.eq.s32.totalorder %s40, 0
      %p298 = por %p296, %p297
      %s300 = sadd.s32 %s299, 1
      %p303 = scmp.eq.s32.totalorder %s34, 1
      %p304 = scmp.ne.s32.totalorder %s299, %s301
      %p305 = scmp.eq.s32.totalorder %s34, 0
      %p306 = por %p304, %p305
      %p307 = scmp.ne.s32.totalorder %s299, %s301
      %p308 = scmp.eq.s32.totalorder %s39, 1
      %p309 = por %p307, %p308
      %p310 = scmp.ne.s32.totalorder %s301, %s302
      %p311 = scmp.eq.s32.totalorder %s39, 0
      %p312 = por %p310, %p311
      %p313 = scmp.ne.s32.totalorder %s301, %s302
      %p314 = scmp.eq.s32.totalorder %s40, 1
      %p315 = por %p313, %p314
      %p317 = scmp.ne.s32.totalorder %s302, %s316
      %p318 = scmp.eq.s32.totalorder %s40, 0
      %p319 = por %p317, %p318
      %s321 = sadd.s32 %s320, 1
      %p324 = scmp.eq.s32.totalorder %s34, 1
      %p325 = scmp.ne.s32.totalorder %s320, %s322
      %p326 = scmp.eq.s32.totalorder %s34, 0
      %p327 = por %p325, %p326
      %p328 = scmp.ne.s32.totalorder %s320, %s322
      %p329 = scmp.eq.s32.totalorder %s39, 1
      %p330 = por %p328, %p329
      %p331 = scmp.ne.s32.totalorder %s322, %s323
      %p332 = scmp.eq.s32.totalorder %s39, 0
      %p333 = por %p331, %p332
      %p334 = scmp.ne.s32.totalorder %s322, %s323
      %p335 = scmp.eq.s32.totalorder %s40, 1
      %p336 = por %p334, %p335
      %p338 = scmp.ne.s32.totalorder %s323, %s337
      %p339 = scmp.eq.s32.totalorder %s40, 0
      %p340 = por %p338, %p339
      %s342 = sadd.s32 %s341, 1
      %p345 = scmp.eq.s32.totalorder %s34, 1
      %p346 = scmp.ne.s32.totalorder %s341, %s343
      %p347 = scmp.eq.s32.totalorder %s34, 0
      %p348 = por %p346, %p347
      %p349 = scmp.ne.s32.totalorder %s341, %s343
      %p350 = scmp.eq.s32.totalorder %s39, 1
      %p351 = por %p349, %p350
      %p352 = scmp.ne.s32.totalorder %s343, %s344
      %p353 = scmp.eq.s32.totalorder %s39, 0
      %p354 = por %p352, %p353
      %p355 = scmp.ne.s32.totalorder %s343, %s344
      %p356 = scmp.eq.s32.totalorder %s40, 1
      %p357 = por %p355, %p356
      %p359 = scmp.ne.s32.totalorder %s344, %s358
      %p360 = scmp.eq.s32.totalorder %s40, 0
      %p361 = por %p359, %p360
      %s363 = sadd.s32 %s362, 1
      %p366 = scmp.eq.s32.totalorder %s34, 1
      %p367 = scmp.ne.s32.totalorder %s362, %s364
      %p368 = scmp.eq.s32.totalorder %s34, 0
      %p369 = por %p367, %p368
      %p370 = scmp.ne.s32.totalorder %s362, %s364
      %p371 = scmp.eq.s32.totalorder %s39, 1
      %p372 = por %p370, %p371
      %p373 = scmp.ne.s32.totalorder %s364, %s365
      %p374 = scmp.eq.s32.totalorder %s39, 0
      %p375 = por %p373, %p374
      %p376 = scmp.ne.s32.totalorder %s364, %s365
      %p377 = scmp.eq.s32.totalorder %s40, 1
      %p378 = por %p376, %p377
      %p380 = scmp.ne.s32.totalorder %s365, %s379
      %p381 = scmp.eq.s32.totalorder %s40, 0
      %p382 = por %p380, %p381
      %s384 = sadd.s32 %s383, 1
      %p387 = scmp.eq.s32.totalorder %s34, 1
      %p388 = scmp.ne.s32.totalorder %s383, %s385
      %p389 = scmp.eq.s32.totalorder %s34, 0
      %p390 = por %p388, %p389
      %p391 = scmp.ne.s32.totalorder %s383, %s385
      %p392 = scmp.eq.s32.totalorder %s39, 1
      %p393 = por %p391, %p392
      %p394 = scmp.ne.s32.totalorder %s385, %s386
      %p395 = scmp.eq.s32.totalorder %s39, 0
      %p396 = por %p394, %p395
      %p397 = scmp.ne.s32.totalorder %s385, %s386
      %p398 = scmp.eq.s32.totalorder %s40, 1
      %p399 = por %p397, %p398
      %p401 = scmp.ne.s32.totalorder %s386, %s400
      %p402 = scmp.eq.s32.totalorder %s40, 0
      %p403 = por %p401, %p402
      %s405 = sadd.s32 %s404, 1
      %p408 = scmp.eq.s32.totalorder %s34, 1
      %p409 = scmp.ne.s32.totalorder %s404, %s406
      %p410 = scmp.eq.s32.totalorder %s34, 0
      %p411 = por %p409, %p410
      %p412 = scmp.ne.s32.totalorder %s404, %s406
      %p413 = scmp.eq.s32.totalorder %s39, 1
      %p414 = por %p412, %p413
      %p415 = scmp.ne.s32.totalorder %s406, %s407
      %p416 = scmp.eq.s32.totalorder %s39, 0
      %p417 = por %p415, %p416
      %p418 = scmp.ne.s32.totalorder %s406, %s407
      %p419 = scmp.eq.s32.totalorder %s40, 1
      %p420 = por %p418, %p419
      %p422 = scmp.ne.s32.totalorder %s407, %s421
      %p423 = scmp.eq.s32.totalorder %s40, 0
      %p424 = por %p422, %p423
      %s426 = sadd.s32 %s425, 1
      %p429 = scmp.eq.s32.totalorder %s34, 1
      %p430 = scmp.ne.s32.totalorder %s425, %s427
      %p431 = scmp.eq.s32.totalorder %s34, 0
      %p432 = por %p430, %p431
      %p433 = scmp.ne.s32.totalorder %s425, %s427
      %p434 = scmp.eq.s32.totalorder %s39, 1
      %p435 = por %p433, %p434
      %p436 = scmp.ne.s32.totalorder %s427, %s428
      %p437 = scmp.eq.s32.totalorder %s39, 0
      %p438 = por %p436, %p437
      %p439 = scmp.ne.s32.totalorder %s427, %s428
      %p440 = scmp.eq.s32.totalorder %s40, 1
      %p441 = por %p439, %p440
      %p443 = scmp.ne.s32.totalorder %s428, %s442
      %p444 = scmp.eq.s32.totalorder %s40, 0
      %p445 = por %p443, %p444
      %s446 = ssub.s32 %s34, %s41
      %p447 = scmp.eq.s32.totalorder %s446, 0
      %s449 = sadd.s32 %s448, 1
      %s450 = scalar_select %p447, %s448, %s449
      %p453 = pneg %p447
      %p454 = scmp.eq.s32.totalorder %s34, 1
      %p455 = por %p453, %p454
      %p456 = scmp.ne.s32.totalorder %s448, %s451
      %p457 = scmp.eq.s32.totalorder %s34, 0
      %p458 = por %p456, %p457
      %p459 = scmp.ne.s32.totalorder %s448, %s451
      %p460 = scmp.eq.s32.totalorder %s39, 1
      %p461 = por %p459, %p460
      %p462 = scmp.ne.s32.totalorder %s451, %s452
      %p463 = scmp.eq.s32.totalorder %s39, 0
      %p464 = por %p462, %p463
      %p465 = scmp.ne.s32.totalorder %s451, %s452
      %p466 = scmp.eq.s32.totalorder %s40, 1
      %p467 = por %p465, %p466
      %p469 = scmp.ne.s32.totalorder %s452, %s468
      %p470 = scmp.eq.s32.totalorder %s40, 0
      %p471 = por %p469, %p470
      %p472 = scmp.le.s32.totalorder 1, %s34
      %p473 = scmp.lt.s32.totalorder %s34, 3
      %p474 = pnand %p472, %p473
      %p475 = pneg %p474
      // Predicated region
      $region9: #{forward.1} parent=5 // pred_check
        _
      $region10: #{forward.1} parent=5 // pred_check_branch
        %477 = sbr.rel (%p474) target = $region12
      $region11: #{forward.1} parent=5 // pred_region
        %s478 = ssub.s32 %s34, 1
        // Predicated region
        $region13: #{forward.1} parent=11 // pred_check
          %p479 = pneg %p81
        $region14: #{forward.1} parent=11 // pred_check_branch
          %481 = sbr.rel (%p479) target = $region16
        $region15: #{forward.1} parent=11 // pred_region
          %s483 = ssub.s32 2048, 2048
          %484 = vsyncadd [#allocation3], %s483
          %s485 = sshll.u32 [#allocation2], 4
          %s486 = int_to_ptr.vmem [resolvable:$true] %s485
          %491 = dma.hbm_to_vmem [thread:$0]  %s1, 2048, %s486, [#allocation3], 256, 256, 16
        $region16: #{forward.1} parent=11 // pred_fallthru
          _
        // Predicated region
        $region17: #{forward.1} parent=11 // pred_check
          %p492 = pneg %p102
        $region18: #{forward.1} parent=11 // pred_check_branch
          %494 = sbr.rel (%p492) target = $region20
        $region19: #{forward.1} parent=11 // pred_region
          %s496 = ssub.s32 4096, 4096
          %497 = vsyncadd [#allocation6], %s496
          %s498 = sshll.u32 [#allocation5], 4
          %s499 = int_to_ptr.vmem [resolvable:$true] %s498
          %504 = dma.hbm_to_vmem [thread:$0]  %s2, 4096, %s499, [#allocation6], 128, 128, 8
        $region20: #{forward.1} parent=11 // pred_fallthru
          _
        // Predicated region
        $region21: #{forward.1} parent=11 // pred_check
          %p505 = pneg %p123
        $region22: #{forward.1} parent=11 // pred_check_branch
          %507 = sbr.rel (%p505) target = $region24
        $region23: #{forward.1} parent=11 // pred_region
          _
        $region24: #{forward.1} parent=11 // pred_fallthru
          _
        // Predicated region
        $region25: #{forward.1} parent=11 // pred_check
          %p508 = pneg %p144
        $region26: #{forward.1} parent=11 // pred_check_branch
          %510 = sbr.rel (%p508) target = $region28
        $region27: #{forward.1} parent=11 // pred_region
          %s512 = ssub.s32 12288, 12288
          %513 = vsyncadd [#allocation6], %s512
          %s514 = sshll.u32 [#allocation7], 4
          %s515 = int_to_ptr.vmem [resolvable:$true] %s514
          %520 = dma.hbm_to_vmem [thread:$0]  %s4, 12288, %s515, [#allocation6], 384, 384, 24
        $region28: #{forward.1} parent=11 // pred_fallthru
          _
        // Predicated region
        $region29: #{forward.1} parent=11 // pred_check
          %p521 = pneg %p165
        $region30: #{forward.1} parent=11 // pred_check_branch
          %523 = sbr.rel (%p521) target = $region32
        $region31: #{forward.1} parent=11 // pred_region
          _
        $region32: #{forward.1} parent=11 // pred_fallthru
          _
        // Predicated region
        $region33: #{forward.1} parent=11 // pred_check
          %p524 = pneg %p186
        $region34: #{forward.1} parent=11 // pred_check_branch
          %526 = sbr.rel (%p524) target = $region36
        $region35: #{forward.1} parent=11 // pred_region
          %s528 = ssub.s32 4096, 4096
          %529 = vsyncadd [#allocation9], %s528
          %s530 = sshll.u32 [#allocation8], 4
          %s531 = int_to_ptr.vmem [resolvable:$true] %s530
          %536 = dma.hbm_to_vmem [thread:$0]  %s6, 4096, %s531, [#allocation9], 128, 128, 8
        $region36: #{forward.1} parent=11 // pred_fallthru
          _
        // Predicated region
        $region37: #{forward.1} parent=11 // pred_check
          %p537 = pneg %p207
        $region38: #{forward.1} parent=11 // pred_check_branch
          %539 = sbr.rel (%p537) target = $region40
        $region39: #{forward.1} parent=11 // pred_region
          _
        $region40: #{forward.1} parent=11 // pred_fallthru
          _
        // Predicated region
        $region41: #{forward.1} parent=11 // pred_check
          %p540 = pneg %p228
        $region42: #{forward.1} parent=11 // pred_check_branch
          %542 = sbr.rel (%p540) target = $region44
        $region43: #{forward.1} parent=11 // pred_region
          _
        $region44: #{forward.1} parent=11 // pred_fallthru
          _
        // Predicated region
        $region45: #{forward.1} parent=11 // pred_check
          %p543 = pneg %p249
        $region46: #{forward.1} parent=11 // pred_check_branch
          %545 = sbr.rel (%p543) target = $region48
        $region47: #{forward.1} parent=11 // pred_region
          _
        $region48: #{forward.1} parent=11 // pred_fallthru
          _
        // Predicated region
        $region49: #{forward.1} parent=11 // pred_check
          %p546 = pneg %p270
        $region50: #{forward.1} parent=11 // pred_check_branch
          %548 = sbr.rel (%p546) target = $region52
        $region51: #{forward.1} parent=11 // pred_region
          %s550 = ssub.s32 4096, 4096
          %551 = vsyncadd [#allocation9], %s550
          %s552 = sshll.u32 [#allocation10], 4
          %s553 = int_to_ptr.vmem [resolvable:$true] %s552
          %558 = dma.hbm_to_vmem [thread:$0]  %s10, 4096, %s553, [#allocation9], 128, 128, 8
        $region52: #{forward.1} parent=11 // pred_fallthru
          _
        // Predicated region
        $region53: #{forward.1} parent=11 // pred_check
          %p559 = pneg %p291
        $region54: #{forward.1} parent=11 // pred_check_branch
          %561 = sbr.rel (%p559) target = $region56
        $region55: #{forward.1} parent=11 // pred_region
          %s563 = ssub.s32 32768, 32768
          %564 = vsyncadd [#allocation12], %s563
          %s565 = sshll.u32 [#allocation11], 4
          %s566 = int_to_ptr.vmem [resolvable:$true] %s565
          %571 = dma.hbm_to_vmem [thread:$0]  %s11, 32768, %s566, [#allocation12], 128, 128, 8
        $region56: #{forward.1} parent=11 // pred_fallthru
          _
        // Predicated region
        $region57: #{forward.1} parent=11 // pred_check
          %p572 = pneg %p312
        $region58: #{forward.1} parent=11 // pred_check_branch
          %574 = sbr.rel (%p572) target = $region60
        $region59: #{forward.1} parent=11 // pred_region
          %s576 = ssub.s32 2048, 2048
          %577 = vsyncadd [#allocation12], %s576
          %s578 = sshll.u32 [#allocation13], 4
          %s579 = int_to_ptr.vmem [resolvable:$true] %s578
          %584 = dma.hbm_to_vmem [thread:$0]  %s12, 2048, %s579, [#allocation12], 128, 128, 8
        $region60: #{forward.1} parent=11 // pred_fallthru
          _
        // Predicated region
        $region61: #{forward.1} parent=11 // pred_check
          %p585 = pneg %p333
        $region62: #{forward.1} parent=11 // pred_check_branch
          %587 = sbr.rel (%p585) target = $region64
        $region63: #{forward.1} parent=11 // pred_region
          %s589 = ssub.s32 16, 16
          %590 = vsyncadd [#allocation15], %s589
          %s592 = sshll.u32 [#allocation14], 4
          %s593 = int_to_ptr.vmem [resolvable:$true] %s592
          %595 = dma.hbm_to_vmem [thread:$0]  %s13, 16, %s593, [#allocation15]
        $region64: #{forward.1} parent=11 // pred_fallthru
          _
        // Predicated region
        $region65: #{forward.1} parent=11 // pred_check
          %p596 = pneg %p354
        $region66: #{forward.1} parent=11 // pred_check_branch
          %598 = sbr.rel (%p596) target = $region68
        $region67: #{forward.1} parent=11 // pred_region
          %s600 = ssub.s32 3584, 3584
          %601 = vsyncadd [#allocation15], %s600
          %s602 = sshll.u32 [#allocation16], 4
          %s603 = int_to_ptr.vmem [resolvable:$true] %s602
          %608 = dma.hbm_to_vmem [thread:$0]  %s14, 3584, %s603, [#allocation15], 128, 128, 8
        $region68: #{forward.1} parent=11 // pred_fallthru
          _
        // Predicated region
        $region69: #{forward.1} parent=11 // pred_check
          %p609 = pneg %p375
        $region70: #{forward.1} parent=11 // pred_check_branch
          %611 = sbr.rel (%p609) target = $region72
        $region71: #{forward.1} parent=11 // pred_region
          _
        $region72: #{forward.1} parent=11 // pred_fallthru
          _
        // Predicated region
        $region73: #{forward.1} parent=11 // pred_check
          %p612 = pneg %p396
        $region74: #{forward.1} parent=11 // pred_check_branch
          %614 = sbr.rel (%p612) target = $region76
        $region75: #{forward.1} parent=11 // pred_region
          %s616 = ssub.s32 3584, 3584
          %617 = vsyncadd [#allocation18], %s616
          %s618 = sshll.u32 [#allocation17], 4
          %s619 = int_to_ptr.vmem [resolvable:$true] %s618
          %624 = dma.hbm_to_vmem [thread:$0]  %s16, 3584, %s619, [#allocation18], 128, 128, 8
        $region76: #{forward.1} parent=11 // pred_fallthru
          _
        // Predicated region
        $region77: #{forward.1} parent=11 // pred_check
          %p625 = pneg %p417
        $region78: #{forward.1} parent=11 // pred_check_branch
          %627 = sbr.rel (%p625) target = $region80
        $region79: #{forward.1} parent=11 // pred_region
          _
        $region80: #{forward.1} parent=11 // pred_fallthru
          _
        // Predicated region
        $region81: #{forward.1} parent=11 // pred_check
          %p628 = pneg %p438
        $region82: #{forward.1} parent=11 // pred_check_branch
          %630 = sbr.rel (%p628) target = $region84
        $region83: #{forward.1} parent=11 // pred_region
          _
        $region84: #{forward.1} parent=11 // pred_fallthru
          _
      $region12: #{forward.1} parent=5 // pred_fallthru
        _
      %p631 = scmp.lt.s32.totalorder %s34, 2
      // Predicated region
      $region85: #{forward.1} parent=5 // pred_check
        %p632 = pneg %p631
      $region86: #{forward.1} parent=5 // pred_check_branch
        %634 = sbr.rel (%p632) target = $region88
      $region87: #{forward.1} parent=5 // pred_region
        // Predicated region
        $region89: #{forward.1} parent=87 // pred_check
          %p635 = pneg %p54
        $region90: #{forward.1} parent=87 // pred_check_branch
          %637 = sbr.rel (%p635) target = $region92
        $region91: #{forward.1} parent=87 // pred_region
          %p638 = scmp.lt.s32.totalorder %s34, 1
          %s639 = scalar_select %p638, %s34, 1
          %s640 = smul.addr %s639, 8
          %s641 = scalar_lea.vmem %s0, %s640
        $region92: #{forward.1} parent=87 // pred_fallthru
          _
      $region88: #{forward.1} parent=5 // pred_fallthru
        _
      %p642 = scmp.le.s32.totalorder 1, %s34
      %p643 = scmp.lt.s32.totalorder %s34, 3
      %p644 = pnand %p642, %p643
      %p645 = pneg %p644
      // Predicated region
      $region93: #{forward.1} parent=5 // pred_check
        _
      $region94: #{forward.1} parent=5 // pred_check_branch
        %647 = sbr.rel (%p644) target = $region96
      $region95: #{forward.1} parent=5 // pred_region
        %s648 = ssub.s32 %s34, 1
        // Predicated region
        $region97: #{forward.1} parent=95 // pred_check
          %p649 = pneg %p81
        $region98: #{forward.1} parent=95 // pred_check_branch
          %651 = sbr.rel (%p649) target = $region100
        $region99: #{forward.1} parent=95 // pred_region
          %652 = dma.done [#allocation3], 2048
        $region100: #{forward.1} parent=95 // pred_fallthru
          _
        // Predicated region
        $region101: #{forward.1} parent=95 // pred_check
          %p653 = pneg %p102
        $region102: #{forward.1} parent=95 // pred_check_branch
          %655 = sbr.rel (%p653) target = $region104
        $region103: #{forward.1} parent=95 // pred_region
          %656 = dma.done [#allocation6], 4096
        $region104: #{forward.1} parent=95 // pred_fallthru
          _
        // Predicated region
        $region105: #{forward.1} parent=95 // pred_check
          %p657 = pneg %p144
        $region106: #{forward.1} parent=95 // pred_check_branch
          %659 = sbr.rel (%p657) target = $region108
        $region107: #{forward.1} parent=95 // pred_region
          %660 = dma.done [#allocation6], 12288
        $region108: #{forward.1} parent=95 // pred_fallthru
          _
        // Predicated region
        $region109: #{forward.1} parent=95 // pred_check
          %p661 = pneg %p186
        $region110: #{forward.1} parent=95 // pred_check_branch
          %663 = sbr.rel (%p661) target = $region112
        $region111: #{forward.1} parent=95 // pred_region
          %664 = dma.done [#allocation9], 4096
        $region112: #{forward.1} parent=95 // pred_fallthru
          _
        // Predicated region
        $region113: #{forward.1} parent=95 // pred_check
          %p665 = pneg %p270
        $region114: #{forward.1} parent=95 // pred_check_branch
          %667 = sbr.rel (%p665) target = $region116
        $region115: #{forward.1} parent=95 // pred_region
          %668 = dma.done [#allocation9], 4096
        $region116: #{forward.1} parent=95 // pred_fallthru
          _
        // Predicated region
        $region117: #{forward.1} parent=95 // pred_check
          %p669 = pneg %p291
        $region118: #{forward.1} parent=95 // pred_check_branch
          %671 = sbr.rel (%p669) target = $region120
        $region119: #{forward.1} parent=95 // pred_region
          %672 = dma.done [#allocation12], 32768
        $region120: #{forward.1} parent=95 // pred_fallthru
          _
        // Predicated region
        $region121: #{forward.1} parent=95 // pred_check
          %p673 = pneg %p312
        $region122: #{forward.1} parent=95 // pred_check_branch
          %675 = sbr.rel (%p673) target = $region124
        $region123: #{forward.1} parent=95 // pred_region
          %676 = dma.done [#allocation12], 2048
        $region124: #{forward.1} parent=95 // pred_fallthru
          _
        // Predicated region
        $region125: #{forward.1} parent=95 // pred_check
          %p677 = pneg %p333
        $region126: #{forward.1} parent=95 // pred_check_branch
          %679 = sbr.rel (%p677) target = $region128
        $region127: #{forward.1} parent=95 // pred_region
          %680 = dma.done [#allocation15], 16
        $region128: #{forward.1} parent=95 // pred_fallthru
          _
        // Predicated region
        $region129: #{forward.1} parent=95 // pred_check
          %p681 = pneg %p354
        $region130: #{forward.1} parent=95 // pred_check_branch
          %683 = sbr.rel (%p681) target = $region132
        $region131: #{forward.1} parent=95 // pred_region
          %684 = dma.done [#allocation15], 3584
        $region132: #{forward.1} parent=95 // pred_fallthru
          _
        // Predicated region
        $region133: #{forward.1} parent=95 // pred_check
          %p685 = pneg %p396
        $region134: #{forward.1} parent=95 // pred_check_branch
          %687 = sbr.rel (%p685) target = $region136
        $region135: #{forward.1} parent=95 // pred_region
          %688 = dma.done [#allocation18], 3584
        $region136: #{forward.1} parent=95 // pred_fallthru
          _
        %p689 = scmp.lt.s32.totalorder %s39, 1
        %s690 = scalar_select %p689, %s39, 1
        %s691 = smul.addr %s690, 8
        %s692 = scalar_lea.vmem %s0, %s691
        %p693 = pneg %p60
        %p694 = pneg %p57
        %p695 = pneg %p81
        %p696 = pneg %p78
        %p697 = pneg %p102
        %p698 = pneg %p99
        %p699 = pneg %p123
        %p700 = pneg %p120
        %p701 = pneg %p144
        %p702 = pneg %p141
        %p703 = pneg %p165
        %p704 = pneg %p162
        %p705 = pneg %p186
        %p706 = pneg %p183
        %p707 = pneg %p207
        %p708 = pneg %p204
        %p709 = pneg %p228
        %p710 = pneg %p225
        %p711 = pneg %p249
        %p712 = pneg %p246
        %p713 = pneg %p270
        %p714 = pneg %p267
        %p715 = pneg %p291
        %p716 = pneg %p288
        %p717 = pneg %p312
        %p718 = pneg %p309
        %p719 = pneg %p333
        %p720 = pneg %p330
        %p721 = pneg %p354
        %p722 = pneg %p351
        %p723 = pneg %p375
        %p724 = pneg %p372
        %p725 = pneg %p396
        %p726 = pneg %p393
        %p727 = pneg %p417
        %p728 = pneg %p414
        %p729 = pneg %p438
        %p730 = pneg %p435
        %p731 = pneg %p464
        %p732 = pneg %p461
        %s733 = sand.u32 %s451, 1
        %s734 = scalar_lea.sflag [#allocation4], %s733
        %s735 = sand.u32 %s451, 1
        %s736 = scalar_lea.vmem [#allocation19], %s735
        %p737 = scmp.lt.s32.totalorder %s39, 1
        %s738 = scalar_select %p737, %s39, 1
        %s739 = smul.addr %s738, 8
        %s740 = scalar_lea.vmem %s0, %s739
        %v741 = vld [vmem:[%s17] sm:$0x1]
        %v742 = vld [vmem:[#allocation17] sm:$0xff]
        %v743 = vld [vmem:[#allocation17 + $0x8] sm:$0xff]
        %v744 = vld [vmem:[#allocation17 + $0x10] sm:$0xff]
        %v745 = vld [vmem:[#allocation17 + $0x18] sm:$0xff]
        %v746 = vld [vmem:[#allocation17 + $0x20] sm:$0xff]
        %v747 = vld [vmem:[#allocation17 + $0x28] sm:$0xff]
        %v748 = vld [vmem:[#allocation17 + $0x30] sm:$0xff]
        %v749 = vld [vmem:[#allocation17 + $0x38] sm:$0xff]
        %v750 = vld [vmem:[#allocation17 + $0x40] sm:$0xff]
        %v751 = vld [vmem:[#allocation17 + $0x48] sm:$0xff]
        %v752 = vld [vmem:[#allocation17 + $0x50] sm:$0xff]
        %v753 = vld [vmem:[#allocation17 + $0x58] sm:$0xff]
        %v754 = vld [vmem:[#allocation17 + $0x60] sm:$0xff]
        %v755 = vld [vmem:[#allocation17 + $0x68] sm:$0xff]
        %v756 = vld [vmem:[#allocation17 + $0x70] sm:$0xff]
        %v757 = vld [vmem:[#allocation17 + $0x78] sm:$0xff]
        %v758 = vld [vmem:[#allocation17 + $0x80] sm:$0xff]
        %v759 = vld [vmem:[#allocation17 + $0x88] sm:$0xff]
        %v760 = vld [vmem:[#allocation17 + $0x90] sm:$0xff]
        %v761 = vld [vmem:[#allocation17 + $0x98] sm:$0xff]
        %v762 = vld [vmem:[#allocation17 + $0xa0] sm:$0xff]
        %v763 = vld [vmem:[#allocation17 + $0xa8] sm:$0xff]
        %v764 = vld [vmem:[#allocation17 + $0xb0] sm:$0xff]
        %v765 = vld [vmem:[#allocation17 + $0xb8] sm:$0xff]
        %v766 = vld [vmem:[#allocation17 + $0xc0] sm:$0xff]
        %v767 = vld [vmem:[#allocation17 + $0xc8] sm:$0xff]
        %v768 = vld [vmem:[#allocation17 + $0xd0] sm:$0xff]
        %v769 = vld [vmem:[#allocation17 + $0xd8] sm:$0xff]
        %v770 = vld [vmem:[#allocation16] sm:$0xff]
        %v771 = vld [vmem:[#allocation16 + $0x8] sm:$0xff]
        %v772 = vld [vmem:[#allocation16 + $0x10] sm:$0xff]
        %v773 = vld [vmem:[#allocation16 + $0x18] sm:$0xff]
        %v774 = vld [vmem:[#allocation16 + $0x20] sm:$0xff]
        %v775 = vld [vmem:[#allocation16 + $0x28] sm:$0xff]
        %v776 = vld [vmem:[#allocation16 + $0x30] sm:$0xff]
        %v777 = vld [vmem:[#allocation16 + $0x38] sm:$0xff]
        %v778 = vld [vmem:[#allocation16 + $0x40] sm:$0xff]
        %v779 = vld [vmem:[#allocation16 + $0x48] sm:$0xff]
        %v780 = vld [vmem:[#allocation16 + $0x50] sm:$0xff]
        %v781 = vld [vmem:[#allocation16 + $0x58] sm:$0xff]
        %v782 = vld [vmem:[#allocation16 + $0x60] sm:$0xff]
        %v783 = vld [vmem:[#allocation16 + $0x68] sm:$0xff]
        %v784 = vld [vmem:[#allocation16 + $0x70] sm:$0xff]
        %v785 = vld [vmem:[#allocation16 + $0x78] sm:$0xff]
        %v786 = vld [vmem:[#allocation16 + $0x80] sm:$0xff]
        %v787 = vld [vmem:[#allocation16 + $0x88] sm:$0xff]
        %v788 = vld [vmem:[#allocation16 + $0x90] sm:$0xff]
        %v789 = vld [vmem:[#allocation16 + $0x98] sm:$0xff]
        %v790 = vld [vmem:[#allocation16 + $0xa0] sm:$0xff]
        %v791 = vld [vmem:[#allocation16 + $0xa8] sm:$0xff]
        %v792 = vld [vmem:[#allocation16 + $0xb0] sm:$0xff]
        %v793 = vld [vmem:[#allocation16 + $0xb8] sm:$0xff]
        %v794 = vld [vmem:[#allocation16 + $0xc0] sm:$0xff]
        %v795 = vld [vmem:[#allocation16 + $0xc8] sm:$0xff]
        %v796 = vld [vmem:[#allocation16 + $0xd0] sm:$0xff]
        %v797 = vld [vmem:[#allocation16 + $0xd8] sm:$0xff]
        %v798 = vld [vmem:[%s15] sm:$0xff]
        %v799 = vld [vmem:[%s15 + $0x8] sm:$0xff]
        %v800 = vld [vmem:[%s740] sm:$0xff]
        %v801 = vlaneseq
        %v802 = vand.u32 %v801, 127
        %803 = vset.pattern.permute.xlu0 0
        %804 = vperm.xlu0 %803, %v800
        %v805 = vpop.permute.xlu0 %804
        %vm806 = vcmp.eq.s32.totalorder %v805, %v802
        %v807 = vsel %vm806, 1, 0
        %v808 = vcvt.s32.f32 %v807
        %v809 = vld [vmem:[#allocation2] sm:$0xff]
        %v810 = vld [vmem:[#allocation2 + $0x8] sm:$0xff]
        %v811 = vld [vmem:[#allocation2 + $0x10] sm:$0xff]
        %v812 = vld [vmem:[#allocation2 + $0x18] sm:$0xff]
        %v813 = vld [vmem:[#allocation2 + $0x20] sm:$0xff]
        %v814 = vld [vmem:[#allocation2 + $0x28] sm:$0xff]
        %v815 = vld [vmem:[#allocation2 + $0x30] sm:$0xff]
        %v816 = vld [vmem:[#allocation2 + $0x38] sm:$0xff]
        %v817 = vld [vmem:[#allocation2 + $0x40] sm:$0xff]
        %v818 = vld [vmem:[#allocation2 + $0x48] sm:$0xff]
        %v819 = vld [vmem:[#allocation2 + $0x50] sm:$0xff]
        %v820 = vld [vmem:[#allocation2 + $0x58] sm:$0xff]
        %v821 = vld [vmem:[#allocation2 + $0x60] sm:$0xff]
        %v822 = vld [vmem:[#allocation2 + $0x68] sm:$0xff]
        %v823 = vld [vmem:[#allocation2 + $0x70] sm:$0xff]
        %v824 = vld [vmem:[#allocation2 + $0x78] sm:$0xff]
        %vm825 = vcmask 523264
        %v827 = vsel %vm825, %v808, 0
        %829 = vmatprep.subr.mxu0 0.0
        %830 = vmatpush1.msra.mxu0 0.0
        %831 = vmatprep.subr.mxu0 0.0
        %832 = vmatpush1.msra.mxu0 0.0
        %833 = vmatprep.subr.mxu0 0.0
        %834 = vmatpush1.msra.mxu0 0.0
        %835 = vmatprep.subr.mxu0 0.0
        %836 = vmatpush1.msra.mxu0 0.0
        %837 = vmatprep.subr.mxu0 0.0
        %838 = vmatpush1.msra.mxu0 0.0
        %839 = vmatprep.subr.mxu0 0.0
        %840 = vmatpush1.msra.mxu0 0.0
        %841 = vmatprep.subr.mxu0 0.0
        %842 = vmatpush1.msra.mxu0 0.0
        %843 = vmatprep.subr.mxu0 0.0
        %844 = vmatpush1.msra.mxu0 0.0
        %845 = vmatprep.subr.mxu0 %v824
        %846 = vmatpush1.msra.mxu0 %v823
        %847 = vmatprep.subr.mxu0 %v822
        %848 = vmatpush1.msra.mxu0 %v821
        %849 = vmatprep.subr.mxu0 %v820
        %850 = vmatpush1.msra.mxu0 %v819
        %851 = vmatprep.subr.mxu0 %v818
        %852 = vmatpush1.msra.mxu0 %v817
        %853 = vmatprep.subr.mxu0 %v816
        %854 = vmatpush1.msra.mxu0 %v815
        %855 = vmatprep.subr.mxu0 %v814
        %856 = vmatpush1.msra.mxu0 %v813
        %857 = vmatprep.subr.mxu0 %v812
        %858 = vmatpush1.msra.mxu0 %v811
        %859 = vmatprep.subr.mxu0 %v810
        %860 = vmatpush1.msra.mxu0 %v809
        %861 = vmatprep.subr.mxu0 0.0
        %862 = vmatpush2.msra.mxu0 0.0
        %863 = vmatprep.subr.mxu0 0.0
        %864 = vmatpush2.msra.mxu0 0.0
        %865 = vmatprep.subr.mxu0 0.0
        %866 = vmatpush2.msra.mxu0 0.0
        %867 = vmatprep.subr.mxu0 0.0
        %868 = vmatpush2.msra.mxu0 0.0
        %869 = vmatprep.subr.mxu0 0.0
        %870 = vmatpush2.msra.mxu0 0.0
        %871 = vmatprep.subr.mxu0 0.0
        %872 = vmatpush2.msra.mxu0 0.0
        %873 = vmatprep.subr.mxu0 0.0
        %874 = vmatpush2.msra.mxu0 0.0
        %875 = vmatprep.subr.mxu0 0.0
        %876 = vmatpush2.msra.mxu0 0.0
        %877 = vmatprep.subr.mxu0 0.0
        %878 = vmatpush2.msra.mxu0 0.0
        %879 = vmatprep.subr.mxu0 0.0
        %880 = vmatpush2.msra.mxu0 0.0
        %881 = vmatprep.subr.mxu0 0.0
        %882 = vmatpush2.msra.mxu0 0.0
        %883 = vmatprep.subr.mxu0 0.0
        %884 = vmatpush2.msra.mxu0 0.0
        %885 = vmatprep.subr.mxu0 0.0
        %886 = vmatpush2.msra.mxu0 0.0
        %887 = vmatprep.subr.mxu0 0.0
        %888 = vmatpush2.msra.mxu0 0.0
        %889 = vmatprep.subr.mxu0 0.0
        %890 = vmatpush2.msra.mxu0 0.0
        %891 = vmatprep.subr.mxu0 0.0
        %892 = vmatpush2.msra.mxu0 0.0
        %893 = vmatprep.mubr.f32.mxu0 0.0
        %894 = vmatmul.mubr.f32.gmra.mxu0 %v827
        %v895 = vpop.f32.mrf.mxu0
        %v896 = vadd.f32 0.0, %v895
        %v897 = vpop.f32.mrf.mxu0
        %v898 = vadd.f32 0.0, %v897
        %899 = vdwg.mxu0
        %v900 = vld [vmem:[#allocation5] sm:$0xff]
        %v901 = vld [vmem:[#allocation5 + $0x8] sm:$0xff]
        %v902 = vld [vmem:[#allocation5 + $0x10] sm:$0xff]
        %v903 = vld [vmem:[#allocation5 + $0x18] sm:$0xff]
        %v904 = vld [vmem:[#allocation5 + $0x20] sm:$0xff]
        %v905 = vld [vmem:[#allocation5 + $0x28] sm:$0xff]
        %v906 = vld [vmem:[#allocation5 + $0x30] sm:$0xff]
        %v907 = vld [vmem:[#allocation5 + $0x38] sm:$0xff]
        %v908 = vld [vmem:[#allocation5 + $0x40] sm:$0xff]
        %v909 = vld [vmem:[#allocation5 + $0x48] sm:$0xff]
        %v910 = vld [vmem:[#allocation5 + $0x50] sm:$0xff]
        %v911 = vld [vmem:[#allocation5 + $0x58] sm:$0xff]
        %v912 = vld [vmem:[#allocation5 + $0x60] sm:$0xff]
        %v913 = vld [vmem:[#allocation5 + $0x68] sm:$0xff]
        %v914 = vld [vmem:[#allocation5 + $0x70] sm:$0xff]
        %v915 = vld [vmem:[#allocation5 + $0x78] sm:$0xff]
        %v916 = vld [vmem:[#allocation5 + $0x80] sm:$0xff]
        %v917 = vld [vmem:[#allocation5 + $0x88] sm:$0xff]
        %v918 = vld [vmem:[#allocation5 + $0x90] sm:$0xff]
        %v919 = vld [vmem:[#allocation5 + $0x98] sm:$0xff]
        %v920 = vld [vmem:[#allocation5 + $0xa0] sm:$0xff]
        %v921 = vld [vmem:[#allocation5 + $0xa8] sm:$0xff]
        %v922 = vld [vmem:[#allocation5 + $0xb0] sm:$0xff]
        %v923 = vld [vmem:[#allocation5 + $0xb8] sm:$0xff]
        %v924 = vld [vmem:[#allocation5 + $0xc0] sm:$0xff]
        %v925 = vld [vmem:[#allocation5 + $0xc8] sm:$0xff]
        %v926 = vld [vmem:[#allocation5 + $0xd0] sm:$0xff]
        %v927 = vld [vmem:[#allocation5 + $0xd8] sm:$0xff]
        %v928 = vld [vmem:[#allocation5 + $0xe0] sm:$0xff]
        %v929 = vld [vmem:[#allocation5 + $0xe8] sm:$0xff]
        %v930 = vld [vmem:[#allocation5 + $0xf0] sm:$0xff]
        %v931 = vld [vmem:[#allocation5 + $0xf8] sm:$0xff]
        %v932 = vld [vmem:[%s3] sm:$0x1]
        %v934 = vlaneseq
        %v935 = vshrl.u32 %v934, 7
        %v936 = vsub.s32 0, %v935
        %v937 = vrot.slane %v932, %v936
        %939 = vmatprep.subr.mxu0 0.0
        %940 = vmatpush1.msra.mxu0 %v915
        %941 = vmatprep.subr.mxu0 0.0
        %942 = vmatpush1.msra.mxu0 %v914
        %943 = vmatprep.subr.mxu0 0.0
        %944 = vmatpush1.msra.mxu0 %v913
        %945 = vmatprep.subr.mxu0 0.0
        %946 = vmatpush1.msra.mxu0 %v912
        %947 = vmatprep.subr.mxu0 0.0
        %948 = vmatpush1.msra.mxu0 %v911
        %949 = vmatprep.subr.mxu0 0.0
        %950 = vmatpush1.msra.mxu0 %v910
        %951 = vmatprep.subr.mxu0 0.0
        %952 = vmatpush1.msra.mxu0 %v909
        %953 = vmatprep.subr.mxu0 0.0
        %954 = vmatpush1.msra.mxu0 %v908
        %955 = vmatprep.subr.mxu0 0.0
        %956 = vmatpush1.msra.mxu0 %v907
        %957 = vmatprep.subr.mxu0 0.0
        %958 = vmatpush1.msra.mxu0 %v906
        %959 = vmatprep.subr.mxu0 0.0
        %960 = vmatpush1.msra.mxu0 %v905
        %961 = vmatprep.subr.mxu0 0.0
        %962 = vmatpush1.msra.mxu0 %v904
        %963 = vmatprep.subr.mxu0 0.0
        %964 = vmatpush1.msra.mxu0 %v903
        %965 = vmatprep.subr.mxu0 0.0
        %966 = vmatpush1.msra.mxu0 %v902
        %967 = vmatprep.subr.mxu0 0.0
        %968 = vmatpush1.msra.mxu0 %v901
        %969 = vmatprep.subr.mxu0 0.0
        %970 = vmatpush1.msra.mxu0 %v900
        %971 = vmatprep.subr.mxu0 0.0
        %972 = vmatpush2.msra.mxu0 %v931
        %973 = vmatprep.subr.mxu0 0.0
        %974 = vmatpush2.msra.mxu0 %v930
        %975 = vmatprep.subr.mxu0 0.0
        %976 = vmatpush2.msra.mxu0 %v929
        %977 = vmatprep.subr.mxu0 0.0
        %978 = vmatpush2.msra.mxu0 %v928
        %979 = vmatprep.subr.mxu0 0.0
        %980 = vmatpush2.msra.mxu0 %v927
        %981 = vmatprep.subr.mxu0 0.0
        %982 = vmatpush2.msra.mxu0 %v926
        %983 = vmatprep.subr.mxu0 0.0
        %984 = vmatpush2.msra.mxu0 %v925
        %985 = vmatprep.subr.mxu0 0.0
        %986 = vmatpush2.msra.mxu0 %v924
        %987 = vmatprep.subr.mxu0 0.0
        %988 = vmatpush2.msra.mxu0 %v923
        %989 = vmatprep.subr.mxu0 0.0
        %990 = vmatpush2.msra.mxu0 %v922
        %991 = vmatprep.subr.mxu0 0.0
        %992 = vmatpush2.msra.mxu0 %v921
        %993 = vmatprep.subr.mxu0 0.0
        %994 = vmatpush2.msra.mxu0 %v920
        %995 = vmatprep.subr.mxu0 0.0
        %996 = vmatpush2.msra.mxu0 %v919
        %997 = vmatprep.subr.mxu0 0.0
        %998 = vmatpush2.msra.mxu0 %v918
        %999 = vmatprep.subr.mxu0 0.0
        %1000 = vmatpush2.msra.mxu0 %v917
        %1001 = vmatprep.subr.mxu0 0.0
        %1002 = vmatpush2.msra.mxu0 %v916
        %1003 = vmatprep.mubr.f32.mxu0 %v898
        %1004 = vmatmul.mubr.f32.gmra.mxu0 %v896
        %v1005 = vpop.f32.mrf.mxu0
        %v1006 = vadd.f32 %v937, %v1005
        %v1007 = vpop.f32.mrf.mxu0
        %1008 = vdwg.mxu0
        %v1009 = vld [vmem:[#allocation7] sm:$0xff]
        %v1010 = vld [vmem:[#allocation7 + $0x8] sm:$0xff]
        %v1011 = vld [vmem:[#allocation7 + $0x10] sm:$0xff]
        %v1012 = vld [vmem:[#allocation7 + $0x18] sm:$0xff]
        %v1013 = vld [vmem:[#allocation7 + $0x20] sm:$0xff]
        %v1014 = vld [vmem:[#allocation7 + $0x28] sm:$0xff]
        %v1015 = vld [vmem:[#allocation7 + $0x30] sm:$0xff]
        %v1016 = vld [vmem:[#allocation7 + $0x38] sm:$0xff]
        %v1017 = vld [vmem:[#allocation7 + $0x40] sm:$0xff]
        %v1018 = vld [vmem:[#allocation7 + $0x48] sm:$0xff]
        %v1019 = vld [vmem:[#allocation7 + $0x50] sm:$0xff]
        %v1020 = vld [vmem:[#allocation7 + $0x58] sm:$0xff]
        %v1021 = vld [vmem:[#allocation7 + $0x60] sm:$0xff]
        %v1022 = vld [vmem:[#allocation7 + $0x68] sm:$0xff]
        %v1023 = vld [vmem:[#allocation7 + $0x70] sm:$0xff]
        %v1024 = vld [vmem:[#allocation7 + $0x78] sm:$0xff]
        %v1025 = vld [vmem:[#allocation7 + $0x80] sm:$0xff]
        %v1026 = vld [vmem:[#allocation7 + $0x88] sm:$0xff]
        %v1027 = vld [vmem:[#allocation7 + $0x90] sm:$0xff]
        %v1028 = vld [vmem:[#allocation7 + $0x98] sm:$0xff]
        %v1029 = vld [vmem:[#allocation7 + $0xa0] sm:$0xff]
        %v1030 = vld [vmem:[#allocation7 + $0xa8] sm:$0xff]
        %v1031 = vld [vmem:[#allocation7 + $0xb0] sm:$0xff]
        %v1032 = vld [vmem:[#allocation7 + $0xb8] sm:$0xff]
        %v1033 = vld [vmem:[#allocation7 + $0xc0] sm:$0xff]
        %v1034 = vld [vmem:[#allocation7 + $0xc8] sm:$0xff]
        %v1035 = vld [vmem:[#allocation7 + $0xd0] sm:$0xff]
        %v1036 = vld [vmem:[#allocation7 + $0xd8] sm:$0xff]
        %v1037 = vld [vmem:[#allocation7 + $0xe0] sm:$0xff]
        %v1038 = vld [vmem:[#allocation7 + $0xe8] sm:$0xff]
        %v1039 = vld [vmem:[#allocation7 + $0xf0] sm:$0xff]
        %v1040 = vld [vmem:[#allocation7 + $0xf8] sm:$0xff]
        %v1041 = vld [vmem:[#allocation7 + $0x100] sm:$0xff]
        %v1042 = vld [vmem:[#allocation7 + $0x108] sm:$0xff]
        %v1043 = vld [vmem:[#allocation7 + $0x110] sm:$0xff]
        %v1044 = vld [vmem:[#allocation7 + $0x118] sm:$0xff]
        %v1045 = vld [vmem:[#allocation7 + $0x120] sm:$0xff]
        %v1046 = vld [vmem:[#allocation7 + $0x128] sm:$0xff]
        %v1047 = vld [vmem:[#allocation7 + $0x130] sm:$0xff]
        %v1048 = vld [vmem:[#allocation7 + $0x138] sm:$0xff]
        %v1049 = vld [vmem:[#allocation7 + $0x140] sm:$0xff]
        %v1050 = vld [vmem:[#allocation7 + $0x148] sm:$0xff]
        %v1051 = vld [vmem:[#allocation7 + $0x150] sm:$0xff]
        %v1052 = vld [vmem:[#allocation7 + $0x158] sm:$0xff]
        %v1053 = vld [vmem:[#allocation7 + $0x160] sm:$0xff]
        %v1054 = vld [vmem:[#allocation7 + $0x168] sm:$0xff]
        %v1055 = vld [vmem:[#allocation7 + $0x170] sm:$0xff]
        %v1056 = vld [vmem:[#allocation7 + $0x178] sm:$0xff]
        %v1057 = vld [vmem:[%s5] sm:$0x7]
        %v1059 = vlaneseq
        %v1060 = vshrl.u32 %v1059, 7
        %v1061 = vsub.s32 0, %v1060
        %v1062 = vrot.slane %v1057, %v1061
        %v1063 = vlaneseq
        %v1064 = vshrl.u32 %v1063, 7
        %v1065 = vsub.s32 1, %v1064
        %v1066 = vrot.slane %v1057, %v1065
        %v1067 = vlaneseq
        %v1068 = vshrl.u32 %v1067, 7
        %v1069 = vsub.s32 2, %v1068
        %v1070 = vrot.slane %v1057, %v1069
        %1074 = vmatprep.subr.mxu0 %v1055
        %1075 = vmatpush1.msra.mxu0 %v1054
        %1076 = vmatprep.subr.mxu0 %v1052
        %1077 = vmatpush1.msra.mxu0 %v1051
        %1078 = vmatprep.subr.mxu0 %v1049
        %1079 = vmatpush1.msra.mxu0 %v1048
        %1080 = vmatprep.subr.mxu0 %v1046
        %1081 = vmatpush1.msra.mxu0 %v1045
        %1082 = vmatprep.subr.mxu0 %v1043
        %1083 = vmatpush1.msra.mxu0 %v1042
        %1084 = vmatprep.subr.mxu0 %v1040
        %1085 = vmatpush1.msra.mxu0 %v1039
        %1086 = vmatprep.subr.mxu0 %v1037
        %1087 = vmatpush1.msra.mxu0 %v1036
        %1088 = vmatprep.subr.mxu0 %v1034
        %1089 = vmatpush1.msra.mxu0 %v1033
        %1090 = vmatprep.subr.mxu0 %v1031
        %1091 = vmatpush1.msra.mxu0 %v1030
        %1092 = vmatprep.subr.mxu0 %v1028
        %1093 = vmatpush1.msra.mxu0 %v1027
        %1094 = vmatprep.subr.mxu0 %v1025
        %1095 = vmatpush1.msra.mxu0 %v1024
        %1096 = vmatprep.subr.mxu0 %v1022
        %1097 = vmatpush1.msra.mxu0 %v1021
        %1098 = vmatprep.subr.mxu0 %v1019
        %1099 = vmatpush1.msra.mxu0 %v1018
        %1100 = vmatprep.subr.mxu0 %v1016
        %1101 = vmatpush1.msra.mxu0 %v1015
        %1102 = vmatprep.subr.mxu0 %v1013
        %1103 = vmatpush1.msra.mxu0 %v1012
        %1104 = vmatprep.subr.mxu0 %v1010
        %1105 = vmatpush1.msra.mxu0 %v1009
        %1106 = vmatprep.subr.mxu0 0.0
        %1107 = vmatpush2.msra.mxu0 0.0
        %1108 = vmatprep.subr.mxu0 0.0
        %1109 = vmatpush2.msra.mxu0 0.0
        %1110 = vmatprep.subr.mxu0 0.0
        %1111 = vmatpush2.msra.mxu0 0.0
        %1112 = vmatprep.subr.mxu0 0.0
        %1113 = vmatpush2.msra.mxu0 0.0
        %1114 = vmatprep.subr.mxu0 0.0
        %1115 = vmatpush2.msra.mxu0 0.0
        %1116 = vmatprep.subr.mxu0 0.0
        %1117 = vmatpush2.msra.mxu0 0.0
        %1118 = vmatprep.subr.mxu0 0.0
        %1119 = vmatpush2.msra.mxu0 0.0
        %1120 = vmatprep.subr.mxu0 0.0
        %1121 = vmatpush2.msra.mxu0 0.0
        %1122 = vmatprep.subr.mxu0 0.0
        %1123 = vmatpush2.msra.mxu0 0.0
        %1124 = vmatprep.subr.mxu0 0.0
        %1125 = vmatpush2.msra.mxu0 0.0
        %1126 = vmatprep.subr.mxu0 0.0
        %1127 = vmatpush2.msra.mxu0 0.0
        %1128 = vmatprep.subr.mxu0 0.0
        %1129 = vmatpush2.msra.mxu0 0.0
        %1130 = vmatprep.subr.mxu0 0.0
        %1131 = vmatpush2.msra.mxu0 0.0
        %1132 = vmatprep.subr.mxu0 0.0
        %1133 = vmatpush2.msra.mxu0 0.0
        %1134 = vmatprep.subr.mxu0 0.0
        %1135 = vmatpush2.msra.mxu0 0.0
        %1136 = vmatprep.subr.mxu0 0.0
        %1137 = vmatpush2.msra.mxu0 0.0
        %1138 = vmatprep.mubr.f32.mxu0 0.0
        %1139 = vmatmul.mubr.f32.gmra.mxu0 %v1006
        %v1140 = vpop.f32.mrf.mxu0
        %v1141 = vadd.f32 %v1062, %v1140
        %v1142 = vpop.f32.mrf.mxu0
        %v1143 = vadd.f32 %v1066, %v1142
        %1144 = vdwg.mxu0
        %1145 = vmatprep.subr.mxu0 0.0
        %1146 = vmatpush1.msra.mxu0 %v1056
        %1147 = vmatprep.subr.mxu0 0.0
        %1148 = vmatpush1.msra.mxu0 %v1053
        %1149 = vmatprep.subr.mxu0 0.0
        %1150 = vmatpush1.msra.mxu0 %v1050
        %1151 = vmatprep.subr.mxu0 0.0
        %1152 = vmatpush1.msra.mxu0 %v1047
        %1153 = vmatprep.subr.mxu0 0.0
        %1154 = vmatpush1.msra.mxu0 %v1044
        %1155 = vmatprep.subr.mxu0 0.0
        %1156 = vmatpush1.msra.mxu0 %v1041
        %1157 = vmatprep.subr.mxu0 0.0
        %1158 = vmatpush1.msra.mxu0 %v1038
        %1159 = vmatprep.subr.mxu0 0.0
        %1160 = vmatpush1.msra.mxu0 %v1035
        %1161 = vmatprep.subr.mxu0 0.0
        %1162 = vmatpush1.msra.mxu0 %v1032
        %1163 = vmatprep.subr.mxu0 0.0
        %1164 = vmatpush1.msra.mxu0 %v1029
        %1165 = vmatprep.subr.mxu0 0.0
        %1166 = vmatpush1.msra.mxu0 %v1026
        %1167 = vmatprep.subr.mxu0 0.0
        %1168 = vmatpush1.msra.mxu0 %v1023
        %1169 = vmatprep.subr.mxu0 0.0
        %1170 = vmatpush1.msra.mxu0 %v1020
        %1171 = vmatprep.subr.mxu0 0.0
        %1172 = vmatpush1.msra.mxu0 %v1017
        %1173 = vmatprep.subr.mxu0 0.0
        %1174 = vmatpush1.msra.mxu0 %v1014
        %1175 = vmatprep.subr.mxu0 0.0
        %1176 = vmatpush1.msra.mxu0 %v1011
        %1177 = vmatprep.subr.mxu0 0.0
        %1178 = vmatpush2.msra.mxu0 0.0
        %1179 = vmatprep.subr.mxu0 0.0
        %1180 = vmatpush2.msra.mxu0 0.0
        %1181 = vmatprep.subr.mxu0 0.0
        %1182 = vmatpush2.msra.mxu0 0.0
        %1183 = vmatprep.subr.mxu0 0.0
        %1184 = vmatpush2.msra.mxu0 0.0
        %1185 = vmatprep.subr.mxu0 0.0
        %1186 = vmatpush2.msra.mxu0 0.0
        %1187 = vmatprep.subr.mxu0 0.0
        %1188 = vmatpush2.msra.mxu0 0.0
        %1189 = vmatprep.subr.mxu0 0.0
        %1190 = vmatpush2.msra.mxu0 0.0
        %1191 = vmatprep.subr.mxu0 0.0
        %1192 = vmatpush2.msra.mxu0 0.0
        %1193 = vmatprep.subr.mxu0 0.0
        %1194 = vmatpush2.msra.mxu0 0.0
        %1195 = vmatprep.subr.mxu0 0.0
        %1196 = vmatpush2.msra.mxu0 0.0
        %1197 = vmatprep.subr.mxu0 0.0
        %1198 = vmatpush2.msra.mxu0 0.0
        %1199 = vmatprep.subr.mxu0 0.0
        %1200 = vmatpush2.msra.mxu0 0.0
        %1201 = vmatprep.subr.mxu0 0.0
        %1202 = vmatpush2.msra.mxu0 0.0
        %1203 = vmatprep.subr.mxu0 0.0
        %1204 = vmatpush2.msra.mxu0 0.0
        %1205 = vmatprep.subr.mxu0 0.0
        %1206 = vmatpush2.msra.mxu0 0.0
        %1207 = vmatprep.subr.mxu0 0.0
        %1208 = vmatpush2.msra.mxu0 0.0
        %1209 = vmatprep.mubr.f32.mxu0 0.0
        %1210 = vmatmul.mubr.f32.gmra.mxu0 %v1006
        %v1211 = vpop.f32.mrf.mxu0
        %v1212 = vadd.f32 %v1070, %v1211
        %v1213 = vpop.f32.mrf.mxu0
        %1214 = vdwg.mxu0
        %vm1215 = vcmask 64512
        %v1217 = vsel %vm1215, %v770, 0
        %v1220 = vsel %vm1215, %v771, 0
        %v1223 = vsel %vm1215, %v772, 0
        %v1226 = vsel %vm1215, %v773, 0
        %v1229 = vsel %vm1215, %v774, 0
        %v1232 = vsel %vm1215, %v775, 0
        %v1235 = vsel %vm1215, %v776, 0
        %v1238 = vsel %vm1215, %v777, 0
        %v1241 = vsel %vm1215, %v778, 0
        %v1244 = vsel %vm1215, %v779, 0
        %v1247 = vsel %vm1215, %v780, 0
        %v1250 = vsel %vm1215, %v781, 0
        %v1253 = vsel %vm1215, %v782, 0
        %v1256 = vsel %vm1215, %v783, 0
        %v1259 = vsel %vm1215, %v784, 0
        %v1262 = vsel %vm1215, %v785, 0
        %v1265 = vsel %vm1215, %v786, 0
        %v1268 = vsel %vm1215, %v787, 0
        %v1271 = vsel %vm1215, %v788, 0
        %v1274 = vsel %vm1215, %v789, 0
        %v1277 = vsel %vm1215, %v790, 0
        %v1280 = vsel %vm1215, %v791, 0
        %v1283 = vsel %vm1215, %v792, 0
        %v1286 = vsel %vm1215, %v793, 0
        %v1289 = vsel %vm1215, %v794, 0
        %v1292 = vsel %vm1215, %v795, 0
        %v1295 = vsel %vm1215, %v796, 0
        %v1298 = vsel %vm1215, %v797, 0
        %1300 = vmatprep.subr.mxu0 0.0
        %1301 = vmatpush1.msra.mxu0 0.0
        %1302 = vmatprep.subr.mxu0 0.0
        %1303 = vmatpush1.msra.mxu0 0.0
        %1304 = vmatprep.subr.mxu0 0.0
        %1305 = vmatpush1.msra.mxu0 0.0
        %1306 = vmatprep.subr.mxu0 0.0
        %1307 = vmatpush1.msra.mxu0 0.0
        %1308 = vmatprep.subr.mxu0 0.0
        %1309 = vmatpush1.msra.mxu0 0.0
        %1310 = vmatprep.subr.mxu0 0.0
        %1311 = vmatpush1.msra.mxu0 0.0
        %1312 = vmatprep.subr.mxu0 0.0
        %1313 = vmatpush1.msra.mxu0 0.0
        %1314 = vmatprep.subr.mxu0 0.0
        %1315 = vmatpush1.msra.mxu0 0.0
        %1316 = vmatprep.subr.mxu0 0.0
        %1317 = vmatpush1.msra.mxu0 0.0
        %1318 = vmatprep.subr.mxu0 0.0
        %1319 = vmatpush1.msra.mxu0 0.0
        %1320 = vmatprep.subr.mxu0 0.0
        %1321 = vmatpush1.msra.mxu0 0.0
        %1322 = vmatprep.subr.mxu0 0.0
        %1323 = vmatpush1.msra.mxu0 0.0
        %1324 = vmatprep.subr.mxu0 0.0
        %1325 = vmatpush1.msra.mxu0 0.0
        %1326 = vmatprep.subr.mxu0 0.0
        %1327 = vmatpush1.msra.mxu0 0.0
        %1328 = vmatprep.subr.mxu0 0.0
        %1329 = vmatpush1.msra.mxu0 0.0
        %1330 = vmatprep.subr.mxu0 0.0
        %1331 = vmatpush1.msra.mxu0 %v1141
        %1332 = vmatprep.subr.mxu0 0.0
        %1333 = vmatpush2.msra.mxu0 0.0
        %1334 = vmatprep.subr.mxu0 0.0
        %1335 = vmatpush2.msra.mxu0 0.0
        %1336 = vmatprep.subr.mxu0 0.0
        %1337 = vmatpush2.msra.mxu0 0.0
        %1338 = vmatprep.subr.mxu0 0.0
        %1339 = vmatpush2.msra.mxu0 0.0
        %1340 = vmatprep.subr.mxu0 0.0
        %1341 = vmatpush2.msra.mxu0 0.0
        %1342 = vmatprep.subr.mxu0 0.0
        %1343 = vmatpush2.msra.mxu0 0.0
        %1344 = vmatprep.subr.mxu0 0.0
        %1345 = vmatpush2.msra.mxu0 0.0
        %1346 = vmatprep.subr.mxu0 0.0
        %1347 = vmatpush2.msra.mxu0 0.0
        %1348 = vmatprep.subr.mxu0 0.0
        %1349 = vmatpush2.msra.mxu0 0.0
        %1350 = vmatprep.subr.mxu0 0.0
        %1351 = vmatpush2.msra.mxu0 0.0
        %1352 = vmatprep.subr.mxu0 0.0
        %1353 = vmatpush2.msra.mxu0 0.0
        %1354 = vmatprep.subr.mxu0 0.0
        %1355 = vmatpush2.msra.mxu0 0.0
        %1356 = vmatprep.subr.mxu0 0.0
        %1357 = vmatpush2.msra.mxu0 0.0
        %1358 = vmatprep.subr.mxu0 0.0
        %1359 = vmatpush2.msra.mxu0 0.0
        %1360 = vmatprep.subr.mxu0 0.0
        %1361 = vmatpush2.msra.mxu0 0.0
        %1362 = vmatprep.subr.mxu0 0.0
        %1363 = vmatpush2.msra.mxu0 0.0
        %1364 = vmatprep.mubr.f32.mxu0 0.0
        %1365 = vmatmul.mubr.f32.gmra.mxu0 %v1217
        %v1366 = vpop.f32.mrf.mxu0
        %v1367 = vadd.f32 0.0, %v1366
        %v1368 = vpop.f32.mrf.mxu0
        %1369 = vmatprep.mubr.f32.mxu0 0.0
        %1370 = vmatmul.mubr.f32.gmra.mxu0 %v1220
        %v1371 = vpop.f32.mrf.mxu0
        %v1372 = vadd.f32 0.0, %v1371
        %v1373 = vpop.f32.mrf.mxu0
        %1374 = vmatprep.mubr.f32.mxu0 0.0
        %1375 = vmatmul.mubr.f32.gmra.mxu0 %v1223
        %v1376 = vpop.f32.mrf.mxu0
        %v1377 = vadd.f32 0.0, %v1376
        %v1378 = vpop.f32.mrf.mxu0
        %1379 = vmatprep.mubr.f32.mxu0 0.0
        %1380 = vmatmul.mubr.f32.gmra.mxu0 %v1226
        %v1381 = vpop.f32.mrf.mxu0
        %v1382 = vadd.f32 0.0, %v1381
        %v1383 = vpop.f32.mrf.mxu0
        %1384 = vmatprep.mubr.f32.mxu0 0.0
        %1385 = vmatmul.mubr.f32.gmra.mxu0 %v1229
        %v1386 = vpop.f32.mrf.mxu0
        %v1387 = vadd.f32 0.0, %v1386
        %v1388 = vpop.f32.mrf.mxu0
        %1389 = vmatprep.mubr.f32.mxu0 0.0
        %1390 = vmatmul.mubr.f32.gmra.mxu0 %v1232
        %v1391 = vpop.f32.mrf.mxu0
        %v1392 = vadd.f32 0.0, %v1391
        %v1393 = vpop.f32.mrf.mxu0
        %1394 = vmatprep.mubr.f32.mxu0 0.0
        %1395 = vmatmul.mubr.f32.gmra.mxu0 %v1235
        %v1396 = vpop.f32.mrf.mxu0
        %v1397 = vadd.f32 0.0, %v1396
        %v1398 = vpop.f32.mrf.mxu0
        %1399 = vmatprep.mubr.f32.mxu0 0.0
        %1400 = vmatmul.mubr.f32.gmra.mxu0 %v1238
        %v1401 = vpop.f32.mrf.mxu0
        %v1402 = vadd.f32 0.0, %v1401
        %v1403 = vpop.f32.mrf.mxu0
        %1404 = vmatprep.mubr.f32.mxu0 0.0
        %1405 = vmatmul.mubr.f32.gmra.mxu0 %v1241
        %v1406 = vpop.f32.mrf.mxu0
        %v1407 = vadd.f32 0.0, %v1406
        %v1408 = vpop.f32.mrf.mxu0
        %1409 = vmatprep.mubr.f32.mxu0 0.0
        %1410 = vmatmul.mubr.f32.gmra.mxu0 %v1244
        %v1411 = vpop.f32.mrf.mxu0
        %v1412 = vadd.f32 0.0, %v1411
        %v1413 = vpop.f32.mrf.mxu0
        %1414 = vmatprep.mubr.f32.mxu0 0.0
        %1415 = vmatmul.mubr.f32.gmra.mxu0 %v1247
        %v1416 = vpop.f32.mrf.mxu0
        %v1417 = vadd.f32 0.0, %v1416
        %v1418 = vpop.f32.mrf.mxu0
        %1419 = vmatprep.mubr.f32.mxu0 0.0
        %1420 = vmatmul.mubr.f32.gmra.mxu0 %v1250
        %v1421 = vpop.f32.mrf.mxu0
        %v1422 = vadd.f32 0.0, %v1421
        %v1423 = vpop.f32.mrf.mxu0
        %1424 = vmatprep.mubr.f32.mxu0 0.0
        %1425 = vmatmul.mubr.f32.gmra.mxu0 %v1253
        %v1426 = vpop.f32.mrf.mxu0
        %v1427 = vadd.f32 0.0, %v1426
        %v1428 = vpop.f32.mrf.mxu0
        %1429 = vmatprep.mubr.f32.mxu0 0.0
        %1430 = vmatmul.mubr.f32.gmra.mxu0 %v1256
        %v1431 = vpop.f32.mrf.mxu0
        %v1432 = vadd.f32 0.0, %v1431
        %v1433 = vpop.f32.mrf.mxu0
        %1434 = vmatprep.mubr.f32.mxu0 0.0
        %1435 = vmatmul.mubr.f32.gmra.mxu0 %v1259
        %v1436 = vpop.f32.mrf.mxu0
        %v1437 = vadd.f32 0.0, %v1436
        %v1438 = vpop.f32.mrf.mxu0
        %1439 = vmatprep.mubr.f32.mxu0 0.0
        %1440 = vmatmul.mubr.f32.gmra.mxu0 %v1262
        %v1441 = vpop.f32.mrf.mxu0
        %v1442 = vadd.f32 0.0, %v1441
        %v1443 = vpop.f32.mrf.mxu0
        %1444 = vmatprep.mubr.f32.mxu0 0.0
        %1445 = vmatmul.mubr.f32.gmra.mxu0 %v1265
        %v1446 = vpop.f32.mrf.mxu0
        %v1447 = vadd.f32 0.0, %v1446
        %v1448 = vpop.f32.mrf.mxu0
        %1449 = vmatprep.mubr.f32.mxu0 0.0
        %1450 = vmatmul.mubr.f32.gmra.mxu0 %v1268
        %v1451 = vpop.f32.mrf.mxu0
        %v1452 = vadd.f32 0.0, %v1451
        %v1453 = vpop.f32.mrf.mxu0
        %1454 = vmatprep.mubr.f32.mxu0 0.0
        %1455 = vmatmul.mubr.f32.gmra.mxu0 %v1271
        %v1456 = vpop.f32.mrf.mxu0
        %v1457 = vadd.f32 0.0, %v1456
        %v1458 = vpop.f32.mrf.mxu0
        %1459 = vmatprep.mubr.f32.mxu0 0.0
        %1460 = vmatmul.mubr.f32.gmra.mxu0 %v1274
        %v1461 = vpop.f32.mrf.mxu0
        %v1462 = vadd.f32 0.0, %v1461
        %v1463 = vpop.f32.mrf.mxu0
        %1464 = vmatprep.mubr.f32.mxu0 0.0
        %1465 = vmatmul.mubr.f32.gmra.mxu0 %v1277
        %v1466 = vpop.f32.mrf.mxu0
        %v1467 = vadd.f32 0.0, %v1466
        %v1468 = vpop.f32.mrf.mxu0
        %1469 = vmatprep.mubr.f32.mxu0 0.0
        %1470 = vmatmul.mubr.f32.gmra.mxu0 %v1280
        %v1471 = vpop.f32.mrf.mxu0
        %v1472 = vadd.f32 0.0, %v1471
        %v1473 = vpop.f32.mrf.mxu0
        %1474 = vmatprep.mubr.f32.mxu0 0.0
        %1475 = vmatmul.mubr.f32.gmra.mxu0 %v1283
        %v1476 = vpop.f32.mrf.mxu0
        %v1477 = vadd.f32 0.0, %v1476
        %v1478 = vpop.f32.mrf.mxu0
        %1479 = vmatprep.mubr.f32.mxu0 0.0
        %1480 = vmatmul.mubr.f32.gmra.mxu0 %v1286
        %v1481 = vpop.f32.mrf.mxu0
        %v1482 = vadd.f32 0.0, %v1481
        %v1483 = vpop.f32.mrf.mxu0
        %1484 = vmatprep.mubr.f32.mxu0 0.0
        %1485 = vmatmul.mubr.f32.gmra.mxu0 %v1289
        %v1486 = vpop.f32.mrf.mxu0
        %v1487 = vadd.f32 0.0, %v1486
        %v1488 = vpop.f32.mrf.mxu0
        %1489 = vmatprep.mubr.f32.mxu0 0.0
        %1490 = vmatmul.mubr.f32.gmra.mxu0 %v1292
        %v1491 = vpop.f32.mrf.mxu0
        %v1492 = vadd.f32 0.0, %v1491
        %v1493 = vpop.f32.mrf.mxu0
        %1494 = vmatprep.mubr.f32.mxu0 0.0
        %1495 = vmatmul.mubr.f32.gmra.mxu0 %v1295
        %v1496 = vpop.f32.mrf.mxu0
        %v1497 = vadd.f32 0.0, %v1496
        %v1498 = vpop.f32.mrf.mxu0
        %1499 = vmatprep.mubr.f32.mxu0 0.0
        %1500 = vmatmul.mubr.f32.gmra.mxu0 %v1298
        %v1501 = vpop.f32.mrf.mxu0
        %v1502 = vadd.f32 0.0, %v1501
        %v1503 = vpop.f32.mrf.mxu0
        %1504 = vdwg.mxu0
        %v1505 = vmul.f32 %v1367, %v742
        %v1506 = vmul.f32 %v1372, %v743
        %v1507 = vmul.f32 %v1377, %v744
        %v1508 = vmul.f32 %v1382, %v745
        %v1509 = vmul.f32 %v1387, %v746
        %v1510 = vmul.f32 %v1392, %v747
        %v1511 = vmul.f32 %v1397, %v748
        %v1512 = vmul.f32 %v1402, %v749
        %v1513 = vmul.f32 %v1407, %v750
        %v1514 = vmul.f32 %v1412, %v751
        %v1515 = vmul.f32 %v1417, %v752
        %v1516 = vmul.f32 %v1422, %v753
        %v1517 = vmul.f32 %v1427, %v754
        %v1518 = vmul.f32 %v1432, %v755
        %v1519 = vmul.f32 %v1437, %v756
        %v1520 = vmul.f32 %v1442, %v757
        %v1521 = vmul.f32 %v1447, %v758
        %v1522 = vmul.f32 %v1452, %v759
        %v1523 = vmul.f32 %v1457, %v760
        %v1524 = vmul.f32 %v1462, %v761
        %v1525 = vmul.f32 %v1467, %v762
        %v1526 = vmul.f32 %v1472, %v763
        %v1527 = vmul.f32 %v1477, %v764
        %v1528 = vmul.f32 %v1482, %v765
        %v1529 = vmul.f32 %v1487, %v766
        %v1530 = vmul.f32 %v1492, %v767
        %v1531 = vmul.f32 %v1497, %v768
        %v1532 = vmul.f32 %v1502, %v769
        %1533 = vmatprep.subr.mxu0 0.0
        %1534 = vmatpush1.xpose.msra.mxu0 0.0
        %1535 = vmatprep.subr.mxu0 0.0
        %1536 = vmatpush1.xpose.msra.mxu0 0.0
        %1537 = vmatprep.subr.mxu0 0.0
        %1538 = vmatpush1.xpose.msra.mxu0 0.0
        %1539 = vmatprep.subr.mxu0 0.0
        %1540 = vmatpush1.xpose.msra.mxu0 0.0
        %1541 = vmatprep.subr.mxu0 0.0
        %1542 = vmatpush1.xpose.msra.mxu0 0.0
        %1543 = vmatprep.subr.mxu0 0.0
        %1544 = vmatpush1.xpose.msra.mxu0 0.0
        %1545 = vmatprep.subr.mxu0 0.0
        %1546 = vmatpush1.xpose.msra.mxu0 0.0
        %1547 = vmatprep.subr.mxu0 0.0
        %1548 = vmatpush1.xpose.msra.mxu0 0.0
        %1549 = vmatprep.subr.mxu0 0.0
        %1550 = vmatpush1.xpose.msra.mxu0 0.0
        %1551 = vmatprep.subr.mxu0 0.0
        %1552 = vmatpush1.xpose.msra.mxu0 0.0
        %1553 = vmatprep.subr.mxu0 0.0
        %1554 = vmatpush1.xpose.msra.mxu0 0.0
        %1555 = vmatprep.subr.mxu0 0.0
        %1556 = vmatpush1.xpose.msra.mxu0 0.0
        %1557 = vmatprep.subr.mxu0 0.0
        %1558 = vmatpush1.xpose.msra.mxu0 0.0
        %1559 = vmatprep.subr.mxu0 0.0
        %1560 = vmatpush1.xpose.msra.mxu0 0.0
        %1561 = vmatprep.subr.mxu0 0.0
        %1562 = vmatpush1.xpose.msra.mxu0 0.0
        %1563 = vmatprep.subr.mxu0 0.0
        %1564 = vmatpush1.xpose.msra.mxu0 %v1143
        %1565 = vmatprep.subr.mxu0 0.0
        %1566 = vmatpush2.xpose.msra.mxu0 0.0
        %1567 = vmatprep.subr.mxu0 0.0
        %1568 = vmatpush2.xpose.msra.mxu0 0.0
        %1569 = vmatprep.subr.mxu0 0.0
        %1570 = vmatpush2.xpose.msra.mxu0 0.0
        %1571 = vmatprep.subr.mxu0 0.0
        %1572 = vmatpush2.xpose.msra.mxu0 0.0
        %1573 = vmatprep.subr.mxu0 0.0
        %1574 = vmatpush2.xpose.msra.mxu0 0.0
        %1575 = vmatprep.subr.mxu0 0.0
        %1576 = vmatpush2.xpose.msra.mxu0 0.0
        %1577 = vmatprep.subr.mxu0 0.0
        %1578 = vmatpush2.xpose.msra.mxu0 0.0
        %1579 = vmatprep.subr.mxu0 0.0
        %1580 = vmatpush2.xpose.msra.mxu0 0.0
        %1581 = vmatprep.subr.mxu0 0.0
        %1582 = vmatpush2.xpose.msra.mxu0 0.0
        %1583 = vmatprep.subr.mxu0 0.0
        %1584 = vmatpush2.xpose.msra.mxu0 0.0
        %1585 = vmatprep.subr.mxu0 0.0
        %1586 = vmatpush2.xpose.msra.mxu0 0.0
        %1587 = vmatprep.subr.mxu0 0.0
        %1588 = vmatpush2.xpose.msra.mxu0 0.0
        %1589 = vmatprep.subr.mxu0 0.0
        %1590 = vmatpush2.xpose.msra.mxu0 0.0
        %1591 = vmatprep.subr.mxu0 0.0
        %1592 = vmatpush2.xpose.msra.mxu0 0.0
        %1593 = vmatprep.subr.mxu0 0.0
        %1594 = vmatpush2.xpose.msra.mxu0 0.0
        %1595 = vmatprep.subr.mxu0 0.0
        %1596 = vmatpush2.xpose.msra.mxu0 0.0
        %1597 = vmatprep.mubr.f32.mxu0 0.0
        %1598 = vmatmul.mubr.f32.gmra.mxu0 %v1505
        %v1599 = vpop.f32.mrf.mxu0
        %v1600 = vadd.f32 0.0, %v1599
        %v1601 = vpop.f32.mrf.mxu0
        %1602 = vmatprep.mubr.f32.mxu0 0.0
        %1603 = vmatmul.mubr.f32.gmra.mxu0 %v1506
        %v1604 = vpop.f32.mrf.mxu0
        %v1605 = vadd.f32 0.0, %v1604
        %v1606 = vpop.f32.mrf.mxu0
        %1607 = vmatprep.mubr.f32.mxu0 0.0
        %1608 = vmatmul.mubr.f32.gmra.mxu0 %v1507
        %v1609 = vpop.f32.mrf.mxu0
        %v1610 = vadd.f32 0.0, %v1609
        %v1611 = vpop.f32.mrf.mxu0
        %1612 = vmatprep.mubr.f32.mxu0 0.0
        %1613 = vmatmul.mubr.f32.gmra.mxu0 %v1508
        %v1614 = vpop.f32.mrf.mxu0
        %v1615 = vadd.f32 0.0, %v1614
        %v1616 = vpop.f32.mrf.mxu0
        %1617 = vmatprep.mubr.f32.mxu0 0.0
        %1618 = vmatmul.mubr.f32.gmra.mxu0 %v1509
        %v1619 = vpop.f32.mrf.mxu0
        %v1620 = vadd.f32 0.0, %v1619
        %v1621 = vpop.f32.mrf.mxu0
        %1622 = vmatprep.mubr.f32.mxu0 0.0
        %1623 = vmatmul.mubr.f32.gmra.mxu0 %v1510
        %v1624 = vpop.f32.mrf.mxu0
        %v1625 = vadd.f32 0.0, %v1624
        %v1626 = vpop.f32.mrf.mxu0
        %1627 = vmatprep.mubr.f32.mxu0 0.0
        %1628 = vmatmul.mubr.f32.gmra.mxu0 %v1511
        %v1629 = vpop.f32.mrf.mxu0
        %v1630 = vadd.f32 0.0, %v1629
        %v1631 = vpop.f32.mrf.mxu0
        %1632 = vmatprep.mubr.f32.mxu0 0.0
        %1633 = vmatmul.mubr.f32.gmra.mxu0 %v1512
        %v1634 = vpop.f32.mrf.mxu0
        %v1635 = vadd.f32 0.0, %v1634
        %v1636 = vpop.f32.mrf.mxu0
        %1637 = vmatprep.mubr.f32.mxu0 0.0
        %1638 = vmatmul.mubr.f32.gmra.mxu0 %v1513
        %v1639 = vpop.f32.mrf.mxu0
        %v1640 = vadd.f32 0.0, %v1639
        %v1641 = vpop.f32.mrf.mxu0
        %1642 = vmatprep.mubr.f32.mxu0 0.0
        %1643 = vmatmul.mubr.f32.gmra.mxu0 %v1514
        %v1644 = vpop.f32.mrf.mxu0
        %v1645 = vadd.f32 0.0, %v1644
        %v1646 = vpop.f32.mrf.mxu0
        %1647 = vmatprep.mubr.f32.mxu0 0.0
        %1648 = vmatmul.mubr.f32.gmra.mxu0 %v1515
        %v1649 = vpop.f32.mrf.mxu0
        %v1650 = vadd.f32 0.0, %v1649
        %v1651 = vpop.f32.mrf.mxu0
        %1652 = vmatprep.mubr.f32.mxu0 0.0
        %1653 = vmatmul.mubr.f32.gmra.mxu0 %v1516
        %v1654 = vpop.f32.mrf.mxu0
        %v1655 = vadd.f32 0.0, %v1654
        %v1656 = vpop.f32.mrf.mxu0
        %1657 = vmatprep.mubr.f32.mxu0 0.0
        %1658 = vmatmul.mubr.f32.gmra.mxu0 %v1517
        %v1659 = vpop.f32.mrf.mxu0
        %v1660 = vadd.f32 0.0, %v1659
        %v1661 = vpop.f32.mrf.mxu0
        %1662 = vmatprep.mubr.f32.mxu0 0.0
        %1663 = vmatmul.mubr.f32.gmra.mxu0 %v1518
        %v1664 = vpop.f32.mrf.mxu0
        %v1665 = vadd.f32 0.0, %v1664
        %v1666 = vpop.f32.mrf.mxu0
        %1667 = vmatprep.mubr.f32.mxu0 0.0
        %1668 = vmatmul.mubr.f32.gmra.mxu0 %v1519
        %v1669 = vpop.f32.mrf.mxu0
        %v1670 = vadd.f32 0.0, %v1669
        %v1671 = vpop.f32.mrf.mxu0
        %1672 = vmatprep.mubr.f32.mxu0 0.0
        %1673 = vmatmul.mubr.f32.gmra.mxu0 %v1520
        %v1674 = vpop.f32.mrf.mxu0
        %v1675 = vadd.f32 0.0, %v1674
        %v1676 = vpop.f32.mrf.mxu0
        %1677 = vmatprep.mubr.f32.mxu0 0.0
        %1678 = vmatmul.mubr.f32.gmra.mxu0 %v1521
        %v1679 = vpop.f32.mrf.mxu0
        %v1680 = vadd.f32 0.0, %v1679
        %v1681 = vpop.f32.mrf.mxu0
        %1682 = vmatprep.mubr.f32.mxu0 0.0
        %1683 = vmatmul.mubr.f32.gmra.mxu0 %v1522
        %v1684 = vpop.f32.mrf.mxu0
        %v1685 = vadd.f32 0.0, %v1684
        %v1686 = vpop.f32.mrf.mxu0
        %1687 = vmatprep.mubr.f32.mxu0 0.0
        %1688 = vmatmul.mubr.f32.gmra.mxu0 %v1523
        %v1689 = vpop.f32.mrf.mxu0
        %v1690 = vadd.f32 0.0, %v1689
        %v1691 = vpop.f32.mrf.mxu0
        %1692 = vmatprep.mubr.f32.mxu0 0.0
        %1693 = vmatmul.mubr.f32.gmra.mxu0 %v1524
        %v1694 = vpop.f32.mrf.mxu0
        %v1695 = vadd.f32 0.0, %v1694
        %v1696 = vpop.f32.mrf.mxu0
        %1697 = vmatprep.mubr.f32.mxu0 0.0
        %1698 = vmatmul.mubr.f32.gmra.mxu0 %v1525
        %v1699 = vpop.f32.mrf.mxu0
        %v1700 = vadd.f32 0.0, %v1699
        %v1701 = vpop.f32.mrf.mxu0
        %1702 = vmatprep.mubr.f32.mxu0 0.0
        %1703 = vmatmul.mubr.f32.gmra.mxu0 %v1526
        %v1704 = vpop.f32.mrf.mxu0
        %v1705 = vadd.f32 0.0, %v1704
        %v1706 = vpop.f32.mrf.mxu0
        %1707 = vmatprep.mubr.f32.mxu0 0.0
        %1708 = vmatmul.mubr.f32.gmra.mxu0 %v1527
        %v1709 = vpop.f32.mrf.mxu0
        %v1710 = vadd.f32 0.0, %v1709
        %v1711 = vpop.f32.mrf.mxu0
        %1712 = vmatprep.mubr.f32.mxu0 0.0
        %1713 = vmatmul.mubr.f32.gmra.mxu0 %v1528
        %v1714 = vpop.f32.mrf.mxu0
        %v1715 = vadd.f32 0.0, %v1714
        %v1716 = vpop.f32.mrf.mxu0
        %1717 = vmatprep.mubr.f32.mxu0 0.0
        %1718 = vmatmul.mubr.f32.gmra.mxu0 %v1529
        %v1719 = vpop.f32.mrf.mxu0
        %v1720 = vadd.f32 0.0, %v1719
        %v1721 = vpop.f32.mrf.mxu0
        %1722 = vmatprep.mubr.f32.mxu0 0.0
        %1723 = vmatmul.mubr.f32.gmra.mxu0 %v1530
        %v1724 = vpop.f32.mrf.mxu0
        %v1725 = vadd.f32 0.0, %v1724
        %v1726 = vpop.f32.mrf.mxu0
        %1727 = vmatprep.mubr.f32.mxu0 0.0
        %1728 = vmatmul.mubr.f32.gmra.mxu0 %v1531
        %v1729 = vpop.f32.mrf.mxu0
        %v1730 = vadd.f32 0.0, %v1729
        %v1731 = vpop.f32.mrf.mxu0
        %1732 = vmatprep.mubr.f32.mxu0 0.0
        %1733 = vmatmul.mubr.f32.gmra.mxu0 %v1532
        %v1734 = vpop.f32.mrf.mxu0
        %v1735 = vadd.f32 0.0, %v1734
        %v1736 = vpop.f32.mrf.mxu0
        %1737 = vdwg.mxu0
        %v1738 = vsel %vm1215, %v1600, -inf
        %1739 = vmax.xlane.f32.xlu0 %v1738
        %v1740 = vpop.xlane.xlu0 %1739
        %v1741 = vsel %vm1215, %v1605, -inf
        %1742 = vmax.xlane.f32.xlu0 %v1741
        %v1743 = vpop.xlane.xlu0 %1742
        %v1744 = vsel %vm1215, %v1610, -inf
        %1745 = vmax.xlane.f32.xlu0 %v1744
        %v1746 = vpop.xlane.xlu0 %1745
        %v1747 = vsel %vm1215, %v1615, -inf
        %1748 = vmax.xlane.f32.xlu0 %v1747
        %v1749 = vpop.xlane.xlu0 %1748
        %v1750 = vsel %vm1215, %v1620, -inf
        %1751 = vmax.xlane.f32.xlu0 %v1750
        %v1752 = vpop.xlane.xlu0 %1751
        %v1753 = vsel %vm1215, %v1625, -inf
        %1754 = vmax.xlane.f32.xlu0 %v1753
        %v1755 = vpop.xlane.xlu0 %1754
        %v1756 = vsel %vm1215, %v1630, -inf
        %1757 = vmax.xlane.f32.xlu0 %v1756
        %v1758 = vpop.xlane.xlu0 %1757
        %v1759 = vsel %vm1215, %v1635, -inf
        %1760 = vmax.xlane.f32.xlu0 %v1759
        %v1761 = vpop.xlane.xlu0 %1760
        %v1762 = vsel %vm1215, %v1640, -inf
        %1763 = vmax.xlane.f32.xlu0 %v1762
        %v1764 = vpop.xlane.xlu0 %1763
        %v1765 = vsel %vm1215, %v1645, -inf
        %1766 = vmax.xlane.f32.xlu0 %v1765
        %v1767 = vpop.xlane.xlu0 %1766
        %v1768 = vsel %vm1215, %v1650, -inf
        %1769 = vmax.xlane.f32.xlu0 %v1768
        %v1770 = vpop.xlane.xlu0 %1769
        %v1771 = vsel %vm1215, %v1655, -inf
        %1772 = vmax.xlane.f32.xlu0 %v1771
        %v1773 = vpop.xlane.xlu0 %1772
        %v1774 = vsel %vm1215, %v1660, -inf
        %1775 = vmax.xlane.f32.xlu0 %v1774
        %v1776 = vpop.xlane.xlu0 %1775
        %v1777 = vsel %vm1215, %v1665, -inf
        %1778 = vmax.xlane.f32.xlu0 %v1777
        %v1779 = vpop.xlane.xlu0 %1778
        %v1780 = vsel %vm1215, %v1670, -inf
        %1781 = vmax.xlane.f32.xlu0 %v1780
        %v1782 = vpop.xlane.xlu0 %1781
        %v1783 = vsel %vm1215, %v1675, -inf
        %1784 = vmax.xlane.f32.xlu0 %v1783
        %v1785 = vpop.xlane.xlu0 %1784
        %v1786 = vsel %vm1215, %v1680, -inf
        %1787 = vmax.xlane.f32.xlu0 %v1786
        %v1788 = vpop.xlane.xlu0 %1787
        %v1789 = vsel %vm1215, %v1685, -inf
        %1790 = vmax.xlane.f32.xlu0 %v1789
        %v1791 = vpop.xlane.xlu0 %1790
        %v1792 = vsel %vm1215, %v1690, -inf
        %1793 = vmax.xlane.f32.xlu0 %v1792
        %v1794 = vpop.xlane.xlu0 %1793
        %v1795 = vsel %vm1215, %v1695, -inf
        %1796 = vmax.xlane.f32.xlu0 %v1795
        %v1797 = vpop.xlane.xlu0 %1796
        %v1798 = vsel %vm1215, %v1700, -inf
        %1799 = vmax.xlane.f32.xlu0 %v1798
        %v1800 = vpop.xlane.xlu0 %1799
        %v1801 = vsel %vm1215, %v1705, -inf
        %1802 = vmax.xlane.f32.xlu0 %v1801
        %v1803 = vpop.xlane.xlu0 %1802
        %v1804 = vsel %vm1215, %v1710, -inf
        %1805 = vmax.xlane.f32.xlu0 %v1804
        %v1806 = vpop.xlane.xlu0 %1805
        %v1807 = vsel %vm1215, %v1715, -inf
        %1808 = vmax.xlane.f32.xlu0 %v1807
        %v1809 = vpop.xlane.xlu0 %1808
        %v1810 = vsel %vm1215, %v1720, -inf
        %1811 = vmax.xlane.f32.xlu0 %v1810
        %v1812 = vpop.xlane.xlu0 %1811
        %v1813 = vsel %vm1215, %v1725, -inf
        %1814 = vmax.xlane.f32.xlu0 %v1813
        %v1815 = vpop.xlane.xlu0 %1814
        %v1816 = vsel %vm1215, %v1730, -inf
        %1817 = vmax.xlane.f32.xlu0 %v1816
        %v1818 = vpop.xlane.xlu0 %1817
        %v1819 = vsel %vm1215, %v1735, -inf
        %1820 = vmax.xlane.f32.xlu0 %v1819
        %v1821 = vpop.xlane.xlu0 %1820
        %v1822 = vsub.f32 %v1600, %v1740
        %v1823 = vsub.f32 %v1605, %v1743
        %v1824 = vsub.f32 %v1610, %v1746
        %v1825 = vsub.f32 %v1615, %v1749
        %v1826 = vsub.f32 %v1620, %v1752
        %v1827 = vsub.f32 %v1625, %v1755
        %v1828 = vsub.f32 %v1630, %v1758
        %v1829 = vsub.f32 %v1635, %v1761
        %v1830 = vsub.f32 %v1640, %v1764
        %v1831 = vsub.f32 %v1645, %v1767
        %v1832 = vsub.f32 %v1650, %v1770
        %v1833 = vsub.f32 %v1655, %v1773
        %v1834 = vsub.f32 %v1660, %v1776
        %v1835 = vsub.f32 %v1665, %v1779
        %v1836 = vsub.f32 %v1670, %v1782
        %v1837 = vsub.f32 %v1675, %v1785
        %v1838 = vsub.f32 %v1680, %v1788
        %v1839 = vsub.f32 %v1685, %v1791
        %v1840 = vsub.f32 %v1690, %v1794
        %v1841 = vsub.f32 %v1695, %v1797
        %v1842 = vsub.f32 %v1700, %v1800
        %v1843 = vsub.f32 %v1705, %v1803
        %v1844 = vsub.f32 %v1710, %v1806
        %v1845 = vsub.f32 %v1715, %v1809
        %v1846 = vsub.f32 %v1720, %v1812
        %v1847 = vsub.f32 %v1725, %v1815
        %v1848 = vsub.f32 %v1730, %v1818
        %v1849 = vsub.f32 %v1735, %v1821
        %v1850 = vmul.f32 %v1822, 1.442695
        %v1851 = vpow.pop %v1850
        %v1852 = vmul.f32 %v1823, 1.442695
        %v1853 = vpow.pop %v1852
        %v1854 = vmul.f32 %v1824, 1.442695
        %v1855 = vpow.pop %v1854
        %v1856 = vmul.f32 %v1825, 1.442695
        %v1857 = vpow.pop %v1856
        %v1858 = vmul.f32 %v1826, 1.442695
        %v1859 = vpow.pop %v1858
        %v1860 = vmul.f32 %v1827, 1.442695
        %v1861 = vpow.pop %v1860
        %v1862 = vmul.f32 %v1828, 1.442695
        %v1863 = vpow.pop %v1862
        %v1864 = vmul.f32 %v1829, 1.442695
        %v1865 = vpow.pop %v1864
        %v1866 = vmul.f32 %v1830, 1.442695
        %v1867 = vpow.pop %v1866
        %v1868 = vmul.f32 %v1831, 1.442695
        %v1869 = vpow.pop %v1868
        %v1870 = vmul.f32 %v1832, 1.442695
        %v1871 = vpow.pop %v1870
        %v1872 = vmul.f32 %v1833, 1.442695
        %v1873 = vpow.pop %v1872
        %v1874 = vmul.f32 %v1834, 1.442695
        %v1875 = vpow.pop %v1874
        %v1876 = vmul.f32 %v1835, 1.442695
        %v1877 = vpow.pop %v1876
        %v1878 = vmul.f32 %v1836, 1.442695
        %v1879 = vpow.pop %v1878
        %v1880 = vmul.f32 %v1837, 1.442695
        %v1881 = vpow.pop %v1880
        %v1882 = vmul.f32 %v1838, 1.442695
        %v1883 = vpow.pop %v1882
        %v1884 = vmul.f32 %v1839, 1.442695
        %v1885 = vpow.pop %v1884
        %v1886 = vmul.f32 %v1840, 1.442695
        %v1887 = vpow.pop %v1886
        %v1888 = vmul.f32 %v1841, 1.442695
        %v1889 = vpow.pop %v1888
        %v1890 = vmul.f32 %v1842, 1.442695
        %v1891 = vpow.pop %v1890
        %v1892 = vmul.f32 %v1843, 1.442695
        %v1893 = vpow.pop %v1892
        %v1894 = vmul.f32 %v1844, 1.442695
        %v1895 = vpow.pop %v1894
        %v1896 = vmul.f32 %v1845, 1.442695
        %v1897 = vpow.pop %v1896
        %v1898 = vmul.f32 %v1846, 1.442695
        %v1899 = vpow.pop %v1898
        %v1900 = vmul.f32 %v1847, 1.442695
        %v1901 = vpow.pop %v1900
        %v1902 = vmul.f32 %v1848, 1.442695
        %v1903 = vpow.pop %v1902
        %v1904 = vmul.f32 %v1849, 1.442695
        %v1905 = vpow.pop %v1904
        %v1906 = vsel %vm1215, %v1851, 0.0
        %1907 = vadd.xlane.f32.xlu0 %v1906
        %v1908 = vpop.xlane.xlu0 %1907
        %v1909 = vsel %vm1215, %v1853, 0.0
        %1910 = vadd.xlane.f32.xlu0 %v1909
        %v1911 = vpop.xlane.xlu0 %1910
        %v1912 = vsel %vm1215, %v1855, 0.0
        %1913 = vadd.xlane.f32.xlu0 %v1912
        %v1914 = vpop.xlane.xlu0 %1913
        %v1915 = vsel %vm1215, %v1857, 0.0
        %1916 = vadd.xlane.f32.xlu0 %v1915
        %v1917 = vpop.xlane.xlu0 %1916
        %v1918 = vsel %vm1215, %v1859, 0.0
        %1919 = vadd.xlane.f32.xlu0 %v1918
        %v1920 = vpop.xlane.xlu0 %1919
        %v1921 = vsel %vm1215, %v1861, 0.0
        %1922 = vadd.xlane.f32.xlu0 %v1921
        %v1923 = vpop.xlane.xlu0 %1922
        %v1924 = vsel %vm1215, %v1863, 0.0
        %1925 = vadd.xlane.f32.xlu0 %v1924
        %v1926 = vpop.xlane.xlu0 %1925
        %v1927 = vsel %vm1215, %v1865, 0.0
        %1928 = vadd.xlane.f32.xlu0 %v1927
        %v1929 = vpop.xlane.xlu0 %1928
        %v1930 = vsel %vm1215, %v1867, 0.0
        %1931 = vadd.xlane.f32.xlu0 %v1930
        %v1932 = vpop.xlane.xlu0 %1931
        %v1933 = vsel %vm1215, %v1869, 0.0
        %1934 = vadd.xlane.f32.xlu0 %v1933
        %v1935 = vpop.xlane.xlu0 %1934
        %v1936 = vsel %vm1215, %v1871, 0.0
        %1937 = vadd.xlane.f32.xlu0 %v1936
        %v1938 = vpop.xlane.xlu0 %1937
        %v1939 = vsel %vm1215, %v1873, 0.0
        %1940 = vadd.xlane.f32.xlu0 %v1939
        %v1941 = vpop.xlane.xlu0 %1940
        %v1942 = vsel %vm1215, %v1875, 0.0
        %1943 = vadd.xlane.f32.xlu0 %v1942
        %v1944 = vpop.xlane.xlu0 %1943
        %v1945 = vsel %vm1215, %v1877, 0.0
        %1946 = vadd.xlane.f32.xlu0 %v1945
        %v1947 = vpop.xlane.xlu0 %1946
        %v1948 = vsel %vm1215, %v1879, 0.0
        %1949 = vadd.xlane.f32.xlu0 %v1948
        %v1950 = vpop.xlane.xlu0 %1949
        %v1951 = vsel %vm1215, %v1881, 0.0
        %1952 = vadd.xlane.f32.xlu0 %v1951
        %v1953 = vpop.xlane.xlu0 %1952
        %v1954 = vsel %vm1215, %v1883, 0.0
        %1955 = vadd.xlane.f32.xlu0 %v1954
        %v1956 = vpop.xlane.xlu0 %1955
        %v1957 = vsel %vm1215, %v1885, 0.0
        %1958 = vadd.xlane.f32.xlu0 %v1957
        %v1959 = vpop.xlane.xlu0 %1958
        %v1960 = vsel %vm1215, %v1887, 0.0
        %1961 = vadd.xlane.f32.xlu0 %v1960
        %v1962 = vpop.xlane.xlu0 %1961
        %v1963 = vsel %vm1215, %v1889, 0.0
        %1964 = vadd.xlane.f32.xlu0 %v1963
        %v1965 = vpop.xlane.xlu0 %1964
        %v1966 = vsel %vm1215, %v1891, 0.0
        %1967 = vadd.xlane.f32.xlu0 %v1966
        %v1968 = vpop.xlane.xlu0 %1967
        %v1969 = vsel %vm1215, %v1893, 0.0
        %1970 = vadd.xlane.f32.xlu0 %v1969
        %v1971 = vpop.xlane.xlu0 %1970
        %v1972 = vsel %vm1215, %v1895, 0.0
        %1973 = vadd.xlane.f32.xlu0 %v1972
        %v1974 = vpop.xlane.xlu0 %1973
        %v1975 = vsel %vm1215, %v1897, 0.0
        %1976 = vadd.xlane.f32.xlu0 %v1975
        %v1977 = vpop.xlane.xlu0 %1976
        %v1978 = vsel %vm1215, %v1899, 0.0
        %1979 = vadd.xlane.f32.xlu0 %v1978
        %v1980 = vpop.xlane.xlu0 %1979
        %v1981 = vsel %vm1215, %v1901, 0.0
        %1982 = vadd.xlane.f32.xlu0 %v1981
        %v1983 = vpop.xlane.xlu0 %1982
        %v1984 = vsel %vm1215, %v1903, 0.0
        %1985 = vadd.xlane.f32.xlu0 %v1984
        %v1986 = vpop.xlane.xlu0 %1985
        %v1987 = vsel %vm1215, %v1905, 0.0
        %1988 = vadd.xlane.f32.xlu0 %v1987
        %v1989 = vpop.xlane.xlu0 %1988
        %v1990 = vrcp.pop %v1908
        %v1991 = vmul.f32 %v1851, %v1990
        %v1992 = vrcp.pop %v1911
        %v1993 = vmul.f32 %v1853, %v1992
        %v1994 = vrcp.pop %v1914
        %v1995 = vmul.f32 %v1855, %v1994
        %v1996 = vrcp.pop %v1917
        %v1997 = vmul.f32 %v1857, %v1996
        %v1998 = vrcp.pop %v1920
        %v1999 = vmul.f32 %v1859, %v1998
        %v2000 = vrcp.pop %v1923
        %v2001 = vmul.f32 %v1861, %v2000
        %v2002 = vrcp.pop %v1926
        %v2003 = vmul.f32 %v1863, %v2002
        %v2004 = vrcp.pop %v1929
        %v2005 = vmul.f32 %v1865, %v2004
        %v2006 = vrcp.pop %v1932
        %v2007 = vmul.f32 %v1867, %v2006
        %v2008 = vrcp.pop %v1935
        %v2009 = vmul.f32 %v1869, %v2008
        %v2010 = vrcp.pop %v1938
        %v2011 = vmul.f32 %v1871, %v2010
        %v2012 = vrcp.pop %v1941
        %v2013 = vmul.f32 %v1873, %v2012
        %v2014 = vrcp.pop %v1944
        %v2015 = vmul.f32 %v1875, %v2014
        %v2016 = vrcp.pop %v1947
        %v2017 = vmul.f32 %v1877, %v2016
        %v2018 = vrcp.pop %v1950
        %v2019 = vmul.f32 %v1879, %v2018
        %v2020 = vrcp.pop %v1953
        %v2021 = vmul.f32 %v1881, %v2020
        %v2022 = vrcp.pop %v1956
        %v2023 = vmul.f32 %v1883, %v2022
        %v2024 = vrcp.pop %v1959
        %v2025 = vmul.f32 %v1885, %v2024
        %v2026 = vrcp.pop %v1962
        %v2027 = vmul.f32 %v1887, %v2026
        %v2028 = vrcp.pop %v1965
        %v2029 = vmul.f32 %v1889, %v2028
        %v2030 = vrcp.pop %v1968
        %v2031 = vmul.f32 %v1891, %v2030
        %v2032 = vrcp.pop %v1971
        %v2033 = vmul.f32 %v1893, %v2032
        %v2034 = vrcp.pop %v1974
        %v2035 = vmul.f32 %v1895, %v2034
        %v2036 = vrcp.pop %v1977
        %v2037 = vmul.f32 %v1897, %v2036
        %v2038 = vrcp.pop %v1980
        %v2039 = vmul.f32 %v1899, %v2038
        %v2040 = vrcp.pop %v1983
        %v2041 = vmul.f32 %v1901, %v2040
        %v2042 = vrcp.pop %v1986
        %v2043 = vmul.f32 %v1903, %v2042
        %v2044 = vrcp.pop %v1989
        %v2045 = vmul.f32 %v1905, %v2044
        %v2047 = vsel %vm1215, %v1991, 0
        %v2050 = vsel %vm1215, %v1993, 0
        %v2053 = vsel %vm1215, %v1995, 0
        %v2056 = vsel %vm1215, %v1997, 0
        %v2059 = vsel %vm1215, %v1999, 0
        %v2062 = vsel %vm1215, %v2001, 0
        %v2065 = vsel %vm1215, %v2003, 0
        %v2068 = vsel %vm1215, %v2005, 0
        %v2071 = vsel %vm1215, %v2007, 0
        %v2074 = vsel %vm1215, %v2009, 0
        %v2077 = vsel %vm1215, %v2011, 0
        %v2080 = vsel %vm1215, %v2013, 0
        %v2083 = vsel %vm1215, %v2015, 0
        %v2086 = vsel %vm1215, %v2017, 0
        %v2089 = vsel %vm1215, %v2019, 0
        %v2092 = vsel %vm1215, %v2021, 0
        %v2095 = vsel %vm1215, %v2023, 0
        %v2098 = vsel %vm1215, %v2025, 0
        %v2101 = vsel %vm1215, %v2027, 0
        %v2104 = vsel %vm1215, %v2029, 0
        %v2107 = vsel %vm1215, %v2031, 0
        %v2110 = vsel %vm1215, %v2033, 0
        %v2113 = vsel %vm1215, %v2035, 0
        %v2116 = vsel %vm1215, %v2037, 0
        %v2119 = vsel %vm1215, %v2039, 0
        %v2122 = vsel %vm1215, %v2041, 0
        %v2125 = vsel %vm1215, %v2043, 0
        %v2128 = vsel %vm1215, %v2045, 0
        %2130 = vmatprep.subr.mxu0 0.0
        %2131 = vmatpush1.msra.mxu0 0.0
        %2132 = vmatprep.subr.mxu0 0.0
        %2133 = vmatpush1.msra.mxu0 0.0
        %2134 = vmatprep.subr.mxu0 0.0
        %2135 = vmatpush1.msra.mxu0 0.0
        %2136 = vmatprep.subr.mxu0 0.0
        %2137 = vmatpush1.msra.mxu0 0.0
        %2138 = vmatprep.subr.mxu0 0.0
        %2139 = vmatpush1.msra.mxu0 0.0
        %2140 = vmatprep.subr.mxu0 0.0
        %2141 = vmatpush1.msra.mxu0 0.0
        %2142 = vmatprep.subr.mxu0 0.0
        %2143 = vmatpush1.msra.mxu0 0.0
        %2144 = vmatprep.subr.mxu0 0.0
        %2145 = vmatpush1.msra.mxu0 0.0
        %2146 = vmatprep.subr.mxu0 0.0
        %2147 = vmatpush1.msra.mxu0 0.0
        %2148 = vmatprep.subr.mxu0 0.0
        %2149 = vmatpush1.msra.mxu0 0.0
        %2150 = vmatprep.subr.mxu0 0.0
        %2151 = vmatpush1.msra.mxu0 0.0
        %2152 = vmatprep.subr.mxu0 0.0
        %2153 = vmatpush1.msra.mxu0 0.0
        %2154 = vmatprep.subr.mxu0 0.0
        %2155 = vmatpush1.msra.mxu0 0.0
        %2156 = vmatprep.subr.mxu0 0.0
        %2157 = vmatpush1.msra.mxu0 0.0
        %2158 = vmatprep.subr.mxu0 0.0
        %2159 = vmatpush1.msra.mxu0 0.0
        %2160 = vmatprep.subr.mxu0 0.0
        %2161 = vmatpush1.msra.mxu0 %v1212
        %2162 = vmatprep.subr.mxu0 0.0
        %2163 = vmatpush2.msra.mxu0 0.0
        %2164 = vmatprep.subr.mxu0 0.0
        %2165 = vmatpush2.msra.mxu0 0.0
        %2166 = vmatprep.subr.mxu0 0.0
        %2167 = vmatpush2.msra.mxu0 0.0
        %2168 = vmatprep.subr.mxu0 0.0
        %2169 = vmatpush2.msra.mxu0 0.0
        %2170 = vmatprep.subr.mxu0 0.0
        %2171 = vmatpush2.msra.mxu0 0.0
        %2172 = vmatprep.subr.mxu0 0.0
        %2173 = vmatpush2.msra.mxu0 0.0
        %2174 = vmatprep.subr.mxu0 0.0
        %2175 = vmatpush2.msra.mxu0 0.0
        %2176 = vmatprep.subr.mxu0 0.0
        %2177 = vmatpush2.msra.mxu0 0.0
        %2178 = vmatprep.subr.mxu0 0.0
        %2179 = vmatpush2.msra.mxu0 0.0
        %2180 = vmatprep.subr.mxu0 0.0
        %2181 = vmatpush2.msra.mxu0 0.0
        %2182 = vmatprep.subr.mxu0 0.0
        %2183 = vmatpush2.msra.mxu0 0.0
        %2184 = vmatprep.subr.mxu0 0.0
        %2185 = vmatpush2.msra.mxu0 0.0
        %2186 = vmatprep.subr.mxu0 0.0
        %2187 = vmatpush2.msra.mxu0 0.0
        %2188 = vmatprep.subr.mxu0 0.0
        %2189 = vmatpush2.msra.mxu0 0.0
        %2190 = vmatprep.subr.mxu0 0.0
        %2191 = vmatpush2.msra.mxu0 0.0
        %2192 = vmatprep.subr.mxu0 0.0
        %2193 = vmatpush2.msra.mxu0 0.0
        %2194 = vmatprep.mubr.f32.mxu0 0.0
        %2195 = vmatmul.mubr.f32.gmra.mxu0 %v2047
        %v2196 = vpop.f32.mrf.mxu0
        %v2197 = vadd.f32 0.0, %v2196
        %v2198 = vpop.f32.mrf.mxu0
        %2199 = vmatprep.mubr.f32.mxu0 0.0
        %2200 = vmatmul.mubr.f32.gmra.mxu0 %v2050
        %v2201 = vpop.f32.mrf.mxu0
        %v2202 = vadd.f32 0.0, %v2201
        %v2203 = vpop.f32.mrf.mxu0
        %2204 = vmatprep.mubr.f32.mxu0 0.0
        %2205 = vmatmul.mubr.f32.gmra.mxu0 %v2053
        %v2206 = vpop.f32.mrf.mxu0
        %v2207 = vadd.f32 0.0, %v2206
        %v2208 = vpop.f32.mrf.mxu0
        %2209 = vmatprep.mubr.f32.mxu0 0.0
        %2210 = vmatmul.mubr.f32.gmra.mxu0 %v2056
        %v2211 = vpop.f32.mrf.mxu0
        %v2212 = vadd.f32 0.0, %v2211
        %v2213 = vpop.f32.mrf.mxu0
        %2214 = vmatprep.mubr.f32.mxu0 0.0
        %2215 = vmatmul.mubr.f32.gmra.mxu0 %v2059
        %v2216 = vpop.f32.mrf.mxu0
        %v2217 = vadd.f32 0.0, %v2216
        %v2218 = vpop.f32.mrf.mxu0
        %2219 = vmatprep.mubr.f32.mxu0 0.0
        %2220 = vmatmul.mubr.f32.gmra.mxu0 %v2062
        %v2221 = vpop.f32.mrf.mxu0
        %v2222 = vadd.f32 0.0, %v2221
        %v2223 = vpop.f32.mrf.mxu0
        %2224 = vmatprep.mubr.f32.mxu0 0.0
        %2225 = vmatmul.mubr.f32.gmra.mxu0 %v2065
        %v2226 = vpop.f32.mrf.mxu0
        %v2227 = vadd.f32 0.0, %v2226
        %v2228 = vpop.f32.mrf.mxu0
        %2229 = vmatprep.mubr.f32.mxu0 0.0
        %2230 = vmatmul.mubr.f32.gmra.mxu0 %v2068
        %v2231 = vpop.f32.mrf.mxu0
        %v2232 = vadd.f32 0.0, %v2231
        %v2233 = vpop.f32.mrf.mxu0
        %2234 = vmatprep.mubr.f32.mxu0 0.0
        %2235 = vmatmul.mubr.f32.gmra.mxu0 %v2071
        %v2236 = vpop.f32.mrf.mxu0
        %v2237 = vadd.f32 0.0, %v2236
        %v2238 = vpop.f32.mrf.mxu0
        %2239 = vmatprep.mubr.f32.mxu0 0.0
        %2240 = vmatmul.mubr.f32.gmra.mxu0 %v2074
        %v2241 = vpop.f32.mrf.mxu0
        %v2242 = vadd.f32 0.0, %v2241
        %v2243 = vpop.f32.mrf.mxu0
        %2244 = vmatprep.mubr.f32.mxu0 0.0
        %2245 = vmatmul.mubr.f32.gmra.mxu0 %v2077
        %v2246 = vpop.f32.mrf.mxu0
        %v2247 = vadd.f32 0.0, %v2246
        %v2248 = vpop.f32.mrf.mxu0
        %2249 = vmatprep.mubr.f32.mxu0 0.0
        %2250 = vmatmul.mubr.f32.gmra.mxu0 %v2080
        %v2251 = vpop.f32.mrf.mxu0
        %v2252 = vadd.f32 0.0, %v2251
        %v2253 = vpop.f32.mrf.mxu0
        %2254 = vmatprep.mubr.f32.mxu0 0.0
        %2255 = vmatmul.mubr.f32.gmra.mxu0 %v2083
        %v2256 = vpop.f32.mrf.mxu0
        %v2257 = vadd.f32 0.0, %v2256
        %v2258 = vpop.f32.mrf.mxu0
        %2259 = vmatprep.mubr.f32.mxu0 0.0
        %2260 = vmatmul.mubr.f32.gmra.mxu0 %v2086
        %v2261 = vpop.f32.mrf.mxu0
        %v2262 = vadd.f32 0.0, %v2261
        %v2263 = vpop.f32.mrf.mxu0
        %2264 = vmatprep.mubr.f32.mxu0 0.0
        %2265 = vmatmul.mubr.f32.gmra.mxu0 %v2089
        %v2266 = vpop.f32.mrf.mxu0
        %v2267 = vadd.f32 0.0, %v2266
        %v2268 = vpop.f32.mrf.mxu0
        %2269 = vmatprep.mubr.f32.mxu0 0.0
        %2270 = vmatmul.mubr.f32.gmra.mxu0 %v2092
        %v2271 = vpop.f32.mrf.mxu0
        %v2272 = vadd.f32 0.0, %v2271
        %v2273 = vpop.f32.mrf.mxu0
        %2274 = vmatprep.mubr.f32.mxu0 0.0
        %2275 = vmatmul.mubr.f32.gmra.mxu0 %v2095
        %v2276 = vpop.f32.mrf.mxu0
        %v2277 = vadd.f32 0.0, %v2276
        %v2278 = vpop.f32.mrf.mxu0
        %2279 = vmatprep.mubr.f32.mxu0 0.0
        %2280 = vmatmul.mubr.f32.gmra.mxu0 %v2098
        %v2281 = vpop.f32.mrf.mxu0
        %v2282 = vadd.f32 0.0, %v2281
        %v2283 = vpop.f32.mrf.mxu0
        %2284 = vmatprep.mubr.f32.mxu0 0.0
        %2285 = vmatmul.mubr.f32.gmra.mxu0 %v2101
        %v2286 = vpop.f32.mrf.mxu0
        %v2287 = vadd.f32 0.0, %v2286
        %v2288 = vpop.f32.mrf.mxu0
        %2289 = vmatprep.mubr.f32.mxu0 0.0
        %2290 = vmatmul.mubr.f32.gmra.mxu0 %v2104
        %v2291 = vpop.f32.mrf.mxu0
        %v2292 = vadd.f32 0.0, %v2291
        %v2293 = vpop.f32.mrf.mxu0
        %2294 = vmatprep.mubr.f32.mxu0 0.0
        %2295 = vmatmul.mubr.f32.gmra.mxu0 %v2107
        %v2296 = vpop.f32.mrf.mxu0
        %v2297 = vadd.f32 0.0, %v2296
        %v2298 = vpop.f32.mrf.mxu0
        %2299 = vmatprep.mubr.f32.mxu0 0.0
        %2300 = vmatmul.mubr.f32.gmra.mxu0 %v2110
        %v2301 = vpop.f32.mrf.mxu0
        %v2302 = vadd.f32 0.0, %v2301
        %v2303 = vpop.f32.mrf.mxu0
        %2304 = vmatprep.mubr.f32.mxu0 0.0
        %2305 = vmatmul.mubr.f32.gmra.mxu0 %v2113
        %v2306 = vpop.f32.mrf.mxu0
        %v2307 = vadd.f32 0.0, %v2306
        %v2308 = vpop.f32.mrf.mxu0
        %2309 = vmatprep.mubr.f32.mxu0 0.0
        %2310 = vmatmul.mubr.f32.gmra.mxu0 %v2116
        %v2311 = vpop.f32.mrf.mxu0
        %v2312 = vadd.f32 0.0, %v2311
        %v2313 = vpop.f32.mrf.mxu0
        %2314 = vmatprep.mubr.f32.mxu0 0.0
        %2315 = vmatmul.mubr.f32.gmra.mxu0 %v2119
        %v2316 = vpop.f32.mrf.mxu0
        %v2317 = vadd.f32 0.0, %v2316
        %v2318 = vpop.f32.mrf.mxu0
        %2319 = vmatprep.mubr.f32.mxu0 0.0
        %2320 = vmatmul.mubr.f32.gmra.mxu0 %v2122
        %v2321 = vpop.f32.mrf.mxu0
        %v2322 = vadd.f32 0.0, %v2321
        %v2323 = vpop.f32.mrf.mxu0
        %2324 = vmatprep.mubr.f32.mxu0 0.0
        %2325 = vmatmul.mubr.f32.gmra.mxu0 %v2125
        %v2326 = vpop.f32.mrf.mxu0
        %v2327 = vadd.f32 0.0, %v2326
        %v2328 = vpop.f32.mrf.mxu0
        %2329 = vmatprep.mubr.f32.mxu0 0.0
        %2330 = vmatmul.mubr.f32.gmra.mxu0 %v2128
        %v2331 = vpop.f32.mrf.mxu0
        %v2332 = vadd.f32 0.0, %v2331
        %v2333 = vpop.f32.mrf.mxu0
        %2334 = vdwg.mxu0
        %v2335 = vmul.f32 %v2197, %v742
        %v2336 = vmul.f32 %v2202, %v743
        %v2337 = vmul.f32 %v2207, %v744
        %v2338 = vmul.f32 %v2212, %v745
        %v2339 = vmul.f32 %v2217, %v746
        %v2340 = vmul.f32 %v2222, %v747
        %v2341 = vmul.f32 %v2227, %v748
        %v2342 = vmul.f32 %v2232, %v749
        %v2343 = vmul.f32 %v2237, %v750
        %v2344 = vmul.f32 %v2242, %v751
        %v2345 = vmul.f32 %v2247, %v752
        %v2346 = vmul.f32 %v2252, %v753
        %v2347 = vmul.f32 %v2257, %v754
        %v2348 = vmul.f32 %v2262, %v755
        %v2349 = vmul.f32 %v2267, %v756
        %v2350 = vmul.f32 %v2272, %v757
        %v2351 = vmul.f32 %v2277, %v758
        %v2352 = vmul.f32 %v2282, %v759
        %v2353 = vmul.f32 %v2287, %v760
        %v2354 = vmul.f32 %v2292, %v761
        %v2355 = vmul.f32 %v2297, %v762
        %v2356 = vmul.f32 %v2302, %v763
        %v2357 = vmul.f32 %v2307, %v764
        %v2358 = vmul.f32 %v2312, %v765
        %v2359 = vmul.f32 %v2317, %v766
        %v2360 = vmul.f32 %v2322, %v767
        %v2361 = vmul.f32 %v2327, %v768
        %v2362 = vmul.f32 %v2332, %v769
        %vm2363 = vcmask 785408
        %v2365 = vsel %vm2363, %v799, 0
        %2367 = vmatprep.subr.mxu0 0.0
        %2368 = vmatpush1.msra.mxu0 %v2350
        %2369 = vmatprep.subr.mxu0 0.0
        %2370 = vmatpush1.msra.mxu0 %v2349
        %2371 = vmatprep.subr.mxu0 0.0
        %2372 = vmatpush1.msra.mxu0 %v2348
        %2373 = vmatprep.subr.mxu0 0.0
        %2374 = vmatpush1.msra.mxu0 %v2347
        %2375 = vmatprep.subr.mxu0 0.0
        %2376 = vmatpush1.msra.mxu0 %v2346
        %2377 = vmatprep.subr.mxu0 0.0
        %2378 = vmatpush1.msra.mxu0 %v2345
        %2379 = vmatprep.subr.mxu0 0.0
        %2380 = vmatpush1.msra.mxu0 %v2344
        %2381 = vmatprep.subr.mxu0 0.0
        %2382 = vmatpush1.msra.mxu0 %v2343
        %2383 = vmatprep.subr.mxu0 0.0
        %2384 = vmatpush1.msra.mxu0 %v2342
        %2385 = vmatprep.subr.mxu0 0.0
        %2386 = vmatpush1.msra.mxu0 %v2341
        %2387 = vmatprep.subr.mxu0 0.0
        %2388 = vmatpush1.msra.mxu0 %v2340
        %2389 = vmatprep.subr.mxu0 0.0
        %2390 = vmatpush1.msra.mxu0 %v2339
        %2391 = vmatprep.subr.mxu0 0.0
        %2392 = vmatpush1.msra.mxu0 %v2338
        %2393 = vmatprep.subr.mxu0 0.0
        %2394 = vmatpush1.msra.mxu0 %v2337
        %2395 = vmatprep.subr.mxu0 0.0
        %2396 = vmatpush1.msra.mxu0 %v2336
        %2397 = vmatprep.subr.mxu0 0.0
        %2398 = vmatpush1.msra.mxu0 %v2335
        %2399 = vmatprep.subr.mxu0 0.0
        %2400 = vmatpush2.msra.mxu0 0.0
        %2401 = vmatprep.subr.mxu0 0.0
        %2402 = vmatpush2.msra.mxu0 0.0
        %2403 = vmatprep.subr.mxu0 0.0
        %2404 = vmatpush2.msra.mxu0 0.0
        %2405 = vmatprep.subr.mxu0 0.0
        %2406 = vmatpush2.msra.mxu0 0.0
        %2407 = vmatprep.subr.mxu0 0.0
        %2408 = vmatpush2.msra.mxu0 %v2362
        %2409 = vmatprep.subr.mxu0 0.0
        %2410 = vmatpush2.msra.mxu0 %v2361
        %2411 = vmatprep.subr.mxu0 0.0
        %2412 = vmatpush2.msra.mxu0 %v2360
        %2413 = vmatprep.subr.mxu0 0.0
        %2414 = vmatpush2.msra.mxu0 %v2359
        %2415 = vmatprep.subr.mxu0 0.0
        %2416 = vmatpush2.msra.mxu0 %v2358
        %2417 = vmatprep.subr.mxu0 0.0
        %2418 = vmatpush2.msra.mxu0 %v2357
        %2419 = vmatprep.subr.mxu0 0.0
        %2420 = vmatpush2.msra.mxu0 %v2356
        %2421 = vmatprep.subr.mxu0 0.0
        %2422 = vmatpush2.msra.mxu0 %v2355
        %2423 = vmatprep.subr.mxu0 0.0
        %2424 = vmatpush2.msra.mxu0 %v2354
        %2425 = vmatprep.subr.mxu0 0.0
        %2426 = vmatpush2.msra.mxu0 %v2353
        %2427 = vmatprep.subr.mxu0 0.0
        %2428 = vmatpush2.msra.mxu0 %v2352
        %2429 = vmatprep.subr.mxu0 0.0
        %2430 = vmatpush2.msra.mxu0 %v2351
        %2431 = vmatprep.mubr.f32.mxu0 %v2365
        %2432 = vmatmul.mubr.f32.gmra.mxu0 %v798
        %v2433 = vpop.f32.mrf.mxu0
        %v2434 = vadd.f32 0.0, %v2433
        %v2435 = vpop.f32.mrf.mxu0
        %2436 = vdwg.mxu0
        %v2437 = vld [vmem:[#allocation8] sm:$0xff]
        %v2438 = vld [vmem:[#allocation8 + $0x8] sm:$0xff]
        %v2439 = vld [vmem:[#allocation8 + $0x10] sm:$0xff]
        %v2440 = vld [vmem:[#allocation8 + $0x18] sm:$0xff]
        %v2441 = vld [vmem:[#allocation8 + $0x20] sm:$0xff]
        %v2442 = vld [vmem:[#allocation8 + $0x28] sm:$0xff]
        %v2443 = vld [vmem:[#allocation8 + $0x30] sm:$0xff]
        %v2444 = vld [vmem:[#allocation8 + $0x38] sm:$0xff]
        %v2445 = vld [vmem:[#allocation8 + $0x40] sm:$0xff]
        %v2446 = vld [vmem:[#allocation8 + $0x48] sm:$0xff]
        %v2447 = vld [vmem:[#allocation8 + $0x50] sm:$0xff]
        %v2448 = vld [vmem:[#allocation8 + $0x58] sm:$0xff]
        %v2449 = vld [vmem:[#allocation8 + $0x60] sm:$0xff]
        %v2450 = vld [vmem:[#allocation8 + $0x68] sm:$0xff]
        %v2451 = vld [vmem:[#allocation8 + $0x70] sm:$0xff]
        %v2452 = vld [vmem:[#allocation8 + $0x78] sm:$0xff]
        %v2453 = vld [vmem:[%s7] sm:$0x1]
        %v2455 = vlaneseq
        %v2456 = vshrl.u32 %v2455, 7
        %v2457 = vsub.s32 0, %v2456
        %v2458 = vrot.slane %v2453, %v2457
        %2460 = vmatprep.subr.mxu0 0.0
        %2461 = vmatpush1.msra.mxu0 %v2452
        %2462 = vmatprep.subr.mxu0 0.0
        %2463 = vmatpush1.msra.mxu0 %v2451
        %2464 = vmatprep.subr.mxu0 0.0
        %2465 = vmatpush1.msra.mxu0 %v2450
        %2466 = vmatprep.subr.mxu0 0.0
        %2467 = vmatpush1.msra.mxu0 %v2449
        %2468 = vmatprep.subr.mxu0 0.0
        %2469 = vmatpush1.msra.mxu0 %v2448
        %2470 = vmatprep.subr.mxu0 0.0
        %2471 = vmatpush1.msra.mxu0 %v2447
        %2472 = vmatprep.subr.mxu0 0.0
        %2473 = vmatpush1.msra.mxu0 %v2446
        %2474 = vmatprep.subr.mxu0 0.0
        %2475 = vmatpush1.msra.mxu0 %v2445
        %2476 = vmatprep.subr.mxu0 0.0
        %2477 = vmatpush1.msra.mxu0 %v2444
        %2478 = vmatprep.subr.mxu0 0.0
        %2479 = vmatpush1.msra.mxu0 %v2443
        %2480 = vmatprep.subr.mxu0 0.0
        %2481 = vmatpush1.msra.mxu0 %v2442
        %2482 = vmatprep.subr.mxu0 0.0
        %2483 = vmatpush1.msra.mxu0 %v2441
        %2484 = vmatprep.subr.mxu0 0.0
        %2485 = vmatpush1.msra.mxu0 %v2440
        %2486 = vmatprep.subr.mxu0 0.0
        %2487 = vmatpush1.msra.mxu0 %v2439
        %2488 = vmatprep.subr.mxu0 0.0
        %2489 = vmatpush1.msra.mxu0 %v2438
        %2490 = vmatprep.subr.mxu0 0.0
        %2491 = vmatpush1.msra.mxu0 %v2437
        %2492 = vmatprep.subr.mxu0 0.0
        %2493 = vmatpush2.msra.mxu0 0.0
        %2494 = vmatprep.subr.mxu0 0.0
        %2495 = vmatpush2.msra.mxu0 0.0
        %2496 = vmatprep.subr.mxu0 0.0
        %2497 = vmatpush2.msra.mxu0 0.0
        %2498 = vmatprep.subr.mxu0 0.0
        %2499 = vmatpush2.msra.mxu0 0.0
        %2500 = vmatprep.subr.mxu0 0.0
        %2501 = vmatpush2.msra.mxu0 0.0
        %2502 = vmatprep.subr.mxu0 0.0
        %2503 = vmatpush2.msra.mxu0 0.0
        %2504 = vmatprep.subr.mxu0 0.0
        %2505 = vmatpush2.msra.mxu0 0.0
        %2506 = vmatprep.subr.mxu0 0.0
        %2507 = vmatpush2.msra.mxu0 0.0
        %2508 = vmatprep.subr.mxu0 0.0
        %2509 = vmatpush2.msra.mxu0 0.0
        %2510 = vmatprep.subr.mxu0 0.0
        %2511 = vmatpush2.msra.mxu0 0.0
        %2512 = vmatprep.subr.mxu0 0.0
        %2513 = vmatpush2.msra.mxu0 0.0
        %2514 = vmatprep.subr.mxu0 0.0
        %2515 = vmatpush2.msra.mxu0 0.0
        %2516 = vmatprep.subr.mxu0 0.0
        %2517 = vmatpush2.msra.mxu0 0.0
        %2518 = vmatprep.subr.mxu0 0.0
        %2519 = vmatpush2.msra.mxu0 0.0
        %2520 = vmatprep.subr.mxu0 0.0
        %2521 = vmatpush2.msra.mxu0 0.0
        %2522 = vmatprep.subr.mxu0 0.0
        %2523 = vmatpush2.msra.mxu0 0.0
        %2524 = vmatprep.mubr.f32.mxu0 0.0
        %2525 = vmatmul.mubr.f32.gmra.mxu0 %v2434
        %v2526 = vpop.f32.mrf.mxu0
        %v2527 = vadd.f32 %v2458, %v2526
        %v2528 = vpop.f32.mrf.mxu0
        %2529 = vdwg.mxu0
        %v2530 = vadd.f32 %v1006, %v2527
        %v2531 = vld [vmem:[%s8] sm:$0x1]
        %v2532 = vld [vmem:[%s9] sm:$0x1]
        %2533 = vadd.xlane.f32.xlu0 %v2530
        %v2534 = vpop.xlane.xlu0 %2533
        %v2535 = vmul.f32 %v2534, 0.008928572
        %v2536 = vsub.f32 %v2530, %v2535
        %v2538 = vlaneseq
        %v2539 = vshrl.u32 %v2538, 7
        %v2540 = vsub.s32 0, %v2539
        %v2541 = vrot.slane %v741, %v2540
        %v2543 = vmul.f32 %v2536, %v2541
        %v2544 = vmul.f32 %v2543, %v2543
        %2545 = vadd.xlane.f32.xlu0 %v2544
        %v2546 = vpop.xlane.xlu0 %2545
        %v2547 = vmul.f32 %v2546, 0.008928572
        %v2548 = vadd.f32 %v2547, 1e-05
        %v2549 = vrsqrt.pop %v2548
        %v2550 = vmul.f32 %v2543, %v2549
        %v2552 = vlaneseq
        %v2553 = vshrl.u32 %v2552, 7
        %v2554 = vsub.s32 0, %v2553
        %v2555 = vrot.slane %v2531, %v2554
        %v2557 = vmul.f32 %v2550, %v2555
        %v2559 = vlaneseq
        %v2560 = vshrl.u32 %v2559, 7
        %v2561 = vsub.s32 0, %v2560
        %v2562 = vrot.slane %v2532, %v2561
        %v2564 = vadd.f32 %v2557, %v2562
        %v2565 = vxor.u32 %v2564, 2147483648
        %v2566 = vmul.f32 %v2565, 1.442695
        %v2567 = vpow.pop %v2566
        %v2568 = vadd.f32 %v2567, 1.0
        %v2569 = vrcp.pop %v2568
        %v2570 = vmul.f32 1.0, %v2569
        %v2571 = vmul.f32 %v2564, %v2570
        %v2572 = vld [vmem:[#allocation10] sm:$0xff]
        %v2573 = vld [vmem:[#allocation10 + $0x8] sm:$0xff]
        %v2574 = vld [vmem:[#allocation10 + $0x10] sm:$0xff]
        %v2575 = vld [vmem:[#allocation10 + $0x18] sm:$0xff]
        %v2576 = vld [vmem:[#allocation10 + $0x20] sm:$0xff]
        %v2577 = vld [vmem:[#allocation10 + $0x28] sm:$0xff]
        %v2578 = vld [vmem:[#allocation10 + $0x30] sm:$0xff]
        %v2579 = vld [vmem:[#allocation10 + $0x38] sm:$0xff]
        %v2580 = vld [vmem:[#allocation10 + $0x40] sm:$0xff]
        %v2581 = vld [vmem:[#allocation10 + $0x48] sm:$0xff]
        %v2582 = vld [vmem:[#allocation10 + $0x50] sm:$0xff]
        %v2583 = vld [vmem:[#allocation10 + $0x58] sm:$0xff]
        %v2584 = vld [vmem:[#allocation10 + $0x60] sm:$0xff]
        %v2585 = vld [vmem:[#allocation10 + $0x68] sm:$0xff]
        %v2586 = vld [vmem:[#allocation10 + $0x70] sm:$0xff]
        %v2587 = vld [vmem:[#allocation10 + $0x78] sm:$0xff]
        %vm2588 = vcmp.ge.f32.partialorder %v2564, -2.2
        %vm2589 = vcmp.lt.f32.partialorder %v2564, -1.8
        %vm2590 = vmand %vm2588, %vm2589
        %v2591 = vsel %vm2590, 1, 0
        %v2592 = vcvt.s32.f32 %v2591
        %vm2593 = vcmp.ge.f32.partialorder %v2564, -1.8
        %vm2594 = vcmp.lt.f32.partialorder %v2564, -1.4
        %vm2595 = vmand %vm2593, %vm2594
        %v2596 = vsel %vm2595, 1, 0
        %v2597 = vcvt.s32.f32 %v2596
        %vm2598 = vcmp.ge.f32.partialorder %v2564, -1.4
        %vm2599 = vcmp.lt.f32.partialorder %v2564, -1.0
        %vm2600 = vmand %vm2598, %vm2599
        %v2601 = vsel %vm2600, 1, 0
        %v2602 = vcvt.s32.f32 %v2601
        %vm2603 = vcmp.ge.f32.partialorder %v2564, -1.0
        %vm2604 = vcmp.lt.f32.partialorder %v2564, -0.6
        %vm2605 = vmand %vm2603, %vm2604
        %v2606 = vsel %vm2605, 1, 0
        %v2607 = vcvt.s32.f32 %v2606
        %vm2608 = vcmp.ge.f32.partialorder %v2564, -0.6
        %vm2609 = vcmp.lt.f32.partialorder %v2564, -0.2
        %vm2610 = vmand %vm2608, %vm2609
        %v2611 = vsel %vm2610, 1, 0
        %v2612 = vcvt.s32.f32 %v2611
        %vm2613 = vcmp.ge.f32.partialorder %v2564, -0.2
        %vm2614 = vcmp.lt.f32.partialorder %v2564, 0.2
        %vm2615 = vmand %vm2613, %vm2614
        %v2616 = vsel %vm2615, 1, 0
        %v2617 = vcvt.s32.f32 %v2616
        %vm2618 = vcmp.ge.f32.partialorder %v2564, 0.2
        %vm2619 = vcmp.lt.f32.partialorder %v2564, 0.6
        %vm2620 = vmand %vm2618, %vm2619
        %v2621 = vsel %vm2620, 1, 0
        %v2622 = vcvt.s32.f32 %v2621
        %vm2623 = vcmp.ge.f32.partialorder %v2564, 0.6
        %vm2624 = vcmp.lt.f32.partialorder %v2564, 1.0
        %vm2625 = vmand %vm2623, %vm2624
        %v2626 = vsel %vm2625, 1, 0
        %v2627 = vcvt.s32.f32 %v2626
        %vm2628 = vcmp.ge.f32.partialorder %v2564, 1.0
        %vm2629 = vcmp.lt.f32.partialorder %v2564, 1.4
        %vm2630 = vmand %vm2628, %vm2629
        %v2631 = vsel %vm2630, 1, 0
        %v2632 = vcvt.s32.f32 %v2631
        %vm2633 = vcmp.ge.f32.partialorder %v2564, 1.4
        %vm2634 = vcmp.lt.f32.partialorder %v2564, 1.8
        %vm2635 = vmand %vm2633, %vm2634
        %v2636 = vsel %vm2635, 1, 0
        %v2637 = vcvt.s32.f32 %v2636
        %vm2638 = vcmp.ge.f32.partialorder %v2564, 1.8
        %vm2639 = vcmp.lt.f32.partialorder %v2564, 2.2
        %vm2640 = vmand %vm2638, %vm2639
        %v2641 = vsel %vm2640, 1, 0
        %v2642 = vcvt.s32.f32 %v2641
        %v2643 = vsub.f32 %v2564, -2.2
        %v2644 = vrcp.pop 0.4
        %v2645 = vmul.f32 %v2643, %v2644
        %v2646 = vmul.f32 %v2645, %v2592
        %v2647 = vsub.f32 -1.4, %v2564
        %v2648 = vmul.f32 %v2647, %v2644
        %v2649 = vmul.f32 %v2648, %v2597
        %v2650 = vadd.f32 %v2646, %v2649
        %v2651 = vsub.f32 %v2564, -1.8
        %v2652 = vmul.f32 %v2651, %v2644
        %v2653 = vmul.f32 %v2652, %v2597
        %v2654 = vsub.f32 -1.0, %v2564
        %v2655 = vmul.f32 %v2654, %v2644
        %v2656 = vmul.f32 %v2655, %v2602
        %v2657 = vadd.f32 %v2653, %v2656
        %v2658 = vsub.f32 %v2564, -1.4
        %v2659 = vmul.f32 %v2658, %v2644
        %v2660 = vmul.f32 %v2659, %v2602
        %v2661 = vsub.f32 -0.6, %v2564
        %v2662 = vmul.f32 %v2661, %v2644
        %v2663 = vmul.f32 %v2662, %v2607
        %v2664 = vadd.f32 %v2660, %v2663
        %v2665 = vsub.f32 %v2564, -1.0
        %v2666 = vmul.f32 %v2665, %v2644
        %v2667 = vmul.f32 %v2666, %v2607
        %v2668 = vsub.f32 -0.2, %v2564
        %v2669 = vmul.f32 %v2668, %v2644
        %v2670 = vmul.f32 %v2669, %v2612
        %v2671 = vadd.f32 %v2667, %v2670
        %v2672 = vsub.f32 %v2564, -0.6
        %v2673 = vmul.f32 %v2672, %v2644
        %v2674 = vmul.f32 %v2673, %v2612
        %v2675 = vsub.f32 0.2, %v2564
        %v2676 = vmul.f32 %v2675, %v2644
        %v2677 = vmul.f32 %v2676, %v2617
        %v2678 = vadd.f32 %v2674, %v2677
        %v2679 = vsub.f32 %v2564, -0.2
        %v2680 = vmul.f32 %v2679, %v2644
        %v2681 = vmul.f32 %v2680, %v2617
        %v2682 = vsub.f32 0.6, %v2564
        %v2683 = vmul.f32 %v2682, %v2644
        %v2684 = vmul.f32 %v2683, %v2622
        %v2685 = vadd.f32 %v2681, %v2684
        %v2686 = vsub.f32 %v2564, 0.2
        %v2687 = vmul.f32 %v2686, %v2644
        %v2688 = vmul.f32 %v2687, %v2622
        %v2689 = vsub.f32 1.0, %v2564
        %v2690 = vmul.f32 %v2689, %v2644
        %v2691 = vmul.f32 %v2690, %v2627
        %v2692 = vadd.f32 %v2688, %v2691
        %v2693 = vsub.f32 %v2564, 0.6
        %v2694 = vmul.f32 %v2693, %v2644
        %v2695 = vmul.f32 %v2694, %v2627
        %v2696 = vsub.f32 1.4, %v2564
        %v2697 = vmul.f32 %v2696, %v2644
        %v2698 = vmul.f32 %v2697, %v2632
        %v2699 = vadd.f32 %v2695, %v2698
        %v2700 = vsub.f32 %v2564, 1.0
        %v2701 = vmul.f32 %v2700, %v2644
        %v2702 = vmul.f32 %v2701, %v2632
        %v2703 = vsub.f32 1.8, %v2564
        %v2704 = vmul.f32 %v2703, %v2644
        %v2705 = vmul.f32 %v2704, %v2637
        %v2706 = vadd.f32 %v2702, %v2705
        %v2707 = vsub.f32 %v2564, 1.4
        %v2708 = vmul.f32 %v2707, %v2644
        %v2709 = vmul.f32 %v2708, %v2637
        %v2710 = vsub.f32 2.2, %v2564
        %v2711 = vmul.f32 %v2710, %v2644
        %v2712 = vmul.f32 %v2711, %v2642
        %v2713 = vadd.f32 %v2709, %v2712
        %v2714 = vrcp.pop 0.8
        %v2715 = vmul.f32 %v2643, %v2714
        %v2716 = vmul.f32 %v2715, %v2650
        %v2717 = vmul.f32 %v2654, %v2714
        %v2718 = vmul.f32 %v2717, %v2657
        %v2719 = vadd.f32 %v2716, %v2718
        %v2720 = vmul.f32 %v2651, %v2714
        %v2721 = vmul.f32 %v2720, %v2657
        %v2722 = vmul.f32 %v2661, %v2714
        %v2723 = vmul.f32 %v2722, %v2664
        %v2724 = vadd.f32 %v2721, %v2723
        %v2725 = vmul.f32 %v2658, %v2714
        %v2726 = vmul.f32 %v2725, %v2664
        %v2727 = vmul.f32 %v2668, %v2714
        %v2728 = vmul.f32 %v2727, %v2671
        %v2729 = vadd.f32 %v2726, %v2728
        %v2730 = vmul.f32 %v2665, %v2714
        %v2731 = vmul.f32 %v2730, %v2671
        %v2732 = vmul.f32 %v2675, %v2714
        %v2733 = vmul.f32 %v2732, %v2678
        %v2734 = vadd.f32 %v2731, %v2733
        %v2735 = vmul.f32 %v2672, %v2714
        %v2736 = vmul.f32 %v2735, %v2678
        %v2737 = vmul.f32 %v2682, %v2714
        %v2738 = vmul.f32 %v2737, %v2685
        %v2739 = vadd.f32 %v2736, %v2738
        %v2740 = vmul.f32 %v2679, %v2714
        %v2741 = vmul.f32 %v2740, %v2685
        %v2742 = vmul.f32 %v2689, %v2714
        %v2743 = vmul.f32 %v2742, %v2692
        %v2744 = vadd.f32 %v2741, %v2743
        %v2745 = vmul.f32 %v2686, %v2714
        %v2746 = vmul.f32 %v2745, %v2692
        %v2747 = vmul.f32 %v2696, %v2714
        %v2748 = vmul.f32 %v2747, %v2699
        %v2749 = vadd.f32 %v2746, %v2748
        %v2750 = vmul.f32 %v2693, %v2714
        %v2751 = vmul.f32 %v2750, %v2699
        %v2752 = vmul.f32 %v2703, %v2714
        %v2753 = vmul.f32 %v2752, %v2706
        %v2754 = vadd.f32 %v2751, %v2753
        %v2755 = vmul.f32 %v2700, %v2714
        %v2756 = vmul.f32 %v2755, %v2706
        %v2757 = vmul.f32 %v2710, %v2714
        %v2758 = vmul.f32 %v2757, %v2713
        %v2759 = vadd.f32 %v2756, %v2758
        %v2760 = vrcp.pop 1.2
        %v2761 = vmul.f32 %v2643, %v2760
        %v2762 = vmul.f32 %v2761, %v2719
        %v2763 = vmul.f32 %v2661, %v2760
        %v2764 = vmul.f32 %v2763, %v2724
        %v2765 = vadd.f32 %v2762, %v2764
        %v2766 = vmul.f32 %v2651, %v2760
        %v2767 = vmul.f32 %v2766, %v2724
        %v2768 = vmul.f32 %v2668, %v2760
        %v2769 = vmul.f32 %v2768, %v2729
        %v2770 = vadd.f32 %v2767, %v2769
        %v2771 = vmul.f32 %v2658, %v2760
        %v2772 = vmul.f32 %v2771, %v2729
        %v2773 = vmul.f32 %v2675, %v2760
        %v2774 = vmul.f32 %v2773, %v2734
        %v2775 = vadd.f32 %v2772, %v2774
        %v2776 = vmul.f32 %v2665, %v2760
        %v2777 = vmul.f32 %v2776, %v2734
        %v2778 = vmul.f32 %v2682, %v2760
        %v2779 = vmul.f32 %v2778, %v2739
        %v2780 = vadd.f32 %v2777, %v2779
        %v2781 = vmul.f32 %v2672, %v2760
        %v2782 = vmul.f32 %v2781, %v2739
        %v2783 = vmul.f32 %v2689, %v2760
        %v2784 = vmul.f32 %v2783, %v2744
        %v2785 = vadd.f32 %v2782, %v2784
        %v2786 = vmul.f32 %v2679, %v2760
        %v2787 = vmul.f32 %v2786, %v2744
        %v2788 = vmul.f32 %v2696, %v2760
        %v2789 = vmul.f32 %v2788, %v2749
        %v2790 = vadd.f32 %v2787, %v2789
        %v2791 = vmul.f32 %v2686, %v2760
        %v2792 = vmul.f32 %v2791, %v2749
        %v2793 = vmul.f32 %v2703, %v2760
        %v2794 = vmul.f32 %v2793, %v2754
        %v2795 = vadd.f32 %v2792, %v2794
        %v2796 = vmul.f32 %v2693, %v2760
        %v2797 = vmul.f32 %v2796, %v2754
        %v2798 = vmul.f32 %v2710, %v2760
        %v2799 = vmul.f32 %v2798, %v2759
        %v2800 = vadd.f32 %v2797, %v2799
        %v2801 = vld [vmem:[#allocation11] sm:$0xff]
        %v2802 = vld [vmem:[#allocation11 + $0x8] sm:$0xff]
        %v2803 = vld [vmem:[#allocation11 + $0x10] sm:$0xff]
        %v2804 = vld [vmem:[#allocation11 + $0x18] sm:$0xff]
        %v2805 = vld [vmem:[#allocation11 + $0x20] sm:$0xff]
        %v2806 = vld [vmem:[#allocation11 + $0x28] sm:$0xff]
        %v2807 = vld [vmem:[#allocation11 + $0x30] sm:$0xff]
        %v2808 = vld [vmem:[#allocation11 + $0x38] sm:$0xff]
        %v2809 = vld [vmem:[#allocation11 + $0x40] sm:$0xff]
        %v2810 = vld [vmem:[#allocation11 + $0x48] sm:$0xff]
        %v2811 = vld [vmem:[#allocation11 + $0x50] sm:$0xff]
        %v2812 = vld [vmem:[#allocation11 + $0x58] sm:$0xff]
        %v2813 = vld [vmem:[#allocation11 + $0x60] sm:$0xff]
        %v2814 = vld [vmem:[#allocation11 + $0x68] sm:$0xff]
        %v2815 = vld [vmem:[#allocation11 + $0x70] sm:$0xff]
        %v2816 = vld [vmem:[#allocation11 + $0x78] sm:$0xff]
        %v2817 = vld [vmem:[#allocation11 + $0x80] sm:$0xff]
        %v2818 = vld [vmem:[#allocation11 + $0x88] sm:$0xff]
        %v2819 = vld [vmem:[#allocation11 + $0x90] sm:$0xff]
        %v2820 = vld [vmem:[#allocation11 + $0x98] sm:$0xff]
        %v2821 = vld [vmem:[#allocation11 + $0xa0] sm:$0xff]
        %v2822 = vld [vmem:[#allocation11 + $0xa8] sm:$0xff]
        %v2823 = vld [vmem:[#allocation11 + $0xb0] sm:$0xff]
        %v2824 = vld [vmem:[#allocation11 + $0xb8] sm:$0xff]
        %v2825 = vld [vmem:[#allocation11 + $0xc0] sm:$0xff]
        %v2826 = vld [vmem:[#allocation11 + $0xc8] sm:$0xff]
        %v2827 = vld [vmem:[#allocation11 + $0xd0] sm:$0xff]
        %v2828 = vld [vmem:[#allocation11 + $0xd8] sm:$0xff]
        %v2829 = vld [vmem:[#allocation11 + $0xe0] sm:$0xff]
        %v2830 = vld [vmem:[#allocation11 + $0xe8] sm:$0xff]
        %v2831 = vld [vmem:[#allocation11 + $0xf0] sm:$0xff]
        %v2832 = vld [vmem:[#allocation11 + $0xf8] sm:$0xff]
        %v2833 = vld [vmem:[#allocation11 + $0x100] sm:$0xff]
        %v2834 = vld [vmem:[#allocation11 + $0x108] sm:$0xff]
        %v2835 = vld [vmem:[#allocation11 + $0x110] sm:$0xff]
        %v2836 = vld [vmem:[#allocation11 + $0x118] sm:$0xff]
        %v2837 = vld [vmem:[#allocation11 + $0x120] sm:$0xff]
        %v2838 = vld [vmem:[#allocation11 + $0x128] sm:$0xff]
        %v2839 = vld [vmem:[#allocation11 + $0x130] sm:$0xff]
        %v2840 = vld [vmem:[#allocation11 + $0x138] sm:$0xff]
        %v2841 = vld [vmem:[#allocation11 + $0x140] sm:$0xff]
        %v2842 = vld [vmem:[#allocation11 + $0x148] sm:$0xff]
        %v2843 = vld [vmem:[#allocation11 + $0x150] sm:$0xff]
        %v2844 = vld [vmem:[#allocation11 + $0x158] sm:$0xff]
        %v2845 = vld [vmem:[#allocation11 + $0x160] sm:$0xff]
        %v2846 = vld [vmem:[#allocation11 + $0x168] sm:$0xff]
        %v2847 = vld [vmem:[#allocation11 + $0x170] sm:$0xff]
        %v2848 = vld [vmem:[#allocation11 + $0x178] sm:$0xff]
        %v2849 = vld [vmem:[#allocation11 + $0x180] sm:$0xff]
        %v2850 = vld [vmem:[#allocation11 + $0x188] sm:$0xff]
        %v2851 = vld [vmem:[#allocation11 + $0x190] sm:$0xff]
        %v2852 = vld [vmem:[#allocation11 + $0x198] sm:$0xff]
        %v2853 = vld [vmem:[#allocation11 + $0x1a0] sm:$0xff]
        %v2854 = vld [vmem:[#allocation11 + $0x1a8] sm:$0xff]
        %v2855 = vld [vmem:[#allocation11 + $0x1b0] sm:$0xff]
        %v2856 = vld [vmem:[#allocation11 + $0x1b8] sm:$0xff]
        %v2857 = vld [vmem:[#allocation11 + $0x1c0] sm:$0xff]
        %v2858 = vld [vmem:[#allocation11 + $0x1c8] sm:$0xff]
        %v2859 = vld [vmem:[#allocation11 + $0x1d0] sm:$0xff]
        %v2860 = vld [vmem:[#allocation11 + $0x1d8] sm:$0xff]
        %v2861 = vld [vmem:[#allocation11 + $0x1e0] sm:$0xff]
        %v2862 = vld [vmem:[#allocation11 + $0x1e8] sm:$0xff]
        %v2863 = vld [vmem:[#allocation11 + $0x1f0] sm:$0xff]
        %v2864 = vld [vmem:[#allocation11 + $0x1f8] sm:$0xff]
        %v2865 = vld [vmem:[#allocation11 + $0x200] sm:$0xff]
        %v2866 = vld [vmem:[#allocation11 + $0x208] sm:$0xff]
        %v2867 = vld [vmem:[#allocation11 + $0x210] sm:$0xff]
        %v2868 = vld [vmem:[#allocation11 + $0x218] sm:$0xff]
        %v2869 = vld [vmem:[#allocation11 + $0x220] sm:$0xff]
        %v2870 = vld [vmem:[#allocation11 + $0x228] sm:$0xff]
        %v2871 = vld [vmem:[#allocation11 + $0x230] sm:$0xff]
        %v2872 = vld [vmem:[#allocation11 + $0x238] sm:$0xff]
        %v2873 = vld [vmem:[#allocation11 + $0x240] sm:$0xff]
        %v2874 = vld [vmem:[#allocation11 + $0x248] sm:$0xff]
        %v2875 = vld [vmem:[#allocation11 + $0x250] sm:$0xff]
        %v2876 = vld [vmem:[#allocation11 + $0x258] sm:$0xff]
        %v2877 = vld [vmem:[#allocation11 + $0x260] sm:$0xff]
        %v2878 = vld [vmem:[#allocation11 + $0x268] sm:$0xff]
        %v2879 = vld [vmem:[#allocation11 + $0x270] sm:$0xff]
        %v2880 = vld [vmem:[#allocation11 + $0x278] sm:$0xff]
        %v2881 = vld [vmem:[#allocation11 + $0x280] sm:$0xff]
        %v2882 = vld [vmem:[#allocation11 + $0x288] sm:$0xff]
        %v2883 = vld [vmem:[#allocation11 + $0x290] sm:$0xff]
        %v2884 = vld [vmem:[#allocation11 + $0x298] sm:$0xff]
        %v2885 = vld [vmem:[#allocation11 + $0x2a0] sm:$0xff]
        %v2886 = vld [vmem:[#allocation11 + $0x2a8] sm:$0xff]
        %v2887 = vld [vmem:[#allocation11 + $0x2b0] sm:$0xff]
        %v2888 = vld [vmem:[#allocation11 + $0x2b8] sm:$0xff]
        %v2889 = vld [vmem:[#allocation11 + $0x2c0] sm:$0xff]
        %v2890 = vld [vmem:[#allocation11 + $0x2c8] sm:$0xff]
        %v2891 = vld [vmem:[#allocation11 + $0x2d0] sm:$0xff]
        %v2892 = vld [vmem:[#allocation11 + $0x2d8] sm:$0xff]
        %v2893 = vld [vmem:[#allocation11 + $0x2e0] sm:$0xff]
        %v2894 = vld [vmem:[#allocation11 + $0x2e8] sm:$0xff]
        %v2895 = vld [vmem:[#allocation11 + $0x2f0] sm:$0xff]
        %v2896 = vld [vmem:[#allocation11 + $0x2f8] sm:$0xff]
        %v2897 = vld [vmem:[#allocation11 + $0x300] sm:$0xff]
        %v2898 = vld [vmem:[#allocation11 + $0x308] sm:$0xff]
        %v2899 = vld [vmem:[#allocation11 + $0x310] sm:$0xff]
        %v2900 = vld [vmem:[#allocation11 + $0x318] sm:$0xff]
        %v2901 = vld [vmem:[#allocation11 + $0x320] sm:$0xff]
        %v2902 = vld [vmem:[#allocation11 + $0x328] sm:$0xff]
        %v2903 = vld [vmem:[#allocation11 + $0x330] sm:$0xff]
        %v2904 = vld [vmem:[#allocation11 + $0x338] sm:$0xff]
        %v2905 = vld [vmem:[#allocation11 + $0x340] sm:$0xff]
        %v2906 = vld [vmem:[#allocation11 + $0x348] sm:$0xff]
        %v2907 = vld [vmem:[#allocation11 + $0x350] sm:$0xff]
        %v2908 = vld [vmem:[#allocation11 + $0x358] sm:$0xff]
        %v2909 = vld [vmem:[#allocation11 + $0x360] sm:$0xff]
        %v2910 = vld [vmem:[#allocation11 + $0x368] sm:$0xff]
        %v2911 = vld [vmem:[#allocation11 + $0x370] sm:$0xff]
        %v2912 = vld [vmem:[#allocation11 + $0x378] sm:$0xff]
        %v2913 = vld [vmem:[#allocation11 + $0x380] sm:$0xff]
        %v2914 = vld [vmem:[#allocation11 + $0x388] sm:$0xff]
        %v2915 = vld [vmem:[#allocation11 + $0x390] sm:$0xff]
        %v2916 = vld [vmem:[#allocation11 + $0x398] sm:$0xff]
        %v2917 = vld [vmem:[#allocation11 + $0x3a0] sm:$0xff]
        %v2918 = vld [vmem:[#allocation11 + $0x3a8] sm:$0xff]
        %v2919 = vld [vmem:[#allocation11 + $0x3b0] sm:$0xff]
        %v2920 = vld [vmem:[#allocation11 + $0x3b8] sm:$0xff]
        %v2921 = vld [vmem:[#allocation11 + $0x3c0] sm:$0xff]
        %v2922 = vld [vmem:[#allocation11 + $0x3c8] sm:$0xff]
        %v2923 = vld [vmem:[#allocation11 + $0x3d0] sm:$0xff]
        %v2924 = vld [vmem:[#allocation11 + $0x3d8] sm:$0xff]
        %v2925 = vld [vmem:[#allocation11 + $0x3e0] sm:$0xff]
        %v2926 = vld [vmem:[#allocation11 + $0x3e8] sm:$0xff]
        %v2927 = vld [vmem:[#allocation11 + $0x3f0] sm:$0xff]
        %v2928 = vld [vmem:[#allocation11 + $0x3f8] sm:$0xff]
        %2929 = vmatprep.subr.mxu0 0.0
        %2930 = vmatpush1.msra.mxu0 %v2816
        %2931 = vmatprep.subr.mxu0 0.0
        %2932 = vmatpush1.msra.mxu0 %v2815
        %2933 = vmatprep.subr.mxu0 0.0
        %2934 = vmatpush1.msra.mxu0 %v2814
        %2935 = vmatprep.subr.mxu0 0.0
        %2936 = vmatpush1.msra.mxu0 %v2813
        %2937 = vmatprep.subr.mxu0 0.0
        %2938 = vmatpush1.msra.mxu0 %v2812
        %2939 = vmatprep.subr.mxu0 0.0
        %2940 = vmatpush1.msra.mxu0 %v2811
        %2941 = vmatprep.subr.mxu0 0.0
        %2942 = vmatpush1.msra.mxu0 %v2810
        %2943 = vmatprep.subr.mxu0 0.0
        %2944 = vmatpush1.msra.mxu0 %v2809
        %2945 = vmatprep.subr.mxu0 0.0
        %2946 = vmatpush1.msra.mxu0 %v2808
        %2947 = vmatprep.subr.mxu0 0.0
        %2948 = vmatpush1.msra.mxu0 %v2807
        %2949 = vmatprep.subr.mxu0 0.0
        %2950 = vmatpush1.msra.mxu0 %v2806
        %2951 = vmatprep.subr.mxu0 0.0
        %2952 = vmatpush1.msra.mxu0 %v2805
        %2953 = vmatprep.subr.mxu0 0.0
        %2954 = vmatpush1.msra.mxu0 %v2804
        %2955 = vmatprep.subr.mxu0 0.0
        %2956 = vmatpush1.msra.mxu0 %v2803
        %2957 = vmatprep.subr.mxu0 0.0
        %2958 = vmatpush1.msra.mxu0 %v2802
        %2959 = vmatprep.subr.mxu0 0.0
        %2960 = vmatpush1.msra.mxu0 %v2801
        %2961 = vmatprep.subr.mxu0 0.0
        %2962 = vmatpush2.msra.mxu0 %v2832
        %2963 = vmatprep.subr.mxu0 0.0
        %2964 = vmatpush2.msra.mxu0 %v2831
        %2965 = vmatprep.subr.mxu0 0.0
        %2966 = vmatpush2.msra.mxu0 %v2830
        %2967 = vmatprep.subr.mxu0 0.0
        %2968 = vmatpush2.msra.mxu0 %v2829
        %2969 = vmatprep.subr.mxu0 0.0
        %2970 = vmatpush2.msra.mxu0 %v2828
        %2971 = vmatprep.subr.mxu0 0.0
        %2972 = vmatpush2.msra.mxu0 %v2827
        %2973 = vmatprep.subr.mxu0 0.0
        %2974 = vmatpush2.msra.mxu0 %v2826
        %2975 = vmatprep.subr.mxu0 0.0
        %2976 = vmatpush2.msra.mxu0 %v2825
        %2977 = vmatprep.subr.mxu0 0.0
        %2978 = vmatpush2.msra.mxu0 %v2824
        %2979 = vmatprep.subr.mxu0 0.0
        %2980 = vmatpush2.msra.mxu0 %v2823
        %2981 = vmatprep.subr.mxu0 0.0
        %2982 = vmatpush2.msra.mxu0 %v2822
        %2983 = vmatprep.subr.mxu0 0.0
        %2984 = vmatpush2.msra.mxu0 %v2821
        %2985 = vmatprep.subr.mxu0 0.0
        %2986 = vmatpush2.msra.mxu0 %v2820
        %2987 = vmatprep.subr.mxu0 0.0
        %2988 = vmatpush2.msra.mxu0 %v2819
        %2989 = vmatprep.subr.mxu0 0.0
        %2990 = vmatpush2.msra.mxu0 %v2818
        %2991 = vmatprep.subr.mxu0 0.0
        %2992 = vmatpush2.msra.mxu0 %v2817
        %2993 = vmatprep.mubr.f32.mxu0 %v2770
        %2994 = vmatmul.mubr.f32.gmra.mxu0 %v2765
        %v2995 = vpop.f32.mrf.mxu0
        %v2996 = vadd.f32 0.0, %v2995
        %v2997 = vpop.f32.mrf.mxu0
        %2998 = vdwg.mxu0
        %2999 = vmatprep.subr.mxu0 0.0
        %3000 = vmatpush1.msra.mxu0 %v2848
        %3001 = vmatprep.subr.mxu0 0.0
        %3002 = vmatpush1.msra.mxu0 %v2847
        %3003 = vmatprep.subr.mxu0 0.0
        %3004 = vmatpush1.msra.mxu0 %v2846
        %3005 = vmatprep.subr.mxu0 0.0
        %3006 = vmatpush1.msra.mxu0 %v2845
        %3007 = vmatprep.subr.mxu0 0.0
        %3008 = vmatpush1.msra.mxu0 %v2844
        %3009 = vmatprep.subr.mxu0 0.0
        %3010 = vmatpush1.msra.mxu0 %v2843
        %3011 = vmatprep.subr.mxu0 0.0
        %3012 = vmatpush1.msra.mxu0 %v2842
        %3013 = vmatprep.subr.mxu0 0.0
        %3014 = vmatpush1.msra.mxu0 %v2841
        %3015 = vmatprep.subr.mxu0 0.0
        %3016 = vmatpush1.msra.mxu0 %v2840
        %3017 = vmatprep.subr.mxu0 0.0
        %3018 = vmatpush1.msra.mxu0 %v2839
        %3019 = vmatprep.subr.mxu0 0.0
        %3020 = vmatpush1.msra.mxu0 %v2838
        %3021 = vmatprep.subr.mxu0 0.0
        %3022 = vmatpush1.msra.mxu0 %v2837
        %3023 = vmatprep.subr.mxu0 0.0
        %3024 = vmatpush1.msra.mxu0 %v2836
        %3025 = vmatprep.subr.mxu0 0.0
        %3026 = vmatpush1.msra.mxu0 %v2835
        %3027 = vmatprep.subr.mxu0 0.0
        %3028 = vmatpush1.msra.mxu0 %v2834
        %3029 = vmatprep.subr.mxu0 0.0
        %3030 = vmatpush1.msra.mxu0 %v2833
        %3031 = vmatprep.subr.mxu0 0.0
        %3032 = vmatpush2.msra.mxu0 %v2864
        %3033 = vmatprep.subr.mxu0 0.0
        %3034 = vmatpush2.msra.mxu0 %v2863
        %3035 = vmatprep.subr.mxu0 0.0
        %3036 = vmatpush2.msra.mxu0 %v2862
        %3037 = vmatprep.subr.mxu0 0.0
        %3038 = vmatpush2.msra.mxu0 %v2861
        %3039 = vmatprep.subr.mxu0 0.0
        %3040 = vmatpush2.msra.mxu0 %v2860
        %3041 = vmatprep.subr.mxu0 0.0
        %3042 = vmatpush2.msra.mxu0 %v2859
        %3043 = vmatprep.subr.mxu0 0.0
        %3044 = vmatpush2.msra.mxu0 %v2858
        %3045 = vmatprep.subr.mxu0 0.0
        %3046 = vmatpush2.msra.mxu0 %v2857
        %3047 = vmatprep.subr.mxu0 0.0
        %3048 = vmatpush2.msra.mxu0 %v2856
        %3049 = vmatprep.subr.mxu0 0.0
        %3050 = vmatpush2.msra.mxu0 %v2855
        %3051 = vmatprep.subr.mxu0 0.0
        %3052 = vmatpush2.msra.mxu0 %v2854
        %3053 = vmatprep.subr.mxu0 0.0
        %3054 = vmatpush2.msra.mxu0 %v2853
        %3055 = vmatprep.subr.mxu0 0.0
        %3056 = vmatpush2.msra.mxu0 %v2852
        %3057 = vmatprep.subr.mxu0 0.0
        %3058 = vmatpush2.msra.mxu0 %v2851
        %3059 = vmatprep.subr.mxu0 0.0
        %3060 = vmatpush2.msra.mxu0 %v2850
        %3061 = vmatprep.subr.mxu0 0.0
        %3062 = vmatpush2.msra.mxu0 %v2849
        %3063 = vmatprep.mubr.f32.mxu0 %v2780
        %3064 = vmatmul.mubr.f32.gmra.mxu0 %v2775
        %v3065 = vpop.f32.mrf.mxu0
        %v3066 = vadd.f32 %v2996, %v3065
        %v3067 = vpop.f32.mrf.mxu0
        %3068 = vdwg.mxu0
        %3069 = vmatprep.subr.mxu0 0.0
        %3070 = vmatpush1.msra.mxu0 %v2880
        %3071 = vmatprep.subr.mxu0 0.0
        %3072 = vmatpush1.msra.mxu0 %v2879
        %3073 = vmatprep.subr.mxu0 0.0
        %3074 = vmatpush1.msra.mxu0 %v2878
        %3075 = vmatprep.subr.mxu0 0.0
        %3076 = vmatpush1.msra.mxu0 %v2877
        %3077 = vmatprep.subr.mxu0 0.0
        %3078 = vmatpush1.msra.mxu0 %v2876
        %3079 = vmatprep.subr.mxu0 0.0
        %3080 = vmatpush1.msra.mxu0 %v2875
        %3081 = vmatprep.subr.mxu0 0.0
        %3082 = vmatpush1.msra.mxu0 %v2874
        %3083 = vmatprep.subr.mxu0 0.0
        %3084 = vmatpush1.msra.mxu0 %v2873
        %3085 = vmatprep.subr.mxu0 0.0
        %3086 = vmatpush1.msra.mxu0 %v2872
        %3087 = vmatprep.subr.mxu0 0.0
        %3088 = vmatpush1.msra.mxu0 %v2871
        %3089 = vmatprep.subr.mxu0 0.0
        %3090 = vmatpush1.msra.mxu0 %v2870
        %3091 = vmatprep.subr.mxu0 0.0
        %3092 = vmatpush1.msra.mxu0 %v2869
        %3093 = vmatprep.subr.mxu0 0.0
        %3094 = vmatpush1.msra.mxu0 %v2868
        %3095 = vmatprep.subr.mxu0 0.0
        %3096 = vmatpush1.msra.mxu0 %v2867
        %3097 = vmatprep.subr.mxu0 0.0
        %3098 = vmatpush1.msra.mxu0 %v2866
        %3099 = vmatprep.subr.mxu0 0.0
        %3100 = vmatpush1.msra.mxu0 %v2865
        %3101 = vmatprep.subr.mxu0 0.0
        %3102 = vmatpush2.msra.mxu0 %v2896
        %3103 = vmatprep.subr.mxu0 0.0
        %3104 = vmatpush2.msra.mxu0 %v2895
        %3105 = vmatprep.subr.mxu0 0.0
        %3106 = vmatpush2.msra.mxu0 %v2894
        %3107 = vmatprep.subr.mxu0 0.0
        %3108 = vmatpush2.msra.mxu0 %v2893
        %3109 = vmatprep.subr.mxu0 0.0
        %3110 = vmatpush2.msra.mxu0 %v2892
        %3111 = vmatprep.subr.mxu0 0.0
        %3112 = vmatpush2.msra.mxu0 %v2891
        %3113 = vmatprep.subr.mxu0 0.0
        %3114 = vmatpush2.msra.mxu0 %v2890
        %3115 = vmatprep.subr.mxu0 0.0
        %3116 = vmatpush2.msra.mxu0 %v2889
        %3117 = vmatprep.subr.mxu0 0.0
        %3118 = vmatpush2.msra.mxu0 %v2888
        %3119 = vmatprep.subr.mxu0 0.0
        %3120 = vmatpush2.msra.mxu0 %v2887
        %3121 = vmatprep.subr.mxu0 0.0
        %3122 = vmatpush2.msra.mxu0 %v2886
        %3123 = vmatprep.subr.mxu0 0.0
        %3124 = vmatpush2.msra.mxu0 %v2885
        %3125 = vmatprep.subr.mxu0 0.0
        %3126 = vmatpush2.msra.mxu0 %v2884
        %3127 = vmatprep.subr.mxu0 0.0
        %3128 = vmatpush2.msra.mxu0 %v2883
        %3129 = vmatprep.subr.mxu0 0.0
        %3130 = vmatpush2.msra.mxu0 %v2882
        %3131 = vmatprep.subr.mxu0 0.0
        %3132 = vmatpush2.msra.mxu0 %v2881
        %3133 = vmatprep.mubr.f32.mxu0 %v2790
        %3134 = vmatmul.mubr.f32.gmra.mxu0 %v2785
        %v3135 = vpop.f32.mrf.mxu0
        %v3136 = vadd.f32 %v3066, %v3135
        %v3137 = vpop.f32.mrf.mxu0
        %3138 = vdwg.mxu0
        %3139 = vmatprep.subr.mxu0 0.0
        %3140 = vmatpush1.msra.mxu0 %v2912
        %3141 = vmatprep.subr.mxu0 0.0
        %3142 = vmatpush1.msra.mxu0 %v2911
        %3143 = vmatprep.subr.mxu0 0.0
        %3144 = vmatpush1.msra.mxu0 %v2910
        %3145 = vmatprep.subr.mxu0 0.0
        %3146 = vmatpush1.msra.mxu0 %v2909
        %3147 = vmatprep.subr.mxu0 0.0
        %3148 = vmatpush1.msra.mxu0 %v2908
        %3149 = vmatprep.subr.mxu0 0.0
        %3150 = vmatpush1.msra.mxu0 %v2907
        %3151 = vmatprep.subr.mxu0 0.0
        %3152 = vmatpush1.msra.mxu0 %v2906
        %3153 = vmatprep.subr.mxu0 0.0
        %3154 = vmatpush1.msra.mxu0 %v2905
        %3155 = vmatprep.subr.mxu0 0.0
        %3156 = vmatpush1.msra.mxu0 %v2904
        %3157 = vmatprep.subr.mxu0 0.0
        %3158 = vmatpush1.msra.mxu0 %v2903
        %3159 = vmatprep.subr.mxu0 0.0
        %3160 = vmatpush1.msra.mxu0 %v2902
        %3161 = vmatprep.subr.mxu0 0.0
        %3162 = vmatpush1.msra.mxu0 %v2901
        %3163 = vmatprep.subr.mxu0 0.0
        %3164 = vmatpush1.msra.mxu0 %v2900
        %3165 = vmatprep.subr.mxu0 0.0
        %3166 = vmatpush1.msra.mxu0 %v2899
        %3167 = vmatprep.subr.mxu0 0.0
        %3168 = vmatpush1.msra.mxu0 %v2898
        %3169 = vmatprep.subr.mxu0 0.0
        %3170 = vmatpush1.msra.mxu0 %v2897
        %3171 = vmatprep.subr.mxu0 0.0
        %3172 = vmatpush2.msra.mxu0 %v2928
        %3173 = vmatprep.subr.mxu0 0.0
        %3174 = vmatpush2.msra.mxu0 %v2927
        %3175 = vmatprep.subr.mxu0 0.0
        %3176 = vmatpush2.msra.mxu0 %v2926
        %3177 = vmatprep.subr.mxu0 0.0
        %3178 = vmatpush2.msra.mxu0 %v2925
        %3179 = vmatprep.subr.mxu0 0.0
        %3180 = vmatpush2.msra.mxu0 %v2924
        %3181 = vmatprep.subr.mxu0 0.0
        %3182 = vmatpush2.msra.mxu0 %v2923
        %3183 = vmatprep.subr.mxu0 0.0
        %3184 = vmatpush2.msra.mxu0 %v2922
        %3185 = vmatprep.subr.mxu0 0.0
        %3186 = vmatpush2.msra.mxu0 %v2921
        %3187 = vmatprep.subr.mxu0 0.0
        %3188 = vmatpush2.msra.mxu0 %v2920
        %3189 = vmatprep.subr.mxu0 0.0
        %3190 = vmatpush2.msra.mxu0 %v2919
        %3191 = vmatprep.subr.mxu0 0.0
        %3192 = vmatpush2.msra.mxu0 %v2918
        %3193 = vmatprep.subr.mxu0 0.0
        %3194 = vmatpush2.msra.mxu0 %v2917
        %3195 = vmatprep.subr.mxu0 0.0
        %3196 = vmatpush2.msra.mxu0 %v2916
        %3197 = vmatprep.subr.mxu0 0.0
        %3198 = vmatpush2.msra.mxu0 %v2915
        %3199 = vmatprep.subr.mxu0 0.0
        %3200 = vmatpush2.msra.mxu0 %v2914
        %3201 = vmatprep.subr.mxu0 0.0
        %3202 = vmatpush2.msra.mxu0 %v2913
        %3203 = vmatprep.mubr.f32.mxu0 %v2800
        %3204 = vmatmul.mubr.f32.gmra.mxu0 %v2795
        %v3205 = vpop.f32.mrf.mxu0
        %v3206 = vadd.f32 %v3136, %v3205
        %v3207 = vpop.f32.mrf.mxu0
        %3208 = vdwg.mxu0
        %3209 = vmatprep.subr.mxu0 0.0
        %3210 = vmatpush1.msra.mxu0 %v2587
        %3211 = vmatprep.subr.mxu0 0.0
        %3212 = vmatpush1.msra.mxu0 %v2586
        %3213 = vmatprep.subr.mxu0 0.0
        %3214 = vmatpush1.msra.mxu0 %v2585
        %3215 = vmatprep.subr.mxu0 0.0
        %3216 = vmatpush1.msra.mxu0 %v2584
        %3217 = vmatprep.subr.mxu0 0.0
        %3218 = vmatpush1.msra.mxu0 %v2583
        %3219 = vmatprep.subr.mxu0 0.0
        %3220 = vmatpush1.msra.mxu0 %v2582
        %3221 = vmatprep.subr.mxu0 0.0
        %3222 = vmatpush1.msra.mxu0 %v2581
        %3223 = vmatprep.subr.mxu0 0.0
        %3224 = vmatpush1.msra.mxu0 %v2580
        %3225 = vmatprep.subr.mxu0 0.0
        %3226 = vmatpush1.msra.mxu0 %v2579
        %3227 = vmatprep.subr.mxu0 0.0
        %3228 = vmatpush1.msra.mxu0 %v2578
        %3229 = vmatprep.subr.mxu0 0.0
        %3230 = vmatpush1.msra.mxu0 %v2577
        %3231 = vmatprep.subr.mxu0 0.0
        %3232 = vmatpush1.msra.mxu0 %v2576
        %3233 = vmatprep.subr.mxu0 0.0
        %3234 = vmatpush1.msra.mxu0 %v2575
        %3235 = vmatprep.subr.mxu0 0.0
        %3236 = vmatpush1.msra.mxu0 %v2574
        %3237 = vmatprep.subr.mxu0 0.0
        %3238 = vmatpush1.msra.mxu0 %v2573
        %3239 = vmatprep.subr.mxu0 0.0
        %3240 = vmatpush1.msra.mxu0 %v2572
        %3241 = vmatprep.subr.mxu0 0.0
        %3242 = vmatpush2.msra.mxu0 0.0
        %3243 = vmatprep.subr.mxu0 0.0
        %3244 = vmatpush2.msra.mxu0 0.0
        %3245 = vmatprep.subr.mxu0 0.0
        %3246 = vmatpush2.msra.mxu0 0.0
        %3247 = vmatprep.subr.mxu0 0.0
        %3248 = vmatpush2.msra.mxu0 0.0
        %3249 = vmatprep.subr.mxu0 0.0
        %3250 = vmatpush2.msra.mxu0 0.0
        %3251 = vmatprep.subr.mxu0 0.0
        %3252 = vmatpush2.msra.mxu0 0.0
        %3253 = vmatprep.subr.mxu0 0.0
        %3254 = vmatpush2.msra.mxu0 0.0
        %3255 = vmatprep.subr.mxu0 0.0
        %3256 = vmatpush2.msra.mxu0 0.0
        %3257 = vmatprep.subr.mxu0 0.0
        %3258 = vmatpush2.msra.mxu0 0.0
        %3259 = vmatprep.subr.mxu0 0.0
        %3260 = vmatpush2.msra.mxu0 0.0
        %3261 = vmatprep.subr.mxu0 0.0
        %3262 = vmatpush2.msra.mxu0 0.0
        %3263 = vmatprep.subr.mxu0 0.0
        %3264 = vmatpush2.msra.mxu0 0.0
        %3265 = vmatprep.subr.mxu0 0.0
        %3266 = vmatpush2.msra.mxu0 0.0
        %3267 = vmatprep.subr.mxu0 0.0
        %3268 = vmatpush2.msra.mxu0 0.0
        %3269 = vmatprep.subr.mxu0 0.0
        %3270 = vmatpush2.msra.mxu0 0.0
        %3271 = vmatprep.subr.mxu0 0.0
        %3272 = vmatpush2.msra.mxu0 0.0
        %3273 = vmatprep.mubr.f32.mxu0 0.0
        %3274 = vmatmul.mubr.f32.gmra.mxu0 %v2571
        %v3275 = vpop.f32.mrf.mxu0
        %v3276 = vadd.f32 %v3206, %v3275
        %v3277 = vpop.f32.mrf.mxu0
        %3278 = vdwg.mxu0
        %v3279 = vadd.f32 %v2564, %v3276
        %s3280 = scalar_lea.vmem %s8, 1
        %v3281 = vld [vmem:[%s3280] sm:$0x1]
        %s3282 = scalar_lea.vmem %s9, 1
        %v3283 = vld [vmem:[%s3282] sm:$0x1]
        %3284 = vadd.xlane.f32.xlu0 %v3279
        %v3285 = vpop.xlane.xlu0 %3284
        %v3286 = vmul.f32 %v3285, 0.008928572
        %v3287 = vsub.f32 %v3279, %v3286
        %v3288 = vmul.f32 %v3287, %v2541
        %v3289 = vmul.f32 %v3288, %v3288
        %3290 = vadd.xlane.f32.xlu0 %v3289
        %v3291 = vpop.xlane.xlu0 %3290
        %v3292 = vmul.f32 %v3291, 0.008928572
        %v3293 = vadd.f32 %v3292, 1e-05
        %v3294 = vrsqrt.pop %v3293
        %v3295 = vmul.f32 %v3288, %v3294
        %v3297 = vlaneseq
        %v3298 = vshrl.u32 %v3297, 7
        %v3299 = vsub.s32 0, %v3298
        %v3300 = vrot.slane %v3281, %v3299
        %v3302 = vmul.f32 %v3295, %v3300
        %v3304 = vlaneseq
        %v3305 = vshrl.u32 %v3304, 7
        %v3306 = vsub.s32 0, %v3305
        %v3307 = vrot.slane %v3283, %v3306
        %v3309 = vadd.f32 %v3302, %v3307
        %s3310 = scalar_lea.vmem [#allocation7], 384
        %v3311 = vld [vmem:[%s3310] sm:$0xff]
        %v3312 = vld [vmem:[%s3310 + $0x8] sm:$0xff]
        %v3313 = vld [vmem:[%s3310 + $0x10] sm:$0xff]
        %v3314 = vld [vmem:[%s3310 + $0x18] sm:$0xff]
        %v3315 = vld [vmem:[%s3310 + $0x20] sm:$0xff]
        %v3316 = vld [vmem:[%s3310 + $0x28] sm:$0xff]
        %v3317 = vld [vmem:[%s3310 + $0x30] sm:$0xff]
        %v3318 = vld [vmem:[%s3310 + $0x38] sm:$0xff]
        %v3319 = vld [vmem:[%s3310 + $0x40] sm:$0xff]
        %v3320 = vld [vmem:[%s3310 + $0x48] sm:$0xff]
        %v3321 = vld [vmem:[%s3310 + $0x50] sm:$0xff]
        %v3322 = vld [vmem:[%s3310 + $0x58] sm:$0xff]
        %v3323 = vld [vmem:[%s3310 + $0x60] sm:$0xff]
        %v3324 = vld [vmem:[%s3310 + $0x68] sm:$0xff]
        %v3325 = vld [vmem:[%s3310 + $0x70] sm:$0xff]
        %v3326 = vld [vmem:[%s3310 + $0x78] sm:$0xff]
        %v3327 = vld [vmem:[%s3310 + $0x80] sm:$0xff]
        %v3328 = vld [vmem:[%s3310 + $0x88] sm:$0xff]
        %v3329 = vld [vmem:[%s3310 + $0x90] sm:$0xff]
        %v3330 = vld [vmem:[%s3310 + $0x98] sm:$0xff]
        %v3331 = vld [vmem:[%s3310 + $0xa0] sm:$0xff]
        %v3332 = vld [vmem:[%s3310 + $0xa8] sm:$0xff]
        %v3333 = vld [vmem:[%s3310 + $0xb0] sm:$0xff]
        %v3334 = vld [vmem:[%s3310 + $0xb8] sm:$0xff]
        %v3335 = vld [vmem:[%s3310 + $0xc0] sm:$0xff]
        %v3336 = vld [vmem:[%s3310 + $0xc8] sm:$0xff]
        %v3337 = vld [vmem:[%s3310 + $0xd0] sm:$0xff]
        %v3338 = vld [vmem:[%s3310 + $0xd8] sm:$0xff]
        %v3339 = vld [vmem:[%s3310 + $0xe0] sm:$0xff]
        %v3340 = vld [vmem:[%s3310 + $0xe8] sm:$0xff]
        %v3341 = vld [vmem:[%s3310 + $0xf0] sm:$0xff]
        %v3342 = vld [vmem:[%s3310 + $0xf8] sm:$0xff]
        %v3343 = vld [vmem:[%s3310 + $0x100] sm:$0xff]
        %v3344 = vld [vmem:[%s3310 + $0x108] sm:$0xff]
        %v3345 = vld [vmem:[%s3310 + $0x110] sm:$0xff]
        %v3346 = vld [vmem:[%s3310 + $0x118] sm:$0xff]
        %v3347 = vld [vmem:[%s3310 + $0x120] sm:$0xff]
        %v3348 = vld [vmem:[%s3310 + $0x128] sm:$0xff]
        %v3349 = vld [vmem:[%s3310 + $0x130] sm:$0xff]
        %v3350 = vld [vmem:[%s3310 + $0x138] sm:$0xff]
        %v3351 = vld [vmem:[%s3310 + $0x140] sm:$0xff]
        %v3352 = vld [vmem:[%s3310 + $0x148] sm:$0xff]
        %v3353 = vld [vmem:[%s3310 + $0x150] sm:$0xff]
        %v3354 = vld [vmem:[%s3310 + $0x158] sm:$0xff]
        %v3355 = vld [vmem:[%s3310 + $0x160] sm:$0xff]
        %v3356 = vld [vmem:[%s3310 + $0x168] sm:$0xff]
        %v3357 = vld [vmem:[%s3310 + $0x170] sm:$0xff]
        %v3358 = vld [vmem:[%s3310 + $0x178] sm:$0xff]
        %s3359 = scalar_lea.vmem %s5, 3
        %v3360 = vld [vmem:[%s3359] sm:$0x7]
        %v3362 = vlaneseq
        %v3363 = vshrl.u32 %v3362, 7
        %v3364 = vsub.s32 0, %v3363
        %v3365 = vrot.slane %v3360, %v3364
        %v3366 = vlaneseq
        %v3367 = vshrl.u32 %v3366, 7
        %v3368 = vsub.s32 1, %v3367
        %v3369 = vrot.slane %v3360, %v3368
        %v3370 = vlaneseq
        %v3371 = vshrl.u32 %v3370, 7
        %v3372 = vsub.s32 2, %v3371
        %v3373 = vrot.slane %v3360, %v3372
        %3377 = vmatprep.subr.mxu0 %v3357
        %3378 = vmatpush1.msra.mxu0 %v3356
        %3379 = vmatprep.subr.mxu0 %v3354
        %3380 = vmatpush1.msra.mxu0 %v3353
        %3381 = vmatprep.subr.mxu0 %v3351
        %3382 = vmatpush1.msra.mxu0 %v3350
        %3383 = vmatprep.subr.mxu0 %v3348
        %3384 = vmatpush1.msra.mxu0 %v3347
        %3385 = vmatprep.subr.mxu0 %v3345
        %3386 = vmatpush1.msra.mxu0 %v3344
        %3387 = vmatprep.subr.mxu0 %v3342
        %3388 = vmatpush1.msra.mxu0 %v3341
        %3389 = vmatprep.subr.mxu0 %v3339
        %3390 = vmatpush1.msra.mxu0 %v3338
        %3391 = vmatprep.subr.mxu0 %v3336
        %3392 = vmatpush1.msra.mxu0 %v3335
        %3393 = vmatprep.subr.mxu0 %v3333
        %3394 = vmatpush1.msra.mxu0 %v3332
        %3395 = vmatprep.subr.mxu0 %v3330
        %3396 = vmatpush1.msra.mxu0 %v3329
        %3397 = vmatprep.subr.mxu0 %v3327
        %3398 = vmatpush1.msra.mxu0 %v3326
        %3399 = vmatprep.subr.mxu0 %v3324
        %3400 = vmatpush1.msra.mxu0 %v3323
        %3401 = vmatprep.subr.mxu0 %v3321
        %3402 = vmatpush1.msra.mxu0 %v3320
        %3403 = vmatprep.subr.mxu0 %v3318
        %3404 = vmatpush1.msra.mxu0 %v3317
        %3405 = vmatprep.subr.mxu0 %v3315
        %3406 = vmatpush1.msra.mxu0 %v3314
        %3407 = vmatprep.subr.mxu0 %v3312
        %3408 = vmatpush1.msra.mxu0 %v3311
        %3409 = vmatprep.subr.mxu0 0.0
        %3410 = vmatpush2.msra.mxu0 0.0
        %3411 = vmatprep.subr.mxu0 0.0
        %3412 = vmatpush2.msra.mxu0 0.0
        %3413 = vmatprep.subr.mxu0 0.0
        %3414 = vmatpush2.msra.mxu0 0.0
        %3415 = vmatprep.subr.mxu0 0.0
        %3416 = vmatpush2.msra.mxu0 0.0
        %3417 = vmatprep.subr.mxu0 0.0
        %3418 = vmatpush2.msra.mxu0 0.0
        %3419 = vmatprep.subr.mxu0 0.0
        %3420 = vmatpush2.msra.mxu0 0.0
        %3421 = vmatprep.subr.mxu0 0.0
        %3422 = vmatpush2.msra.mxu0 0.0
        %3423 = vmatprep.subr.mxu0 0.0
        %3424 = vmatpush2.msra.mxu0 0.0
        %3425 = vmatprep.subr.mxu0 0.0
        %3426 = vmatpush2.msra.mxu0 0.0
        %3427 = vmatprep.subr.mxu0 0.0
        %3428 = vmatpush2.msra.mxu0 0.0
        %3429 = vmatprep.subr.mxu0 0.0
        %3430 = vmatpush2.msra.mxu0 0.0
        %3431 = vmatprep.subr.mxu0 0.0
        %3432 = vmatpush2.msra.mxu0 0.0
        %3433 = vmatprep.subr.mxu0 0.0
        %3434 = vmatpush2.msra.mxu0 0.0
        %3435 = vmatprep.subr.mxu0 0.0
        %3436 = vmatpush2.msra.mxu0 0.0
        %3437 = vmatprep.subr.mxu0 0.0
        %3438 = vmatpush2.msra.mxu0 0.0
        %3439 = vmatprep.subr.mxu0 0.0
        %3440 = vmatpush2.msra.mxu0 0.0
        %3441 = vmatprep.mubr.f32.mxu0 0.0
        %3442 = vmatmul.mubr.f32.gmra.mxu0 %v3309
        %v3443 = vpop.f32.mrf.mxu0
        %v3444 = vadd.f32 %v3365, %v3443
        %v3445 = vpop.f32.mrf.mxu0
        %v3446 = vadd.f32 %v3369, %v3445
        %3447 = vdwg.mxu0
        %3448 = vmatprep.subr.mxu0 0.0
        %3449 = vmatpush1.msra.mxu0 %v3358
        %3450 = vmatprep.subr.mxu0 0.0
        %3451 = vmatpush1.msra.mxu0 %v3355
        %3452 = vmatprep.subr.mxu0 0.0
        %3453 = vmatpush1.msra.mxu0 %v3352
        %3454 = vmatprep.subr.mxu0 0.0
        %3455 = vmatpush1.msra.mxu0 %v3349
        %3456 = vmatprep.subr.mxu0 0.0
        %3457 = vmatpush1.msra.mxu0 %v3346
        %3458 = vmatprep.subr.mxu0 0.0
        %3459 = vmatpush1.msra.mxu0 %v3343
        %3460 = vmatprep.subr.mxu0 0.0
        %3461 = vmatpush1.msra.mxu0 %v3340
        %3462 = vmatprep.subr.mxu0 0.0
        %3463 = vmatpush1.msra.mxu0 %v3337
        %3464 = vmatprep.subr.mxu0 0.0
        %3465 = vmatpush1.msra.mxu0 %v3334
        %3466 = vmatprep.subr.mxu0 0.0
        %3467 = vmatpush1.msra.mxu0 %v3331
        %3468 = vmatprep.subr.mxu0 0.0
        %3469 = vmatpush1.msra.mxu0 %v3328
        %3470 = vmatprep.subr.mxu0 0.0
        %3471 = vmatpush1.msra.mxu0 %v3325
        %3472 = vmatprep.subr.mxu0 0.0
        %3473 = vmatpush1.msra.mxu0 %v3322
        %3474 = vmatprep.subr.mxu0 0.0
        %3475 = vmatpush1.msra.mxu0 %v3319
        %3476 = vmatprep.subr.mxu0 0.0
        %3477 = vmatpush1.msra.mxu0 %v3316
        %3478 = vmatprep.subr.mxu0 0.0
        %3479 = vmatpush1.msra.mxu0 %v3313
        %3480 = vmatprep.subr.mxu0 0.0
        %3481 = vmatpush2.msra.mxu0 0.0
        %3482 = vmatprep.subr.mxu0 0.0
        %3483 = vmatpush2.msra.mxu0 0.0
        %3484 = vmatprep.subr.mxu0 0.0
        %3485 = vmatpush2.msra.mxu0 0.0
        %3486 = vmatprep.subr.mxu0 0.0
        %3487 = vmatpush2.msra.mxu0 0.0
        %3488 = vmatprep.subr.mxu0 0.0
        %3489 = vmatpush2.msra.mxu0 0.0
        %3490 = vmatprep.subr.mxu0 0.0
        %3491 = vmatpush2.msra.mxu0 0.0
        %3492 = vmatprep.subr.mxu0 0.0
        %3493 = vmatpush2.msra.mxu0 0.0
        %3494 = vmatprep.subr.mxu0 0.0
        %3495 = vmatpush2.msra.mxu0 0.0
        %3496 = vmatprep.subr.mxu0 0.0
        %3497 = vmatpush2.msra.mxu0 0.0
        %3498 = vmatprep.subr.mxu0 0.0
        %3499 = vmatpush2.msra.mxu0 0.0
        %3500 = vmatprep.subr.mxu0 0.0
        %3501 = vmatpush2.msra.mxu0 0.0
        %3502 = vmatprep.subr.mxu0 0.0
        %3503 = vmatpush2.msra.mxu0 0.0
        %3504 = vmatprep.subr.mxu0 0.0
        %3505 = vmatpush2.msra.mxu0 0.0
        %3506 = vmatprep.subr.mxu0 0.0
        %3507 = vmatpush2.msra.mxu0 0.0
        %3508 = vmatprep.subr.mxu0 0.0
        %3509 = vmatpush2.msra.mxu0 0.0
        %3510 = vmatprep.subr.mxu0 0.0
        %3511 = vmatpush2.msra.mxu0 0.0
        %3512 = vmatprep.mubr.f32.mxu0 0.0
        %3513 = vmatmul.mubr.f32.gmra.mxu0 %v3309
        %v3514 = vpop.f32.mrf.mxu0
        %v3515 = vadd.f32 %v3373, %v3514
        %v3516 = vpop.f32.mrf.mxu0
        %3517 = vdwg.mxu0
        %3518 = vmatprep.subr.mxu0 0.0
        %3519 = vmatpush1.msra.mxu0 0.0
        %3520 = vmatprep.subr.mxu0 0.0
        %3521 = vmatpush1.msra.mxu0 0.0
        %3522 = vmatprep.subr.mxu0 0.0
        %3523 = vmatpush1.msra.mxu0 0.0
        %3524 = vmatprep.subr.mxu0 0.0
        %3525 = vmatpush1.msra.mxu0 0.0
        %3526 = vmatprep.subr.mxu0 0.0
        %3527 = vmatpush1.msra.mxu0 0.0
        %3528 = vmatprep.subr.mxu0 0.0
        %3529 = vmatpush1.msra.mxu0 0.0
        %3530 = vmatprep.subr.mxu0 0.0
        %3531 = vmatpush1.msra.mxu0 0.0
        %3532 = vmatprep.subr.mxu0 0.0
        %3533 = vmatpush1.msra.mxu0 0.0
        %3534 = vmatprep.subr.mxu0 0.0
        %3535 = vmatpush1.msra.mxu0 0.0
        %3536 = vmatprep.subr.mxu0 0.0
        %3537 = vmatpush1.msra.mxu0 0.0
        %3538 = vmatprep.subr.mxu0 0.0
        %3539 = vmatpush1.msra.mxu0 0.0
        %3540 = vmatprep.subr.mxu0 0.0
        %3541 = vmatpush1.msra.mxu0 0.0
        %3542 = vmatprep.subr.mxu0 0.0
        %3543 = vmatpush1.msra.mxu0 0.0
        %3544 = vmatprep.subr.mxu0 0.0
        %3545 = vmatpush1.msra.mxu0 0.0
        %3546 = vmatprep.subr.mxu0 0.0
        %3547 = vmatpush1.msra.mxu0 0.0
        %3548 = vmatprep.subr.mxu0 0.0
        %3549 = vmatpush1.msra.mxu0 %v3444
        %3550 = vmatprep.subr.mxu0 0.0
        %3551 = vmatpush2.msra.mxu0 0.0
        %3552 = vmatprep.subr.mxu0 0.0
        %3553 = vmatpush2.msra.mxu0 0.0
        %3554 = vmatprep.subr.mxu0 0.0
        %3555 = vmatpush2.msra.mxu0 0.0
        %3556 = vmatprep.subr.mxu0 0.0
        %3557 = vmatpush2.msra.mxu0 0.0
        %3558 = vmatprep.subr.mxu0 0.0
        %3559 = vmatpush2.msra.mxu0 0.0
        %3560 = vmatprep.subr.mxu0 0.0
        %3561 = vmatpush2.msra.mxu0 0.0
        %3562 = vmatprep.subr.mxu0 0.0
        %3563 = vmatpush2.msra.mxu0 0.0
        %3564 = vmatprep.subr.mxu0 0.0
        %3565 = vmatpush2.msra.mxu0 0.0
        %3566 = vmatprep.subr.mxu0 0.0
        %3567 = vmatpush2.msra.mxu0 0.0
        %3568 = vmatprep.subr.mxu0 0.0
        %3569 = vmatpush2.msra.mxu0 0.0
        %3570 = vmatprep.subr.mxu0 0.0
        %3571 = vmatpush2.msra.mxu0 0.0
        %3572 = vmatprep.subr.mxu0 0.0
        %3573 = vmatpush2.msra.mxu0 0.0
        %3574 = vmatprep.subr.mxu0 0.0
        %3575 = vmatpush2.msra.mxu0 0.0
        %3576 = vmatprep.subr.mxu0 0.0
        %3577 = vmatpush2.msra.mxu0 0.0
        %3578 = vmatprep.subr.mxu0 0.0
        %3579 = vmatpush2.msra.mxu0 0.0
        %3580 = vmatprep.subr.mxu0 0.0
        %3581 = vmatpush2.msra.mxu0 0.0
        %3582 = vmatprep.mubr.f32.mxu0 0.0
        %3583 = vmatmul.mubr.f32.gmra.mxu0 %v1217
        %v3584 = vpop.f32.mrf.mxu0
        %v3585 = vadd.f32 0.0, %v3584
        %v3586 = vpop.f32.mrf.mxu0
        %3587 = vmatprep.mubr.f32.mxu0 0.0
        %3588 = vmatmul.mubr.f32.gmra.mxu0 %v1220
        %v3589 = vpop.f32.mrf.mxu0
        %v3590 = vadd.f32 0.0, %v3589
        %v3591 = vpop.f32.mrf.mxu0
        %3592 = vmatprep.mubr.f32.mxu0 0.0
        %3593 = vmatmul.mubr.f32.gmra.mxu0 %v1223
        %v3594 = vpop.f32.mrf.mxu0
        %v3595 = vadd.f32 0.0, %v3594
        %v3596 = vpop.f32.mrf.mxu0
        %3597 = vmatprep.mubr.f32.mxu0 0.0
        %3598 = vmatmul.mubr.f32.gmra.mxu0 %v1226
        %v3599 = vpop.f32.mrf.mxu0
        %v3600 = vadd.f32 0.0, %v3599
        %v3601 = vpop.f32.mrf.mxu0
        %3602 = vmatprep.mubr.f32.mxu0 0.0
        %3603 = vmatmul.mubr.f32.gmra.mxu0 %v1229
        %v3604 = vpop.f32.mrf.mxu0
        %v3605 = vadd.f32 0.0, %v3604
        %v3606 = vpop.f32.mrf.mxu0
        %3607 = vmatprep.mubr.f32.mxu0 0.0
        %3608 = vmatmul.mubr.f32.gmra.mxu0 %v1232
        %v3609 = vpop.f32.mrf.mxu0
        %v3610 = vadd.f32 0.0, %v3609
        %v3611 = vpop.f32.mrf.mxu0
        %3612 = vmatprep.mubr.f32.mxu0 0.0
        %3613 = vmatmul.mubr.f32.gmra.mxu0 %v1235
        %v3614 = vpop.f32.mrf.mxu0
        %v3615 = vadd.f32 0.0, %v3614
        %v3616 = vpop.f32.mrf.mxu0
        %3617 = vmatprep.mubr.f32.mxu0 0.0
        %3618 = vmatmul.mubr.f32.gmra.mxu0 %v1238
        %v3619 = vpop.f32.mrf.mxu0
        %v3620 = vadd.f32 0.0, %v3619
        %v3621 = vpop.f32.mrf.mxu0
        %3622 = vmatprep.mubr.f32.mxu0 0.0
        %3623 = vmatmul.mubr.f32.gmra.mxu0 %v1241
        %v3624 = vpop.f32.mrf.mxu0
        %v3625 = vadd.f32 0.0, %v3624
        %v3626 = vpop.f32.mrf.mxu0
        %3627 = vmatprep.mubr.f32.mxu0 0.0
        %3628 = vmatmul.mubr.f32.gmra.mxu0 %v1244
        %v3629 = vpop.f32.mrf.mxu0
        %v3630 = vadd.f32 0.0, %v3629
        %v3631 = vpop.f32.mrf.mxu0
        %3632 = vmatprep.mubr.f32.mxu0 0.0
        %3633 = vmatmul.mubr.f32.gmra.mxu0 %v1247
        %v3634 = vpop.f32.mrf.mxu0
        %v3635 = vadd.f32 0.0, %v3634
        %v3636 = vpop.f32.mrf.mxu0
        %3637 = vmatprep.mubr.f32.mxu0 0.0
        %3638 = vmatmul.mubr.f32.gmra.mxu0 %v1250
        %v3639 = vpop.f32.mrf.mxu0
        %v3640 = vadd.f32 0.0, %v3639
        %v3641 = vpop.f32.mrf.mxu0
        %3642 = vmatprep.mubr.f32.mxu0 0.0
        %3643 = vmatmul.mubr.f32.gmra.mxu0 %v1253
        %v3644 = vpop.f32.mrf.mxu0
        %v3645 = vadd.f32 0.0, %v3644
        %v3646 = vpop.f32.mrf.mxu0
        %3647 = vmatprep.mubr.f32.mxu0 0.0
        %3648 = vmatmul.mubr.f32.gmra.mxu0 %v1256
        %v3649 = vpop.f32.mrf.mxu0
        %v3650 = vadd.f32 0.0, %v3649
        %v3651 = vpop.f32.mrf.mxu0
        %3652 = vmatprep.mubr.f32.mxu0 0.0
        %3653 = vmatmul.mubr.f32.gmra.mxu0 %v1259
        %v3654 = vpop.f32.mrf.mxu0
        %v3655 = vadd.f32 0.0, %v3654
        %v3656 = vpop.f32.mrf.mxu0
        %3657 = vmatprep.mubr.f32.mxu0 0.0
        %3658 = vmatmul.mubr.f32.gmra.mxu0 %v1262
        %v3659 = vpop.f32.mrf.mxu0
        %v3660 = vadd.f32 0.0, %v3659
        %v3661 = vpop.f32.mrf.mxu0
        %3662 = vmatprep.mubr.f32.mxu0 0.0
        %3663 = vmatmul.mubr.f32.gmra.mxu0 %v1265
        %v3664 = vpop.f32.mrf.mxu0
        %v3665 = vadd.f32 0.0, %v3664
        %v3666 = vpop.f32.mrf.mxu0
        %3667 = vmatprep.mubr.f32.mxu0 0.0
        %3668 = vmatmul.mubr.f32.gmra.mxu0 %v1268
        %v3669 = vpop.f32.mrf.mxu0
        %v3670 = vadd.f32 0.0, %v3669
        %v3671 = vpop.f32.mrf.mxu0
        %3672 = vmatprep.mubr.f32.mxu0 0.0
        %3673 = vmatmul.mubr.f32.gmra.mxu0 %v1271
        %v3674 = vpop.f32.mrf.mxu0
        %v3675 = vadd.f32 0.0, %v3674
        %v3676 = vpop.f32.mrf.mxu0
        %3677 = vmatprep.mubr.f32.mxu0 0.0
        %3678 = vmatmul.mubr.f32.gmra.mxu0 %v1274
        %v3679 = vpop.f32.mrf.mxu0
        %v3680 = vadd.f32 0.0, %v3679
        %v3681 = vpop.f32.mrf.mxu0
        %3682 = vmatprep.mubr.f32.mxu0 0.0
        %3683 = vmatmul.mubr.f32.gmra.mxu0 %v1277
        %v3684 = vpop.f32.mrf.mxu0
        %v3685 = vadd.f32 0.0, %v3684
        %v3686 = vpop.f32.mrf.mxu0
        %3687 = vmatprep.mubr.f32.mxu0 0.0
        %3688 = vmatmul.mubr.f32.gmra.mxu0 %v1280
        %v3689 = vpop.f32.mrf.mxu0
        %v3690 = vadd.f32 0.0, %v3689
        %v3691 = vpop.f32.mrf.mxu0
        %3692 = vmatprep.mubr.f32.mxu0 0.0
        %3693 = vmatmul.mubr.f32.gmra.mxu0 %v1283
        %v3694 = vpop.f32.mrf.mxu0
        %v3695 = vadd.f32 0.0, %v3694
        %v3696 = vpop.f32.mrf.mxu0
        %3697 = vmatprep.mubr.f32.mxu0 0.0
        %3698 = vmatmul.mubr.f32.gmra.mxu0 %v1286
        %v3699 = vpop.f32.mrf.mxu0
        %v3700 = vadd.f32 0.0, %v3699
        %v3701 = vpop.f32.mrf.mxu0
        %3702 = vmatprep.mubr.f32.mxu0 0.0
        %3703 = vmatmul.mubr.f32.gmra.mxu0 %v1289
        %v3704 = vpop.f32.mrf.mxu0
        %v3705 = vadd.f32 0.0, %v3704
        %v3706 = vpop.f32.mrf.mxu0
        %3707 = vmatprep.mubr.f32.mxu0 0.0
        %3708 = vmatmul.mubr.f32.gmra.mxu0 %v1292
        %v3709 = vpop.f32.mrf.mxu0
        %v3710 = vadd.f32 0.0, %v3709
        %v3711 = vpop.f32.mrf.mxu0
        %3712 = vmatprep.mubr.f32.mxu0 0.0
        %3713 = vmatmul.mubr.f32.gmra.mxu0 %v1295
        %v3714 = vpop.f32.mrf.mxu0
        %v3715 = vadd.f32 0.0, %v3714
        %v3716 = vpop.f32.mrf.mxu0
        %3717 = vmatprep.mubr.f32.mxu0 0.0
        %3718 = vmatmul.mubr.f32.gmra.mxu0 %v1298
        %v3719 = vpop.f32.mrf.mxu0
        %v3720 = vadd.f32 0.0, %v3719
        %v3721 = vpop.f32.mrf.mxu0
        %3722 = vdwg.mxu0
        %v3723 = vmul.f32 %v3585, %v742
        %v3724 = vmul.f32 %v3590, %v743
        %v3725 = vmul.f32 %v3595, %v744
        %v3726 = vmul.f32 %v3600, %v745
        %v3727 = vmul.f32 %v3605, %v746
        %v3728 = vmul.f32 %v3610, %v747
        %v3729 = vmul.f32 %v3615, %v748
        %v3730 = vmul.f32 %v3620, %v749
        %v3731 = vmul.f32 %v3625, %v750
        %v3732 = vmul.f32 %v3630, %v751
        %v3733 = vmul.f32 %v3635, %v752
        %v3734 = vmul.f32 %v3640, %v753
        %v3735 = vmul.f32 %v3645, %v754
        %v3736 = vmul.f32 %v3650, %v755
        %v3737 = vmul.f32 %v3655, %v756
        %v3738 = vmul.f32 %v3660, %v757
        %v3739 = vmul.f32 %v3665, %v758
        %v3740 = vmul.f32 %v3670, %v759
        %v3741 = vmul.f32 %v3675, %v760
        %v3742 = vmul.f32 %v3680, %v761
        %v3743 = vmul.f32 %v3685, %v762
        %v3744 = vmul.f32 %v3690, %v763
        %v3745 = vmul.f32 %v3695, %v764
        %v3746 = vmul.f32 %v3700, %v765
        %v3747 = vmul.f32 %v3705, %v766
        %v3748 = vmul.f32 %v3710, %v767
        %v3749 = vmul.f32 %v3715, %v768
        %v3750 = vmul.f32 %v3720, %v769
        %3751 = vmatprep.subr.mxu0 0.0
        %3752 = vmatpush1.xpose.msra.mxu0 0.0
        %3753 = vmatprep.subr.mxu0 0.0
        %3754 = vmatpush1.xpose.msra.mxu0 0.0
        %3755 = vmatprep.subr.mxu0 0.0
        %3756 = vmatpush1.xpose.msra.mxu0 0.0
        %3757 = vmatprep.subr.mxu0 0.0
        %3758 = vmatpush1.xpose.msra.mxu0 0.0
        %3759 = vmatprep.subr.mxu0 0.0
        %3760 = vmatpush1.xpose.msra.mxu0 0.0
        %3761 = vmatprep.subr.mxu0 0.0
        %3762 = vmatpush1.xpose.msra.mxu0 0.0
        %3763 = vmatprep.subr.mxu0 0.0
        %3764 = vmatpush1.xpose.msra.mxu0 0.0
        %3765 = vmatprep.subr.mxu0 0.0
        %3766 = vmatpush1.xpose.msra.mxu0 0.0
        %3767 = vmatprep.subr.mxu0 0.0
        %3768 = vmatpush1.xpose.msra.mxu0 0.0
        %3769 = vmatprep.subr.mxu0 0.0
        %3770 = vmatpush1.xpose.msra.mxu0 0.0
        %3771 = vmatprep.subr.mxu0 0.0
        %3772 = vmatpush1.xpose.msra.mxu0 0.0
        %3773 = vmatprep.subr.mxu0 0.0
        %3774 = vmatpush1.xpose.msra.mxu0 0.0
        %3775 = vmatprep.subr.mxu0 0.0
        %3776 = vmatpush1.xpose.msra.mxu0 0.0
        %3777 = vmatprep.subr.mxu0 0.0
        %3778 = vmatpush1.xpose.msra.mxu0 0.0
        %3779 = vmatprep.subr.mxu0 0.0
        %3780 = vmatpush1.xpose.msra.mxu0 0.0
        %3781 = vmatprep.subr.mxu0 0.0
        %3782 = vmatpush1.xpose.msra.mxu0 %v3446
        %3783 = vmatprep.subr.mxu0 0.0
        %3784 = vmatpush2.xpose.msra.mxu0 0.0
        %3785 = vmatprep.subr.mxu0 0.0
        %3786 = vmatpush2.xpose.msra.mxu0 0.0
        %3787 = vmatprep.subr.mxu0 0.0
        %3788 = vmatpush2.xpose.msra.mxu0 0.0
        %3789 = vmatprep.subr.mxu0 0.0
        %3790 = vmatpush2.xpose.msra.mxu0 0.0
        %3791 = vmatprep.subr.mxu0 0.0
        %3792 = vmatpush2.xpose.msra.mxu0 0.0
        %3793 = vmatprep.subr.mxu0 0.0
        %3794 = vmatpush2.xpose.msra.mxu0 0.0
        %3795 = vmatprep.subr.mxu0 0.0
        %3796 = vmatpush2.xpose.msra.mxu0 0.0
        %3797 = vmatprep.subr.mxu0 0.0
        %3798 = vmatpush2.xpose.msra.mxu0 0.0
        %3799 = vmatprep.subr.mxu0 0.0
        %3800 = vmatpush2.xpose.msra.mxu0 0.0
        %3801 = vmatprep.subr.mxu0 0.0
        %3802 = vmatpush2.xpose.msra.mxu0 0.0
        %3803 = vmatprep.subr.mxu0 0.0
        %3804 = vmatpush2.xpose.msra.mxu0 0.0
        %3805 = vmatprep.subr.mxu0 0.0
        %3806 = vmatpush2.xpose.msra.mxu0 0.0
        %3807 = vmatprep.subr.mxu0 0.0
        %3808 = vmatpush2.xpose.msra.mxu0 0.0
        %3809 = vmatprep.subr.mxu0 0.0
        %3810 = vmatpush2.xpose.msra.mxu0 0.0
        %3811 = vmatprep.subr.mxu0 0.0
        %3812 = vmatpush2.xpose.msra.mxu0 0.0
        %3813 = vmatprep.subr.mxu0 0.0
        %3814 = vmatpush2.xpose.msra.mxu0 0.0
        %3815 = vmatprep.mubr.f32.mxu0 0.0
        %3816 = vmatmul.mubr.f32.gmra.mxu0 %v3723
        %v3817 = vpop.f32.mrf.mxu0
        %v3818 = vadd.f32 0.0, %v3817
        %v3819 = vpop.f32.mrf.mxu0
        %3820 = vmatprep.mubr.f32.mxu0 0.0
        %3821 = vmatmul.mubr.f32.gmra.mxu0 %v3724
        %v3822 = vpop.f32.mrf.mxu0
        %v3823 = vadd.f32 0.0, %v3822
        %v3824 = vpop.f32.mrf.mxu0
        %3825 = vmatprep.mubr.f32.mxu0 0.0
        %3826 = vmatmul.mubr.f32.gmra.mxu0 %v3725
        %v3827 = vpop.f32.mrf.mxu0
        %v3828 = vadd.f32 0.0, %v3827
        %v3829 = vpop.f32.mrf.mxu0
        %3830 = vmatprep.mubr.f32.mxu0 0.0
        %3831 = vmatmul.mubr.f32.gmra.mxu0 %v3726
        %v3832 = vpop.f32.mrf.mxu0
        %v3833 = vadd.f32 0.0, %v3832
        %v3834 = vpop.f32.mrf.mxu0
        %3835 = vmatprep.mubr.f32.mxu0 0.0
        %3836 = vmatmul.mubr.f32.gmra.mxu0 %v3727
        %v3837 = vpop.f32.mrf.mxu0
        %v3838 = vadd.f32 0.0, %v3837
        %v3839 = vpop.f32.mrf.mxu0
        %3840 = vmatprep.mubr.f32.mxu0 0.0
        %3841 = vmatmul.mubr.f32.gmra.mxu0 %v3728
        %v3842 = vpop.f32.mrf.mxu0
        %v3843 = vadd.f32 0.0, %v3842
        %v3844 = vpop.f32.mrf.mxu0
        %3845 = vmatprep.mubr.f32.mxu0 0.0
        %3846 = vmatmul.mubr.f32.gmra.mxu0 %v3729
        %v3847 = vpop.f32.mrf.mxu0
        %v3848 = vadd.f32 0.0, %v3847
        %v3849 = vpop.f32.mrf.mxu0
        %3850 = vmatprep.mubr.f32.mxu0 0.0
        %3851 = vmatmul.mubr.f32.gmra.mxu0 %v3730
        %v3852 = vpop.f32.mrf.mxu0
        %v3853 = vadd.f32 0.0, %v3852
        %v3854 = vpop.f32.mrf.mxu0
        %3855 = vmatprep.mubr.f32.mxu0 0.0
        %3856 = vmatmul.mubr.f32.gmra.mxu0 %v3731
        %v3857 = vpop.f32.mrf.mxu0
        %v3858 = vadd.f32 0.0, %v3857
        %v3859 = vpop.f32.mrf.mxu0
        %3860 = vmatprep.mubr.f32.mxu0 0.0
        %3861 = vmatmul.mubr.f32.gmra.mxu0 %v3732
        %v3862 = vpop.f32.mrf.mxu0
        %v3863 = vadd.f32 0.0, %v3862
        %v3864 = vpop.f32.mrf.mxu0
        %3865 = vmatprep.mubr.f32.mxu0 0.0
        %3866 = vmatmul.mubr.f32.gmra.mxu0 %v3733
        %v3867 = vpop.f32.mrf.mxu0
        %v3868 = vadd.f32 0.0, %v3867
        %v3869 = vpop.f32.mrf.mxu0
        %3870 = vmatprep.mubr.f32.mxu0 0.0
        %3871 = vmatmul.mubr.f32.gmra.mxu0 %v3734
        %v3872 = vpop.f32.mrf.mxu0
        %v3873 = vadd.f32 0.0, %v3872
        %v3874 = vpop.f32.mrf.mxu0
        %3875 = vmatprep.mubr.f32.mxu0 0.0
        %3876 = vmatmul.mubr.f32.gmra.mxu0 %v3735
        %v3877 = vpop.f32.mrf.mxu0
        %v3878 = vadd.f32 0.0, %v3877
        %v3879 = vpop.f32.mrf.mxu0
        %3880 = vmatprep.mubr.f32.mxu0 0.0
        %3881 = vmatmul.mubr.f32.gmra.mxu0 %v3736
        %v3882 = vpop.f32.mrf.mxu0
        %v3883 = vadd.f32 0.0, %v3882
        %v3884 = vpop.f32.mrf.mxu0
        %3885 = vmatprep.mubr.f32.mxu0 0.0
        %3886 = vmatmul.mubr.f32.gmra.mxu0 %v3737
        %v3887 = vpop.f32.mrf.mxu0
        %v3888 = vadd.f32 0.0, %v3887
        %v3889 = vpop.f32.mrf.mxu0
        %3890 = vmatprep.mubr.f32.mxu0 0.0
        %3891 = vmatmul.mubr.f32.gmra.mxu0 %v3738
        %v3892 = vpop.f32.mrf.mxu0
        %v3893 = vadd.f32 0.0, %v3892
        %v3894 = vpop.f32.mrf.mxu0
        %3895 = vmatprep.mubr.f32.mxu0 0.0
        %3896 = vmatmul.mubr.f32.gmra.mxu0 %v3739
        %v3897 = vpop.f32.mrf.mxu0
        %v3898 = vadd.f32 0.0, %v3897
        %v3899 = vpop.f32.mrf.mxu0
        %3900 = vmatprep.mubr.f32.mxu0 0.0
        %3901 = vmatmul.mubr.f32.gmra.mxu0 %v3740
        %v3902 = vpop.f32.mrf.mxu0
        %v3903 = vadd.f32 0.0, %v3902
        %v3904 = vpop.f32.mrf.mxu0
        %3905 = vmatprep.mubr.f32.mxu0 0.0
        %3906 = vmatmul.mubr.f32.gmra.mxu0 %v3741
        %v3907 = vpop.f32.mrf.mxu0
        %v3908 = vadd.f32 0.0, %v3907
        %v3909 = vpop.f32.mrf.mxu0
        %3910 = vmatprep.mubr.f32.mxu0 0.0
        %3911 = vmatmul.mubr.f32.gmra.mxu0 %v3742
        %v3912 = vpop.f32.mrf.mxu0
        %v3913 = vadd.f32 0.0, %v3912
        %v3914 = vpop.f32.mrf.mxu0
        %3915 = vmatprep.mubr.f32.mxu0 0.0
        %3916 = vmatmul.mubr.f32.gmra.mxu0 %v3743
        %v3917 = vpop.f32.mrf.mxu0
        %v3918 = vadd.f32 0.0, %v3917
        %v3919 = vpop.f32.mrf.mxu0
        %3920 = vmatprep.mubr.f32.mxu0 0.0
        %3921 = vmatmul.mubr.f32.gmra.mxu0 %v3744
        %v3922 = vpop.f32.mrf.mxu0
        %v3923 = vadd.f32 0.0, %v3922
        %v3924 = vpop.f32.mrf.mxu0
        %3925 = vmatprep.mubr.f32.mxu0 0.0
        %3926 = vmatmul.mubr.f32.gmra.mxu0 %v3745
        %v3927 = vpop.f32.mrf.mxu0
        %v3928 = vadd.f32 0.0, %v3927
        %v3929 = vpop.f32.mrf.mxu0
        %3930 = vmatprep.mubr.f32.mxu0 0.0
        %3931 = vmatmul.mubr.f32.gmra.mxu0 %v3746
        %v3932 = vpop.f32.mrf.mxu0
        %v3933 = vadd.f32 0.0, %v3932
        %v3934 = vpop.f32.mrf.mxu0
        %3935 = vmatprep.mubr.f32.mxu0 0.0
        %3936 = vmatmul.mubr.f32.gmra.mxu0 %v3747
        %v3937 = vpop.f32.mrf.mxu0
        %v3938 = vadd.f32 0.0, %v3937
        %v3939 = vpop.f32.mrf.mxu0
        %3940 = vmatprep.mubr.f32.mxu0 0.0
        %3941 = vmatmul.mubr.f32.gmra.mxu0 %v3748
        %v3942 = vpop.f32.mrf.mxu0
        %v3943 = vadd.f32 0.0, %v3942
        %v3944 = vpop.f32.mrf.mxu0
        %3945 = vmatprep.mubr.f32.mxu0 0.0
        %3946 = vmatmul.mubr.f32.gmra.mxu0 %v3749
        %v3947 = vpop.f32.mrf.mxu0
        %v3948 = vadd.f32 0.0, %v3947
        %v3949 = vpop.f32.mrf.mxu0
        %3950 = vmatprep.mubr.f32.mxu0 0.0
        %3951 = vmatmul.mubr.f32.gmra.mxu0 %v3750
        %v3952 = vpop.f32.mrf.mxu0
        %v3953 = vadd.f32 0.0, %v3952
        %v3954 = vpop.f32.mrf.mxu0
        %3955 = vdwg.mxu0
        %v3956 = vsel %vm1215, %v3818, -inf
        %3957 = vmax.xlane.f32.xlu0 %v3956
        %v3958 = vpop.xlane.xlu0 %3957
        %v3959 = vsel %vm1215, %v3823, -inf
        %3960 = vmax.xlane.f32.xlu0 %v3959
        %v3961 = vpop.xlane.xlu0 %3960
        %v3962 = vsel %vm1215, %v3828, -inf
        %3963 = vmax.xlane.f32.xlu0 %v3962
        %v3964 = vpop.xlane.xlu0 %3963
        %v3965 = vsel %vm1215, %v3833, -inf
        %3966 = vmax.xlane.f32.xlu0 %v3965
        %v3967 = vpop.xlane.xlu0 %3966
        %v3968 = vsel %vm1215, %v3838, -inf
        %3969 = vmax.xlane.f32.xlu0 %v3968
        %v3970 = vpop.xlane.xlu0 %3969
        %v3971 = vsel %vm1215, %v3843, -inf
        %3972 = vmax.xlane.f32.xlu0 %v3971
        %v3973 = vpop.xlane.xlu0 %3972
        %v3974 = vsel %vm1215, %v3848, -inf
        %3975 = vmax.xlane.f32.xlu0 %v3974
        %v3976 = vpop.xlane.xlu0 %3975
        %v3977 = vsel %vm1215, %v3853, -inf
        %3978 = vmax.xlane.f32.xlu0 %v3977
        %v3979 = vpop.xlane.xlu0 %3978
        %v3980 = vsel %vm1215, %v3858, -inf
        %3981 = vmax.xlane.f32.xlu0 %v3980
        %v3982 = vpop.xlane.xlu0 %3981
        %v3983 = vsel %vm1215, %v3863, -inf
        %3984 = vmax.xlane.f32.xlu0 %v3983
        %v3985 = vpop.xlane.xlu0 %3984
        %v3986 = vsel %vm1215, %v3868, -inf
        %3987 = vmax.xlane.f32.xlu0 %v3986
        %v3988 = vpop.xlane.xlu0 %3987
        %v3989 = vsel %vm1215, %v3873, -inf
        %3990 = vmax.xlane.f32.xlu0 %v3989
        %v3991 = vpop.xlane.xlu0 %3990
        %v3992 = vsel %vm1215, %v3878, -inf
        %3993 = vmax.xlane.f32.xlu0 %v3992
        %v3994 = vpop.xlane.xlu0 %3993
        %v3995 = vsel %vm1215, %v3883, -inf
        %3996 = vmax.xlane.f32.xlu0 %v3995
        %v3997 = vpop.xlane.xlu0 %3996
        %v3998 = vsel %vm1215, %v3888, -inf
        %3999 = vmax.xlane.f32.xlu0 %v3998
        %v4000 = vpop.xlane.xlu0 %3999
        %v4001 = vsel %vm1215, %v3893, -inf
        %4002 = vmax.xlane.f32.xlu0 %v4001
        %v4003 = vpop.xlane.xlu0 %4002
        %v4004 = vsel %vm1215, %v3898, -inf
        %4005 = vmax.xlane.f32.xlu0 %v4004
        %v4006 = vpop.xlane.xlu0 %4005
        %v4007 = vsel %vm1215, %v3903, -inf
        %4008 = vmax.xlane.f32.xlu0 %v4007
        %v4009 = vpop.xlane.xlu0 %4008
        %v4010 = vsel %vm1215, %v3908, -inf
        %4011 = vmax.xlane.f32.xlu0 %v4010
        %v4012 = vpop.xlane.xlu0 %4011
        %v4013 = vsel %vm1215, %v3913, -inf
        %4014 = vmax.xlane.f32.xlu0 %v4013
        %v4015 = vpop.xlane.xlu0 %4014
        %v4016 = vsel %vm1215, %v3918, -inf
        %4017 = vmax.xlane.f32.xlu0 %v4016
        %v4018 = vpop.xlane.xlu0 %4017
        %v4019 = vsel %vm1215, %v3923, -inf
        %4020 = vmax.xlane.f32.xlu0 %v4019
        %v4021 = vpop.xlane.xlu0 %4020
        %v4022 = vsel %vm1215, %v3928, -inf
        %4023 = vmax.xlane.f32.xlu0 %v4022
        %v4024 = vpop.xlane.xlu0 %4023
        %v4025 = vsel %vm1215, %v3933, -inf
        %4026 = vmax.xlane.f32.xlu0 %v4025
        %v4027 = vpop.xlane.xlu0 %4026
        %v4028 = vsel %vm1215, %v3938, -inf
        %4029 = vmax.xlane.f32.xlu0 %v4028
        %v4030 = vpop.xlane.xlu0 %4029
        %v4031 = vsel %vm1215, %v3943, -inf
        %4032 = vmax.xlane.f32.xlu0 %v4031
        %v4033 = vpop.xlane.xlu0 %4032
        %v4034 = vsel %vm1215, %v3948, -inf
        %4035 = vmax.xlane.f32.xlu0 %v4034
        %v4036 = vpop.xlane.xlu0 %4035
        %v4037 = vsel %vm1215, %v3953, -inf
        %4038 = vmax.xlane.f32.xlu0 %v4037
        %v4039 = vpop.xlane.xlu0 %4038
        %v4040 = vsub.f32 %v3818, %v3958
        %v4041 = vsub.f32 %v3823, %v3961
        %v4042 = vsub.f32 %v3828, %v3964
        %v4043 = vsub.f32 %v3833, %v3967
        %v4044 = vsub.f32 %v3838, %v3970
        %v4045 = vsub.f32 %v3843, %v3973
        %v4046 = vsub.f32 %v3848, %v3976
        %v4047 = vsub.f32 %v3853, %v3979
        %v4048 = vsub.f32 %v3858, %v3982
        %v4049 = vsub.f32 %v3863, %v3985
        %v4050 = vsub.f32 %v3868, %v3988
        %v4051 = vsub.f32 %v3873, %v3991
        %v4052 = vsub.f32 %v3878, %v3994
        %v4053 = vsub.f32 %v3883, %v3997
        %v4054 = vsub.f32 %v3888, %v4000
        %v4055 = vsub.f32 %v3893, %v4003
        %v4056 = vsub.f32 %v3898, %v4006
        %v4057 = vsub.f32 %v3903, %v4009
        %v4058 = vsub.f32 %v3908, %v4012
        %v4059 = vsub.f32 %v3913, %v4015
        %v4060 = vsub.f32 %v3918, %v4018
        %v4061 = vsub.f32 %v3923, %v4021
        %v4062 = vsub.f32 %v3928, %v4024
        %v4063 = vsub.f32 %v3933, %v4027
        %v4064 = vsub.f32 %v3938, %v4030
        %v4065 = vsub.f32 %v3943, %v4033
        %v4066 = vsub.f32 %v3948, %v4036
        %v4067 = vsub.f32 %v3953, %v4039
        %v4068 = vmul.f32 %v4040, 1.442695
        %v4069 = vpow.pop %v4068
        %v4070 = vmul.f32 %v4041, 1.442695
        %v4071 = vpow.pop %v4070
        %v4072 = vmul.f32 %v4042, 1.442695
        %v4073 = vpow.pop %v4072
        %v4074 = vmul.f32 %v4043, 1.442695
        %v4075 = vpow.pop %v4074
        %v4076 = vmul.f32 %v4044, 1.442695
        %v4077 = vpow.pop %v4076
        %v4078 = vmul.f32 %v4045, 1.442695
        %v4079 = vpow.pop %v4078
        %v4080 = vmul.f32 %v4046, 1.442695
        %v4081 = vpow.pop %v4080
        %v4082 = vmul.f32 %v4047, 1.442695
        %v4083 = vpow.pop %v4082
        %v4084 = vmul.f32 %v4048, 1.442695
        %v4085 = vpow.pop %v4084
        %v4086 = vmul.f32 %v4049, 1.442695
        %v4087 = vpow.pop %v4086
        %v4088 = vmul.f32 %v4050, 1.442695
        %v4089 = vpow.pop %v4088
        %v4090 = vmul.f32 %v4051, 1.442695
        %v4091 = vpow.pop %v4090
        %v4092 = vmul.f32 %v4052, 1.442695
        %v4093 = vpow.pop %v4092
        %v4094 = vmul.f32 %v4053, 1.442695
        %v4095 = vpow.pop %v4094
        %v4096 = vmul.f32 %v4054, 1.442695
        %v4097 = vpow.pop %v4096
        %v4098 = vmul.f32 %v4055, 1.442695
        %v4099 = vpow.pop %v4098
        %v4100 = vmul.f32 %v4056, 1.442695
        %v4101 = vpow.pop %v4100
        %v4102 = vmul.f32 %v4057, 1.442695
        %v4103 = vpow.pop %v4102
        %v4104 = vmul.f32 %v4058, 1.442695
        %v4105 = vpow.pop %v4104
        %v4106 = vmul.f32 %v4059, 1.442695
        %v4107 = vpow.pop %v4106
        %v4108 = vmul.f32 %v4060, 1.442695
        %v4109 = vpow.pop %v4108
        %v4110 = vmul.f32 %v4061, 1.442695
        %v4111 = vpow.pop %v4110
        %v4112 = vmul.f32 %v4062, 1.442695
        %v4113 = vpow.pop %v4112
        %v4114 = vmul.f32 %v4063, 1.442695
        %v4115 = vpow.pop %v4114
        %v4116 = vmul.f32 %v4064, 1.442695
        %v4117 = vpow.pop %v4116
        %v4118 = vmul.f32 %v4065, 1.442695
        %v4119 = vpow.pop %v4118
        %v4120 = vmul.f32 %v4066, 1.442695
        %v4121 = vpow.pop %v4120
        %v4122 = vmul.f32 %v4067, 1.442695
        %v4123 = vpow.pop %v4122
        %v4124 = vsel %vm1215, %v4069, 0.0
        %4125 = vadd.xlane.f32.xlu0 %v4124
        %v4126 = vpop.xlane.xlu0 %4125
        %v4127 = vsel %vm1215, %v4071, 0.0
        %4128 = vadd.xlane.f32.xlu0 %v4127
        %v4129 = vpop.xlane.xlu0 %4128
        %v4130 = vsel %vm1215, %v4073, 0.0
        %4131 = vadd.xlane.f32.xlu0 %v4130
        %v4132 = vpop.xlane.xlu0 %4131
        %v4133 = vsel %vm1215, %v4075, 0.0
        %4134 = vadd.xlane.f32.xlu0 %v4133
        %v4135 = vpop.xlane.xlu0 %4134
        %v4136 = vsel %vm1215, %v4077, 0.0
        %4137 = vadd.xlane.f32.xlu0 %v4136
        %v4138 = vpop.xlane.xlu0 %4137
        %v4139 = vsel %vm1215, %v4079, 0.0
        %4140 = vadd.xlane.f32.xlu0 %v4139
        %v4141 = vpop.xlane.xlu0 %4140
        %v4142 = vsel %vm1215, %v4081, 0.0
        %4143 = vadd.xlane.f32.xlu0 %v4142
        %v4144 = vpop.xlane.xlu0 %4143
        %v4145 = vsel %vm1215, %v4083, 0.0
        %4146 = vadd.xlane.f32.xlu0 %v4145
        %v4147 = vpop.xlane.xlu0 %4146
        %v4148 = vsel %vm1215, %v4085, 0.0
        %4149 = vadd.xlane.f32.xlu0 %v4148
        %v4150 = vpop.xlane.xlu0 %4149
        %v4151 = vsel %vm1215, %v4087, 0.0
        %4152 = vadd.xlane.f32.xlu0 %v4151
        %v4153 = vpop.xlane.xlu0 %4152
        %v4154 = vsel %vm1215, %v4089, 0.0
        %4155 = vadd.xlane.f32.xlu0 %v4154
        %v4156 = vpop.xlane.xlu0 %4155
        %v4157 = vsel %vm1215, %v4091, 0.0
        %4158 = vadd.xlane.f32.xlu0 %v4157
        %v4159 = vpop.xlane.xlu0 %4158
        %v4160 = vsel %vm1215, %v4093, 0.0
        %4161 = vadd.xlane.f32.xlu0 %v4160
        %v4162 = vpop.xlane.xlu0 %4161
        %v4163 = vsel %vm1215, %v4095, 0.0
        %4164 = vadd.xlane.f32.xlu0 %v4163
        %v4165 = vpop.xlane.xlu0 %4164
        %v4166 = vsel %vm1215, %v4097, 0.0
        %4167 = vadd.xlane.f32.xlu0 %v4166
        %v4168 = vpop.xlane.xlu0 %4167
        %v4169 = vsel %vm1215, %v4099, 0.0
        %4170 = vadd.xlane.f32.xlu0 %v4169
        %v4171 = vpop.xlane.xlu0 %4170
        %v4172 = vsel %vm1215, %v4101, 0.0
        %4173 = vadd.xlane.f32.xlu0 %v4172
        %v4174 = vpop.xlane.xlu0 %4173
        %v4175 = vsel %vm1215, %v4103, 0.0
        %4176 = vadd.xlane.f32.xlu0 %v4175
        %v4177 = vpop.xlane.xlu0 %4176
        %v4178 = vsel %vm1215, %v4105, 0.0
        %4179 = vadd.xlane.f32.xlu0 %v4178
        %v4180 = vpop.xlane.xlu0 %4179
        %v4181 = vsel %vm1215, %v4107, 0.0
        %4182 = vadd.xlane.f32.xlu0 %v4181
        %v4183 = vpop.xlane.xlu0 %4182
        %v4184 = vsel %vm1215, %v4109, 0.0
        %4185 = vadd.xlane.f32.xlu0 %v4184
        %v4186 = vpop.xlane.xlu0 %4185
        %v4187 = vsel %vm1215, %v4111, 0.0
        %4188 = vadd.xlane.f32.xlu0 %v4187
        %v4189 = vpop.xlane.xlu0 %4188
        %v4190 = vsel %vm1215, %v4113, 0.0
        %4191 = vadd.xlane.f32.xlu0 %v4190
        %v4192 = vpop.xlane.xlu0 %4191
        %v4193 = vsel %vm1215, %v4115, 0.0
        %4194 = vadd.xlane.f32.xlu0 %v4193
        %v4195 = vpop.xlane.xlu0 %4194
        %v4196 = vsel %vm1215, %v4117, 0.0
        %4197 = vadd.xlane.f32.xlu0 %v4196
        %v4198 = vpop.xlane.xlu0 %4197
        %v4199 = vsel %vm1215, %v4119, 0.0
        %4200 = vadd.xlane.f32.xlu0 %v4199
        %v4201 = vpop.xlane.xlu0 %4200
        %v4202 = vsel %vm1215, %v4121, 0.0
        %4203 = vadd.xlane.f32.xlu0 %v4202
        %v4204 = vpop.xlane.xlu0 %4203
        %v4205 = vsel %vm1215, %v4123, 0.0
        %4206 = vadd.xlane.f32.xlu0 %v4205
        %v4207 = vpop.xlane.xlu0 %4206
        %v4208 = vrcp.pop %v4126
        %v4209 = vmul.f32 %v4069, %v4208
        %v4210 = vrcp.pop %v4129
        %v4211 = vmul.f32 %v4071, %v4210
        %v4212 = vrcp.pop %v4132
        %v4213 = vmul.f32 %v4073, %v4212
        %v4214 = vrcp.pop %v4135
        %v4215 = vmul.f32 %v4075, %v4214
        %v4216 = vrcp.pop %v4138
        %v4217 = vmul.f32 %v4077, %v4216
        %v4218 = vrcp.pop %v4141
        %v4219 = vmul.f32 %v4079, %v4218
        %v4220 = vrcp.pop %v4144
        %v4221 = vmul.f32 %v4081, %v4220
        %v4222 = vrcp.pop %v4147
        %v4223 = vmul.f32 %v4083, %v4222
        %v4224 = vrcp.pop %v4150
        %v4225 = vmul.f32 %v4085, %v4224
        %v4226 = vrcp.pop %v4153
        %v4227 = vmul.f32 %v4087, %v4226
        %v4228 = vrcp.pop %v4156
        %v4229 = vmul.f32 %v4089, %v4228
        %v4230 = vrcp.pop %v4159
        %v4231 = vmul.f32 %v4091, %v4230
        %v4232 = vrcp.pop %v4162
        %v4233 = vmul.f32 %v4093, %v4232
        %v4234 = vrcp.pop %v4165
        %v4235 = vmul.f32 %v4095, %v4234
        %v4236 = vrcp.pop %v4168
        %v4237 = vmul.f32 %v4097, %v4236
        %v4238 = vrcp.pop %v4171
        %v4239 = vmul.f32 %v4099, %v4238
        %v4240 = vrcp.pop %v4174
        %v4241 = vmul.f32 %v4101, %v4240
        %v4242 = vrcp.pop %v4177
        %v4243 = vmul.f32 %v4103, %v4242
        %v4244 = vrcp.pop %v4180
        %v4245 = vmul.f32 %v4105, %v4244
        %v4246 = vrcp.pop %v4183
        %v4247 = vmul.f32 %v4107, %v4246
        %v4248 = vrcp.pop %v4186
        %v4249 = vmul.f32 %v4109, %v4248
        %v4250 = vrcp.pop %v4189
        %v4251 = vmul.f32 %v4111, %v4250
        %v4252 = vrcp.pop %v4192
        %v4253 = vmul.f32 %v4113, %v4252
        %v4254 = vrcp.pop %v4195
        %v4255 = vmul.f32 %v4115, %v4254
        %v4256 = vrcp.pop %v4198
        %v4257 = vmul.f32 %v4117, %v4256
        %v4258 = vrcp.pop %v4201
        %v4259 = vmul.f32 %v4119, %v4258
        %v4260 = vrcp.pop %v4204
        %v4261 = vmul.f32 %v4121, %v4260
        %v4262 = vrcp.pop %v4207
        %v4263 = vmul.f32 %v4123, %v4262
        %v4265 = vsel %vm1215, %v4209, 0
        %v4268 = vsel %vm1215, %v4211, 0
        %v4271 = vsel %vm1215, %v4213, 0
        %v4274 = vsel %vm1215, %v4215, 0
        %v4277 = vsel %vm1215, %v4217, 0
        %v4280 = vsel %vm1215, %v4219, 0
        %v4283 = vsel %vm1215, %v4221, 0
        %v4286 = vsel %vm1215, %v4223, 0
        %v4289 = vsel %vm1215, %v4225, 0
        %v4292 = vsel %vm1215, %v4227, 0
        %v4295 = vsel %vm1215, %v4229, 0
        %v4298 = vsel %vm1215, %v4231, 0
        %v4301 = vsel %vm1215, %v4233, 0
        %v4304 = vsel %vm1215, %v4235, 0
        %v4307 = vsel %vm1215, %v4237, 0
        %v4310 = vsel %vm1215, %v4239, 0
        %v4313 = vsel %vm1215, %v4241, 0
        %v4316 = vsel %vm1215, %v4243, 0
        %v4319 = vsel %vm1215, %v4245, 0
        %v4322 = vsel %vm1215, %v4247, 0
        %v4325 = vsel %vm1215, %v4249, 0
        %v4328 = vsel %vm1215, %v4251, 0
        %v4331 = vsel %vm1215, %v4253, 0
        %v4334 = vsel %vm1215, %v4255, 0
        %v4337 = vsel %vm1215, %v4257, 0
        %v4340 = vsel %vm1215, %v4259, 0
        %v4343 = vsel %vm1215, %v4261, 0
        %v4346 = vsel %vm1215, %v4263, 0
        %4348 = vmatprep.subr.mxu0 0.0
        %4349 = vmatpush1.msra.mxu0 0.0
        %4350 = vmatprep.subr.mxu0 0.0
        %4351 = vmatpush1.msra.mxu0 0.0
        %4352 = vmatprep.subr.mxu0 0.0
        %4353 = vmatpush1.msra.mxu0 0.0
        %4354 = vmatprep.subr.mxu0 0.0
        %4355 = vmatpush1.msra.mxu0 0.0
        %4356 = vmatprep.subr.mxu0 0.0
        %4357 = vmatpush1.msra.mxu0 0.0
        %4358 = vmatprep.subr.mxu0 0.0
        %4359 = vmatpush1.msra.mxu0 0.0
        %4360 = vmatprep.subr.mxu0 0.0
        %4361 = vmatpush1.msra.mxu0 0.0
        %4362 = vmatprep.subr.mxu0 0.0
        %4363 = vmatpush1.msra.mxu0 0.0
        %4364 = vmatprep.subr.mxu0 0.0
        %4365 = vmatpush1.msra.mxu0 0.0
        %4366 = vmatprep.subr.mxu0 0.0
        %4367 = vmatpush1.msra.mxu0 0.0
        %4368 = vmatprep.subr.mxu0 0.0
        %4369 = vmatpush1.msra.mxu0 0.0
        %4370 = vmatprep.subr.mxu0 0.0
        %4371 = vmatpush1.msra.mxu0 0.0
        %4372 = vmatprep.subr.mxu0 0.0
        %4373 = vmatpush1.msra.mxu0 0.0
        %4374 = vmatprep.subr.mxu0 0.0
        %4375 = vmatpush1.msra.mxu0 0.0
        %4376 = vmatprep.subr.mxu0 0.0
        %4377 = vmatpush1.msra.mxu0 0.0
        %4378 = vmatprep.subr.mxu0 0.0
        %4379 = vmatpush1.msra.mxu0 %v3515
        %4380 = vmatprep.subr.mxu0 0.0
        %4381 = vmatpush2.msra.mxu0 0.0
        %4382 = vmatprep.subr.mxu0 0.0
        %4383 = vmatpush2.msra.mxu0 0.0
        %4384 = vmatprep.subr.mxu0 0.0
        %4385 = vmatpush2.msra.mxu0 0.0
        %4386 = vmatprep.subr.mxu0 0.0
        %4387 = vmatpush2.msra.mxu0 0.0
        %4388 = vmatprep.subr.mxu0 0.0
        %4389 = vmatpush2.msra.mxu0 0.0
        %4390 = vmatprep.subr.mxu0 0.0
        %4391 = vmatpush2.msra.mxu0 0.0
        %4392 = vmatprep.subr.mxu0 0.0
        %4393 = vmatpush2.msra.mxu0 0.0
        %4394 = vmatprep.subr.mxu0 0.0
        %4395 = vmatpush2.msra.mxu0 0.0
        %4396 = vmatprep.subr.mxu0 0.0
        %4397 = vmatpush2.msra.mxu0 0.0
        %4398 = vmatprep.subr.mxu0 0.0
        %4399 = vmatpush2.msra.mxu0 0.0
        %4400 = vmatprep.subr.mxu0 0.0
        %4401 = vmatpush2.msra.mxu0 0.0
        %4402 = vmatprep.subr.mxu0 0.0
        %4403 = vmatpush2.msra.mxu0 0.0
        %4404 = vmatprep.subr.mxu0 0.0
        %4405 = vmatpush2.msra.mxu0 0.0
        %4406 = vmatprep.subr.mxu0 0.0
        %4407 = vmatpush2.msra.mxu0 0.0
        %4408 = vmatprep.subr.mxu0 0.0
        %4409 = vmatpush2.msra.mxu0 0.0
        %4410 = vmatprep.subr.mxu0 0.0
        %4411 = vmatpush2.msra.mxu0 0.0
        %4412 = vmatprep.mubr.f32.mxu0 0.0
        %4413 = vmatmul.mubr.f32.gmra.mxu0 %v4265
        %v4414 = vpop.f32.mrf.mxu0
        %v4415 = vadd.f32 0.0, %v4414
        %v4416 = vpop.f32.mrf.mxu0
        %4417 = vmatprep.mubr.f32.mxu0 0.0
        %4418 = vmatmul.mubr.f32.gmra.mxu0 %v4268
        %v4419 = vpop.f32.mrf.mxu0
        %v4420 = vadd.f32 0.0, %v4419
        %v4421 = vpop.f32.mrf.mxu0
        %4422 = vmatprep.mubr.f32.mxu0 0.0
        %4423 = vmatmul.mubr.f32.gmra.mxu0 %v4271
        %v4424 = vpop.f32.mrf.mxu0
        %v4425 = vadd.f32 0.0, %v4424
        %v4426 = vpop.f32.mrf.mxu0
        %4427 = vmatprep.mubr.f32.mxu0 0.0
        %4428 = vmatmul.mubr.f32.gmra.mxu0 %v4274
        %v4429 = vpop.f32.mrf.mxu0
        %v4430 = vadd.f32 0.0, %v4429
        %v4431 = vpop.f32.mrf.mxu0
        %4432 = vmatprep.mubr.f32.mxu0 0.0
        %4433 = vmatmul.mubr.f32.gmra.mxu0 %v4277
        %v4434 = vpop.f32.mrf.mxu0
        %v4435 = vadd.f32 0.0, %v4434
        %v4436 = vpop.f32.mrf.mxu0
        %4437 = vmatprep.mubr.f32.mxu0 0.0
        %4438 = vmatmul.mubr.f32.gmra.mxu0 %v4280
        %v4439 = vpop.f32.mrf.mxu0
        %v4440 = vadd.f32 0.0, %v4439
        %v4441 = vpop.f32.mrf.mxu0
        %4442 = vmatprep.mubr.f32.mxu0 0.0
        %4443 = vmatmul.mubr.f32.gmra.mxu0 %v4283
        %v4444 = vpop.f32.mrf.mxu0
        %v4445 = vadd.f32 0.0, %v4444
        %v4446 = vpop.f32.mrf.mxu0
        %4447 = vmatprep.mubr.f32.mxu0 0.0
        %4448 = vmatmul.mubr.f32.gmra.mxu0 %v4286
        %v4449 = vpop.f32.mrf.mxu0
        %v4450 = vadd.f32 0.0, %v4449
        %v4451 = vpop.f32.mrf.mxu0
        %4452 = vmatprep.mubr.f32.mxu0 0.0
        %4453 = vmatmul.mubr.f32.gmra.mxu0 %v4289
        %v4454 = vpop.f32.mrf.mxu0
        %v4455 = vadd.f32 0.0, %v4454
        %v4456 = vpop.f32.mrf.mxu0
        %4457 = vmatprep.mubr.f32.mxu0 0.0
        %4458 = vmatmul.mubr.f32.gmra.mxu0 %v4292
        %v4459 = vpop.f32.mrf.mxu0
        %v4460 = vadd.f32 0.0, %v4459
        %v4461 = vpop.f32.mrf.mxu0
        %4462 = vmatprep.mubr.f32.mxu0 0.0
        %4463 = vmatmul.mubr.f32.gmra.mxu0 %v4295
        %v4464 = vpop.f32.mrf.mxu0
        %v4465 = vadd.f32 0.0, %v4464
        %v4466 = vpop.f32.mrf.mxu0
        %4467 = vmatprep.mubr.f32.mxu0 0.0
        %4468 = vmatmul.mubr.f32.gmra.mxu0 %v4298
        %v4469 = vpop.f32.mrf.mxu0
        %v4470 = vadd.f32 0.0, %v4469
        %v4471 = vpop.f32.mrf.mxu0
        %4472 = vmatprep.mubr.f32.mxu0 0.0
        %4473 = vmatmul.mubr.f32.gmra.mxu0 %v4301
        %v4474 = vpop.f32.mrf.mxu0
        %v4475 = vadd.f32 0.0, %v4474
        %v4476 = vpop.f32.mrf.mxu0
        %4477 = vmatprep.mubr.f32.mxu0 0.0
        %4478 = vmatmul.mubr.f32.gmra.mxu0 %v4304
        %v4479 = vpop.f32.mrf.mxu0
        %v4480 = vadd.f32 0.0, %v4479
        %v4481 = vpop.f32.mrf.mxu0
        %4482 = vmatprep.mubr.f32.mxu0 0.0
        %4483 = vmatmul.mubr.f32.gmra.mxu0 %v4307
        %v4484 = vpop.f32.mrf.mxu0
        %v4485 = vadd.f32 0.0, %v4484
        %v4486 = vpop.f32.mrf.mxu0
        %4487 = vmatprep.mubr.f32.mxu0 0.0
        %4488 = vmatmul.mubr.f32.gmra.mxu0 %v4310
        %v4489 = vpop.f32.mrf.mxu0
        %v4490 = vadd.f32 0.0, %v4489
        %v4491 = vpop.f32.mrf.mxu0
        %4492 = vmatprep.mubr.f32.mxu0 0.0
        %4493 = vmatmul.mubr.f32.gmra.mxu0 %v4313
        %v4494 = vpop.f32.mrf.mxu0
        %v4495 = vadd.f32 0.0, %v4494
        %v4496 = vpop.f32.mrf.mxu0
        %4497 = vmatprep.mubr.f32.mxu0 0.0
        %4498 = vmatmul.mubr.f32.gmra.mxu0 %v4316
        %v4499 = vpop.f32.mrf.mxu0
        %v4500 = vadd.f32 0.0, %v4499
        %v4501 = vpop.f32.mrf.mxu0
        %4502 = vmatprep.mubr.f32.mxu0 0.0
        %4503 = vmatmul.mubr.f32.gmra.mxu0 %v4319
        %v4504 = vpop.f32.mrf.mxu0
        %v4505 = vadd.f32 0.0, %v4504
        %v4506 = vpop.f32.mrf.mxu0
        %4507 = vmatprep.mubr.f32.mxu0 0.0
        %4508 = vmatmul.mubr.f32.gmra.mxu0 %v4322
        %v4509 = vpop.f32.mrf.mxu0
        %v4510 = vadd.f32 0.0, %v4509
        %v4511 = vpop.f32.mrf.mxu0
        %4512 = vmatprep.mubr.f32.mxu0 0.0
        %4513 = vmatmul.mubr.f32.gmra.mxu0 %v4325
        %v4514 = vpop.f32.mrf.mxu0
        %v4515 = vadd.f32 0.0, %v4514
        %v4516 = vpop.f32.mrf.mxu0
        %4517 = vmatprep.mubr.f32.mxu0 0.0
        %4518 = vmatmul.mubr.f32.gmra.mxu0 %v4328
        %v4519 = vpop.f32.mrf.mxu0
        %v4520 = vadd.f32 0.0, %v4519
        %v4521 = vpop.f32.mrf.mxu0
        %4522 = vmatprep.mubr.f32.mxu0 0.0
        %4523 = vmatmul.mubr.f32.gmra.mxu0 %v4331
        %v4524 = vpop.f32.mrf.mxu0
        %v4525 = vadd.f32 0.0, %v4524
        %v4526 = vpop.f32.mrf.mxu0
        %4527 = vmatprep.mubr.f32.mxu0 0.0
        %4528 = vmatmul.mubr.f32.gmra.mxu0 %v4334
        %v4529 = vpop.f32.mrf.mxu0
        %v4530 = vadd.f32 0.0, %v4529
        %v4531 = vpop.f32.mrf.mxu0
        %4532 = vmatprep.mubr.f32.mxu0 0.0
        %4533 = vmatmul.mubr.f32.gmra.mxu0 %v4337
        %v4534 = vpop.f32.mrf.mxu0
        %v4535 = vadd.f32 0.0, %v4534
        %v4536 = vpop.f32.mrf.mxu0
        %4537 = vmatprep.mubr.f32.mxu0 0.0
        %4538 = vmatmul.mubr.f32.gmra.mxu0 %v4340
        %v4539 = vpop.f32.mrf.mxu0
        %v4540 = vadd.f32 0.0, %v4539
        %v4541 = vpop.f32.mrf.mxu0
        %4542 = vmatprep.mubr.f32.mxu0 0.0
        %4543 = vmatmul.mubr.f32.gmra.mxu0 %v4343
        %v4544 = vpop.f32.mrf.mxu0
        %v4545 = vadd.f32 0.0, %v4544
        %v4546 = vpop.f32.mrf.mxu0
        %4547 = vmatprep.mubr.f32.mxu0 0.0
        %4548 = vmatmul.mubr.f32.gmra.mxu0 %v4346
        %v4549 = vpop.f32.mrf.mxu0
        %v4550 = vadd.f32 0.0, %v4549
        %v4551 = vpop.f32.mrf.mxu0
        %4552 = vdwg.mxu0
        %v4553 = vmul.f32 %v4415, %v742
        %v4554 = vmul.f32 %v4420, %v743
        %v4555 = vmul.f32 %v4425, %v744
        %v4556 = vmul.f32 %v4430, %v745
        %v4557 = vmul.f32 %v4435, %v746
        %v4558 = vmul.f32 %v4440, %v747
        %v4559 = vmul.f32 %v4445, %v748
        %v4560 = vmul.f32 %v4450, %v749
        %v4561 = vmul.f32 %v4455, %v750
        %v4562 = vmul.f32 %v4460, %v751
        %v4563 = vmul.f32 %v4465, %v752
        %v4564 = vmul.f32 %v4470, %v753
        %v4565 = vmul.f32 %v4475, %v754
        %v4566 = vmul.f32 %v4480, %v755
        %v4567 = vmul.f32 %v4485, %v756
        %v4568 = vmul.f32 %v4490, %v757
        %v4569 = vmul.f32 %v4495, %v758
        %v4570 = vmul.f32 %v4500, %v759
        %v4571 = vmul.f32 %v4505, %v760
        %v4572 = vmul.f32 %v4510, %v761
        %v4573 = vmul.f32 %v4515, %v762
        %v4574 = vmul.f32 %v4520, %v763
        %v4575 = vmul.f32 %v4525, %v764
        %v4576 = vmul.f32 %v4530, %v765
        %v4577 = vmul.f32 %v4535, %v766
        %v4578 = vmul.f32 %v4540, %v767
        %v4579 = vmul.f32 %v4545, %v768
        %v4580 = vmul.f32 %v4550, %v769
        %4581 = vmatprep.subr.mxu0 0.0
        %4582 = vmatpush1.msra.mxu0 %v4568
        %4583 = vmatprep.subr.mxu0 0.0
        %4584 = vmatpush1.msra.mxu0 %v4567
        %4585 = vmatprep.subr.mxu0 0.0
        %4586 = vmatpush1.msra.mxu0 %v4566
        %4587 = vmatprep.subr.mxu0 0.0
        %4588 = vmatpush1.msra.mxu0 %v4565
        %4589 = vmatprep.subr.mxu0 0.0
        %4590 = vmatpush1.msra.mxu0 %v4564
        %4591 = vmatprep.subr.mxu0 0.0
        %4592 = vmatpush1.msra.mxu0 %v4563
        %4593 = vmatprep.subr.mxu0 0.0
        %4594 = vmatpush1.msra.mxu0 %v4562
        %4595 = vmatprep.subr.mxu0 0.0
        %4596 = vmatpush1.msra.mxu0 %v4561
        %4597 = vmatprep.subr.mxu0 0.0
        %4598 = vmatpush1.msra.mxu0 %v4560
        %4599 = vmatprep.subr.mxu0 0.0
        %4600 = vmatpush1.msra.mxu0 %v4559
        %4601 = vmatprep.subr.mxu0 0.0
        %4602 = vmatpush1.msra.mxu0 %v4558
        %4603 = vmatprep.subr.mxu0 0.0
        %4604 = vmatpush1.msra.mxu0 %v4557
        %4605 = vmatprep.subr.mxu0 0.0
        %4606 = vmatpush1.msra.mxu0 %v4556
        %4607 = vmatprep.subr.mxu0 0.0
        %4608 = vmatpush1.msra.mxu0 %v4555
        %4609 = vmatprep.subr.mxu0 0.0
        %4610 = vmatpush1.msra.mxu0 %v4554
        %4611 = vmatprep.subr.mxu0 0.0
        %4612 = vmatpush1.msra.mxu0 %v4553
        %4613 = vmatprep.subr.mxu0 0.0
        %4614 = vmatpush2.msra.mxu0 0.0
        %4615 = vmatprep.subr.mxu0 0.0
        %4616 = vmatpush2.msra.mxu0 0.0
        %4617 = vmatprep.subr.mxu0 0.0
        %4618 = vmatpush2.msra.mxu0 0.0
        %4619 = vmatprep.subr.mxu0 0.0
        %4620 = vmatpush2.msra.mxu0 0.0
        %4621 = vmatprep.subr.mxu0 0.0
        %4622 = vmatpush2.msra.mxu0 %v4580
        %4623 = vmatprep.subr.mxu0 0.0
        %4624 = vmatpush2.msra.mxu0 %v4579
        %4625 = vmatprep.subr.mxu0 0.0
        %4626 = vmatpush2.msra.mxu0 %v4578
        %4627 = vmatprep.subr.mxu0 0.0
        %4628 = vmatpush2.msra.mxu0 %v4577
        %4629 = vmatprep.subr.mxu0 0.0
        %4630 = vmatpush2.msra.mxu0 %v4576
        %4631 = vmatprep.subr.mxu0 0.0
        %4632 = vmatpush2.msra.mxu0 %v4575
        %4633 = vmatprep.subr.mxu0 0.0
        %4634 = vmatpush2.msra.mxu0 %v4574
        %4635 = vmatprep.subr.mxu0 0.0
        %4636 = vmatpush2.msra.mxu0 %v4573
        %4637 = vmatprep.subr.mxu0 0.0
        %4638 = vmatpush2.msra.mxu0 %v4572
        %4639 = vmatprep.subr.mxu0 0.0
        %4640 = vmatpush2.msra.mxu0 %v4571
        %4641 = vmatprep.subr.mxu0 0.0
        %4642 = vmatpush2.msra.mxu0 %v4570
        %4643 = vmatprep.subr.mxu0 0.0
        %4644 = vmatpush2.msra.mxu0 %v4569
        %4645 = vmatprep.mubr.f32.mxu0 %v2365
        %4646 = vmatmul.mubr.f32.gmra.mxu0 %v798
        %v4647 = vpop.f32.mrf.mxu0
        %v4648 = vadd.f32 0.0, %v4647
        %v4649 = vpop.f32.mrf.mxu0
        %4650 = vdwg.mxu0
        %s4651 = scalar_lea.vmem [#allocation8], 128
        %v4652 = vld [vmem:[%s4651] sm:$0xff]
        %v4653 = vld [vmem:[%s4651 + $0x8] sm:$0xff]
        %v4654 = vld [vmem:[%s4651 + $0x10] sm:$0xff]
        %v4655 = vld [vmem:[%s4651 + $0x18] sm:$0xff]
        %v4656 = vld [vmem:[%s4651 + $0x20] sm:$0xff]
        %v4657 = vld [vmem:[%s4651 + $0x28] sm:$0xff]
        %v4658 = vld [vmem:[%s4651 + $0x30] sm:$0xff]
        %v4659 = vld [vmem:[%s4651 + $0x38] sm:$0xff]
        %v4660 = vld [vmem:[%s4651 + $0x40] sm:$0xff]
        %v4661 = vld [vmem:[%s4651 + $0x48] sm:$0xff]
        %v4662 = vld [vmem:[%s4651 + $0x50] sm:$0xff]
        %v4663 = vld [vmem:[%s4651 + $0x58] sm:$0xff]
        %v4664 = vld [vmem:[%s4651 + $0x60] sm:$0xff]
        %v4665 = vld [vmem:[%s4651 + $0x68] sm:$0xff]
        %v4666 = vld [vmem:[%s4651 + $0x70] sm:$0xff]
        %v4667 = vld [vmem:[%s4651 + $0x78] sm:$0xff]
        %s4668 = scalar_lea.vmem %s7, 1
        %v4669 = vld [vmem:[%s4668] sm:$0x1]
        %v4671 = vlaneseq
        %v4672 = vshrl.u32 %v4671, 7
        %v4673 = vsub.s32 0, %v4672
        %v4674 = vrot.slane %v4669, %v4673
        %4676 = vmatprep.subr.mxu0 0.0
        %4677 = vmatpush1.msra.mxu0 %v4667
        %4678 = vmatprep.subr.mxu0 0.0
        %4679 = vmatpush1.msra.mxu0 %v4666
        %4680 = vmatprep.subr.mxu0 0.0
        %4681 = vmatpush1.msra.mxu0 %v4665
        %4682 = vmatprep.subr.mxu0 0.0
        %4683 = vmatpush1.msra.mxu0 %v4664
        %4684 = vmatprep.subr.mxu0 0.0
        %4685 = vmatpush1.msra.mxu0 %v4663
        %4686 = vmatprep.subr.mxu0 0.0
        %4687 = vmatpush1.msra.mxu0 %v4662
        %4688 = vmatprep.subr.mxu0 0.0
        %4689 = vmatpush1.msra.mxu0 %v4661
        %4690 = vmatprep.subr.mxu0 0.0
        %4691 = vmatpush1.msra.mxu0 %v4660
        %4692 = vmatprep.subr.mxu0 0.0
        %4693 = vmatpush1.msra.mxu0 %v4659
        %4694 = vmatprep.subr.mxu0 0.0
        %4695 = vmatpush1.msra.mxu0 %v4658
        %4696 = vmatprep.subr.mxu0 0.0
        %4697 = vmatpush1.msra.mxu0 %v4657
        %4698 = vmatprep.subr.mxu0 0.0
        %4699 = vmatpush1.msra.mxu0 %v4656
        %4700 = vmatprep.subr.mxu0 0.0
        %4701 = vmatpush1.msra.mxu0 %v4655
        %4702 = vmatprep.subr.mxu0 0.0
        %4703 = vmatpush1.msra.mxu0 %v4654
        %4704 = vmatprep.subr.mxu0 0.0
        %4705 = vmatpush1.msra.mxu0 %v4653
        %4706 = vmatprep.subr.mxu0 0.0
        %4707 = vmatpush1.msra.mxu0 %v4652
        %4708 = vmatprep.subr.mxu0 0.0
        %4709 = vmatpush2.msra.mxu0 0.0
        %4710 = vmatprep.subr.mxu0 0.0
        %4711 = vmatpush2.msra.mxu0 0.0
        %4712 = vmatprep.subr.mxu0 0.0
        %4713 = vmatpush2.msra.mxu0 0.0
        %4714 = vmatprep.subr.mxu0 0.0
        %4715 = vmatpush2.msra.mxu0 0.0
        %4716 = vmatprep.subr.mxu0 0.0
        %4717 = vmatpush2.msra.mxu0 0.0
        %4718 = vmatprep.subr.mxu0 0.0
        %4719 = vmatpush2.msra.mxu0 0.0
        %4720 = vmatprep.subr.mxu0 0.0
        %4721 = vmatpush2.msra.mxu0 0.0
        %4722 = vmatprep.subr.mxu0 0.0
        %4723 = vmatpush2.msra.mxu0 0.0
        %4724 = vmatprep.subr.mxu0 0.0
        %4725 = vmatpush2.msra.mxu0 0.0
        %4726 = vmatprep.subr.mxu0 0.0
        %4727 = vmatpush2.msra.mxu0 0.0
        %4728 = vmatprep.subr.mxu0 0.0
        %4729 = vmatpush2.msra.mxu0 0.0
        %4730 = vmatprep.subr.mxu0 0.0
        %4731 = vmatpush2.msra.mxu0 0.0
        %4732 = vmatprep.subr.mxu0 0.0
        %4733 = vmatpush2.msra.mxu0 0.0
        %4734 = vmatprep.subr.mxu0 0.0
        %4735 = vmatpush2.msra.mxu0 0.0
        %4736 = vmatprep.subr.mxu0 0.0
        %4737 = vmatpush2.msra.mxu0 0.0
        %4738 = vmatprep.subr.mxu0 0.0
        %4739 = vmatpush2.msra.mxu0 0.0
        %4740 = vmatprep.mubr.f32.mxu0 0.0
        %4741 = vmatmul.mubr.f32.gmra.mxu0 %v4648
        %v4742 = vpop.f32.mrf.mxu0
        %v4743 = vadd.f32 %v4674, %v4742
        %v4744 = vpop.f32.mrf.mxu0
        %4745 = vdwg.mxu0
        %v4746 = vadd.f32 %v3309, %v4743
        %s4747 = scalar_lea.vmem %s8, 2
        %v4748 = vld [vmem:[%s4747] sm:$0x1]
        %s4749 = scalar_lea.vmem %s9, 2
        %v4750 = vld [vmem:[%s4749] sm:$0x1]
        %4751 = vadd.xlane.f32.xlu0 %v4746
        %v4752 = vpop.xlane.xlu0 %4751
        %v4753 = vmul.f32 %v4752, 0.008928572
        %v4754 = vsub.f32 %v4746, %v4753
        %v4755 = vmul.f32 %v4754, %v2541
        %v4756 = vmul.f32 %v4755, %v4755
        %4757 = vadd.xlane.f32.xlu0 %v4756
        %v4758 = vpop.xlane.xlu0 %4757
        %v4759 = vmul.f32 %v4758, 0.008928572
        %v4760 = vadd.f32 %v4759, 1e-05
        %v4761 = vrsqrt.pop %v4760
        %v4762 = vmul.f32 %v4755, %v4761
        %v4764 = vlaneseq
        %v4765 = vshrl.u32 %v4764, 7
        %v4766 = vsub.s32 0, %v4765
        %v4767 = vrot.slane %v4748, %v4766
        %v4769 = vmul.f32 %v4762, %v4767
        %v4771 = vlaneseq
        %v4772 = vshrl.u32 %v4771, 7
        %v4773 = vsub.s32 0, %v4772
        %v4774 = vrot.slane %v4750, %v4773
        %v4776 = vadd.f32 %v4769, %v4774
        %v4777 = vxor.u32 %v4776, 2147483648
        %v4778 = vmul.f32 %v4777, 1.442695
        %v4779 = vpow.pop %v4778
        %v4780 = vadd.f32 %v4779, 1.0
        %v4781 = vrcp.pop %v4780
        %v4782 = vmul.f32 1.0, %v4781
        %v4783 = vmul.f32 %v4776, %v4782
        %s4784 = scalar_lea.vmem [#allocation10], 128
        %v4785 = vld [vmem:[%s4784] sm:$0xff]
        %v4786 = vld [vmem:[%s4784 + $0x8] sm:$0xff]
        %v4787 = vld [vmem:[%s4784 + $0x10] sm:$0xff]
        %v4788 = vld [vmem:[%s4784 + $0x18] sm:$0xff]
        %v4789 = vld [vmem:[%s4784 + $0x20] sm:$0xff]
        %v4790 = vld [vmem:[%s4784 + $0x28] sm:$0xff]
        %v4791 = vld [vmem:[%s4784 + $0x30] sm:$0xff]
        %v4792 = vld [vmem:[%s4784 + $0x38] sm:$0xff]
        %v4793 = vld [vmem:[%s4784 + $0x40] sm:$0xff]
        %v4794 = vld [vmem:[%s4784 + $0x48] sm:$0xff]
        %v4795 = vld [vmem:[%s4784 + $0x50] sm:$0xff]
        %v4796 = vld [vmem:[%s4784 + $0x58] sm:$0xff]
        %v4797 = vld [vmem:[%s4784 + $0x60] sm:$0xff]
        %v4798 = vld [vmem:[%s4784 + $0x68] sm:$0xff]
        %v4799 = vld [vmem:[%s4784 + $0x70] sm:$0xff]
        %v4800 = vld [vmem:[%s4784 + $0x78] sm:$0xff]
        %vm4801 = vcmp.ge.f32.partialorder %v4776, -2.2
        %vm4802 = vcmp.lt.f32.partialorder %v4776, -1.8
        %vm4803 = vmand %vm4801, %vm4802
        %v4804 = vsel %vm4803, 1, 0
        %v4805 = vcvt.s32.f32 %v4804
        %vm4806 = vcmp.ge.f32.partialorder %v4776, -1.8
        %vm4807 = vcmp.lt.f32.partialorder %v4776, -1.4
        %vm4808 = vmand %vm4806, %vm4807
        %v4809 = vsel %vm4808, 1, 0
        %v4810 = vcvt.s32.f32 %v4809
        %vm4811 = vcmp.ge.f32.partialorder %v4776, -1.4
        %vm4812 = vcmp.lt.f32.partialorder %v4776, -1.0
        %vm4813 = vmand %vm4811, %vm4812
        %v4814 = vsel %vm4813, 1, 0
        %v4815 = vcvt.s32.f32 %v4814
        %vm4816 = vcmp.ge.f32.partialorder %v4776, -1.0
        %vm4817 = vcmp.lt.f32.partialorder %v4776, -0.6
        %vm4818 = vmand %vm4816, %vm4817
        %v4819 = vsel %vm4818, 1, 0
        %v4820 = vcvt.s32.f32 %v4819
        %vm4821 = vcmp.ge.f32.partialorder %v4776, -0.6
        %vm4822 = vcmp.lt.f32.partialorder %v4776, -0.2
        %vm4823 = vmand %vm4821, %vm4822
        %v4824 = vsel %vm4823, 1, 0
        %v4825 = vcvt.s32.f32 %v4824
        %vm4826 = vcmp.ge.f32.partialorder %v4776, -0.2
        %vm4827 = vcmp.lt.f32.partialorder %v4776, 0.2
        %vm4828 = vmand %vm4826, %vm4827
        %v4829 = vsel %vm4828, 1, 0
        %v4830 = vcvt.s32.f32 %v4829
        %vm4831 = vcmp.ge.f32.partialorder %v4776, 0.2
        %vm4832 = vcmp.lt.f32.partialorder %v4776, 0.6
        %vm4833 = vmand %vm4831, %vm4832
        %v4834 = vsel %vm4833, 1, 0
        %v4835 = vcvt.s32.f32 %v4834
        %vm4836 = vcmp.ge.f32.partialorder %v4776, 0.6
        %vm4837 = vcmp.lt.f32.partialorder %v4776, 1.0
        %vm4838 = vmand %vm4836, %vm4837
        %v4839 = vsel %vm4838, 1, 0
        %v4840 = vcvt.s32.f32 %v4839
        %vm4841 = vcmp.ge.f32.partialorder %v4776, 1.0
        %vm4842 = vcmp.lt.f32.partialorder %v4776, 1.4
        %vm4843 = vmand %vm4841, %vm4842
        %v4844 = vsel %vm4843, 1, 0
        %v4845 = vcvt.s32.f32 %v4844
        %vm4846 = vcmp.ge.f32.partialorder %v4776, 1.4
        %vm4847 = vcmp.lt.f32.partialorder %v4776, 1.8
        %vm4848 = vmand %vm4846, %vm4847
        %v4849 = vsel %vm4848, 1, 0
        %v4850 = vcvt.s32.f32 %v4849
        %vm4851 = vcmp.ge.f32.partialorder %v4776, 1.8
        %vm4852 = vcmp.lt.f32.partialorder %v4776, 2.2
        %vm4853 = vmand %vm4851, %vm4852
        %v4854 = vsel %vm4853, 1, 0
        %v4855 = vcvt.s32.f32 %v4854
        %v4856 = vsub.f32 %v4776, -2.2
        %v4857 = vmul.f32 %v4856, %v2644
        %v4858 = vmul.f32 %v4857, %v4805
        %v4859 = vsub.f32 -1.4, %v4776
        %v4860 = vmul.f32 %v4859, %v2644
        %v4861 = vmul.f32 %v4860, %v4810
        %v4862 = vadd.f32 %v4858, %v4861
        %v4863 = vsub.f32 %v4776, -1.8
        %v4864 = vmul.f32 %v4863, %v2644
        %v4865 = vmul.f32 %v4864, %v4810
        %v4866 = vsub.f32 -1.0, %v4776
        %v4867 = vmul.f32 %v4866, %v2644
        %v4868 = vmul.f32 %v4867, %v4815
        %v4869 = vadd.f32 %v4865, %v4868
        %v4870 = vsub.f32 %v4776, -1.4
        %v4871 = vmul.f32 %v4870, %v2644
        %v4872 = vmul.f32 %v4871, %v4815
        %v4873 = vsub.f32 -0.6, %v4776
        %v4874 = vmul.f32 %v4873, %v2644
        %v4875 = vmul.f32 %v4874, %v4820
        %v4876 = vadd.f32 %v4872, %v4875
        %v4877 = vsub.f32 %v4776, -1.0
        %v4878 = vmul.f32 %v4877, %v2644
        %v4879 = vmul.f32 %v4878, %v4820
        %v4880 = vsub.f32 -0.2, %v4776
        %v4881 = vmul.f32 %v4880, %v2644
        %v4882 = vmul.f32 %v4881, %v4825
        %v4883 = vadd.f32 %v4879, %v4882
        %v4884 = vsub.f32 %v4776, -0.6
        %v4885 = vmul.f32 %v4884, %v2644
        %v4886 = vmul.f32 %v4885, %v4825
        %v4887 = vsub.f32 0.2, %v4776
        %v4888 = vmul.f32 %v4887, %v2644
        %v4889 = vmul.f32 %v4888, %v4830
        %v4890 = vadd.f32 %v4886, %v4889
        %v4891 = vsub.f32 %v4776, -0.2
        %v4892 = vmul.f32 %v4891, %v2644
        %v4893 = vmul.f32 %v4892, %v4830
        %v4894 = vsub.f32 0.6, %v4776
        %v4895 = vmul.f32 %v4894, %v2644
        %v4896 = vmul.f32 %v4895, %v4835
        %v4897 = vadd.f32 %v4893, %v4896
        %v4898 = vsub.f32 %v4776, 0.2
        %v4899 = vmul.f32 %v4898, %v2644
        %v4900 = vmul.f32 %v4899, %v4835
        %v4901 = vsub.f32 1.0, %v4776
        %v4902 = vmul.f32 %v4901, %v2644
        %v4903 = vmul.f32 %v4902, %v4840
        %v4904 = vadd.f32 %v4900, %v4903
        %v4905 = vsub.f32 %v4776, 0.6
        %v4906 = vmul.f32 %v4905, %v2644
        %v4907 = vmul.f32 %v4906, %v4840
        %v4908 = vsub.f32 1.4, %v4776
        %v4909 = vmul.f32 %v4908, %v2644
        %v4910 = vmul.f32 %v4909, %v4845
        %v4911 = vadd.f32 %v4907, %v4910
        %v4912 = vsub.f32 %v4776, 1.0
        %v4913 = vmul.f32 %v4912, %v2644
        %v4914 = vmul.f32 %v4913, %v4845
        %v4915 = vsub.f32 1.8, %v4776
        %v4916 = vmul.f32 %v4915, %v2644
        %v4917 = vmul.f32 %v4916, %v4850
        %v4918 = vadd.f32 %v4914, %v4917
        %v4919 = vsub.f32 %v4776, 1.4
        %v4920 = vmul.f32 %v4919, %v2644
        %v4921 = vmul.f32 %v4920, %v4850
        %v4922 = vsub.f32 2.2, %v4776
        %v4923 = vmul.f32 %v4922, %v2644
        %v4924 = vmul.f32 %v4923, %v4855
        %v4925 = vadd.f32 %v4921, %v4924
        %v4926 = vmul.f32 %v4856, %v2714
        %v4927 = vmul.f32 %v4926, %v4862
        %v4928 = vmul.f32 %v4866, %v2714
        %v4929 = vmul.f32 %v4928, %v4869
        %v4930 = vadd.f32 %v4927, %v4929
        %v4931 = vmul.f32 %v4863, %v2714
        %v4932 = vmul.f32 %v4931, %v4869
        %v4933 = vmul.f32 %v4873, %v2714
        %v4934 = vmul.f32 %v4933, %v4876
        %v4935 = vadd.f32 %v4932, %v4934
        %v4936 = vmul.f32 %v4870, %v2714
        %v4937 = vmul.f32 %v4936, %v4876
        %v4938 = vmul.f32 %v4880, %v2714
        %v4939 = vmul.f32 %v4938, %v4883
        %v4940 = vadd.f32 %v4937, %v4939
        %v4941 = vmul.f32 %v4877, %v2714
        %v4942 = vmul.f32 %v4941, %v4883
        %v4943 = vmul.f32 %v4887, %v2714
        %v4944 = vmul.f32 %v4943, %v4890
        %v4945 = vadd.f32 %v4942, %v4944
        %v4946 = vmul.f32 %v4884, %v2714
        %v4947 = vmul.f32 %v4946, %v4890
        %v4948 = vmul.f32 %v4894, %v2714
        %v4949 = vmul.f32 %v4948, %v4897
        %v4950 = vadd.f32 %v4947, %v4949
        %v4951 = vmul.f32 %v4891, %v2714
        %v4952 = vmul.f32 %v4951, %v4897
        %v4953 = vmul.f32 %v4901, %v2714
        %v4954 = vmul.f32 %v4953, %v4904
        %v4955 = vadd.f32 %v4952, %v4954
        %v4956 = vmul.f32 %v4898, %v2714
        %v4957 = vmul.f32 %v4956, %v4904
        %v4958 = vmul.f32 %v4908, %v2714
        %v4959 = vmul.f32 %v4958, %v4911
        %v4960 = vadd.f32 %v4957, %v4959
        %v4961 = vmul.f32 %v4905, %v2714
        %v4962 = vmul.f32 %v4961, %v4911
        %v4963 = vmul.f32 %v4915, %v2714
        %v4964 = vmul.f32 %v4963, %v4918
        %v4965 = vadd.f32 %v4962, %v4964
        %v4966 = vmul.f32 %v4912, %v2714
        %v4967 = vmul.f32 %v4966, %v4918
        %v4968 = vmul.f32 %v4922, %v2714
        %v4969 = vmul.f32 %v4968, %v4925
        %v4970 = vadd.f32 %v4967, %v4969
        %v4971 = vmul.f32 %v4856, %v2760
        %v4972 = vmul.f32 %v4971, %v4930
        %v4973 = vmul.f32 %v4873, %v2760
        %v4974 = vmul.f32 %v4973, %v4935
        %v4975 = vadd.f32 %v4972, %v4974
        %v4976 = vmul.f32 %v4863, %v2760
        %v4977 = vmul.f32 %v4976, %v4935
        %v4978 = vmul.f32 %v4880, %v2760
        %v4979 = vmul.f32 %v4978, %v4940
        %v4980 = vadd.f32 %v4977, %v4979
        %v4981 = vmul.f32 %v4870, %v2760
        %v4982 = vmul.f32 %v4981, %v4940
        %v4983 = vmul.f32 %v4887, %v2760
        %v4984 = vmul.f32 %v4983, %v4945
        %v4985 = vadd.f32 %v4982, %v4984
        %v4986 = vmul.f32 %v4877, %v2760
        %v4987 = vmul.f32 %v4986, %v4945
        %v4988 = vmul.f32 %v4894, %v2760
        %v4989 = vmul.f32 %v4988, %v4950
        %v4990 = vadd.f32 %v4987, %v4989
        %v4991 = vmul.f32 %v4884, %v2760
        %v4992 = vmul.f32 %v4991, %v4950
        %v4993 = vmul.f32 %v4901, %v2760
        %v4994 = vmul.f32 %v4993, %v4955
        %v4995 = vadd.f32 %v4992, %v4994
        %v4996 = vmul.f32 %v4891, %v2760
        %v4997 = vmul.f32 %v4996, %v4955
        %v4998 = vmul.f32 %v4908, %v2760
        %v4999 = vmul.f32 %v4998, %v4960
        %v5000 = vadd.f32 %v4997, %v4999
        %v5001 = vmul.f32 %v4898, %v2760
        %v5002 = vmul.f32 %v5001, %v4960
        %v5003 = vmul.f32 %v4915, %v2760
        %v5004 = vmul.f32 %v5003, %v4965
        %v5005 = vadd.f32 %v5002, %v5004
        %v5006 = vmul.f32 %v4905, %v2760
        %v5007 = vmul.f32 %v5006, %v4965
        %v5008 = vmul.f32 %v4922, %v2760
        %v5009 = vmul.f32 %v5008, %v4970
        %v5010 = vadd.f32 %v5007, %v5009
        %s5011 = scalar_lea.vmem [#allocation11], 1024
        %v5012 = vld [vmem:[%s5011] sm:$0xff]
        %v5013 = vld [vmem:[%s5011 + $0x8] sm:$0xff]
        %v5014 = vld [vmem:[%s5011 + $0x10] sm:$0xff]
        %v5015 = vld [vmem:[%s5011 + $0x18] sm:$0xff]
        %v5016 = vld [vmem:[%s5011 + $0x20] sm:$0xff]
        %v5017 = vld [vmem:[%s5011 + $0x28] sm:$0xff]
        %v5018 = vld [vmem:[%s5011 + $0x30] sm:$0xff]
        %v5019 = vld [vmem:[%s5011 + $0x38] sm:$0xff]
        %v5020 = vld [vmem:[%s5011 + $0x40] sm:$0xff]
        %v5021 = vld [vmem:[%s5011 + $0x48] sm:$0xff]
        %v5022 = vld [vmem:[%s5011 + $0x50] sm:$0xff]
        %v5023 = vld [vmem:[%s5011 + $0x58] sm:$0xff]
        %v5024 = vld [vmem:[%s5011 + $0x60] sm:$0xff]
        %v5025 = vld [vmem:[%s5011 + $0x68] sm:$0xff]
        %v5026 = vld [vmem:[%s5011 + $0x70] sm:$0xff]
        %v5027 = vld [vmem:[%s5011 + $0x78] sm:$0xff]
        %v5028 = vld [vmem:[%s5011 + $0x80] sm:$0xff]
        %v5029 = vld [vmem:[%s5011 + $0x88] sm:$0xff]
        %v5030 = vld [vmem:[%s5011 + $0x90] sm:$0xff]
        %v5031 = vld [vmem:[%s5011 + $0x98] sm:$0xff]
        %v5032 = vld [vmem:[%s5011 + $0xa0] sm:$0xff]
        %v5033 = vld [vmem:[%s5011 + $0xa8] sm:$0xff]
        %v5034 = vld [vmem:[%s5011 + $0xb0] sm:$0xff]
        %v5035 = vld [vmem:[%s5011 + $0xb8] sm:$0xff]
        %v5036 = vld [vmem:[%s5011 + $0xc0] sm:$0xff]
        %v5037 = vld [vmem:[%s5011 + $0xc8] sm:$0xff]
        %v5038 = vld [vmem:[%s5011 + $0xd0] sm:$0xff]
        %v5039 = vld [vmem:[%s5011 + $0xd8] sm:$0xff]
        %v5040 = vld [vmem:[%s5011 + $0xe0] sm:$0xff]
        %v5041 = vld [vmem:[%s5011 + $0xe8] sm:$0xff]
        %v5042 = vld [vmem:[%s5011 + $0xf0] sm:$0xff]
        %v5043 = vld [vmem:[%s5011 + $0xf8] sm:$0xff]
        %v5044 = vld [vmem:[%s5011 + $0x100] sm:$0xff]
        %v5045 = vld [vmem:[%s5011 + $0x108] sm:$0xff]
        %v5046 = vld [vmem:[%s5011 + $0x110] sm:$0xff]
        %v5047 = vld [vmem:[%s5011 + $0x118] sm:$0xff]
        %v5048 = vld [vmem:[%s5011 + $0x120] sm:$0xff]
        %v5049 = vld [vmem:[%s5011 + $0x128] sm:$0xff]
        %v5050 = vld [vmem:[%s5011 + $0x130] sm:$0xff]
        %v5051 = vld [vmem:[%s5011 + $0x138] sm:$0xff]
        %v5052 = vld [vmem:[%s5011 + $0x140] sm:$0xff]
        %v5053 = vld [vmem:[%s5011 + $0x148] sm:$0xff]
        %v5054 = vld [vmem:[%s5011 + $0x150] sm:$0xff]
        %v5055 = vld [vmem:[%s5011 + $0x158] sm:$0xff]
        %v5056 = vld [vmem:[%s5011 + $0x160] sm:$0xff]
        %v5057 = vld [vmem:[%s5011 + $0x168] sm:$0xff]
        %v5058 = vld [vmem:[%s5011 + $0x170] sm:$0xff]
        %v5059 = vld [vmem:[%s5011 + $0x178] sm:$0xff]
        %v5060 = vld [vmem:[%s5011 + $0x180] sm:$0xff]
        %v5061 = vld [vmem:[%s5011 + $0x188] sm:$0xff]
        %v5062 = vld [vmem:[%s5011 + $0x190] sm:$0xff]
        %v5063 = vld [vmem:[%s5011 + $0x198] sm:$0xff]
        %v5064 = vld [vmem:[%s5011 + $0x1a0] sm:$0xff]
        %v5065 = vld [vmem:[%s5011 + $0x1a8] sm:$0xff]
        %v5066 = vld [vmem:[%s5011 + $0x1b0] sm:$0xff]
        %v5067 = vld [vmem:[%s5011 + $0x1b8] sm:$0xff]
        %v5068 = vld [vmem:[%s5011 + $0x1c0] sm:$0xff]
        %v5069 = vld [vmem:[%s5011 + $0x1c8] sm:$0xff]
        %v5070 = vld [vmem:[%s5011 + $0x1d0] sm:$0xff]
        %v5071 = vld [vmem:[%s5011 + $0x1d8] sm:$0xff]
        %v5072 = vld [vmem:[%s5011 + $0x1e0] sm:$0xff]
        %v5073 = vld [vmem:[%s5011 + $0x1e8] sm:$0xff]
        %v5074 = vld [vmem:[%s5011 + $0x1f0] sm:$0xff]
        %v5075 = vld [vmem:[%s5011 + $0x1f8] sm:$0xff]
        %v5076 = vld [vmem:[%s5011 + $0x200] sm:$0xff]
        %v5077 = vld [vmem:[%s5011 + $0x208] sm:$0xff]
        %v5078 = vld [vmem:[%s5011 + $0x210] sm:$0xff]
        %v5079 = vld [vmem:[%s5011 + $0x218] sm:$0xff]
        %v5080 = vld [vmem:[%s5011 + $0x220] sm:$0xff]
        %v5081 = vld [vmem:[%s5011 + $0x228] sm:$0xff]
        %v5082 = vld [vmem:[%s5011 + $0x230] sm:$0xff]
        %v5083 = vld [vmem:[%s5011 + $0x238] sm:$0xff]
        %v5084 = vld [vmem:[%s5011 + $0x240] sm:$0xff]
        %v5085 = vld [vmem:[%s5011 + $0x248] sm:$0xff]
        %v5086 = vld [vmem:[%s5011 + $0x250] sm:$0xff]
        %v5087 = vld [vmem:[%s5011 + $0x258] sm:$0xff]
        %v5088 = vld [vmem:[%s5011 + $0x260] sm:$0xff]
        %v5089 = vld [vmem:[%s5011 + $0x268] sm:$0xff]
        %v5090 = vld [vmem:[%s5011 + $0x270] sm:$0xff]
        %v5091 = vld [vmem:[%s5011 + $0x278] sm:$0xff]
        %v5092 = vld [vmem:[%s5011 + $0x280] sm:$0xff]
        %v5093 = vld [vmem:[%s5011 + $0x288] sm:$0xff]
        %v5094 = vld [vmem:[%s5011 + $0x290] sm:$0xff]
        %v5095 = vld [vmem:[%s5011 + $0x298] sm:$0xff]
        %v5096 = vld [vmem:[%s5011 + $0x2a0] sm:$0xff]
        %v5097 = vld [vmem:[%s5011 + $0x2a8] sm:$0xff]
        %v5098 = vld [vmem:[%s5011 + $0x2b0] sm:$0xff]
        %v5099 = vld [vmem:[%s5011 + $0x2b8] sm:$0xff]
        %v5100 = vld [vmem:[%s5011 + $0x2c0] sm:$0xff]
        %v5101 = vld [vmem:[%s5011 + $0x2c8] sm:$0xff]
        %v5102 = vld [vmem:[%s5011 + $0x2d0] sm:$0xff]
        %v5103 = vld [vmem:[%s5011 + $0x2d8] sm:$0xff]
        %v5104 = vld [vmem:[%s5011 + $0x2e0] sm:$0xff]
        %v5105 = vld [vmem:[%s5011 + $0x2e8] sm:$0xff]
        %v5106 = vld [vmem:[%s5011 + $0x2f0] sm:$0xff]
        %v5107 = vld [vmem:[%s5011 + $0x2f8] sm:$0xff]
        %v5108 = vld [vmem:[%s5011 + $0x300] sm:$0xff]
        %v5109 = vld [vmem:[%s5011 + $0x308] sm:$0xff]
        %v5110 = vld [vmem:[%s5011 + $0x310] sm:$0xff]
        %v5111 = vld [vmem:[%s5011 + $0x318] sm:$0xff]
        %v5112 = vld [vmem:[%s5011 + $0x320] sm:$0xff]
        %v5113 = vld [vmem:[%s5011 + $0x328] sm:$0xff]
        %v5114 = vld [vmem:[%s5011 + $0x330] sm:$0xff]
        %v5115 = vld [vmem:[%s5011 + $0x338] sm:$0xff]
        %v5116 = vld [vmem:[%s5011 + $0x340] sm:$0xff]
        %v5117 = vld [vmem:[%s5011 + $0x348] sm:$0xff]
        %v5118 = vld [vmem:[%s5011 + $0x350] sm:$0xff]
        %v5119 = vld [vmem:[%s5011 + $0x358] sm:$0xff]
        %v5120 = vld [vmem:[%s5011 + $0x360] sm:$0xff]
        %v5121 = vld [vmem:[%s5011 + $0x368] sm:$0xff]
        %v5122 = vld [vmem:[%s5011 + $0x370] sm:$0xff]
        %v5123 = vld [vmem:[%s5011 + $0x378] sm:$0xff]
        %v5124 = vld [vmem:[%s5011 + $0x380] sm:$0xff]
        %v5125 = vld [vmem:[%s5011 + $0x388] sm:$0xff]
        %v5126 = vld [vmem:[%s5011 + $0x390] sm:$0xff]
        %v5127 = vld [vmem:[%s5011 + $0x398] sm:$0xff]
        %v5128 = vld [vmem:[%s5011 + $0x3a0] sm:$0xff]
        %v5129 = vld [vmem:[%s5011 + $0x3a8] sm:$0xff]
        %v5130 = vld [vmem:[%s5011 + $0x3b0] sm:$0xff]
        %v5131 = vld [vmem:[%s5011 + $0x3b8] sm:$0xff]
        %v5132 = vld [vmem:[%s5011 + $0x3c0] sm:$0xff]
        %v5133 = vld [vmem:[%s5011 + $0x3c8] sm:$0xff]
        %v5134 = vld [vmem:[%s5011 + $0x3d0] sm:$0xff]
        %v5135 = vld [vmem:[%s5011 + $0x3d8] sm:$0xff]
        %v5136 = vld [vmem:[%s5011 + $0x3e0] sm:$0xff]
        %v5137 = vld [vmem:[%s5011 + $0x3e8] sm:$0xff]
        %v5138 = vld [vmem:[%s5011 + $0x3f0] sm:$0xff]
        %v5139 = vld [vmem:[%s5011 + $0x3f8] sm:$0xff]
        %5140 = vmatprep.subr.mxu0 0.0
        %5141 = vmatpush1.msra.mxu0 %v5027
        %5142 = vmatprep.subr.mxu0 0.0
        %5143 = vmatpush1.msra.mxu0 %v5026
        %5144 = vmatprep.subr.mxu0 0.0
        %5145 = vmatpush1.msra.mxu0 %v5025
        %5146 = vmatprep.subr.mxu0 0.0
        %5147 = vmatpush1.msra.mxu0 %v5024
        %5148 = vmatprep.subr.mxu0 0.0
        %5149 = vmatpush1.msra.mxu0 %v5023
        %5150 = vmatprep.subr.mxu0 0.0
        %5151 = vmatpush1.msra.mxu0 %v5022
        %5152 = vmatprep.subr.mxu0 0.0
        %5153 = vmatpush1.msra.mxu0 %v5021
        %5154 = vmatprep.subr.mxu0 0.0
        %5155 = vmatpush1.msra.mxu0 %v5020
        %5156 = vmatprep.subr.mxu0 0.0
        %5157 = vmatpush1.msra.mxu0 %v5019
        %5158 = vmatprep.subr.mxu0 0.0
        %5159 = vmatpush1.msra.mxu0 %v5018
        %5160 = vmatprep.subr.mxu0 0.0
        %5161 = vmatpush1.msra.mxu0 %v5017
        %5162 = vmatprep.subr.mxu0 0.0
        %5163 = vmatpush1.msra.mxu0 %v5016
        %5164 = vmatprep.subr.mxu0 0.0
        %5165 = vmatpush1.msra.mxu0 %v5015
        %5166 = vmatprep.subr.mxu0 0.0
        %5167 = vmatpush1.msra.mxu0 %v5014
        %5168 = vmatprep.subr.mxu0 0.0
        %5169 = vmatpush1.msra.mxu0 %v5013
        %5170 = vmatprep.subr.mxu0 0.0
        %5171 = vmatpush1.msra.mxu0 %v5012
        %5172 = vmatprep.subr.mxu0 0.0
        %5173 = vmatpush2.msra.mxu0 %v5043
        %5174 = vmatprep.subr.mxu0 0.0
        %5175 = vmatpush2.msra.mxu0 %v5042
        %5176 = vmatprep.subr.mxu0 0.0
        %5177 = vmatpush2.msra.mxu0 %v5041
        %5178 = vmatprep.subr.mxu0 0.0
        %5179 = vmatpush2.msra.mxu0 %v5040
        %5180 = vmatprep.subr.mxu0 0.0
        %5181 = vmatpush2.msra.mxu0 %v5039
        %5182 = vmatprep.subr.mxu0 0.0
        %5183 = vmatpush2.msra.mxu0 %v5038
        %5184 = vmatprep.subr.mxu0 0.0
        %5185 = vmatpush2.msra.mxu0 %v5037
        %5186 = vmatprep.subr.mxu0 0.0
        %5187 = vmatpush2.msra.mxu0 %v5036
        %5188 = vmatprep.subr.mxu0 0.0
        %5189 = vmatpush2.msra.mxu0 %v5035
        %5190 = vmatprep.subr.mxu0 0.0
        %5191 = vmatpush2.msra.mxu0 %v5034
        %5192 = vmatprep.subr.mxu0 0.0
        %5193 = vmatpush2.msra.mxu0 %v5033
        %5194 = vmatprep.subr.mxu0 0.0
        %5195 = vmatpush2.msra.mxu0 %v5032
        %5196 = vmatprep.subr.mxu0 0.0
        %5197 = vmatpush2.msra.mxu0 %v5031
        %5198 = vmatprep.subr.mxu0 0.0
        %5199 = vmatpush2.msra.mxu0 %v5030
        %5200 = vmatprep.subr.mxu0 0.0
        %5201 = vmatpush2.msra.mxu0 %v5029
        %5202 = vmatprep.subr.mxu0 0.0
        %5203 = vmatpush2.msra.mxu0 %v5028
        %5204 = vmatprep.mubr.f32.mxu0 %v4980
        %5205 = vmatmul.mubr.f32.gmra.mxu0 %v4975
        %v5206 = vpop.f32.mrf.mxu0
        %v5207 = vadd.f32 0.0, %v5206
        %v5208 = vpop.f32.mrf.mxu0
        %5209 = vdwg.mxu0
        %5210 = vmatprep.subr.mxu0 0.0
        %5211 = vmatpush1.msra.mxu0 %v5059
        %5212 = vmatprep.subr.mxu0 0.0
        %5213 = vmatpush1.msra.mxu0 %v5058
        %5214 = vmatprep.subr.mxu0 0.0
        %5215 = vmatpush1.msra.mxu0 %v5057
        %5216 = vmatprep.subr.mxu0 0.0
        %5217 = vmatpush1.msra.mxu0 %v5056
        %5218 = vmatprep.subr.mxu0 0.0
        %5219 = vmatpush1.msra.mxu0 %v5055
        %5220 = vmatprep.subr.mxu0 0.0
        %5221 = vmatpush1.msra.mxu0 %v5054
        %5222 = vmatprep.subr.mxu0 0.0
        %5223 = vmatpush1.msra.mxu0 %v5053
        %5224 = vmatprep.subr.mxu0 0.0
        %5225 = vmatpush1.msra.mxu0 %v5052
        %5226 = vmatprep.subr.mxu0 0.0
        %5227 = vmatpush1.msra.mxu0 %v5051
        %5228 = vmatprep.subr.mxu0 0.0
        %5229 = vmatpush1.msra.mxu0 %v5050
        %5230 = vmatprep.subr.mxu0 0.0
        %5231 = vmatpush1.msra.mxu0 %v5049
        %5232 = vmatprep.subr.mxu0 0.0
        %5233 = vmatpush1.msra.mxu0 %v5048
        %5234 = vmatprep.subr.mxu0 0.0
        %5235 = vmatpush1.msra.mxu0 %v5047
        %5236 = vmatprep.subr.mxu0 0.0
        %5237 = vmatpush1.msra.mxu0 %v5046
        %5238 = vmatprep.subr.mxu0 0.0
        %5239 = vmatpush1.msra.mxu0 %v5045
        %5240 = vmatprep.subr.mxu0 0.0
        %5241 = vmatpush1.msra.mxu0 %v5044
        %5242 = vmatprep.subr.mxu0 0.0
        %5243 = vmatpush2.msra.mxu0 %v5075
        %5244 = vmatprep.subr.mxu0 0.0
        %5245 = vmatpush2.msra.mxu0 %v5074
        %5246 = vmatprep.subr.mxu0 0.0
        %5247 = vmatpush2.msra.mxu0 %v5073
        %5248 = vmatprep.subr.mxu0 0.0
        %5249 = vmatpush2.msra.mxu0 %v5072
        %5250 = vmatprep.subr.mxu0 0.0
        %5251 = vmatpush2.msra.mxu0 %v5071
        %5252 = vmatprep.subr.mxu0 0.0
        %5253 = vmatpush2.msra.mxu0 %v5070
        %5254 = vmatprep.subr.mxu0 0.0
        %5255 = vmatpush2.msra.mxu0 %v5069
        %5256 = vmatprep.subr.mxu0 0.0
        %5257 = vmatpush2.msra.mxu0 %v5068
        %5258 = vmatprep.subr.mxu0 0.0
        %5259 = vmatpush2.msra.mxu0 %v5067
        %5260 = vmatprep.subr.mxu0 0.0
        %5261 = vmatpush2.msra.mxu0 %v5066
        %5262 = vmatprep.subr.mxu0 0.0
        %5263 = vmatpush2.msra.mxu0 %v5065
        %5264 = vmatprep.subr.mxu0 0.0
        %5265 = vmatpush2.msra.mxu0 %v5064
        %5266 = vmatprep.subr.mxu0 0.0
        %5267 = vmatpush2.msra.mxu0 %v5063
        %5268 = vmatprep.subr.mxu0 0.0
        %5269 = vmatpush2.msra.mxu0 %v5062
        %5270 = vmatprep.subr.mxu0 0.0
        %5271 = vmatpush2.msra.mxu0 %v5061
        %5272 = vmatprep.subr.mxu0 0.0
        %5273 = vmatpush2.msra.mxu0 %v5060
        %5274 = vmatprep.mubr.f32.mxu0 %v4990
        %5275 = vmatmul.mubr.f32.gmra.mxu0 %v4985
        %v5276 = vpop.f32.mrf.mxu0
        %v5277 = vadd.f32 %v5207, %v5276
        %v5278 = vpop.f32.mrf.mxu0
        %5279 = vdwg.mxu0
        %5280 = vmatprep.subr.mxu0 0.0
        %5281 = vmatpush1.msra.mxu0 %v5091
        %5282 = vmatprep.subr.mxu0 0.0
        %5283 = vmatpush1.msra.mxu0 %v5090
        %5284 = vmatprep.subr.mxu0 0.0
        %5285 = vmatpush1.msra.mxu0 %v5089
        %5286 = vmatprep.subr.mxu0 0.0
        %5287 = vmatpush1.msra.mxu0 %v5088
        %5288 = vmatprep.subr.mxu0 0.0
        %5289 = vmatpush1.msra.mxu0 %v5087
        %5290 = vmatprep.subr.mxu0 0.0
        %5291 = vmatpush1.msra.mxu0 %v5086
        %5292 = vmatprep.subr.mxu0 0.0
        %5293 = vmatpush1.msra.mxu0 %v5085
        %5294 = vmatprep.subr.mxu0 0.0
        %5295 = vmatpush1.msra.mxu0 %v5084
        %5296 = vmatprep.subr.mxu0 0.0
        %5297 = vmatpush1.msra.mxu0 %v5083
        %5298 = vmatprep.subr.mxu0 0.0
        %5299 = vmatpush1.msra.mxu0 %v5082
        %5300 = vmatprep.subr.mxu0 0.0
        %5301 = vmatpush1.msra.mxu0 %v5081
        %5302 = vmatprep.subr.mxu0 0.0
        %5303 = vmatpush1.msra.mxu0 %v5080
        %5304 = vmatprep.subr.mxu0 0.0
        %5305 = vmatpush1.msra.mxu0 %v5079
        %5306 = vmatprep.subr.mxu0 0.0
        %5307 = vmatpush1.msra.mxu0 %v5078
        %5308 = vmatprep.subr.mxu0 0.0
        %5309 = vmatpush1.msra.mxu0 %v5077
        %5310 = vmatprep.subr.mxu0 0.0
        %5311 = vmatpush1.msra.mxu0 %v5076
        %5312 = vmatprep.subr.mxu0 0.0
        %5313 = vmatpush2.msra.mxu0 %v5107
        %5314 = vmatprep.subr.mxu0 0.0
        %5315 = vmatpush2.msra.mxu0 %v5106
        %5316 = vmatprep.subr.mxu0 0.0
        %5317 = vmatpush2.msra.mxu0 %v5105
        %5318 = vmatprep.subr.mxu0 0.0
        %5319 = vmatpush2.msra.mxu0 %v5104
        %5320 = vmatprep.subr.mxu0 0.0
        %5321 = vmatpush2.msra.mxu0 %v5103
        %5322 = vmatprep.subr.mxu0 0.0
        %5323 = vmatpush2.msra.mxu0 %v5102
        %5324 = vmatprep.subr.mxu0 0.0
        %5325 = vmatpush2.msra.mxu0 %v5101
        %5326 = vmatprep.subr.mxu0 0.0
        %5327 = vmatpush2.msra.mxu0 %v5100
        %5328 = vmatprep.subr.mxu0 0.0
        %5329 = vmatpush2.msra.mxu0 %v5099
        %5330 = vmatprep.subr.mxu0 0.0
        %5331 = vmatpush2.msra.mxu0 %v5098
        %5332 = vmatprep.subr.mxu0 0.0
        %5333 = vmatpush2.msra.mxu0 %v5097
        %5334 = vmatprep.subr.mxu0 0.0
        %5335 = vmatpush2.msra.mxu0 %v5096
        %5336 = vmatprep.subr.mxu0 0.0
        %5337 = vmatpush2.msra.mxu0 %v5095
        %5338 = vmatprep.subr.mxu0 0.0
        %5339 = vmatpush2.msra.mxu0 %v5094
        %5340 = vmatprep.subr.mxu0 0.0
        %5341 = vmatpush2.msra.mxu0 %v5093
        %5342 = vmatprep.subr.mxu0 0.0
        %5343 = vmatpush2.msra.mxu0 %v5092
        %5344 = vmatprep.mubr.f32.mxu0 %v5000
        %5345 = vmatmul.mubr.f32.gmra.mxu0 %v4995
        %v5346 = vpop.f32.mrf.mxu0
        %v5347 = vadd.f32 %v5277, %v5346
        %v5348 = vpop.f32.mrf.mxu0
        %5349 = vdwg.mxu0
        %5350 = vmatprep.subr.mxu0 0.0
        %5351 = vmatpush1.msra.mxu0 %v5123
        %5352 = vmatprep.subr.mxu0 0.0
        %5353 = vmatpush1.msra.mxu0 %v5122
        %5354 = vmatprep.subr.mxu0 0.0
        %5355 = vmatpush1.msra.mxu0 %v5121
        %5356 = vmatprep.subr.mxu0 0.0
        %5357 = vmatpush1.msra.mxu0 %v5120
        %5358 = vmatprep.subr.mxu0 0.0
        %5359 = vmatpush1.msra.mxu0 %v5119
        %5360 = vmatprep.subr.mxu0 0.0
        %5361 = vmatpush1.msra.mxu0 %v5118
        %5362 = vmatprep.subr.mxu0 0.0
        %5363 = vmatpush1.msra.mxu0 %v5117
        %5364 = vmatprep.subr.mxu0 0.0
        %5365 = vmatpush1.msra.mxu0 %v5116
        %5366 = vmatprep.subr.mxu0 0.0
        %5367 = vmatpush1.msra.mxu0 %v5115
        %5368 = vmatprep.subr.mxu0 0.0
        %5369 = vmatpush1.msra.mxu0 %v5114
        %5370 = vmatprep.subr.mxu0 0.0
        %5371 = vmatpush1.msra.mxu0 %v5113
        %5372 = vmatprep.subr.mxu0 0.0
        %5373 = vmatpush1.msra.mxu0 %v5112
        %5374 = vmatprep.subr.mxu0 0.0
        %5375 = vmatpush1.msra.mxu0 %v5111
        %5376 = vmatprep.subr.mxu0 0.0
        %5377 = vmatpush1.msra.mxu0 %v5110
        %5378 = vmatprep.subr.mxu0 0.0
        %5379 = vmatpush1.msra.mxu0 %v5109
        %5380 = vmatprep.subr.mxu0 0.0
        %5381 = vmatpush1.msra.mxu0 %v5108
        %5382 = vmatprep.subr.mxu0 0.0
        %5383 = vmatpush2.msra.mxu0 %v5139
        %5384 = vmatprep.subr.mxu0 0.0
        %5385 = vmatpush2.msra.mxu0 %v5138
        %5386 = vmatprep.subr.mxu0 0.0
        %5387 = vmatpush2.msra.mxu0 %v5137
        %5388 = vmatprep.subr.mxu0 0.0
        %5389 = vmatpush2.msra.mxu0 %v5136
        %5390 = vmatprep.subr.mxu0 0.0
        %5391 = vmatpush2.msra.mxu0 %v5135
        %5392 = vmatprep.subr.mxu0 0.0
        %5393 = vmatpush2.msra.mxu0 %v5134
        %5394 = vmatprep.subr.mxu0 0.0
        %5395 = vmatpush2.msra.mxu0 %v5133
        %5396 = vmatprep.subr.mxu0 0.0
        %5397 = vmatpush2.msra.mxu0 %v5132
        %5398 = vmatprep.subr.mxu0 0.0
        %5399 = vmatpush2.msra.mxu0 %v5131
        %5400 = vmatprep.subr.mxu0 0.0
        %5401 = vmatpush2.msra.mxu0 %v5130
        %5402 = vmatprep.subr.mxu0 0.0
        %5403 = vmatpush2.msra.mxu0 %v5129
        %5404 = vmatprep.subr.mxu0 0.0
        %5405 = vmatpush2.msra.mxu0 %v5128
        %5406 = vmatprep.subr.mxu0 0.0
        %5407 = vmatpush2.msra.mxu0 %v5127
        %5408 = vmatprep.subr.mxu0 0.0
        %5409 = vmatpush2.msra.mxu0 %v5126
        %5410 = vmatprep.subr.mxu0 0.0
        %5411 = vmatpush2.msra.mxu0 %v5125
        %5412 = vmatprep.subr.mxu0 0.0
        %5413 = vmatpush2.msra.mxu0 %v5124
        %5414 = vmatprep.mubr.f32.mxu0 %v5010
        %5415 = vmatmul.mubr.f32.gmra.mxu0 %v5005
        %v5416 = vpop.f32.mrf.mxu0
        %v5417 = vadd.f32 %v5347, %v5416
        %v5418 = vpop.f32.mrf.mxu0
        %5419 = vdwg.mxu0
        %5420 = vmatprep.subr.mxu0 0.0
        %5421 = vmatpush1.msra.mxu0 %v4800
        %5422 = vmatprep.subr.mxu0 0.0
        %5423 = vmatpush1.msra.mxu0 %v4799
        %5424 = vmatprep.subr.mxu0 0.0
        %5425 = vmatpush1.msra.mxu0 %v4798
        %5426 = vmatprep.subr.mxu0 0.0
        %5427 = vmatpush1.msra.mxu0 %v4797
        %5428 = vmatprep.subr.mxu0 0.0
        %5429 = vmatpush1.msra.mxu0 %v4796
        %5430 = vmatprep.subr.mxu0 0.0
        %5431 = vmatpush1.msra.mxu0 %v4795
        %5432 = vmatprep.subr.mxu0 0.0
        %5433 = vmatpush1.msra.mxu0 %v4794
        %5434 = vmatprep.subr.mxu0 0.0
        %5435 = vmatpush1.msra.mxu0 %v4793
        %5436 = vmatprep.subr.mxu0 0.0
        %5437 = vmatpush1.msra.mxu0 %v4792
        %5438 = vmatprep.subr.mxu0 0.0
        %5439 = vmatpush1.msra.mxu0 %v4791
        %5440 = vmatprep.subr.mxu0 0.0
        %5441 = vmatpush1.msra.mxu0 %v4790
        %5442 = vmatprep.subr.mxu0 0.0
        %5443 = vmatpush1.msra.mxu0 %v4789
        %5444 = vmatprep.subr.mxu0 0.0
        %5445 = vmatpush1.msra.mxu0 %v4788
        %5446 = vmatprep.subr.mxu0 0.0
        %5447 = vmatpush1.msra.mxu0 %v4787
        %5448 = vmatprep.subr.mxu0 0.0
        %5449 = vmatpush1.msra.mxu0 %v4786
        %5450 = vmatprep.subr.mxu0 0.0
        %5451 = vmatpush1.msra.mxu0 %v4785
        %5452 = vmatprep.subr.mxu0 0.0
        %5453 = vmatpush2.msra.mxu0 0.0
        %5454 = vmatprep.subr.mxu0 0.0
        %5455 = vmatpush2.msra.mxu0 0.0
        %5456 = vmatprep.subr.mxu0 0.0
        %5457 = vmatpush2.msra.mxu0 0.0
        %5458 = vmatprep.subr.mxu0 0.0
        %5459 = vmatpush2.msra.mxu0 0.0
        %5460 = vmatprep.subr.mxu0 0.0
        %5461 = vmatpush2.msra.mxu0 0.0
        %5462 = vmatprep.subr.mxu0 0.0
        %5463 = vmatpush2.msra.mxu0 0.0
        %5464 = vmatprep.subr.mxu0 0.0
        %5465 = vmatpush2.msra.mxu0 0.0
        %5466 = vmatprep.subr.mxu0 0.0
        %5467 = vmatpush2.msra.mxu0 0.0
        %5468 = vmatprep.subr.mxu0 0.0
        %5469 = vmatpush2.msra.mxu0 0.0
        %5470 = vmatprep.subr.mxu0 0.0
        %5471 = vmatpush2.msra.mxu0 0.0
        %5472 = vmatprep.subr.mxu0 0.0
        %5473 = vmatpush2.msra.mxu0 0.0
        %5474 = vmatprep.subr.mxu0 0.0
        %5475 = vmatpush2.msra.mxu0 0.0
        %5476 = vmatprep.subr.mxu0 0.0
        %5477 = vmatpush2.msra.mxu0 0.0
        %5478 = vmatprep.subr.mxu0 0.0
        %5479 = vmatpush2.msra.mxu0 0.0
        %5480 = vmatprep.subr.mxu0 0.0
        %5481 = vmatpush2.msra.mxu0 0.0
        %5482 = vmatprep.subr.mxu0 0.0
        %5483 = vmatpush2.msra.mxu0 0.0
        %5484 = vmatprep.mubr.f32.mxu0 0.0
        %5485 = vmatmul.mubr.f32.gmra.mxu0 %v4783
        %v5486 = vpop.f32.mrf.mxu0
        %v5487 = vadd.f32 %v5417, %v5486
        %v5488 = vpop.f32.mrf.mxu0
        %5489 = vdwg.mxu0
        %v5490 = vadd.f32 %v4776, %v5487
        %s5491 = scalar_lea.vmem %s8, 3
        %v5492 = vld [vmem:[%s5491] sm:$0x1]
        %s5493 = scalar_lea.vmem %s9, 3
        %v5494 = vld [vmem:[%s5493] sm:$0x1]
        %5495 = vadd.xlane.f32.xlu0 %v5490
        %v5496 = vpop.xlane.xlu0 %5495
        %v5497 = vmul.f32 %v5496, 0.008928572
        %v5498 = vsub.f32 %v5490, %v5497
        %v5499 = vmul.f32 %v5498, %v2541
        %v5500 = vmul.f32 %v5499, %v5499
        %5501 = vadd.xlane.f32.xlu0 %v5500
        %v5502 = vpop.xlane.xlu0 %5501
        %v5503 = vmul.f32 %v5502, 0.008928572
        %v5504 = vadd.f32 %v5503, 1e-05
        %v5505 = vrsqrt.pop %v5504
        %v5506 = vmul.f32 %v5499, %v5505
        %v5508 = vlaneseq
        %v5509 = vshrl.u32 %v5508, 7
        %v5510 = vsub.s32 0, %v5509
        %v5511 = vrot.slane %v5492, %v5510
        %v5513 = vmul.f32 %v5506, %v5511
        %v5515 = vlaneseq
        %v5516 = vshrl.u32 %v5515, 7
        %v5517 = vsub.s32 0, %v5516
        %v5518 = vrot.slane %v5494, %v5517
        %v5520 = vadd.f32 %v5513, %v5518
        %v5521 = vld [vmem:[%s18] sm:$0x1]
        %v5523 = vsel %vm1215, %v5521, 0
        %5525 = vmatprep.subr.mxu0 0.0
        %5526 = vmatpush1.msra.mxu0 0.0
        %5527 = vmatprep.subr.mxu0 0.0
        %5528 = vmatpush1.msra.mxu0 0.0
        %5529 = vmatprep.subr.mxu0 0.0
        %5530 = vmatpush1.msra.mxu0 0.0
        %5531 = vmatprep.subr.mxu0 0.0
        %5532 = vmatpush1.msra.mxu0 0.0
        %5533 = vmatprep.subr.mxu0 0.0
        %5534 = vmatpush1.msra.mxu0 0.0
        %5535 = vmatprep.subr.mxu0 0.0
        %5536 = vmatpush1.msra.mxu0 0.0
        %5537 = vmatprep.subr.mxu0 0.0
        %5538 = vmatpush1.msra.mxu0 0.0
        %5539 = vmatprep.subr.mxu0 0.0
        %5540 = vmatpush1.msra.mxu0 0.0
        %5541 = vmatprep.subr.mxu0 0.0
        %5542 = vmatpush1.msra.mxu0 0.0
        %5543 = vmatprep.subr.mxu0 0.0
        %5544 = vmatpush1.msra.mxu0 0.0
        %5545 = vmatprep.subr.mxu0 0.0
        %5546 = vmatpush1.msra.mxu0 0.0
        %5547 = vmatprep.subr.mxu0 0.0
        %5548 = vmatpush1.msra.mxu0 0.0
        %5549 = vmatprep.subr.mxu0 0.0
        %5550 = vmatpush1.msra.mxu0 0.0
        %5551 = vmatprep.subr.mxu0 0.0
        %5552 = vmatpush1.msra.mxu0 0.0
        %5553 = vmatprep.subr.mxu0 0.0
        %5554 = vmatpush1.msra.mxu0 0.0
        %5555 = vmatprep.subr.mxu0 0.0
        %5556 = vmatpush1.msra.mxu0 %v5520
        %5557 = vmatprep.subr.mxu0 0.0
        %5558 = vmatpush2.msra.mxu0 0.0
        %5559 = vmatprep.subr.mxu0 0.0
        %5560 = vmatpush2.msra.mxu0 0.0
        %5561 = vmatprep.subr.mxu0 0.0
        %5562 = vmatpush2.msra.mxu0 0.0
        %5563 = vmatprep.subr.mxu0 0.0
        %5564 = vmatpush2.msra.mxu0 0.0
        %5565 = vmatprep.subr.mxu0 0.0
        %5566 = vmatpush2.msra.mxu0 0.0
        %5567 = vmatprep.subr.mxu0 0.0
        %5568 = vmatpush2.msra.mxu0 0.0
        %5569 = vmatprep.subr.mxu0 0.0
        %5570 = vmatpush2.msra.mxu0 0.0
        %5571 = vmatprep.subr.mxu0 0.0
        %5572 = vmatpush2.msra.mxu0 0.0
        %5573 = vmatprep.subr.mxu0 0.0
        %5574 = vmatpush2.msra.mxu0 0.0
        %5575 = vmatprep.subr.mxu0 0.0
        %5576 = vmatpush2.msra.mxu0 0.0
        %5577 = vmatprep.subr.mxu0 0.0
        %5578 = vmatpush2.msra.mxu0 0.0
        %5579 = vmatprep.subr.mxu0 0.0
        %5580 = vmatpush2.msra.mxu0 0.0
        %5581 = vmatprep.subr.mxu0 0.0
        %5582 = vmatpush2.msra.mxu0 0.0
        %5583 = vmatprep.subr.mxu0 0.0
        %5584 = vmatpush2.msra.mxu0 0.0
        %5585 = vmatprep.subr.mxu0 0.0
        %5586 = vmatpush2.msra.mxu0 0.0
        %5587 = vmatprep.subr.mxu0 0.0
        %5588 = vmatpush2.msra.mxu0 0.0
        %5589 = vmatprep.mubr.f32.mxu0 0.0
        %5590 = vmatmul.mubr.f32.gmra.mxu0 %v5523
        %v5591 = vpop.f32.mrf.mxu0
        %v5592 = vadd.f32 0.0, %v5591
        %v5593 = vpop.f32.mrf.mxu0
        %5594 = vdwg.mxu0
        %v5595 = vld [vmem:[#allocation13] sm:$0xff]
        %v5596 = vld [vmem:[#allocation13 + $0x8] sm:$0xff]
        %v5597 = vld [vmem:[#allocation13 + $0x10] sm:$0xff]
        %v5598 = vld [vmem:[#allocation13 + $0x18] sm:$0xff]
        %v5599 = vld [vmem:[#allocation13 + $0x20] sm:$0xff]
        %v5600 = vld [vmem:[#allocation13 + $0x28] sm:$0xff]
        %v5601 = vld [vmem:[#allocation13 + $0x30] sm:$0xff]
        %v5602 = vld [vmem:[#allocation13 + $0x38] sm:$0xff]
        %v5603 = vld [vmem:[#allocation13 + $0x40] sm:$0xff]
        %v5604 = vld [vmem:[#allocation13 + $0x48] sm:$0xff]
        %v5605 = vld [vmem:[#allocation13 + $0x50] sm:$0xff]
        %v5606 = vld [vmem:[#allocation13 + $0x58] sm:$0xff]
        %v5607 = vld [vmem:[#allocation13 + $0x60] sm:$0xff]
        %v5608 = vld [vmem:[#allocation13 + $0x68] sm:$0xff]
        %v5609 = vld [vmem:[#allocation13 + $0x70] sm:$0xff]
        %v5610 = vld [vmem:[#allocation13 + $0x78] sm:$0xff]
        %v5611 = vld [vmem:[#allocation14] sm:$0x1]
        %5612 = vmatprep.subr.mxu0 0.0
        %5613 = vmatpush1.msra.mxu0 %v5610
        %5614 = vmatprep.subr.mxu0 0.0
        %5615 = vmatpush1.msra.mxu0 %v5609
        %5616 = vmatprep.subr.mxu0 0.0
        %5617 = vmatpush1.msra.mxu0 %v5608
        %5618 = vmatprep.subr.mxu0 0.0
        %5619 = vmatpush1.msra.mxu0 %v5607
        %5620 = vmatprep.subr.mxu0 0.0
        %5621 = vmatpush1.msra.mxu0 %v5606
        %5622 = vmatprep.subr.mxu0 0.0
        %5623 = vmatpush1.msra.mxu0 %v5605
        %5624 = vmatprep.subr.mxu0 0.0
        %5625 = vmatpush1.msra.mxu0 %v5604
        %5626 = vmatprep.subr.mxu0 0.0
        %5627 = vmatpush1.msra.mxu0 %v5603
        %5628 = vmatprep.subr.mxu0 0.0
        %5629 = vmatpush1.msra.mxu0 %v5602
        %5630 = vmatprep.subr.mxu0 0.0
        %5631 = vmatpush1.msra.mxu0 %v5601
        %5632 = vmatprep.subr.mxu0 0.0
        %5633 = vmatpush1.msra.mxu0 %v5600
        %5634 = vmatprep.subr.mxu0 0.0
        %5635 = vmatpush1.msra.mxu0 %v5599
        %5636 = vmatprep.subr.mxu0 0.0
        %5637 = vmatpush1.msra.mxu0 %v5598
        %5638 = vmatprep.subr.mxu0 0.0
        %5639 = vmatpush1.msra.mxu0 %v5597
        %5640 = vmatprep.subr.mxu0 0.0
        %5641 = vmatpush1.msra.mxu0 %v5596
        %5642 = vmatprep.subr.mxu0 0.0
        %5643 = vmatpush1.msra.mxu0 %v5595
        %5644 = vmatprep.subr.mxu0 0.0
        %5645 = vmatpush2.msra.mxu0 0.0
        %5646 = vmatprep.subr.mxu0 0.0
        %5647 = vmatpush2.msra.mxu0 0.0
        %5648 = vmatprep.subr.mxu0 0.0
        %5649 = vmatpush2.msra.mxu0 0.0
        %5650 = vmatprep.subr.mxu0 0.0
        %5651 = vmatpush2.msra.mxu0 0.0
        %5652 = vmatprep.subr.mxu0 0.0
        %5653 = vmatpush2.msra.mxu0 0.0
        %5654 = vmatprep.subr.mxu0 0.0
        %5655 = vmatpush2.msra.mxu0 0.0
        %5656 = vmatprep.subr.mxu0 0.0
        %5657 = vmatpush2.msra.mxu0 0.0
        %5658 = vmatprep.subr.mxu0 0.0
        %5659 = vmatpush2.msra.mxu0 0.0
        %5660 = vmatprep.subr.mxu0 0.0
        %5661 = vmatpush2.msra.mxu0 0.0
        %5662 = vmatprep.subr.mxu0 0.0
        %5663 = vmatpush2.msra.mxu0 0.0
        %5664 = vmatprep.subr.mxu0 0.0
        %5665 = vmatpush2.msra.mxu0 0.0
        %5666 = vmatprep.subr.mxu0 0.0
        %5667 = vmatpush2.msra.mxu0 0.0
        %5668 = vmatprep.subr.mxu0 0.0
        %5669 = vmatpush2.msra.mxu0 0.0
        %5670 = vmatprep.subr.mxu0 0.0
        %5671 = vmatpush2.msra.mxu0 0.0
        %5672 = vmatprep.subr.mxu0 0.0
        %5673 = vmatpush2.msra.mxu0 0.0
        %5674 = vmatprep.subr.mxu0 0.0
        %5675 = vmatpush2.msra.mxu0 0.0
        %5676 = vmatprep.mubr.f32.mxu0 0.0
        %5677 = vmatmul.mubr.f32.gmra.mxu0 %v5592
        %v5678 = vpop.f32.mrf.mxu0
        %v5679 = vadd.f32 %v5611, %v5678
        %v5680 = vpop.f32.mrf.mxu0
        %5681 = vdwg.mxu0
        %5682 = vst [vmem:[%s736] sm:$0x1] %v5679
        %s5683 = sand.u32 %s451, 1
        %s5684 = scalar_lea.sflag [#allocation4], %s5683
        %s5685 = sand.u32 %s451, 1
        %s5686 = scalar_lea.vmem [#allocation19], %s5685
        // Predicated region
        $region137: #{forward.1} parent=95 // pred_check
          %p5687 = pneg %p461
        $region138: #{forward.1} parent=95 // pred_check_branch
          %5689 = sbr.rel (%p5687) target = $region140
        $region139: #{forward.1} parent=95 // pred_region
          %s5691 = ssub.s32 16, 16
          %5692 = vsyncadd %s5684, %s5691
          %s5693 = smul.addr %s39, 16
          %s5694 = scalar_lea.hbm %s19, %s5693
          %s5696 = sshll.u32 %s5686, 4
          %s5697 = int_to_ptr.vmem [resolvable:$true] %s5696
          %5699 = dma.vmem_to_hbm [thread:$0]  %s5697, 16, %s5694, %s5684
        $region140: #{forward.1} parent=95 // pred_fallthru
          _
      $region96: #{forward.1} parent=5 // pred_fallthru
        _
      %p5700 = scmp.le.s32.totalorder 2, %s34
      // Predicated region
      $region141: #{forward.1} parent=5 // pred_check
        %p5701 = pneg %p5700
      $region142: #{forward.1} parent=5 // pred_check_branch
        %5703 = sbr.rel (%p5701) target = $region144
      $region143: #{forward.1} parent=5 // pred_region
        %s5704 = ssub.s32 %s34, 2
        // Predicated region
        $region145: #{forward.1} parent=143 // pred_check
          %p5705 = pneg %p467
        $region146: #{forward.1} parent=143 // pred_check_branch
          %5707 = sbr.rel (%p5705) target = $region148
        $region147: #{forward.1} parent=143 // pred_region
          %s5708 = sand.u32 %s452, 1
          %s5709 = scalar_lea.sflag [#allocation4], %s5708
          %s5710 = sand.u32 %s452, 1
          %s5711 = scalar_lea.vmem [#allocation19], %s5710
          %5712 = dma.done %s5709, 16
        $region148: #{forward.1} parent=143 // pred_fallthru
          _
      $region144: #{forward.1} parent=5 // pred_fallthru
        _
    $region6: #{forward.1} parent=1 // loop_footer
      %s38 = sadd.s32 1, %s34
    $region7: #{forward.1} parent=1 // loop_footer_branch
      %33 = sbr.rel target = $region3
    $region8: #{forward.1} parent=1 // loop_exit
      _
    %5713 = vsyncpa [#allocation3], 1
    %s5714 = scalar_lea.sflag [#allocation3], 1
    %5715 = vsyncpa %s5714, 1
    %5716 = vsyncpa [#allocation6], 1
    %5717 = vsyncpa [#allocation9], 1
    %5718 = vsyncpa [#allocation12], 1
    %5719 = vsyncpa [#allocation15], 1
    %5720 = vsyncpa [#allocation18], 1
    %5721 = vsyncpa [#allocation4], 1
    %s5722 = scalar_lea.sflag [#allocation4], 1
    %5723 = vsyncpa %s5722, 1

</llo_original>
